<compile_context>
chip_gen: v5e
topology: v5e:2x2
jax: 0.10.0
libtpu: 0.0.40
codegen_flags: <defaults>
</compile_context>

<pallas_src>
import jax
import jax.numpy as jnp
import numpy as np
from jax import lax
from jax.experimental import pallas as pl
from jax.experimental.pallas import tpu as pltpu

# ------------------- scaled (but consistent) model dimensions -------------------
N_BATCH = 2
D_IN, H_IN, W_IN = 6, 64, 64           # frames, height, width
C_CONV, KSIZE = 4, 5                   # Conv3d(1, 4, kernel_size=5, stride=(1,2,2))
KVOL = KSIZE ** 3                      # 125 taps
DO, HO, WO = 2, 14, 14                 # conv output spatial dims
HP, WP = HO // 2, WO // 2              # 7, 7 after the second pool
PIX = DO * HP * WP                     # 98 positions per conv channel (per image)
FLAT = C_CONV * PIX                    # 392 flattened features
HID = 256                              # scaled analog of layer3.in_features (1152)
T_OUT, S_OUT = 24, 16                  # scaled analog of view(-1, 24, 64, 64)
OUT = T_OUT * S_OUT * S_OUT            # 6144


def _layer3_tiles():
    """2 layer-3 tiles (one per TensorCore) on v7x; 1 step on single-TC chips."""
    try:
        kind = jax.devices()[0].device_kind.lower()
    except Exception:
        return 1
    return 2 if "7" in kind else 1


N_TILES_L3 = _layer3_tiles()


# ------------------------------ Pallas kernels -----------------------------------
def pool1_kernel(x_ref, sel_ref, o_ref):
    """relu(maxpool2x2(x)) from a (rows, 128) view of the input.

    Each row holds two consecutive H rows (64 lanes each) of one (n, d) image.
    The 2x2 pool is four tiny MXU dots against precomputed 0/1 selectors
    (passed as an input — no in-kernel iota matrices), followed by a VPU max.
    The 1/1023 input scale is folded into the conv weights downstream."""
    x2 = x_ref[...]                                          # (rows, 128)
    r = None
    for k in range(sel_ref.shape[0]):                        # 4 pool taps
        t = jnp.dot(x2, sel_ref[k], preferred_element_type=jnp.float32)
        r = t if r is None else jnp.maximum(r, t)
    o_ref[...] = jnp.maximum(r, 0.0)                         # (rows, 32)


def fused_conv_fc_kernel(patches_ref, wc_ref, bc_ref, w2_ref, b2_ref,
                         w3_ref, b3_ref, o_ref, flat_ref):
    """One layer-3 output tile per grid step.

    conv-as-matmul (4 lane-dense dots, batch folded into the lane dim)
      -> MaxPool3d((1,2,2)) as an elementwise max over the 4 (h,w) parities
      -> relu -> flatten into a (N, 392) VMEM scratch (static slice stores)
      -> layer2 (bf16 weights, f32 accumulate) -> relu
      -> layer3 tile (bf16 weights, *1023 pre-folded) -> relu.

    patches_ref : (4, KVOL, N*PIX) f32  im2col patches, pre-split by parity
    wc_ref      : (C, KVOL)       f32   conv weight (already / 1023)
    bc_ref      : (C, 1)          f32   conv bias (broadcasts over positions)
    w2_ref      : (FLAT, HID)     bf16  layer2 weight, pre-transposed (in, out)
    b2_ref      : (1, HID)        f32
    w3_ref      : (HID, TILE)     bf16  layer3 weight tile (pre-transposed, *1023)
    b3_ref      : (1, TILE)       f32   (already *1023)
    o_ref       : (N, TILE)       f32
    flat_ref    : (N, FLAT)       f32   VMEM scratch
    """
    wc = wc_ref[...]
    bc = bc_ref[...]
    # Conv3d(1->C, k=5, stride=(1,2,2)) + bias for all 4 pool-2 parities,
    # fused MaxPool3d((1,2,2)) as an elementwise max, then relu.
    pooled = None
    for p in range(patches_ref.shape[0]):                    # 4 parities
        ct = jnp.dot(wc, patches_ref[p],
                     preferred_element_type=jnp.float32) + bc   # (C, N*PIX)
        pooled = ct if pooled is None else jnp.maximum(pooled, ct)
    pooled = jnp.maximum(pooled, 0.0)                        # (C, N*PIX)

    # Flatten order is (c, do, hp, wp) per image: assemble (N, FLAT) with
    # static slice stores into VMEM scratch (no in-kernel generic relayout).
    for n in range(flat_ref.shape[0]):
        for c in range(C_CONV):
            flat_ref[n:n + 1, c * PIX:(c + 1) * PIX] = \
                pooled[c:c + 1, n * PIX:(n + 1) * PIX]
    flat = flat_ref[...]                                     # (N, FLAT)

    # layer2: bf16 weights promoted to f32, single M=N dot, + relu.
    w2 = w2_ref[...].astype(jnp.float32)
    h = jnp.maximum(jnp.dot(flat, w2, preferred_element_type=jnp.float32)
                    + b2_ref[...], 0.0)                      # (N, HID)

    # layer3 tile: bf16 weights (scale 1023 pre-folded), + relu.
    w3 = w3_ref[...].astype(jnp.float32)
    y = jnp.dot(h, w3, preferred_element_type=jnp.float32) + b3_ref[...]
    o_ref[...] = jnp.maximum(y, 0.0)                         # (N, TILE)


# ------------------------------ kernel wrappers -----------------------------------
def pool1_relu(x2, sel):
    """x2: (rows, 128) f32 -> relu(maxpool2x2) : (rows, 32) f32."""
    rows, lanes = x2.shape
    w2 = sel.shape[-1]
    return pl.pallas_call(
        pool1_kernel,
        out_shape=jax.ShapeDtypeStruct((rows, w2), jnp.float32),
        grid=(1,),
        in_specs=[pl.BlockSpec((rows, lanes), lambda i: (0, 0)),
                  pl.BlockSpec(sel.shape, lambda i: (0, 0, 0))],
        out_specs=pl.BlockSpec((rows, w2), lambda i: (0, 0)),
        compiler_params=pltpu.CompilerParams(
            dimension_semantics=("arbitrary",)),
    )(x2, sel)


def conv_fc_fused(patches_par, wc_mat, bc_col, w2_bf, b2_row, w3_bf, b3_row):
    """Fused conv + pool2 + relu + layer2 + relu + layer3 + relu (scales folded)."""
    n_par, kvol, cols = patches_par.shape
    hid, out = w3_bf.shape
    n_tiles = N_TILES_L3
    tile = out // n_tiles
    return pl.pallas_call(
        fused_conv_fc_kernel,
        out_shape=jax.ShapeDtypeStruct((N_BATCH, out), jnp.float32),
        grid=(n_tiles,),
        in_specs=[
            pl.BlockSpec((n_par, kvol, cols), lambda j: (0, 0, 0)),
            pl.BlockSpec((C_CONV, kvol), lambda j: (0, 0)),
            pl.BlockSpec((C_CONV, 1), lambda j: (0, 0)),
            pl.BlockSpec((FLAT, hid), lambda j: (0, 0)),
            pl.BlockSpec((1, hid), lambda j: (0, 0)),
            pl.BlockSpec((hid, tile), lambda j: (0, j)),     # streamed per tile
            pl.BlockSpec((1, tile), lambda j: (0, j)),
        ],
        out_specs=pl.BlockSpec((N_BATCH, tile), lambda j: (0, j)),
        scratch_shapes=[pltpu.VMEM((N_BATCH, FLAT), jnp.float32)],
        compiler_params=pltpu.CompilerParams(
            dimension_semantics=("parallel",),               # v7x: one tile/core
            vmem_limit_bytes=32 * 1024 * 1024),
    )(patches_par, wc_mat, bc_col, w2_bf, b2_row, w3_bf, b3_row)


# ------------------------------ model forward -----------------------------------
@jax.jit
def model_forward(x, kp):
    N, D, Hin, Win = x.shape
    # (N, D, H, W) -> (N*D*H/2, 2W) is a *free* contiguous reshape: each row is a
    # pair of consecutive H rows, so the 2x2 pool needs only lane selection.
    x2 = x.reshape(N * D * (Hin // 2), 2 * Win)
    p1 = pool1_relu(x2, kp["sel_pool"])                      # (N*D*32, 32)
    p1 = p1.reshape(N, 1, D, Hin // 2, Win // 2)             # NCDHW (free)
    # im2col in ONE XLA op; channel order is (kd, kh, kw) row-major (C_in = 1).
    patches = lax.conv_general_dilated_patches(
        p1, filter_shape=(KSIZE, KSIZE, KSIZE), window_strides=(1, 2, 2),
        padding="VALID", dimension_numbers=("NCDHW", "OIDHW", "NCDHW"),
        precision=lax.Precision.HIGHEST)                     # (N, 125, DO, HO, WO)
    # Pre-split by output (h, w) parity and fold the batch into the lane dim so
    # the conv is 4 dots of (4,125)@(125, N*PIX) and pool2 is an elementwise max.
    pp = patches.reshape(N, KVOL, DO, HP, 2, WP, 2)
    patches_par = pp.transpose(4, 6, 1, 0, 2, 3, 5).reshape(4, KVOL, N * PIX)
    # All remaining layers run in a single fused Pallas kernel.
    y = conv_fc_fused(patches_par, kp["wc_mat"], kp["bc_col"],
                      kp["w2_bf"], kp["b2_row"], kp["w3_bf"], kp["b3_row"])
    return y.reshape(-1, T_OUT, S_OUT, S_OUT)


# ----------------------- deterministic parameter init ---------------------------
def init_params(key):
    ks = jax.random.split(key, 6)
    kc = 1.0 / np.sqrt(1 * KVOL)
    k2 = 1.0 / np.sqrt(FLAT)
    k3 = 1.0 / np.sqrt(HID)
    return dict(
        wc=jax.random.uniform(ks[0], (C_CONV, 1, KSIZE, KSIZE, KSIZE),
                              jnp.float32, -kc, kc),
        bc=jax.random.uniform(ks[1], (C_CONV,), jnp.float32, -kc, kc),
        # FC weights are stored PRE-TRANSPOSED ((in, out)).
        w2_t=jax.random.uniform(ks[2], (FLAT, HID), jnp.float32, -k2, k2),
        b2=jax.random.uniform(ks[3], (HID,), jnp.float32, -k2, k2),
        w3_t=jax.random.uniform(ks[4], (HID, OUT), jnp.float32, -k3, k3),
        b3=jax.random.uniform(ks[5], (OUT,), jnp.float32, -k3, k3),
    )


def _pool_selectors():
    """(4, 2W, W/2) 0/1 selectors: column w2 of tap (i, j) picks lane W*i+2*w2+j."""
    sel = np.zeros((4, 2 * W_IN, W_IN // 2), np.float32)
    for i in range(2):
        for j in range(2):
            k = 2 * i + j
            for w2 in range(W_IN // 2):
                sel[k, W_IN * i + 2 * w2 + j, w2] = 1.0
    return jnp.asarray(sel)


def prepare_params(params):
    """Kernel-ready parameters: scales folded in, FC weights stored in bf16."""
    return dict(
        sel_pool=_pool_selectors(),
        wc_mat=(params["wc"] / 1023.0).reshape(C_CONV, KVOL),   # fold 1/1023
        bc_col=params["bc"].reshape(C_CONV, 1),
        w2_bf=params["w2_t"].astype(jnp.bfloat16),
        b2_row=params["b2"].reshape(1, HID),
        w3_bf=(params["w3_t"] * 1023.0).astype(jnp.bfloat16),   # fold *1023
        b3_row=(params["b3"] * 1023.0).reshape(1, OUT),
    )


# ------------------------------ pure-JAX reference ------------------------------
@jax.jit
def reference_forward(x, params):
    xs = x[:, None, :, :, :] / 1023.0
    p1 = lax.reduce_window(xs, -jnp.inf, lax.max,
                           (1, 1, 1, 2, 2), (1, 1, 1, 2, 2), "VALID")
    p1 = jnp.maximum(p1, 0.0)
    conv = lax.conv_general_dilated(
        p1, params["wc"], window_strides=(1, 2, 2), padding="VALID",
        dimension_numbers=("NCDHW", "OIDHW", "NCDHW"),
        precision=lax.Precision.HIGHEST)
    conv = conv + params["bc"][None, :, None, None, None]
    p2 = lax.reduce_window(conv, -jnp.inf, lax.max,
                           (1, 1, 1, 2, 2), (1, 1, 1, 2, 2), "VALID")
    p2 = jnp.maximum(p2, 0.0)
    flat = p2.reshape(p2.shape[0], -1)
    h = jnp.maximum(jnp.dot(flat, params["w2_t"], precision=lax.Precision.HIGHEST)
                    + params["b2"], 0.0)
    y = jnp.maximum(jnp.dot(h, params["w3_t"], precision=lax.Precision.HIGHEST)
                    + params["b3"], 0.0) * 1023.0
    return y.reshape(-1, T_OUT, S_OUT, S_OUT)


# ------------------------------------ main ---------------------------------------
if __name__ == "__main__":
    key = jax.random.PRNGKey(0)
    kx, kp = jax.random.split(key)
    x = jax.random.uniform(kx, (N_BATCH, D_IN, H_IN, W_IN), jnp.float32, 0.0, 1023.0)
    params = init_params(kp)
    kparams = prepare_params(params)

    out = jax.block_until_ready(model_forward(x, kparams))
    ref = jax.block_until_ready(reference_forward(x, params))

    assert out.shape == (N_BATCH, T_OUT, S_OUT, S_OUT), out.shape
    # Outputs are scaled by 1023 (typical range ~0..500).  atol=6 / rtol=2e-2
    # absorbs bf16 weight storage plus MXU f32-via-bf16 accumulation differences
    # near the ReLU boundary.
    np.testing.assert_allclose(np.asarray(out), np.asarray(ref), rtol=2e-2, atol=6.0)
    print("KERNEL_OK")
</pallas_src>

<mosaic_0001>
module attributes {stable_mosaic.version = 11 : i64} {
  func.func @pool1_kernel(%arg0: i32, %arg1: memref<384x128xf32, #tpu.memory_space<vmem>>, %arg2: memref<4x128x32xf32, #tpu.memory_space<vmem>>, %arg3: memref<384x32xf32, #tpu.memory_space<vmem>>) attributes {dimension_semantics = [#tpu.dimension_semantics<arbitrary>], iteration_bounds = array<i64: 1>, scalar_prefetch = 0 : i64, scratch_operands = 0 : i64, tpu.core_type = #tpu.core_type<tc>, window_params = [{pipeline_mode = #tpu.pipeline_mode<synchronous>, transform_indices = @transform_0, window_bounds = array<i64: 384, 128>}, {pipeline_mode = #tpu.pipeline_mode<synchronous>, transform_indices = @transform_1, window_bounds = array<i64: 4, 128, 32>}, {pipeline_mode = #tpu.pipeline_mode<synchronous>, transform_indices = @transform_2, window_bounds = array<i64: 384, 32>}]} {
    %c0 = arith.constant 0 : index
    %c0_0 = arith.constant 0 : index
    %0 = vector.load %arg1[%c0, %c0_0] : memref<384x128xf32, #tpu.memory_space<vmem>>, vector<384x128xf32>
    %c0_1 = arith.constant 0 : index
    %c0_2 = arith.constant 0 : index
    %c0_3 = arith.constant 0 : index
    %1 = vector.load %arg2[%c0_1, %c0_2, %c0_3] : memref<4x128x32xf32, #tpu.memory_space<vmem>>, vector<1x128x32xf32>
    %2 = vector.shape_cast %1 : vector<1x128x32xf32> to vector<128x32xf32>
    %cst = arith.constant dense<0.000000e+00> : vector<384x32xf32>
    %3 = tpu.matmul %0, %2, %cst {dimension_numbers = #tpu.dot_dimension_numbers<[1], [0], [0], [1], [0, 0, 1, 1], [], []>} : vector<384x128xf32>, vector<128x32xf32>, vector<384x32xf32> -> vector<384x32xf32>
    %c1 = arith.constant 1 : index
    %c0_4 = arith.constant 0 : index
    %c0_5 = arith.constant 0 : index
    %4 = vector.load %arg2[%c1, %c0_4, %c0_5] : memref<4x128x32xf32, #tpu.memory_space<vmem>>, vector<1x128x32xf32>
    %5 = vector.shape_cast %4 : vector<1x128x32xf32> to vector<128x32xf32>
    %cst_6 = arith.constant dense<0.000000e+00> : vector<384x32xf32>
    %6 = tpu.matmul %0, %5, %cst_6 {dimension_numbers = #tpu.dot_dimension_numbers<[1], [0], [0], [1], [0, 0, 1, 1], [], []>} : vector<384x128xf32>, vector<128x32xf32>, vector<384x32xf32> -> vector<384x32xf32>
    %7 = arith.maximumf %3, %6 : vector<384x32xf32>
    %c2 = arith.constant 2 : index
    %c0_7 = arith.constant 0 : index
    %c0_8 = arith.constant 0 : index
    %8 = vector.load %arg2[%c2, %c0_7, %c0_8] : memref<4x128x32xf32, #tpu.memory_space<vmem>>, vector<1x128x32xf32>
    %9 = vector.shape_cast %8 : vector<1x128x32xf32> to vector<128x32xf32>
    %cst_9 = arith.constant dense<0.000000e+00> : vector<384x32xf32>
    %10 = tpu.matmul %0, %9, %cst_9 {dimension_numbers = #tpu.dot_dimension_numbers<[1], [0], [0], [1], [0, 0, 1, 1], [], []>} : vector<384x128xf32>, vector<128x32xf32>, vector<384x32xf32> -> vector<384x32xf32>
    %11 = arith.maximumf %7, %10 : vector<384x32xf32>
    %c3 = arith.constant 3 : index
    %c0_10 = arith.constant 0 : index
    %c0_11 = arith.constant 0 : index
    %12 = vector.load %arg2[%c3, %c0_10, %c0_11] : memref<4x128x32xf32, #tpu.memory_space<vmem>>, vector<1x128x32xf32>
    %13 = vector.shape_cast %12 : vector<1x128x32xf32> to vector<128x32xf32>
    %cst_12 = arith.constant dense<0.000000e+00> : vector<384x32xf32>
    %14 = tpu.matmul %0, %13, %cst_12 {dimension_numbers = #tpu.dot_dimension_numbers<[1], [0], [0], [1], [0, 0, 1, 1], [], []>} : vector<384x128xf32>, vector<128x32xf32>, vector<384x32xf32> -> vector<384x32xf32>
    %15 = arith.maximumf %11, %14 : vector<384x32xf32>
    %cst_13 = arith.constant 0.000000e+00 : f32
    %16 = vector.broadcast %cst_13 : f32 to vector<384x32xf32>
    %17 = arith.maximumf %15, %16 : vector<384x32xf32>
    %c0_14 = arith.constant 0 : index
    %c0_15 = arith.constant 0 : index
    %18 = vector.load %arg3[%c0_14, %c0_15] : memref<384x32xf32, #tpu.memory_space<vmem>>, vector<384x32xf32>
    tpu.vector_store %arg3[%c0_14, %c0_15], %17 {strides = array<i32>} : memref<384x32xf32, #tpu.memory_space<vmem>>, vector<384x32xf32>,
    return
  }
  func.func @transform_0(%arg0: i32) -> (i32, i32) {
    %c0_i32 = arith.constant 0 : i32
    %c0_i32_0 = arith.constant 0 : i32
    %c0_i32_1 = arith.constant 0 : i32
    return %c0_i32, %c0_i32_0 : i32, i32
  }
  func.func @transform_1(%arg0: i32) -> (i32, i32, i32) {
    %c0_i32 = arith.constant 0 : i32
    %c0_i32_0 = arith.constant 0 : i32
    %c0_i32_1 = arith.constant 0 : i32
    %c0_i32_2 = arith.constant 0 : i32
    return %c0_i32, %c0_i32_0, %c0_i32_1 : i32, i32, i32
  }
  func.func @transform_2(%arg0: i32) -> (i32, i32) {
    %c0_i32 = arith.constant 0 : i32
    %c0_i32_0 = arith.constant 0 : i32
    %c0_i32_1 = arith.constant 0 : i32
    return %c0_i32, %c0_i32_0 : i32, i32
  }
}

module attributes {stable_mosaic.version = 11 : i64} {
  func.func @fused_conv_fc_kernel(%arg0: i32, %arg1: memref<4x125x196xf32, #tpu.memory_space<vmem>>, %arg2: memref<4x125xf32, #tpu.memory_space<vmem>>, %arg3: memref<4x1xf32, #tpu.memory_space<vmem>>, %arg4: memref<392x256xbf16, #tpu.memory_space<vmem>>, %arg5: memref<1x256xf32, #tpu.memory_space<vmem>>, %arg6: memref<256x6144xbf16, #tpu.memory_space<vmem>>, %arg7: memref<1x6144xf32, #tpu.memory_space<vmem>>, %arg8: memref<2x6144xf32, #tpu.memory_space<vmem>>, %arg9: memref<2x392xf32, #tpu.memory_space<vmem>>) attributes {dimension_semantics = [#tpu.dimension_semantics<parallel>], iteration_bounds = array<i64: 1>, scalar_prefetch = 0 : i64, scratch_operands = 1 : i64, tpu.core_type = #tpu.core_type<tc>, window_params = [{pipeline_mode = #tpu.pipeline_mode<synchronous>, transform_indices = @transform_0, window_bounds = array<i64: 4, 125, 196>}, {pipeline_mode = #tpu.pipeline_mode<synchronous>, transform_indices = @transform_1, window_bounds = array<i64: 4, 125>}, {pipeline_mode = #tpu.pipeline_mode<synchronous>, transform_indices = @transform_2, window_bounds = array<i64: 4, 1>}, {pipeline_mode = #tpu.pipeline_mode<synchronous>, transform_indices = @transform_3, window_bounds = array<i64: 392, 256>}, {pipeline_mode = #tpu.pipeline_mode<synchronous>, transform_indices = @transform_4, window_bounds = array<i64: 1, 256>}, {transform_indices = @transform_5, window_bounds = array<i64: 256, 6144>}, {transform_indices = @transform_6, window_bounds = array<i64: 1, 6144>}, {transform_indices = @transform_7, window_bounds = array<i64: 2, 6144>}]} {
    %c0 = arith.constant 0 : index
    %c0_0 = arith.constant 0 : index
    %0 = vector.load %arg2[%c0, %c0_0] : memref<4x125xf32, #tpu.memory_space<vmem>>, vector<4x125xf32>
    %c0_1 = arith.constant 0 : index
    %c0_2 = arith.constant 0 : index
    %1 = vector.load %arg3[%c0_1, %c0_2] : memref<4x1xf32, #tpu.memory_space<vmem>>, vector<4x1xf32>
    %c0_3 = arith.constant 0 : index
    %c0_4 = arith.constant 0 : index
    %c0_5 = arith.constant 0 : index
    %2 = vector.load %arg1[%c0_3, %c0_4, %c0_5] : memref<4x125x196xf32, #tpu.memory_space<vmem>>, vector<1x125x196xf32>
    %3 = vector.shape_cast %2 : vector<1x125x196xf32> to vector<125x196xf32>
    %cst = arith.constant dense<0.000000e+00> : vector<4x196xf32>
    %4 = tpu.matmul %0, %3, %cst {dimension_numbers = #tpu.dot_dimension_numbers<[1], [0], [0], [1], [0, 0, 1, 1], [], []>} : vector<4x125xf32>, vector<125x196xf32>, vector<4x196xf32> -> vector<4x196xf32>
    %5 = vector.broadcast %1 : vector<4x1xf32> to vector<4x196xf32>
    %6 = arith.addf %4, %5 : vector<4x196xf32>
    %c1 = arith.constant 1 : index
    %c0_6 = arith.constant 0 : index
    %c0_7 = arith.constant 0 : index
    %7 = vector.load %arg1[%c1, %c0_6, %c0_7] : memref<4x125x196xf32, #tpu.memory_space<vmem>>, vector<1x125x196xf32>
    %8 = vector.shape_cast %7 : vector<1x125x196xf32> to vector<125x196xf32>
    %cst_8 = arith.constant dense<0.000000e+00> : vector<4x196xf32>
    %9 = tpu.matmul %0, %8, %cst_8 {dimension_numbers = #tpu.dot_dimension_numbers<[1], [0], [0], [1], [0, 0, 1, 1], [], []>} : vector<4x125xf32>, vector<125x196xf32>, vector<4x196xf32> -> vector<4x196xf32>
    %10 = vector.broadcast %1 : vector<4x1xf32> to vector<4x196xf32>
    %11 = arith.addf %9, %10 : vector<4x196xf32>
    %12 = arith.maximumf %6, %11 : vector<4x196xf32>
    %c2 = arith.constant 2 : index
    %c0_9 = arith.constant 0 : index
    %c0_10 = arith.constant 0 : index
    %13 = vector.load %arg1[%c2, %c0_9, %c0_10] : memref<4x125x196xf32, #tpu.memory_space<vmem>>, vector<1x125x196xf32>
    %14 = vector.shape_cast %13 : vector<1x125x196xf32> to vector<125x196xf32>
    %cst_11 = arith.constant dense<0.000000e+00> : vector<4x196xf32>
    %15 = tpu.matmul %0, %14, %cst_11 {dimension_numbers = #tpu.dot_dimension_numbers<[1], [0], [0], [1], [0, 0, 1, 1], [], []>} : vector<4x125xf32>, vector<125x196xf32>, vector<4x196xf32> -> vector<4x196xf32>
    %16 = vector.broadcast %1 : vector<4x1xf32> to vector<4x196xf32>
    %17 = arith.addf %15, %16 : vector<4x196xf32>
    %18 = arith.maximumf %12, %17 : vector<4x196xf32>
    %c3 = arith.constant 3 : index
    %c0_12 = arith.constant 0 : index
    %c0_13 = arith.constant 0 : index
    %19 = vector.load %arg1[%c3, %c0_12, %c0_13] : memref<4x125x196xf32, #tpu.memory_space<vmem>>, vector<1x125x196xf32>
    %20 = vector.shape_cast %19 : vector<1x125x196xf32> to vector<125x196xf32>
    %cst_14 = arith.constant dense<0.000000e+00> : vector<4x196xf32>
    %21 = tpu.matmul %0, %20, %cst_14 {dimension_numbers = #tpu.dot_dimension_numbers<[1], [0], [0], [1], [0, 0, 1, 1], [], []>} : vector<4x125xf32>, vector<125x196xf32>, vector<4x196xf32> -> vector<4x196xf32>
    %22 = vector.broadcast %1 : vector<4x1xf32> to vector<4x196xf32>
    %23 = arith.addf %21, %22 : vector<4x196xf32>
    %24 = arith.maximumf %18, %23 : vector<4x196xf32>
    %cst_15 = arith.constant 0.000000e+00 : f32
    %25 = vector.broadcast %cst_15 : f32 to vector<4x196xf32>
    %26 = arith.maximumf %24, %25 : vector<4x196xf32>
    %27 = vector.extract_strided_slice %26 {offsets = [0, 0], sizes = [1, 98], strides = [1, 1]} : vector<4x196xf32> to vector<1x98xf32>
    %c0_16 = arith.constant 0 : index
    %c0_17 = arith.constant 0 : index
    %28 = vector.load %arg9[%c0_16, %c0_17] : memref<2x392xf32, #tpu.memory_space<vmem>>, vector<1x98xf32>
    tpu.vector_store %arg9[%c0_16, %c0_17], %27 {strides = array<i32>} : memref<2x392xf32, #tpu.memory_space<vmem>>, vector<1x98xf32>,
    %29 = vector.extract_strided_slice %26 {offsets = [1, 0], sizes = [1, 98], strides = [1, 1]} : vector<4x196xf32> to vector<1x98xf32>
    %c0_18 = arith.constant 0 : index
    %c98 = arith.constant 98 : index
    %30 = vector.load %arg9[%c0_18, %c98] : memref<2x392xf32, #tpu.memory_space<vmem>>, vector<1x98xf32>
    tpu.vector_store %arg9[%c0_18, %c98], %29 {strides = array<i32>} : memref<2x392xf32, #tpu.memory_space<vmem>>, vector<1x98xf32>,
    %31 = vector.extract_strided_slice %26 {offsets = [2, 0], sizes = [1, 98], strides = [1, 1]} : vector<4x196xf32> to vector<1x98xf32>
    %c0_19 = arith.constant 0 : index
    %c196 = arith.constant 196 : index
    %32 = vector.load %arg9[%c0_19, %c196] : memref<2x392xf32, #tpu.memory_space<vmem>>, vector<1x98xf32>
    tpu.vector_store %arg9[%c0_19, %c196], %31 {strides = array<i32>} : memref<2x392xf32, #tpu.memory_space<vmem>>, vector<1x98xf32>,
    %33 = vector.extract_strided_slice %26 {offsets = [3, 0], sizes = [1, 98], strides = [1, 1]} : vector<4x196xf32> to vector<1x98xf32>
    %c0_20 = arith.constant 0 : index
    %c294 = arith.constant 294 : index
    %34 = vector.load %arg9[%c0_20, %c294] : memref<2x392xf32, #tpu.memory_space<vmem>>, vector<1x98xf32>
    tpu.vector_store %arg9[%c0_20, %c294], %33 {strides = array<i32>} : memref<2x392xf32, #tpu.memory_space<vmem>>, vector<1x98xf32>,
    %35 = vector.extract_strided_slice %26 {offsets = [0, 98], sizes = [1, 98], strides = [1, 1]} : vector<4x196xf32> to vector<1x98xf32>
    %c1_21 = arith.constant 1 : index
    %c0_22 = arith.constant 0 : index
    %36 = vector.load %arg9[%c1_21, %c0_22] : memref<2x392xf32, #tpu.memory_space<vmem>>, vector<1x98xf32>
    tpu.vector_store %arg9[%c1_21, %c0_22], %35 {strides = array<i32>} : memref<2x392xf32, #tpu.memory_space<vmem>>, vector<1x98xf32>,
    %37 = vector.extract_strided_slice %26 {offsets = [1, 98], sizes = [1, 98], strides = [1, 1]} : vector<4x196xf32> to vector<1x98xf32>
    %c1_23 = arith.constant 1 : index
    %c98_24 = arith.constant 98 : index
    %38 = vector.load %arg9[%c1_23, %c98_24] : memref<2x392xf32, #tpu.memory_space<vmem>>, vector<1x98xf32>
    tpu.vector_store %arg9[%c1_23, %c98_24], %37 {strides = array<i32>} : memref<2x392xf32, #tpu.memory_space<vmem>>, vector<1x98xf32>,
    %39 = vector.extract_strided_slice %26 {offsets = [2, 98], sizes = [1, 98], strides = [1, 1]} : vector<4x196xf32> to vector<1x98xf32>
    %c1_25 = arith.constant 1 : index
    %c196_26 = arith.constant 196 : index
    %40 = vector.load %arg9[%c1_25, %c196_26] : memref<2x392xf32, #tpu.memory_space<vmem>>, vector<1x98xf32>
    tpu.vector_store %arg9[%c1_25, %c196_26], %39 {strides = array<i32>} : memref<2x392xf32, #tpu.memory_space<vmem>>, vector<1x98xf32>,
    %41 = vector.extract_strided_slice %26 {offsets = [3, 98], sizes = [1, 98], strides = [1, 1]} : vector<4x196xf32> to vector<1x98xf32>
    %c1_27 = arith.constant 1 : index
    %c294_28 = arith.constant 294 : index
    %42 = vector.load %arg9[%c1_27, %c294_28] : memref<2x392xf32, #tpu.memory_space<vmem>>, vector<1x98xf32>
    tpu.vector_store %arg9[%c1_27, %c294_28], %41 {strides = array<i32>} : memref<2x392xf32, #tpu.memory_space<vmem>>, vector<1x98xf32>,
    %c0_29 = arith.constant 0 : index
    %c0_30 = arith.constant 0 : index
    %43 = vector.load %arg9[%c0_29, %c0_30] : memref<2x392xf32, #tpu.memory_space<vmem>>, vector<2x392xf32>
    %c0_31 = arith.constant 0 : index
    %c0_32 = arith.constant 0 : index
    %44 = vector.load %arg4[%c0_31, %c0_32] : memref<392x256xbf16, #tpu.memory_space<vmem>>, vector<392x256xbf16>
    %45 = arith.extf %44 : vector<392x256xbf16> to vector<392x256xf32>
    %cst_33 = arith.constant dense<0.000000e+00> : vector<2x256xf32>
    %46 = tpu.matmul %43, %45, %cst_33 {dimension_numbers = #tpu.dot_dimension_numbers<[1], [0], [0], [1], [0, 0, 1, 1], [], []>} : vector<2x392xf32>, vector<392x256xf32>, vector<2x256xf32> -> vector<2x256xf32>
    %c0_34 = arith.constant 0 : index
    %c0_35 = arith.constant 0 : index
    %47 = vector.load %arg5[%c0_34, %c0_35] : memref<1x256xf32, #tpu.memory_space<vmem>>, vector<1x256xf32>
    %48 = vector.broadcast %47 : vector<1x256xf32> to vector<2x256xf32>
    %49 = arith.addf %46, %48 : vector<2x256xf32>
    %cst_36 = arith.constant 0.000000e+00 : f32
    %50 = vector.broadcast %cst_36 : f32 to vector<2x256xf32>
    %51 = arith.maximumf %49, %50 : vector<2x256xf32>
    %c0_37 = arith.constant 0 : index
    %c0_38 = arith.constant 0 : index
    %52 = vector.load %arg6[%c0_37, %c0_38] : memref<256x6144xbf16, #tpu.memory_space<vmem>>, vector<256x6144xbf16>
    %53 = arith.extf %52 : vector<256x6144xbf16> to vector<256x6144xf32>
    %cst_39 = arith.constant dense<0.000000e+00> : vector<2x6144xf32>
    %54 = tpu.matmul %51, %53, %cst_39 {dimension_numbers = #tpu.dot_dimension_numbers<[1], [0], [0], [1], [0, 0, 1, 1], [], []>} : vector<2x256xf32>, vector<256x6144xf32>, vector<2x6144xf32> -> vector<2x6144xf32>
    %c0_40 = arith.constant 0 : index
    %c0_41 = arith.constant 0 : index
    %55 = vector.load %arg7[%c0_40, %c0_41] : memref<1x6144xf32, #tpu.memory_space<vmem>>, vector<1x6144xf32>
    %56 = vector.broadcast %55 : vector<1x6144xf32> to vector<2x6144xf32>
    %57 = arith.addf %54, %56 : vector<2x6144xf32>
    %cst_42 = arith.constant 0.000000e+00 : f32
    %58 = vector.broadcast %cst_42 : f32 to vector<2x6144xf32>
    %59 = arith.maximumf %57, %58 : vector<2x6144xf32>
    %c0_43 = arith.constant 0 : index
    %c0_44 = arith.constant 0 : index
    %60 = vector.load %arg8[%c0_43, %c0_44] : memref<2x6144xf32, #tpu.memory_space<vmem>>, vector<2x6144xf32>
    tpu.vector_store %arg8[%c0_43, %c0_44], %59 {strides = array<i32>} : memref<2x6144xf32, #tpu.memory_space<vmem>>, vector<2x6144xf32>,
    return
  }
  func.func @transform_0(%arg0: i32) -> (i32, i32, i32) {
    %c0_i32 = arith.constant 0 : i32
    %c0_i32_0 = arith.constant 0 : i32
    %c0_i32_1 = arith.constant 0 : i32
    %c0_i32_2 = arith.constant 0 : i32
    return %c0_i32, %c0_i32_0, %c0_i32_1 : i32, i32, i32
  }
  func.func @transform_1(%arg0: i32) -> (i32, i32) {
    %c0_i32 = arith.constant 0 : i32
    %c0_i32_0 = arith.constant 0 : i32
    %c0_i32_1 = arith.constant 0 : i32
    return %c0_i32, %c0_i32_0 : i32, i32
  }
  func.func @transform_2(%arg0: i32) -> (i32, i32) {
    %c0_i32 = arith.constant 0 : i32
    %c0_i32_0 = arith.constant 0 : i32
    %c0_i32_1 = arith.constant 0 : i32
    return %c0_i32, %c0_i32_0 : i32, i32
  }
  func.func @transform_3(%arg0: i32) -> (i32, i32) {
    %c0_i32 = arith.constant 0 : i32
    %c0_i32_0 = arith.constant 0 : i32
    %c0_i32_1 = arith.constant 0 : i32
    return %c0_i32, %c0_i32_0 : i32, i32
  }
  func.func @transform_4(%arg0: i32) -> (i32, i32) {
    %c0_i32 = arith.constant 0 : i32
    %c0_i32_0 = arith.constant 0 : i32
    %c0_i32_1 = arith.constant 0 : i32
    return %c0_i32, %c0_i32_0 : i32, i32
  }
  func.func @transform_5(%arg0: i32) -> (i32, i32) {
    %c0_i32 = arith.constant 0 : i32
    %c0_i32_0 = arith.constant 0 : i32
    return %c0_i32, %arg0 : i32, i32
  }
  func.func @transform_6(%arg0: i32) -> (i32, i32) {
    %c0_i32 = arith.constant 0 : i32
    %c0_i32_0 = arith.constant 0 : i32
    return %c0_i32, %arg0 : i32, i32
  }
  func.func @transform_7(%arg0: i32) -> (i32, i32) {
    %c0_i32 = arith.constant 0 : i32
    %c0_i32_0 = arith.constant 0 : i32
    return %c0_i32, %arg0 : i32, i32
  }
}

</mosaic_0001>

<llo_original>
// kernel: model_forward.2
$region0: #{model_forward.2}
  #allocation0 [shape = 'u32[]', space=smem, size = 0x4, offset = 0x4, fixed_abs, tag = 'smem constant byte address 0x4 - core index']
  #allocation1 [shape = 'u32[72,128]{1,0:T(1,128)}', space=vmem, size = 0x9000, scoped, tag = 'internal scratch']
  %s0 = inlined_call_operand.vmem [shape: f32[384,128], index: 0, kind: input, shape index: {}]
  %s1 = inlined_call_operand.vmem [shape: f32[4,128,32], index: 1, kind: input, shape index: {}]
  %s2 = inlined_call_operand.vmem [shape: f32[384,32], index: 2, kind: output, shape index: {}]
  %s3 = sld [smem:[#allocation0]]
  $region18: #{model_forward.2} parent=0
    _
  %s5 = ssub.s32 1, %s3
  %s6 = scalar_select 0, %s5, %s3
  // Predicated region
  $region2: #{model_forward.2} parent=0 // pred_check
    _
  $region3: #{model_forward.2} parent=0 // pred_check_branch
    %8 = sbr.rel (0) target = $region5
  $region4: #{model_forward.2} parent=0 // pred_region
    _
  $region5: #{model_forward.2} parent=0 // pred_fallthru
    _
  // Predicated region
  $region6: #{model_forward.2} parent=0 // pred_check
    _
  $region7: #{model_forward.2} parent=0 // pred_check_branch
    %10 = sbr.rel (0) target = $region9
  $region8: #{model_forward.2} parent=0 // pred_region
    _
  $region9: #{model_forward.2} parent=0 // pred_fallthru
    _
  %v11 = vld [vmem:[%s0] sm:$0xff]
  %v12 = vld [vmem:[%s0 + $0x8] sm:$0xff]
  %v13 = vld [vmem:[%s0 + $0x10] sm:$0xff]
  %v14 = vld [vmem:[%s0 + $0x18] sm:$0xff]
  %v15 = vld [vmem:[%s0 + $0x20] sm:$0xff]
  %v16 = vld [vmem:[%s0 + $0x28] sm:$0xff]
  %v17 = vld [vmem:[%s0 + $0x30] sm:$0xff]
  %v18 = vld [vmem:[%s0 + $0x38] sm:$0xff]
  %v19 = vld [vmem:[%s0 + $0x40] sm:$0xff]
  %v20 = vld [vmem:[%s0 + $0x48] sm:$0xff]
  %v21 = vld [vmem:[%s0 + $0x50] sm:$0xff]
  %v22 = vld [vmem:[%s0 + $0x58] sm:$0xff]
  %v23 = vld [vmem:[%s0 + $0x60] sm:$0xff]
  %v24 = vld [vmem:[%s0 + $0x68] sm:$0xff]
  %v25 = vld [vmem:[%s0 + $0x70] sm:$0xff]
  %v26 = vld [vmem:[%s0 + $0x78] sm:$0xff]
  %v27 = vld [vmem:[%s0 + $0x80] sm:$0xff]
  %v28 = vld [vmem:[%s0 + $0x88] sm:$0xff]
  %v29 = vld [vmem:[%s0 + $0x90] sm:$0xff]
  %v30 = vld [vmem:[%s0 + $0x98] sm:$0xff]
  %v31 = vld [vmem:[%s0 + $0xa0] sm:$0xff]
  %v32 = vld [vmem:[%s0 + $0xa8] sm:$0xff]
  %v33 = vld [vmem:[%s0 + $0xb0] sm:$0xff]
  %v34 = vld [vmem:[%s0 + $0xb8] sm:$0xff]
  %v35 = vld [vmem:[%s0 + $0xc0] sm:$0xff]
  %v36 = vld [vmem:[%s0 + $0xc8] sm:$0xff]
  %v37 = vld [vmem:[%s0 + $0xd0] sm:$0xff]
  %v38 = vld [vmem:[%s0 + $0xd8] sm:$0xff]
  %v39 = vld [vmem:[%s0 + $0xe0] sm:$0xff]
  %v40 = vld [vmem:[%s0 + $0xe8] sm:$0xff]
  %v41 = vld [vmem:[%s0 + $0xf0] sm:$0xff]
  %v42 = vld [vmem:[%s0 + $0xf8] sm:$0xff]
  %v43 = vld [vmem:[%s0 + $0x100] sm:$0xff]
  %v44 = vld [vmem:[%s0 + $0x108] sm:$0xff]
  %v45 = vld [vmem:[%s0 + $0x110] sm:$0xff]
  %v46 = vld [vmem:[%s0 + $0x118] sm:$0xff]
  %v47 = vld [vmem:[%s0 + $0x120] sm:$0xff]
  %v48 = vld [vmem:[%s0 + $0x128] sm:$0xff]
  %v49 = vld [vmem:[%s0 + $0x130] sm:$0xff]
  %v50 = vld [vmem:[%s0 + $0x138] sm:$0xff]
  %v51 = vld [vmem:[%s0 + $0x140] sm:$0xff]
  %v52 = vld [vmem:[%s0 + $0x148] sm:$0xff]
  %v53 = vld [vmem:[%s0 + $0x150] sm:$0xff]
  %v54 = vld [vmem:[%s0 + $0x158] sm:$0xff]
  %v55 = vld [vmem:[%s0 + $0x160] sm:$0xff]
  %v56 = vld [vmem:[%s0 + $0x168] sm:$0xff]
  %v57 = vld [vmem:[%s0 + $0x170] sm:$0xff]
  %v58 = vld [vmem:[%s0 + $0x178] sm:$0xff]
  %v59 = vld [vmem:[%s1] sm:$0xff]
  %v60 = vld [vmem:[%s1 + $0x8] sm:$0xff]
  %v61 = vld [vmem:[%s1 + $0x10] sm:$0xff]
  %v62 = vld [vmem:[%s1 + $0x18] sm:$0xff]
  %v63 = vld [vmem:[%s1 + $0x20] sm:$0xff]
  %v64 = vld [vmem:[%s1 + $0x28] sm:$0xff]
  %v65 = vld [vmem:[%s1 + $0x30] sm:$0xff]
  %v66 = vld [vmem:[%s1 + $0x38] sm:$0xff]
  %v67 = vld [vmem:[%s1 + $0x40] sm:$0xff]
  %v68 = vld [vmem:[%s1 + $0x48] sm:$0xff]
  %v69 = vld [vmem:[%s1 + $0x50] sm:$0xff]
  %v70 = vld [vmem:[%s1 + $0x58] sm:$0xff]
  %v71 = vld [vmem:[%s1 + $0x60] sm:$0xff]
  %v72 = vld [vmem:[%s1 + $0x68] sm:$0xff]
  %v73 = vld [vmem:[%s1 + $0x70] sm:$0xff]
  %v74 = vld [vmem:[%s1 + $0x78] sm:$0xff]
  %75 = vmatpush.msra.mxu0 %v74
  %76 = vmatpush.msra.mxu0 %v73
  %77 = vmatpush.msra.mxu0 %v72
  %78 = vmatpush.msra.mxu0 %v71
  %79 = vmatpush.msra.mxu0 %v70
  %80 = vmatpush.msra.mxu0 %v69
  %81 = vmatpush.msra.mxu0 %v68
  %82 = vmatpush.msra.mxu0 %v67
  %83 = vmatpush.msra.mxu0 %v66
  %84 = vmatpush.msra.mxu0 %v65
  %85 = vmatpush.msra.mxu0 %v64
  %86 = vmatpush.msra.mxu0 %v63
  %87 = vmatpush.msra.mxu0 %v62
  %88 = vmatpush.msra.mxu0 %v61
  %89 = vmatpush.msra.mxu0 %v60
  %90 = vmatpush.msra.mxu0 %v59
  %91 = vmatmul.f32.gmra.mxu0 %v11
  %v92 = vpop.f32.mrf.mxu0
  %v93 = vadd.f32 0.0, %v92
  %94 = vmatmul.f32.gmra.mxu0 %v12
  %v95 = vpop.f32.mrf.mxu0
  %v96 = vadd.f32 0.0, %v95
  %97 = vmatmul.f32.gmra.mxu0 %v13
  %v98 = vpop.f32.mrf.mxu0
  %v99 = vadd.f32 0.0, %v98
  %100 = vmatmul.f32.gmra.mxu0 %v14
  %v101 = vpop.f32.mrf.mxu0
  %v102 = vadd.f32 0.0, %v101
  %103 = vmatmul.f32.gmra.mxu0 %v15
  %v104 = vpop.f32.mrf.mxu0
  %v105 = vadd.f32 0.0, %v104
  %106 = vmatmul.f32.gmra.mxu0 %v16
  %v107 = vpop.f32.mrf.mxu0
  %v108 = vadd.f32 0.0, %v107
  %109 = vmatmul.f32.gmra.mxu0 %v17
  %v110 = vpop.f32.mrf.mxu0
  %v111 = vadd.f32 0.0, %v110
  %112 = vmatmul.f32.gmra.mxu0 %v18
  %v113 = vpop.f32.mrf.mxu0
  %v114 = vadd.f32 0.0, %v113
  %115 = vmatmul.f32.gmra.mxu0 %v19
  %v116 = vpop.f32.mrf.mxu0
  %v117 = vadd.f32 0.0, %v116
  %118 = vmatmul.f32.gmra.mxu0 %v20
  %v119 = vpop.f32.mrf.mxu0
  %v120 = vadd.f32 0.0, %v119
  %121 = vmatmul.f32.gmra.mxu0 %v21
  %v122 = vpop.f32.mrf.mxu0
  %v123 = vadd.f32 0.0, %v122
  %124 = vmatmul.f32.gmra.mxu0 %v22
  %v125 = vpop.f32.mrf.mxu0
  %v126 = vadd.f32 0.0, %v125
  %127 = vmatmul.f32.gmra.mxu0 %v23
  %v128 = vpop.f32.mrf.mxu0
  %v129 = vadd.f32 0.0, %v128
  %130 = vmatmul.f32.gmra.mxu0 %v24
  %v131 = vpop.f32.mrf.mxu0
  %v132 = vadd.f32 0.0, %v131
  %133 = vmatmul.f32.gmra.mxu0 %v25
  %v134 = vpop.f32.mrf.mxu0
  %v135 = vadd.f32 0.0, %v134
  %136 = vmatmul.f32.gmra.mxu0 %v26
  %v137 = vpop.f32.mrf.mxu0
  %v138 = vadd.f32 0.0, %v137
  %139 = vmatmul.f32.gmra.mxu0 %v27
  %v140 = vpop.f32.mrf.mxu0
  %v141 = vadd.f32 0.0, %v140
  %142 = vmatmul.f32.gmra.mxu0 %v28
  %v143 = vpop.f32.mrf.mxu0
  %v144 = vadd.f32 0.0, %v143
  %145 = vmatmul.f32.gmra.mxu0 %v29
  %v146 = vpop.f32.mrf.mxu0
  %v147 = vadd.f32 0.0, %v146
  %148 = vmatmul.f32.gmra.mxu0 %v30
  %v149 = vpop.f32.mrf.mxu0
  %v150 = vadd.f32 0.0, %v149
  %151 = vmatmul.f32.gmra.mxu0 %v31
  %v152 = vpop.f32.mrf.mxu0
  %v153 = vadd.f32 0.0, %v152
  %154 = vmatmul.f32.gmra.mxu0 %v32
  %v155 = vpop.f32.mrf.mxu0
  %v156 = vadd.f32 0.0, %v155
  %157 = vmatmul.f32.gmra.mxu0 %v33
  %v158 = vpop.f32.mrf.mxu0
  %v159 = vadd.f32 0.0, %v158
  %160 = vmatmul.f32.gmra.mxu0 %v34
  %v161 = vpop.f32.mrf.mxu0
  %v162 = vadd.f32 0.0, %v161
  %163 = vmatmul.f32.gmra.mxu0 %v35
  %v164 = vpop.f32.mrf.mxu0
  %v165 = vadd.f32 0.0, %v164
  %166 = vmatmul.f32.gmra.mxu0 %v36
  %v167 = vpop.f32.mrf.mxu0
  %v168 = vadd.f32 0.0, %v167
  %169 = vmatmul.f32.gmra.mxu0 %v37
  %v170 = vpop.f32.mrf.mxu0
  %v171 = vadd.f32 0.0, %v170
  %172 = vmatmul.f32.gmra.mxu0 %v38
  %v173 = vpop.f32.mrf.mxu0
  %v174 = vadd.f32 0.0, %v173
  %175 = vmatmul.f32.gmra.mxu0 %v39
  %v176 = vpop.f32.mrf.mxu0
  %v177 = vadd.f32 0.0, %v176
  %178 = vmatmul.f32.gmra.mxu0 %v40
  %v179 = vpop.f32.mrf.mxu0
  %v180 = vadd.f32 0.0, %v179
  %181 = vmatmul.f32.gmra.mxu0 %v41
  %v182 = vpop.f32.mrf.mxu0
  %v183 = vadd.f32 0.0, %v182
  %184 = vmatmul.f32.gmra.mxu0 %v42
  %v185 = vpop.f32.mrf.mxu0
  %v186 = vadd.f32 0.0, %v185
  %187 = vmatmul.f32.gmra.mxu0 %v43
  %v188 = vpop.f32.mrf.mxu0
  %v189 = vadd.f32 0.0, %v188
  %190 = vmatmul.f32.gmra.mxu0 %v44
  %v191 = vpop.f32.mrf.mxu0
  %v192 = vadd.f32 0.0, %v191
  %193 = vmatmul.f32.gmra.mxu0 %v45
  %v194 = vpop.f32.mrf.mxu0
  %v195 = vadd.f32 0.0, %v194
  %196 = vmatmul.f32.gmra.mxu0 %v46
  %v197 = vpop.f32.mrf.mxu0
  %v198 = vadd.f32 0.0, %v197
  %199 = vmatmul.f32.gmra.mxu0 %v47
  %v200 = vpop.f32.mrf.mxu0
  %v201 = vadd.f32 0.0, %v200
  %202 = vmatmul.f32.gmra.mxu0 %v48
  %v203 = vpop.f32.mrf.mxu0
  %v204 = vadd.f32 0.0, %v203
  %205 = vmatmul.f32.gmra.mxu0 %v49
  %v206 = vpop.f32.mrf.mxu0
  %v207 = vadd.f32 0.0, %v206
  %208 = vmatmul.f32.gmra.mxu0 %v50
  %v209 = vpop.f32.mrf.mxu0
  %v210 = vadd.f32 0.0, %v209
  %211 = vmatmul.f32.gmra.mxu0 %v51
  %v212 = vpop.f32.mrf.mxu0
  %v213 = vadd.f32 0.0, %v212
  %214 = vmatmul.f32.gmra.mxu0 %v52
  %v215 = vpop.f32.mrf.mxu0
  %v216 = vadd.f32 0.0, %v215
  %217 = vmatmul.f32.gmra.mxu0 %v53
  %v218 = vpop.f32.mrf.mxu0
  %v219 = vadd.f32 0.0, %v218
  %220 = vmatmul.f32.gmra.mxu0 %v54
  %v221 = vpop.f32.mrf.mxu0
  %v222 = vadd.f32 0.0, %v221
  %223 = vmatmul.f32.gmra.mxu0 %v55
  %v224 = vpop.f32.mrf.mxu0
  %v225 = vadd.f32 0.0, %v224
  %226 = vmatmul.f32.gmra.mxu0 %v56
  %v227 = vpop.f32.mrf.mxu0
  %v228 = vadd.f32 0.0, %v227
  %229 = vmatmul.f32.gmra.mxu0 %v57
  %v230 = vpop.f32.mrf.mxu0
  %v231 = vadd.f32 0.0, %v230
  %232 = vmatmul.f32.gmra.mxu0 %v58
  %v233 = vpop.f32.mrf.mxu0
  %v234 = vadd.f32 0.0, %v233
  %235 = vdwg.mxu0
  %s236 = scalar_lea.vmem %s1, 128
  %v237 = vld [vmem:[%s236] sm:$0xff]
  %v238 = vld [vmem:[%s236 + $0x8] sm:$0xff]
  %v239 = vld [vmem:[%s236 + $0x10] sm:$0xff]
  %v240 = vld [vmem:[%s236 + $0x18] sm:$0xff]
  %v241 = vld [vmem:[%s236 + $0x20] sm:$0xff]
  %v242 = vld [vmem:[%s236 + $0x28] sm:$0xff]
  %v243 = vld [vmem:[%s236 + $0x30] sm:$0xff]
  %v244 = vld [vmem:[%s236 + $0x38] sm:$0xff]
  %v245 = vld [vmem:[%s236 + $0x40] sm:$0xff]
  %v246 = vld [vmem:[%s236 + $0x48] sm:$0xff]
  %v247 = vld [vmem:[%s236 + $0x50] sm:$0xff]
  %v248 = vld [vmem:[%s236 + $0x58] sm:$0xff]
  %v249 = vld [vmem:[%s236 + $0x60] sm:$0xff]
  %v250 = vld [vmem:[%s236 + $0x68] sm:$0xff]
  %v251 = vld [vmem:[%s236 + $0x70] sm:$0xff]
  %v252 = vld [vmem:[%s236 + $0x78] sm:$0xff]
  %253 = vmatpush.msra.mxu0 %v252
  %254 = vmatpush.msra.mxu0 %v251
  %255 = vmatpush.msra.mxu0 %v250
  %256 = vmatpush.msra.mxu0 %v249
  %257 = vmatpush.msra.mxu0 %v248
  %258 = vmatpush.msra.mxu0 %v247
  %259 = vmatpush.msra.mxu0 %v246
  %260 = vmatpush.msra.mxu0 %v245
  %261 = vmatpush.msra.mxu0 %v244
  %262 = vmatpush.msra.mxu0 %v243
  %263 = vmatpush.msra.mxu0 %v242
  %264 = vmatpush.msra.mxu0 %v241
  %265 = vmatpush.msra.mxu0 %v240
  %266 = vmatpush.msra.mxu0 %v239
  %267 = vmatpush.msra.mxu0 %v238
  %268 = vmatpush.msra.mxu0 %v237
  %269 = vmatmul.f32.gmra.mxu0 %v11
  %v270 = vpop.f32.mrf.mxu0
  %v271 = vadd.f32 0.0, %v270
  %272 = vmatmul.f32.gmra.mxu0 %v12
  %v273 = vpop.f32.mrf.mxu0
  %v274 = vadd.f32 0.0, %v273
  %275 = vmatmul.f32.gmra.mxu0 %v13
  %v276 = vpop.f32.mrf.mxu0
  %v277 = vadd.f32 0.0, %v276
  %278 = vmatmul.f32.gmra.mxu0 %v14
  %v279 = vpop.f32.mrf.mxu0
  %v280 = vadd.f32 0.0, %v279
  %281 = vmatmul.f32.gmra.mxu0 %v15
  %v282 = vpop.f32.mrf.mxu0
  %v283 = vadd.f32 0.0, %v282
  %284 = vmatmul.f32.gmra.mxu0 %v16
  %v285 = vpop.f32.mrf.mxu0
  %v286 = vadd.f32 0.0, %v285
  %287 = vmatmul.f32.gmra.mxu0 %v17
  %v288 = vpop.f32.mrf.mxu0
  %v289 = vadd.f32 0.0, %v288
  %290 = vmatmul.f32.gmra.mxu0 %v18
  %v291 = vpop.f32.mrf.mxu0
  %v292 = vadd.f32 0.0, %v291
  %293 = vmatmul.f32.gmra.mxu0 %v19
  %v294 = vpop.f32.mrf.mxu0
  %v295 = vadd.f32 0.0, %v294
  %296 = vmatmul.f32.gmra.mxu0 %v20
  %v297 = vpop.f32.mrf.mxu0
  %v298 = vadd.f32 0.0, %v297
  %299 = vmatmul.f32.gmra.mxu0 %v21
  %v300 = vpop.f32.mrf.mxu0
  %v301 = vadd.f32 0.0, %v300
  %302 = vmatmul.f32.gmra.mxu0 %v22
  %v303 = vpop.f32.mrf.mxu0
  %v304 = vadd.f32 0.0, %v303
  %305 = vmatmul.f32.gmra.mxu0 %v23
  %v306 = vpop.f32.mrf.mxu0
  %v307 = vadd.f32 0.0, %v306
  %308 = vmatmul.f32.gmra.mxu0 %v24
  %v309 = vpop.f32.mrf.mxu0
  %v310 = vadd.f32 0.0, %v309
  %311 = vmatmul.f32.gmra.mxu0 %v25
  %v312 = vpop.f32.mrf.mxu0
  %v313 = vadd.f32 0.0, %v312
  %314 = vmatmul.f32.gmra.mxu0 %v26
  %v315 = vpop.f32.mrf.mxu0
  %v316 = vadd.f32 0.0, %v315
  %317 = vmatmul.f32.gmra.mxu0 %v27
  %v318 = vpop.f32.mrf.mxu0
  %v319 = vadd.f32 0.0, %v318
  %320 = vmatmul.f32.gmra.mxu0 %v28
  %v321 = vpop.f32.mrf.mxu0
  %v322 = vadd.f32 0.0, %v321
  %323 = vmatmul.f32.gmra.mxu0 %v29
  %v324 = vpop.f32.mrf.mxu0
  %v325 = vadd.f32 0.0, %v324
  %326 = vmatmul.f32.gmra.mxu0 %v30
  %v327 = vpop.f32.mrf.mxu0
  %v328 = vadd.f32 0.0, %v327
  %329 = vmatmul.f32.gmra.mxu0 %v31
  %v330 = vpop.f32.mrf.mxu0
  %v331 = vadd.f32 0.0, %v330
  %332 = vmatmul.f32.gmra.mxu0 %v32
  %v333 = vpop.f32.mrf.mxu0
  %v334 = vadd.f32 0.0, %v333
  %335 = vmatmul.f32.gmra.mxu0 %v33
  %v336 = vpop.f32.mrf.mxu0
  %v337 = vadd.f32 0.0, %v336
  %338 = vmatmul.f32.gmra.mxu0 %v34
  %v339 = vpop.f32.mrf.mxu0
  %v340 = vadd.f32 0.0, %v339
  %341 = vmatmul.f32.gmra.mxu0 %v35
  %v342 = vpop.f32.mrf.mxu0
  %v343 = vadd.f32 0.0, %v342
  %344 = vmatmul.f32.gmra.mxu0 %v36
  %v345 = vpop.f32.mrf.mxu0
  %v346 = vadd.f32 0.0, %v345
  %347 = vmatmul.f32.gmra.mxu0 %v37
  %v348 = vpop.f32.mrf.mxu0
  %v349 = vadd.f32 0.0, %v348
  %350 = vmatmul.f32.gmra.mxu0 %v38
  %v351 = vpop.f32.mrf.mxu0
  %v352 = vadd.f32 0.0, %v351
  %353 = vmatmul.f32.gmra.mxu0 %v39
  %v354 = vpop.f32.mrf.mxu0
  %v355 = vadd.f32 0.0, %v354
  %356 = vmatmul.f32.gmra.mxu0 %v40
  %v357 = vpop.f32.mrf.mxu0
  %v358 = vadd.f32 0.0, %v357
  %359 = vmatmul.f32.gmra.mxu0 %v41
  %v360 = vpop.f32.mrf.mxu0
  %v361 = vadd.f32 0.0, %v360
  %362 = vmatmul.f32.gmra.mxu0 %v42
  %v363 = vpop.f32.mrf.mxu0
  %v364 = vadd.f32 0.0, %v363
  %365 = vmatmul.f32.gmra.mxu0 %v43
  %v366 = vpop.f32.mrf.mxu0
  %v367 = vadd.f32 0.0, %v366
  %368 = vmatmul.f32.gmra.mxu0 %v44
  %v369 = vpop.f32.mrf.mxu0
  %v370 = vadd.f32 0.0, %v369
  %371 = vmatmul.f32.gmra.mxu0 %v45
  %v372 = vpop.f32.mrf.mxu0
  %v373 = vadd.f32 0.0, %v372
  %374 = vmatmul.f32.gmra.mxu0 %v46
  %v375 = vpop.f32.mrf.mxu0
  %v376 = vadd.f32 0.0, %v375
  %377 = vmatmul.f32.gmra.mxu0 %v47
  %v378 = vpop.f32.mrf.mxu0
  %v379 = vadd.f32 0.0, %v378
  %380 = vmatmul.f32.gmra.mxu0 %v48
  %v381 = vpop.f32.mrf.mxu0
  %v382 = vadd.f32 0.0, %v381
  %383 = vmatmul.f32.gmra.mxu0 %v49
  %v384 = vpop.f32.mrf.mxu0
  %v385 = vadd.f32 0.0, %v384
  %386 = vmatmul.f32.gmra.mxu0 %v50
  %v387 = vpop.f32.mrf.mxu0
  %v388 = vadd.f32 0.0, %v387
  %389 = vmatmul.f32.gmra.mxu0 %v51
  %v390 = vpop.f32.mrf.mxu0
  %v391 = vadd.f32 0.0, %v390
  %392 = vmatmul.f32.gmra.mxu0 %v52
  %v393 = vpop.f32.mrf.mxu0
  %v394 = vadd.f32 0.0, %v393
  %395 = vmatmul.f32.gmra.mxu0 %v53
  %v396 = vpop.f32.mrf.mxu0
  %v397 = vadd.f32 0.0, %v396
  %398 = vmatmul.f32.gmra.mxu0 %v54
  %v399 = vpop.f32.mrf.mxu0
  %v400 = vadd.f32 0.0, %v399
  %401 = vmatmul.f32.gmra.mxu0 %v55
  %v402 = vpop.f32.mrf.mxu0
  %v403 = vadd.f32 0.0, %v402
  %404 = vmatmul.f32.gmra.mxu0 %v56
  %v405 = vpop.f32.mrf.mxu0
  %v406 = vadd.f32 0.0, %v405
  %407 = vmatmul.f32.gmra.mxu0 %v57
  %v408 = vpop.f32.mrf.mxu0
  %v409 = vadd.f32 0.0, %v408
  %410 = vmatmul.f32.gmra.mxu0 %v58
  %v411 = vpop.f32.mrf.mxu0
  %v412 = vadd.f32 0.0, %v411
  %413 = vdwg.mxu0
  %v414 = vmax.f32 %v93, %v271
  %v415 = vmax.f32 %v96, %v274
  %v416 = vmax.f32 %v99, %v277
  %v417 = vmax.f32 %v102, %v280
  %v418 = vmax.f32 %v105, %v283
  %v419 = vmax.f32 %v108, %v286
  %v420 = vmax.f32 %v111, %v289
  %v421 = vmax.f32 %v114, %v292
  %v422 = vmax.f32 %v117, %v295
  %v423 = vmax.f32 %v120, %v298
  %v424 = vmax.f32 %v123, %v301
  %v425 = vmax.f32 %v126, %v304
  %v426 = vmax.f32 %v129, %v307
  %v427 = vmax.f32 %v132, %v310
  %v428 = vmax.f32 %v135, %v313
  %v429 = vmax.f32 %v138, %v316
  %v430 = vmax.f32 %v141, %v319
  %v431 = vmax.f32 %v144, %v322
  %v432 = vmax.f32 %v147, %v325
  %v433 = vmax.f32 %v150, %v328
  %v434 = vmax.f32 %v153, %v331
  %v435 = vmax.f32 %v156, %v334
  %v436 = vmax.f32 %v159, %v337
  %v437 = vmax.f32 %v162, %v340
  %v438 = vmax.f32 %v165, %v343
  %v439 = vmax.f32 %v168, %v346
  %v440 = vmax.f32 %v171, %v349
  %v441 = vmax.f32 %v174, %v352
  %v442 = vmax.f32 %v177, %v355
  %v443 = vmax.f32 %v180, %v358
  %v444 = vmax.f32 %v183, %v361
  %v445 = vmax.f32 %v186, %v364
  %v446 = vmax.f32 %v189, %v367
  %v447 = vmax.f32 %v192, %v370
  %v448 = vmax.f32 %v195, %v373
  %v449 = vmax.f32 %v198, %v376
  %v450 = vmax.f32 %v201, %v379
  %v451 = vmax.f32 %v204, %v382
  %v452 = vmax.f32 %v207, %v385
  %v453 = vmax.f32 %v210, %v388
  %v454 = vmax.f32 %v213, %v391
  %v455 = vmax.f32 %v216, %v394
  %v456 = vmax.f32 %v219, %v397
  %v457 = vmax.f32 %v222, %v400
  %v458 = vmax.f32 %v225, %v403
  %v459 = vmax.f32 %v228, %v406
  %v460 = vmax.f32 %v231, %v409
  %v461 = vmax.f32 %v234, %v412
  %s462 = scalar_lea.vmem %s1, 256
  %v463 = vld [vmem:[%s462] sm:$0xff]
  %v464 = vld [vmem:[%s462 + $0x8] sm:$0xff]
  %v465 = vld [vmem:[%s462 + $0x10] sm:$0xff]
  %v466 = vld [vmem:[%s462 + $0x18] sm:$0xff]
  %v467 = vld [vmem:[%s462 + $0x20] sm:$0xff]
  %v468 = vld [vmem:[%s462 + $0x28] sm:$0xff]
  %v469 = vld [vmem:[%s462 + $0x30] sm:$0xff]
  %v470 = vld [vmem:[%s462 + $0x38] sm:$0xff]
  %v471 = vld [vmem:[%s462 + $0x40] sm:$0xff]
  %v472 = vld [vmem:[%s462 + $0x48] sm:$0xff]
  %v473 = vld [vmem:[%s462 + $0x50] sm:$0xff]
  %v474 = vld [vmem:[%s462 + $0x58] sm:$0xff]
  %v475 = vld [vmem:[%s462 + $0x60] sm:$0xff]
  %v476 = vld [vmem:[%s462 + $0x68] sm:$0xff]
  %v477 = vld [vmem:[%s462 + $0x70] sm:$0xff]
  %v478 = vld [vmem:[%s462 + $0x78] sm:$0xff]
  %479 = vmatpush.msra.mxu0 %v478
  %480 = vmatpush.msra.mxu0 %v477
  %481 = vmatpush.msra.mxu0 %v476
  %482 = vmatpush.msra.mxu0 %v475
  %483 = vmatpush.msra.mxu0 %v474
  %484 = vmatpush.msra.mxu0 %v473
  %485 = vmatpush.msra.mxu0 %v472
  %486 = vmatpush.msra.mxu0 %v471
  %487 = vmatpush.msra.mxu0 %v470
  %488 = vmatpush.msra.mxu0 %v469
  %489 = vmatpush.msra.mxu0 %v468
  %490 = vmatpush.msra.mxu0 %v467
  %491 = vmatpush.msra.mxu0 %v466
  %492 = vmatpush.msra.mxu0 %v465
  %493 = vmatpush.msra.mxu0 %v464
  %494 = vmatpush.msra.mxu0 %v463
  %495 = vmatmul.f32.gmra.mxu0 %v11
  %v496 = vpop.f32.mrf.mxu0
  %v497 = vadd.f32 0.0, %v496
  %498 = vmatmul.f32.gmra.mxu0 %v12
  %v499 = vpop.f32.mrf.mxu0
  %v500 = vadd.f32 0.0, %v499
  %501 = vmatmul.f32.gmra.mxu0 %v13
  %v502 = vpop.f32.mrf.mxu0
  %v503 = vadd.f32 0.0, %v502
  %504 = vmatmul.f32.gmra.mxu0 %v14
  %v505 = vpop.f32.mrf.mxu0
  %v506 = vadd.f32 0.0, %v505
  %507 = vmatmul.f32.gmra.mxu0 %v15
  %v508 = vpop.f32.mrf.mxu0
  %v509 = vadd.f32 0.0, %v508
  %510 = vmatmul.f32.gmra.mxu0 %v16
  %v511 = vpop.f32.mrf.mxu0
  %v512 = vadd.f32 0.0, %v511
  %513 = vmatmul.f32.gmra.mxu0 %v17
  %v514 = vpop.f32.mrf.mxu0
  %v515 = vadd.f32 0.0, %v514
  %516 = vmatmul.f32.gmra.mxu0 %v18
  %v517 = vpop.f32.mrf.mxu0
  %v518 = vadd.f32 0.0, %v517
  %519 = vmatmul.f32.gmra.mxu0 %v19
  %v520 = vpop.f32.mrf.mxu0
  %v521 = vadd.f32 0.0, %v520
  %522 = vmatmul.f32.gmra.mxu0 %v20
  %v523 = vpop.f32.mrf.mxu0
  %v524 = vadd.f32 0.0, %v523
  %525 = vmatmul.f32.gmra.mxu0 %v21
  %v526 = vpop.f32.mrf.mxu0
  %v527 = vadd.f32 0.0, %v526
  %528 = vmatmul.f32.gmra.mxu0 %v22
  %v529 = vpop.f32.mrf.mxu0
  %v530 = vadd.f32 0.0, %v529
  %531 = vmatmul.f32.gmra.mxu0 %v23
  %v532 = vpop.f32.mrf.mxu0
  %v533 = vadd.f32 0.0, %v532
  %534 = vmatmul.f32.gmra.mxu0 %v24
  %v535 = vpop.f32.mrf.mxu0
  %v536 = vadd.f32 0.0, %v535
  %537 = vmatmul.f32.gmra.mxu0 %v25
  %v538 = vpop.f32.mrf.mxu0
  %v539 = vadd.f32 0.0, %v538
  %540 = vmatmul.f32.gmra.mxu0 %v26
  %v541 = vpop.f32.mrf.mxu0
  %v542 = vadd.f32 0.0, %v541
  %543 = vmatmul.f32.gmra.mxu0 %v27
  %v544 = vpop.f32.mrf.mxu0
  %v545 = vadd.f32 0.0, %v544
  %546 = vmatmul.f32.gmra.mxu0 %v28
  %v547 = vpop.f32.mrf.mxu0
  %v548 = vadd.f32 0.0, %v547
  %549 = vmatmul.f32.gmra.mxu0 %v29
  %v550 = vpop.f32.mrf.mxu0
  %v551 = vadd.f32 0.0, %v550
  %552 = vmatmul.f32.gmra.mxu0 %v30
  %v553 = vpop.f32.mrf.mxu0
  %v554 = vadd.f32 0.0, %v553
  %555 = vmatmul.f32.gmra.mxu0 %v31
  %v556 = vpop.f32.mrf.mxu0
  %v557 = vadd.f32 0.0, %v556
  %558 = vmatmul.f32.gmra.mxu0 %v32
  %v559 = vpop.f32.mrf.mxu0
  %v560 = vadd.f32 0.0, %v559
  %561 = vmatmul.f32.gmra.mxu0 %v33
  %v562 = vpop.f32.mrf.mxu0
  %v563 = vadd.f32 0.0, %v562
  %564 = vmatmul.f32.gmra.mxu0 %v34
  %v565 = vpop.f32.mrf.mxu0
  %v566 = vadd.f32 0.0, %v565
  %567 = vmatmul.f32.gmra.mxu0 %v35
  %v568 = vpop.f32.mrf.mxu0
  %v569 = vadd.f32 0.0, %v568
  %570 = vmatmul.f32.gmra.mxu0 %v36
  %v571 = vpop.f32.mrf.mxu0
  %v572 = vadd.f32 0.0, %v571
  %573 = vmatmul.f32.gmra.mxu0 %v37
  %v574 = vpop.f32.mrf.mxu0
  %v575 = vadd.f32 0.0, %v574
  %576 = vmatmul.f32.gmra.mxu0 %v38
  %v577 = vpop.f32.mrf.mxu0
  %v578 = vadd.f32 0.0, %v577
  %579 = vmatmul.f32.gmra.mxu0 %v39
  %v580 = vpop.f32.mrf.mxu0
  %v581 = vadd.f32 0.0, %v580
  %582 = vmatmul.f32.gmra.mxu0 %v40
  %v583 = vpop.f32.mrf.mxu0
  %v584 = vadd.f32 0.0, %v583
  %585 = vmatmul.f32.gmra.mxu0 %v41
  %v586 = vpop.f32.mrf.mxu0
  %v587 = vadd.f32 0.0, %v586
  %588 = vmatmul.f32.gmra.mxu0 %v42
  %v589 = vpop.f32.mrf.mxu0
  %v590 = vadd.f32 0.0, %v589
  %591 = vmatmul.f32.gmra.mxu0 %v43
  %v592 = vpop.f32.mrf.mxu0
  %v593 = vadd.f32 0.0, %v592
  %594 = vmatmul.f32.gmra.mxu0 %v44
  %v595 = vpop.f32.mrf.mxu0
  %v596 = vadd.f32 0.0, %v595
  %597 = vmatmul.f32.gmra.mxu0 %v45
  %v598 = vpop.f32.mrf.mxu0
  %v599 = vadd.f32 0.0, %v598
  %600 = vmatmul.f32.gmra.mxu0 %v46
  %v601 = vpop.f32.mrf.mxu0
  %v602 = vadd.f32 0.0, %v601
  %603 = vmatmul.f32.gmra.mxu0 %v47
  %v604 = vpop.f32.mrf.mxu0
  %v605 = vadd.f32 0.0, %v604
  %606 = vmatmul.f32.gmra.mxu0 %v48
  %v607 = vpop.f32.mrf.mxu0
  %v608 = vadd.f32 0.0, %v607
  %609 = vmatmul.f32.gmra.mxu0 %v49
  %v610 = vpop.f32.mrf.mxu0
  %v611 = vadd.f32 0.0, %v610
  %612 = vmatmul.f32.gmra.mxu0 %v50
  %v613 = vpop.f32.mrf.mxu0
  %v614 = vadd.f32 0.0, %v613
  %615 = vmatmul.f32.gmra.mxu0 %v51
  %v616 = vpop.f32.mrf.mxu0
  %v617 = vadd.f32 0.0, %v616
  %618 = vmatmul.f32.gmra.mxu0 %v52
  %v619 = vpop.f32.mrf.mxu0
  %v620 = vadd.f32 0.0, %v619
  %621 = vmatmul.f32.gmra.mxu0 %v53
  %v622 = vpop.f32.mrf.mxu0
  %v623 = vadd.f32 0.0, %v622
  %624 = vmatmul.f32.gmra.mxu0 %v54
  %v625 = vpop.f32.mrf.mxu0
  %v626 = vadd.f32 0.0, %v625
  %627 = vmatmul.f32.gmra.mxu0 %v55
  %v628 = vpop.f32.mrf.mxu0
  %v629 = vadd.f32 0.0, %v628
  %630 = vmatmul.f32.gmra.mxu0 %v56
  %v631 = vpop.f32.mrf.mxu0
  %v632 = vadd.f32 0.0, %v631
  %633 = vmatmul.f32.gmra.mxu0 %v57
  %v634 = vpop.f32.mrf.mxu0
  %v635 = vadd.f32 0.0, %v634
  %636 = vmatmul.f32.gmra.mxu0 %v58
  %v637 = vpop.f32.mrf.mxu0
  %v638 = vadd.f32 0.0, %v637
  %639 = vdwg.mxu0
  %v640 = vmax.f32 %v414, %v497
  %v641 = vmax.f32 %v415, %v500
  %v642 = vmax.f32 %v416, %v503
  %v643 = vmax.f32 %v417, %v506
  %v644 = vmax.f32 %v418, %v509
  %v645 = vmax.f32 %v419, %v512
  %v646 = vmax.f32 %v420, %v515
  %v647 = vmax.f32 %v421, %v518
  %v648 = vmax.f32 %v422, %v521
  %v649 = vmax.f32 %v423, %v524
  %v650 = vmax.f32 %v424, %v527
  %v651 = vmax.f32 %v425, %v530
  %v652 = vmax.f32 %v426, %v533
  %v653 = vmax.f32 %v427, %v536
  %v654 = vmax.f32 %v428, %v539
  %v655 = vmax.f32 %v429, %v542
  %v656 = vmax.f32 %v430, %v545
  %v657 = vmax.f32 %v431, %v548
  %v658 = vmax.f32 %v432, %v551
  %v659 = vmax.f32 %v433, %v554
  %v660 = vmax.f32 %v434, %v557
  %v661 = vmax.f32 %v435, %v560
  %v662 = vmax.f32 %v436, %v563
  %v663 = vmax.f32 %v437, %v566
  %v664 = vmax.f32 %v438, %v569
  %v665 = vmax.f32 %v439, %v572
  %v666 = vmax.f32 %v440, %v575
  %v667 = vmax.f32 %v441, %v578
  %v668 = vmax.f32 %v442, %v581
  %v669 = vmax.f32 %v443, %v584
  %v670 = vmax.f32 %v444, %v587
  %v671 = vmax.f32 %v445, %v590
  %v672 = vmax.f32 %v446, %v593
  %v673 = vmax.f32 %v447, %v596
  %v674 = vmax.f32 %v448, %v599
  %v675 = vmax.f32 %v449, %v602
  %v676 = vmax.f32 %v450, %v605
  %v677 = vmax.f32 %v451, %v608
  %v678 = vmax.f32 %v452, %v611
  %v679 = vmax.f32 %v453, %v614
  %v680 = vmax.f32 %v454, %v617
  %v681 = vmax.f32 %v455, %v620
  %v682 = vmax.f32 %v456, %v623
  %v683 = vmax.f32 %v457, %v626
  %v684 = vmax.f32 %v458, %v629
  %v685 = vmax.f32 %v459, %v632
  %v686 = vmax.f32 %v460, %v635
  %v687 = vmax.f32 %v461, %v638
  %s688 = scalar_lea.vmem %s1, 384
  %v689 = vld [vmem:[%s688] sm:$0xff]
  %v690 = vld [vmem:[%s688 + $0x8] sm:$0xff]
  %v691 = vld [vmem:[%s688 + $0x10] sm:$0xff]
  %v692 = vld [vmem:[%s688 + $0x18] sm:$0xff]
  %v693 = vld [vmem:[%s688 + $0x20] sm:$0xff]
  %v694 = vld [vmem:[%s688 + $0x28] sm:$0xff]
  %v695 = vld [vmem:[%s688 + $0x30] sm:$0xff]
  %v696 = vld [vmem:[%s688 + $0x38] sm:$0xff]
  %v697 = vld [vmem:[%s688 + $0x40] sm:$0xff]
  %v698 = vld [vmem:[%s688 + $0x48] sm:$0xff]
  %v699 = vld [vmem:[%s688 + $0x50] sm:$0xff]
  %v700 = vld [vmem:[%s688 + $0x58] sm:$0xff]
  %v701 = vld [vmem:[%s688 + $0x60] sm:$0xff]
  %v702 = vld [vmem:[%s688 + $0x68] sm:$0xff]
  %v703 = vld [vmem:[%s688 + $0x70] sm:$0xff]
  %v704 = vld [vmem:[%s688 + $0x78] sm:$0xff]
  %705 = vmatpush.msra.mxu0 %v704
  %706 = vmatpush.msra.mxu0 %v703
  %707 = vmatpush.msra.mxu0 %v702
  %708 = vmatpush.msra.mxu0 %v701
  %709 = vmatpush.msra.mxu0 %v700
  %710 = vmatpush.msra.mxu0 %v699
  %711 = vmatpush.msra.mxu0 %v698
  %712 = vmatpush.msra.mxu0 %v697
  %713 = vmatpush.msra.mxu0 %v696
  %714 = vmatpush.msra.mxu0 %v695
  %715 = vmatpush.msra.mxu0 %v694
  %716 = vmatpush.msra.mxu0 %v693
  %717 = vmatpush.msra.mxu0 %v692
  %718 = vmatpush.msra.mxu0 %v691
  %719 = vmatpush.msra.mxu0 %v690
  %720 = vmatpush.msra.mxu0 %v689
  %721 = vmatmul.f32.gmra.mxu0 %v11
  %v722 = vpop.f32.mrf.mxu0
  %v723 = vadd.f32 0.0, %v722
  %724 = vmatmul.f32.gmra.mxu0 %v12
  %v725 = vpop.f32.mrf.mxu0
  %v726 = vadd.f32 0.0, %v725
  %727 = vmatmul.f32.gmra.mxu0 %v13
  %v728 = vpop.f32.mrf.mxu0
  %v729 = vadd.f32 0.0, %v728
  %730 = vmatmul.f32.gmra.mxu0 %v14
  %v731 = vpop.f32.mrf.mxu0
  %v732 = vadd.f32 0.0, %v731
  %733 = vmatmul.f32.gmra.mxu0 %v15
  %v734 = vpop.f32.mrf.mxu0
  %v735 = vadd.f32 0.0, %v734
  %736 = vmatmul.f32.gmra.mxu0 %v16
  %v737 = vpop.f32.mrf.mxu0
  %v738 = vadd.f32 0.0, %v737
  %739 = vmatmul.f32.gmra.mxu0 %v17
  %v740 = vpop.f32.mrf.mxu0
  %v741 = vadd.f32 0.0, %v740
  %742 = vmatmul.f32.gmra.mxu0 %v18
  %v743 = vpop.f32.mrf.mxu0
  %v744 = vadd.f32 0.0, %v743
  %745 = vmatmul.f32.gmra.mxu0 %v19
  %v746 = vpop.f32.mrf.mxu0
  %v747 = vadd.f32 0.0, %v746
  %748 = vmatmul.f32.gmra.mxu0 %v20
  %v749 = vpop.f32.mrf.mxu0
  %v750 = vadd.f32 0.0, %v749
  %751 = vmatmul.f32.gmra.mxu0 %v21
  %v752 = vpop.f32.mrf.mxu0
  %v753 = vadd.f32 0.0, %v752
  %754 = vmatmul.f32.gmra.mxu0 %v22
  %v755 = vpop.f32.mrf.mxu0
  %v756 = vadd.f32 0.0, %v755
  %757 = vmatmul.f32.gmra.mxu0 %v23
  %v758 = vpop.f32.mrf.mxu0
  %v759 = vadd.f32 0.0, %v758
  %760 = vmatmul.f32.gmra.mxu0 %v24
  %v761 = vpop.f32.mrf.mxu0
  %v762 = vadd.f32 0.0, %v761
  %763 = vmatmul.f32.gmra.mxu0 %v25
  %v764 = vpop.f32.mrf.mxu0
  %v765 = vadd.f32 0.0, %v764
  %766 = vmatmul.f32.gmra.mxu0 %v26
  %v767 = vpop.f32.mrf.mxu0
  %v768 = vadd.f32 0.0, %v767
  %769 = vmatmul.f32.gmra.mxu0 %v27
  %v770 = vpop.f32.mrf.mxu0
  %v771 = vadd.f32 0.0, %v770
  %772 = vmatmul.f32.gmra.mxu0 %v28
  %v773 = vpop.f32.mrf.mxu0
  %v774 = vadd.f32 0.0, %v773
  %775 = vmatmul.f32.gmra.mxu0 %v29
  %v776 = vpop.f32.mrf.mxu0
  %v777 = vadd.f32 0.0, %v776
  %778 = vmatmul.f32.gmra.mxu0 %v30
  %v779 = vpop.f32.mrf.mxu0
  %v780 = vadd.f32 0.0, %v779
  %781 = vmatmul.f32.gmra.mxu0 %v31
  %v782 = vpop.f32.mrf.mxu0
  %v783 = vadd.f32 0.0, %v782
  %784 = vmatmul.f32.gmra.mxu0 %v32
  %v785 = vpop.f32.mrf.mxu0
  %v786 = vadd.f32 0.0, %v785
  %787 = vmatmul.f32.gmra.mxu0 %v33
  %v788 = vpop.f32.mrf.mxu0
  %v789 = vadd.f32 0.0, %v788
  %790 = vmatmul.f32.gmra.mxu0 %v34
  %v791 = vpop.f32.mrf.mxu0
  %v792 = vadd.f32 0.0, %v791
  %793 = vmatmul.f32.gmra.mxu0 %v35
  %v794 = vpop.f32.mrf.mxu0
  %v795 = vadd.f32 0.0, %v794
  %796 = vmatmul.f32.gmra.mxu0 %v36
  %v797 = vpop.f32.mrf.mxu0
  %v798 = vadd.f32 0.0, %v797
  %799 = vmatmul.f32.gmra.mxu0 %v37
  %v800 = vpop.f32.mrf.mxu0
  %v801 = vadd.f32 0.0, %v800
  %802 = vmatmul.f32.gmra.mxu0 %v38
  %v803 = vpop.f32.mrf.mxu0
  %v804 = vadd.f32 0.0, %v803
  %805 = vmatmul.f32.gmra.mxu0 %v39
  %v806 = vpop.f32.mrf.mxu0
  %v807 = vadd.f32 0.0, %v806
  %808 = vmatmul.f32.gmra.mxu0 %v40
  %v809 = vpop.f32.mrf.mxu0
  %v810 = vadd.f32 0.0, %v809
  %811 = vmatmul.f32.gmra.mxu0 %v41
  %v812 = vpop.f32.mrf.mxu0
  %v813 = vadd.f32 0.0, %v812
  %814 = vmatmul.f32.gmra.mxu0 %v42
  %v815 = vpop.f32.mrf.mxu0
  %v816 = vadd.f32 0.0, %v815
  %817 = vmatmul.f32.gmra.mxu0 %v43
  %v818 = vpop.f32.mrf.mxu0
  %v819 = vadd.f32 0.0, %v818
  %820 = vmatmul.f32.gmra.mxu0 %v44
  %v821 = vpop.f32.mrf.mxu0
  %v822 = vadd.f32 0.0, %v821
  %823 = vmatmul.f32.gmra.mxu0 %v45
  %v824 = vpop.f32.mrf.mxu0
  %v825 = vadd.f32 0.0, %v824
  %826 = vmatmul.f32.gmra.mxu0 %v46
  %v827 = vpop.f32.mrf.mxu0
  %v828 = vadd.f32 0.0, %v827
  %829 = vmatmul.f32.gmra.mxu0 %v47
  %v830 = vpop.f32.mrf.mxu0
  %v831 = vadd.f32 0.0, %v830
  %832 = vmatmul.f32.gmra.mxu0 %v48
  %v833 = vpop.f32.mrf.mxu0
  %v834 = vadd.f32 0.0, %v833
  %835 = vmatmul.f32.gmra.mxu0 %v49
  %v836 = vpop.f32.mrf.mxu0
  %v837 = vadd.f32 0.0, %v836
  %838 = vmatmul.f32.gmra.mxu0 %v50
  %v839 = vpop.f32.mrf.mxu0
  %v840 = vadd.f32 0.0, %v839
  %841 = vmatmul.f32.gmra.mxu0 %v51
  %v842 = vpop.f32.mrf.mxu0
  %v843 = vadd.f32 0.0, %v842
  %844 = vmatmul.f32.gmra.mxu0 %v52
  %v845 = vpop.f32.mrf.mxu0
  %v846 = vadd.f32 0.0, %v845
  %847 = vmatmul.f32.gmra.mxu0 %v53
  %v848 = vpop.f32.mrf.mxu0
  %v849 = vadd.f32 0.0, %v848
  %850 = vmatmul.f32.gmra.mxu0 %v54
  %v851 = vpop.f32.mrf.mxu0
  %v852 = vadd.f32 0.0, %v851
  %853 = vmatmul.f32.gmra.mxu0 %v55
  %v854 = vpop.f32.mrf.mxu0
  %v855 = vadd.f32 0.0, %v854
  %856 = vmatmul.f32.gmra.mxu0 %v56
  %v857 = vpop.f32.mrf.mxu0
  %v858 = vadd.f32 0.0, %v857
  %859 = vmatmul.f32.gmra.mxu0 %v57
  %v860 = vpop.f32.mrf.mxu0
  %v861 = vadd.f32 0.0, %v860
  %862 = vmatmul.f32.gmra.mxu0 %v58
  %v863 = vpop.f32.mrf.mxu0
  %v864 = vadd.f32 0.0, %v863
  %865 = vdwg.mxu0
  %v866 = vmax.f32 %v640, %v723
  %v867 = vmax.f32 %v641, %v726
  %v868 = vmax.f32 %v642, %v729
  %v869 = vmax.f32 %v643, %v732
  %v870 = vmax.f32 %v644, %v735
  %v871 = vmax.f32 %v645, %v738
  %v872 = vmax.f32 %v646, %v741
  %v873 = vmax.f32 %v647, %v744
  %v874 = vmax.f32 %v648, %v747
  %v875 = vmax.f32 %v649, %v750
  %v876 = vmax.f32 %v650, %v753
  %v877 = vmax.f32 %v651, %v756
  %v878 = vmax.f32 %v652, %v759
  %v879 = vmax.f32 %v653, %v762
  %v880 = vmax.f32 %v654, %v765
  %v881 = vmax.f32 %v655, %v768
  %v882 = vmax.f32 %v656, %v771
  %v883 = vmax.f32 %v657, %v774
  %v884 = vmax.f32 %v658, %v777
  %v885 = vmax.f32 %v659, %v780
  %v886 = vmax.f32 %v660, %v783
  %v887 = vmax.f32 %v661, %v786
  %v888 = vmax.f32 %v662, %v789
  %v889 = vmax.f32 %v663, %v792
  %v890 = vmax.f32 %v664, %v795
  %v891 = vmax.f32 %v665, %v798
  %v892 = vmax.f32 %v666, %v801
  %v893 = vmax.f32 %v667, %v804
  %v894 = vmax.f32 %v668, %v807
  %v895 = vmax.f32 %v669, %v810
  %v896 = vmax.f32 %v670, %v813
  %v897 = vmax.f32 %v671, %v816
  %v898 = vmax.f32 %v672, %v819
  %v899 = vmax.f32 %v673, %v822
  %v900 = vmax.f32 %v674, %v825
  %v901 = vmax.f32 %v675, %v828
  %v902 = vmax.f32 %v676, %v831
  %v903 = vmax.f32 %v677, %v834
  %v904 = vmax.f32 %v678, %v837
  %v905 = vmax.f32 %v679, %v840
  %v906 = vmax.f32 %v680, %v843
  %v907 = vmax.f32 %v681, %v846
  %v908 = vmax.f32 %v682, %v849
  %v909 = vmax.f32 %v683, %v852
  %v910 = vmax.f32 %v684, %v855
  %v911 = vmax.f32 %v685, %v858
  %v912 = vmax.f32 %v686, %v861
  %v913 = vmax.f32 %v687, %v864
  %v914 = vmax.f32 %v866, 0.0
  %v915 = vmax.f32 %v867, 0.0
  %v916 = vmax.f32 %v868, 0.0
  %v917 = vmax.f32 %v869, 0.0
  %v918 = vmax.f32 %v870, 0.0
  %v919 = vmax.f32 %v871, 0.0
  %v920 = vmax.f32 %v872, 0.0
  %v921 = vmax.f32 %v873, 0.0
  %v922 = vmax.f32 %v874, 0.0
  %v923 = vmax.f32 %v875, 0.0
  %v924 = vmax.f32 %v876, 0.0
  %v925 = vmax.f32 %v877, 0.0
  %v926 = vmax.f32 %v878, 0.0
  %v927 = vmax.f32 %v879, 0.0
  %v928 = vmax.f32 %v880, 0.0
  %v929 = vmax.f32 %v881, 0.0
  %v930 = vmax.f32 %v882, 0.0
  %v931 = vmax.f32 %v883, 0.0
  %v932 = vmax.f32 %v884, 0.0
  %v933 = vmax.f32 %v885, 0.0
  %v934 = vmax.f32 %v886, 0.0
  %v935 = vmax.f32 %v887, 0.0
  %v936 = vmax.f32 %v888, 0.0
  %v937 = vmax.f32 %v889, 0.0
  %v938 = vmax.f32 %v890, 0.0
  %v939 = vmax.f32 %v891, 0.0
  %v940 = vmax.f32 %v892, 0.0
  %v941 = vmax.f32 %v893, 0.0
  %v942 = vmax.f32 %v894, 0.0
  %v943 = vmax.f32 %v895, 0.0
  %v944 = vmax.f32 %v896, 0.0
  %v945 = vmax.f32 %v897, 0.0
  %v946 = vmax.f32 %v898, 0.0
  %v947 = vmax.f32 %v899, 0.0
  %v948 = vmax.f32 %v900, 0.0
  %v949 = vmax.f32 %v901, 0.0
  %v950 = vmax.f32 %v902, 0.0
  %v951 = vmax.f32 %v903, 0.0
  %v952 = vmax.f32 %v904, 0.0
  %v953 = vmax.f32 %v905, 0.0
  %v954 = vmax.f32 %v906, 0.0
  %v955 = vmax.f32 %v907, 0.0
  %v956 = vmax.f32 %v908, 0.0
  %v957 = vmax.f32 %v909, 0.0
  %v958 = vmax.f32 %v910, 0.0
  %v959 = vmax.f32 %v911, 0.0
  %v960 = vmax.f32 %v912, 0.0
  %v961 = vmax.f32 %v913, 0.0
  %vm962 = vcmask 261120
  %963 = vst.msk [vmem:[%s2] sm:$0xff] %vm962, %v914
  %964 = vst.msk [vmem:[%s2 + $0x8] sm:$0xff] %vm962, %v915
  %965 = vst.msk [vmem:[%s2 + $0x10] sm:$0xff] %vm962, %v916
  %966 = vst.msk [vmem:[%s2 + $0x18] sm:$0xff] %vm962, %v917
  %967 = vst.msk [vmem:[%s2 + $0x20] sm:$0xff] %vm962, %v918
  %968 = vst.msk [vmem:[%s2 + $0x28] sm:$0xff] %vm962, %v919
  %969 = vst.msk [vmem:[%s2 + $0x30] sm:$0xff] %vm962, %v920
  %970 = vst.msk [vmem:[%s2 + $0x38] sm:$0xff] %vm962, %v921
  %971 = vst.msk [vmem:[%s2 + $0x40] sm:$0xff] %vm962, %v922
  %972 = vst.msk [vmem:[%s2 + $0x48] sm:$0xff] %vm962, %v923
  %973 = vst.msk [vmem:[%s2 + $0x50] sm:$0xff] %vm962, %v924
  %974 = vst.msk [vmem:[%s2 + $0x58] sm:$0xff] %vm962, %v925
  %975 = vst.msk [vmem:[%s2 + $0x60] sm:$0xff] %vm962, %v926
  %976 = vst.msk [vmem:[%s2 + $0x68] sm:$0xff] %vm962, %v927
  %977 = vst.msk [vmem:[%s2 + $0x70] sm:$0xff] %vm962, %v928
  %978 = vst.msk [vmem:[%s2 + $0x78] sm:$0xff] %vm962, %v929
  %979 = vst.msk [vmem:[%s2 + $0x80] sm:$0xff] %vm962, %v930
  %980 = vst.msk [vmem:[%s2 + $0x88] sm:$0xff] %vm962, %v931
  %981 = vst.msk [vmem:[%s2 + $0x90] sm:$0xff] %vm962, %v932
  %982 = vst.msk [vmem:[%s2 + $0x98] sm:$0xff] %vm962, %v933
  %983 = vst.msk [vmem:[%s2 + $0xa0] sm:$0xff] %vm962, %v934
  %984 = vst.msk [vmem:[%s2 + $0xa8] sm:$0xff] %vm962, %v935
  %985 = vst.msk [vmem:[%s2 + $0xb0] sm:$0xff] %vm962, %v936
  %986 = vst.msk [vmem:[%s2 + $0xb8] sm:$0xff] %vm962, %v937
  %987 = vst.msk [vmem:[%s2 + $0xc0] sm:$0xff] %vm962, %v938
  %988 = vst.msk [vmem:[%s2 + $0xc8] sm:$0xff] %vm962, %v939
  %989 = vst.msk [vmem:[%s2 + $0xd0] sm:$0xff] %vm962, %v940
  %990 = vst.msk [vmem:[%s2 + $0xd8] sm:$0xff] %vm962, %v941
  %991 = vst.msk [vmem:[%s2 + $0xe0] sm:$0xff] %vm962, %v942
  %992 = vst.msk [vmem:[%s2 + $0xe8] sm:$0xff] %vm962, %v943
  %993 = vst.msk [vmem:[%s2 + $0xf0] sm:$0xff] %vm962, %v944
  %994 = vst.msk [vmem:[%s2 + $0xf8] sm:$0xff] %vm962, %v945
  %995 = vst.msk [vmem:[%s2 + $0x100] sm:$0xff] %vm962, %v946
  %996 = vst.msk [vmem:[%s2 + $0x108] sm:$0xff] %vm962, %v947
  %997 = vst.msk [vmem:[%s2 + $0x110] sm:$0xff] %vm962, %v948
  %998 = vst.msk [vmem:[%s2 + $0x118] sm:$0xff] %vm962, %v949
  %999 = vst.msk [vmem:[%s2 + $0x120] sm:$0xff] %vm962, %v950
  %1000 = vst.msk [vmem:[%s2 + $0x128] sm:$0xff] %vm962, %v951
  %1001 = vst.msk [vmem:[%s2 + $0x130] sm:$0xff] %vm962, %v952
  %1002 = vst.msk [vmem:[%s2 + $0x138] sm:$0xff] %vm962, %v953
  %1003 = vst.msk [vmem:[%s2 + $0x140] sm:$0xff] %vm962, %v954
  %1004 = vst.msk [vmem:[%s2 + $0x148] sm:$0xff] %vm962, %v955
  %1005 = vst.msk [vmem:[%s2 + $0x150] sm:$0xff] %vm962, %v956
  %1006 = vst.msk [vmem:[%s2 + $0x158] sm:$0xff] %vm962, %v957
  %1007 = vst.msk [vmem:[%s2 + $0x160] sm:$0xff] %vm962, %v958
  %1008 = vst.msk [vmem:[%s2 + $0x168] sm:$0xff] %vm962, %v959
  %1009 = vst.msk [vmem:[%s2 + $0x170] sm:$0xff] %vm962, %v960
  %1010 = vst.msk [vmem:[%s2 + $0x178] sm:$0xff] %vm962, %v961
  // Predicated region
  $region10: #{model_forward.2} parent=0 // pred_check
    _
  $region11: #{model_forward.2} parent=0 // pred_check_branch
    %1012 = sbr.rel (0) target = $region13
  $region12: #{model_forward.2} parent=0 // pred_region
    _
  $region13: #{model_forward.2} parent=0 // pred_fallthru
    _
  // Predicated region
  $region14: #{model_forward.2} parent=0 // pred_check
    _
  $region15: #{model_forward.2} parent=0 // pred_check_branch
    %1014 = sbr.rel (0) target = $region17
  $region16: #{model_forward.2} parent=0 // pred_region
    _
  $region17: #{model_forward.2} parent=0 // pred_fallthru
    _

// kernel: model_forward.3
$region0: #{model_forward.3}
  #allocation0 [shape = 'u32[]', space=smem, size = 0x4, offset = 0x4, fixed_abs, tag = 'smem constant byte address 0x4 - core index']
  #allocation1 [shape = 'u32[72,128]{1,0:T(1,128)}', space=vmem, size = 0x9000, scoped, tag = 'internal scratch']
  #allocation2 [shape = 'f32[2,392]{1,0:T(2,128)}', space=vmem, size = 0x1000, scoped, tag = 'scratch operand']
  %s0 = inlined_call_operand.vmem [shape: f32[4,125,196], index: 0, kind: input, shape index: {}]
  %s1 = inlined_call_operand.vmem [shape: f32[4,125], index: 1, kind: input, shape index: {}]
  %s2 = inlined_call_operand.vmem [shape: f32[4,1], index: 2, kind: input, shape index: {}]
  %s3 = inlined_call_operand.vmem [shape: bf16[392,256], index: 3, kind: input, shape index: {}]
  %s4 = inlined_call_operand.vmem [shape: f32[1,256], index: 4, kind: input, shape index: {}]
  %s5 = inlined_call_operand.vmem [shape: bf16[256,6144], index: 5, kind: input, shape index: {}]
  %s6 = inlined_call_operand.vmem [shape: f32[1,6144], index: 6, kind: input, shape index: {}]
  %s7 = inlined_call_operand.vmem [shape: f32[2,6144], index: 7, kind: output, shape index: {}]
  %s8 = sld [smem:[#allocation0]]
  $region38: #{model_forward.3} parent=0
    _
  %s10 = ssub.s32 1, %s8
  %s11 = scalar_select 0, %s10, %s8
  // Predicated region
  $region2: #{model_forward.3} parent=0 // pred_check
    _
  $region3: #{model_forward.3} parent=0 // pred_check_branch
    %13 = sbr.rel (0) target = $region5
  $region4: #{model_forward.3} parent=0 // pred_region
    _
  $region5: #{model_forward.3} parent=0 // pred_fallthru
    _
  // Predicated region
  $region6: #{model_forward.3} parent=0 // pred_check
    _
  $region7: #{model_forward.3} parent=0 // pred_check_branch
    %15 = sbr.rel (0) target = $region9
  $region8: #{model_forward.3} parent=0 // pred_region
    _
  $region9: #{model_forward.3} parent=0 // pred_fallthru
    _
  // Predicated region
  $region10: #{model_forward.3} parent=0 // pred_check
    _
  $region11: #{model_forward.3} parent=0 // pred_check_branch
    %17 = sbr.rel (0) target = $region13
  $region12: #{model_forward.3} parent=0 // pred_region
    _
  $region13: #{model_forward.3} parent=0 // pred_fallthru
    _
  // Predicated region
  $region14: #{model_forward.3} parent=0 // pred_check
    _
  $region15: #{model_forward.3} parent=0 // pred_check_branch
    %19 = sbr.rel (0) target = $region17
  $region16: #{model_forward.3} parent=0 // pred_region
    _
  $region17: #{model_forward.3} parent=0 // pred_fallthru
    _
  // Predicated region
  $region18: #{model_forward.3} parent=0 // pred_check
    _
  $region19: #{model_forward.3} parent=0 // pred_check_branch
    %21 = sbr.rel (0) target = $region21
  $region20: #{model_forward.3} parent=0 // pred_region
    _
  $region21: #{model_forward.3} parent=0 // pred_fallthru
    _
  // Predicated region
  $region22: #{model_forward.3} parent=0 // pred_check
    _
  $region23: #{model_forward.3} parent=0 // pred_check_branch
    %23 = sbr.rel (0) target = $region25
  $region24: #{model_forward.3} parent=0 // pred_region
    _
  $region25: #{model_forward.3} parent=0 // pred_fallthru
    _
  // Predicated region
  $region26: #{model_forward.3} parent=0 // pred_check
    _
  $region27: #{model_forward.3} parent=0 // pred_check_branch
    %25 = sbr.rel (0) target = $region29
  $region28: #{model_forward.3} parent=0 // pred_region
    _
  $region29: #{model_forward.3} parent=0 // pred_fallthru
    _
  %v26 = vld [vmem:[%s1] sm:$0xf]
  %v27 = vld [vmem:[%s2] sm:$0xf]
  %v28 = vld [vmem:[%s0] sm:$0xff]
  %v29 = vld [vmem:[%s0 + $0x8] sm:$0xff]
  %v30 = vld [vmem:[%s0 + $0x10] sm:$0xff]
  %v31 = vld [vmem:[%s0 + $0x18] sm:$0xff]
  %v32 = vld [vmem:[%s0 + $0x20] sm:$0xff]
  %v33 = vld [vmem:[%s0 + $0x28] sm:$0xff]
  %v34 = vld [vmem:[%s0 + $0x30] sm:$0xff]
  %v35 = vld [vmem:[%s0 + $0x38] sm:$0xff]
  %v36 = vld [vmem:[%s0 + $0x40] sm:$0xff]
  %v37 = vld [vmem:[%s0 + $0x48] sm:$0xff]
  %v38 = vld [vmem:[%s0 + $0x50] sm:$0xff]
  %v39 = vld [vmem:[%s0 + $0x58] sm:$0xff]
  %v40 = vld [vmem:[%s0 + $0x60] sm:$0xff]
  %v41 = vld [vmem:[%s0 + $0x68] sm:$0xff]
  %v42 = vld [vmem:[%s0 + $0x70] sm:$0xff]
  %v43 = vld [vmem:[%s0 + $0x78] sm:$0xff]
  %v44 = vld [vmem:[%s0 + $0x80] sm:$0xff]
  %v45 = vld [vmem:[%s0 + $0x88] sm:$0xff]
  %v46 = vld [vmem:[%s0 + $0x90] sm:$0xff]
  %v47 = vld [vmem:[%s0 + $0x98] sm:$0xff]
  %v48 = vld [vmem:[%s0 + $0xa0] sm:$0xff]
  %v49 = vld [vmem:[%s0 + $0xa8] sm:$0xff]
  %v50 = vld [vmem:[%s0 + $0xb0] sm:$0xff]
  %v51 = vld [vmem:[%s0 + $0xb8] sm:$0xff]
  %v52 = vld [vmem:[%s0 + $0xc0] sm:$0xff]
  %v53 = vld [vmem:[%s0 + $0xc8] sm:$0xff]
  %v54 = vld [vmem:[%s0 + $0xd0] sm:$0xff]
  %v55 = vld [vmem:[%s0 + $0xd8] sm:$0xff]
  %v56 = vld [vmem:[%s0 + $0xe0] sm:$0xff]
  %v57 = vld [vmem:[%s0 + $0xe8] sm:$0xff]
  %v58 = vld [vmem:[%s0 + $0xf0] sm:$0x1f]
  %v59 = vld [vmem:[%s0 + $0xf8] sm:$0x1f]
  %61 = vset.pattern.permute.xlu0 0
  %62 = vperm.xlu0 %61, %v27
  %v63 = vpop.permute.xlu0 %62
  %vm65 = vcmask 1022976
  %v67 = vsel %vm65, %v26, 0
  %vm69 = vcmask 1044480
  %v71 = vsel %vm69, %v58, 0
  %v74 = vsel %vm69, %v59, 0
  %76 = vmatpush.msra.mxu0 %v71
  %77 = vmatpush.msra.mxu0 %v56
  %78 = vmatpush.msra.mxu0 %v54
  %79 = vmatpush.msra.mxu0 %v52
  %80 = vmatpush.msra.mxu0 %v50
  %81 = vmatpush.msra.mxu0 %v48
  %82 = vmatpush.msra.mxu0 %v46
  %83 = vmatpush.msra.mxu0 %v44
  %84 = vmatpush.msra.mxu0 %v42
  %85 = vmatpush.msra.mxu0 %v40
  %86 = vmatpush.msra.mxu0 %v38
  %87 = vmatpush.msra.mxu0 %v36
  %88 = vmatpush.msra.mxu0 %v34
  %89 = vmatpush.msra.mxu0 %v32
  %90 = vmatpush.msra.mxu0 %v30
  %91 = vmatpush.msra.mxu0 %v28
  %92 = vmatmul.f32.gmra.mxu0 %v67
  %v93 = vpop.f32.mrf.mxu0
  %v94 = vadd.f32 %v63, %v93
  %95 = vdwg.mxu0
  %96 = vmatpush.msra.mxu0 %v74
  %97 = vmatpush.msra.mxu0 %v57
  %98 = vmatpush.msra.mxu0 %v55
  %99 = vmatpush.msra.mxu0 %v53
  %100 = vmatpush.msra.mxu0 %v51
  %101 = vmatpush.msra.mxu0 %v49
  %102 = vmatpush.msra.mxu0 %v47
  %103 = vmatpush.msra.mxu0 %v45
  %104 = vmatpush.msra.mxu0 %v43
  %105 = vmatpush.msra.mxu0 %v41
  %106 = vmatpush.msra.mxu0 %v39
  %107 = vmatpush.msra.mxu0 %v37
  %108 = vmatpush.msra.mxu0 %v35
  %109 = vmatpush.msra.mxu0 %v33
  %110 = vmatpush.msra.mxu0 %v31
  %111 = vmatpush.msra.mxu0 %v29
  %112 = vmatmul.f32.gmra.mxu0 %v67
  %v113 = vpop.f32.mrf.mxu0
  %v114 = vadd.f32 %v63, %v113
  %115 = vdwg.mxu0
  %s116 = scalar_lea.vmem %s0, 256
  %v117 = vld [vmem:[%s116] sm:$0xff]
  %v118 = vld [vmem:[%s116 + $0x8] sm:$0xff]
  %v119 = vld [vmem:[%s116 + $0x10] sm:$0xff]
  %v120 = vld [vmem:[%s116 + $0x18] sm:$0xff]
  %v121 = vld [vmem:[%s116 + $0x20] sm:$0xff]
  %v122 = vld [vmem:[%s116 + $0x28] sm:$0xff]
  %v123 = vld [vmem:[%s116 + $0x30] sm:$0xff]
  %v124 = vld [vmem:[%s116 + $0x38] sm:$0xff]
  %v125 = vld [vmem:[%s116 + $0x40] sm:$0xff]
  %v126 = vld [vmem:[%s116 + $0x48] sm:$0xff]
  %v127 = vld [vmem:[%s116 + $0x50] sm:$0xff]
  %v128 = vld [vmem:[%s116 + $0x58] sm:$0xff]
  %v129 = vld [vmem:[%s116 + $0x60] sm:$0xff]
  %v130 = vld [vmem:[%s116 + $0x68] sm:$0xff]
  %v131 = vld [vmem:[%s116 + $0x70] sm:$0xff]
  %v132 = vld [vmem:[%s116 + $0x78] sm:$0xff]
  %v133 = vld [vmem:[%s116 + $0x80] sm:$0xff]
  %v134 = vld [vmem:[%s116 + $0x88] sm:$0xff]
  %v135 = vld [vmem:[%s116 + $0x90] sm:$0xff]
  %v136 = vld [vmem:[%s116 + $0x98] sm:$0xff]
  %v137 = vld [vmem:[%s116 + $0xa0] sm:$0xff]
  %v138 = vld [vmem:[%s116 + $0xa8] sm:$0xff]
  %v139 = vld [vmem:[%s116 + $0xb0] sm:$0xff]
  %v140 = vld [vmem:[%s116 + $0xb8] sm:$0xff]
  %v141 = vld [vmem:[%s116 + $0xc0] sm:$0xff]
  %v142 = vld [vmem:[%s116 + $0xc8] sm:$0xff]
  %v143 = vld [vmem:[%s116 + $0xd0] sm:$0xff]
  %v144 = vld [vmem:[%s116 + $0xd8] sm:$0xff]
  %v145 = vld [vmem:[%s116 + $0xe0] sm:$0xff]
  %v146 = vld [vmem:[%s116 + $0xe8] sm:$0xff]
  %v147 = vld [vmem:[%s116 + $0xf0] sm:$0x1f]
  %v148 = vld [vmem:[%s116 + $0xf8] sm:$0x1f]
  %v150 = vsel %vm69, %v147, 0
  %v153 = vsel %vm69, %v148, 0
  %155 = vmatpush.msra.mxu0 %v150
  %156 = vmatpush.msra.mxu0 %v145
  %157 = vmatpush.msra.mxu0 %v143
  %158 = vmatpush.msra.mxu0 %v141
  %159 = vmatpush.msra.mxu0 %v139
  %160 = vmatpush.msra.mxu0 %v137
  %161 = vmatpush.msra.mxu0 %v135
  %162 = vmatpush.msra.mxu0 %v133
  %163 = vmatpush.msra.mxu0 %v131
  %164 = vmatpush.msra.mxu0 %v129
  %165 = vmatpush.msra.mxu0 %v127
  %166 = vmatpush.msra.mxu0 %v125
  %167 = vmatpush.msra.mxu0 %v123
  %168 = vmatpush.msra.mxu0 %v121
  %169 = vmatpush.msra.mxu0 %v119
  %170 = vmatpush.msra.mxu0 %v117
  %171 = vmatmul.f32.gmra.mxu0 %v67
  %v172 = vpop.f32.mrf.mxu0
  %v173 = vadd.f32 %v63, %v172
  %174 = vdwg.mxu0
  %175 = vmatpush.msra.mxu0 %v153
  %176 = vmatpush.msra.mxu0 %v146
  %177 = vmatpush.msra.mxu0 %v144
  %178 = vmatpush.msra.mxu0 %v142
  %179 = vmatpush.msra.mxu0 %v140
  %180 = vmatpush.msra.mxu0 %v138
  %181 = vmatpush.msra.mxu0 %v136
  %182 = vmatpush.msra.mxu0 %v134
  %183 = vmatpush.msra.mxu0 %v132
  %184 = vmatpush.msra.mxu0 %v130
  %185 = vmatpush.msra.mxu0 %v128
  %186 = vmatpush.msra.mxu0 %v126
  %187 = vmatpush.msra.mxu0 %v124
  %188 = vmatpush.msra.mxu0 %v122
  %189 = vmatpush.msra.mxu0 %v120
  %190 = vmatpush.msra.mxu0 %v118
  %191 = vmatmul.f32.gmra.mxu0 %v67
  %v192 = vpop.f32.mrf.mxu0
  %v193 = vadd.f32 %v63, %v192
  %194 = vdwg.mxu0
  %v195 = vmax.f32 %v94, %v173
  %v196 = vmax.f32 %v114, %v193
  %s197 = scalar_lea.vmem %s0, 512
  %v198 = vld [vmem:[%s197] sm:$0xff]
  %v199 = vld [vmem:[%s197 + $0x8] sm:$0xff]
  %v200 = vld [vmem:[%s197 + $0x10] sm:$0xff]
  %v201 = vld [vmem:[%s197 + $0x18] sm:$0xff]
  %v202 = vld [vmem:[%s197 + $0x20] sm:$0xff]
  %v203 = vld [vmem:[%s197 + $0x28] sm:$0xff]
  %v204 = vld [vmem:[%s197 + $0x30] sm:$0xff]
  %v205 = vld [vmem:[%s197 + $0x38] sm:$0xff]
  %v206 = vld [vmem:[%s197 + $0x40] sm:$0xff]
  %v207 = vld [vmem:[%s197 + $0x48] sm:$0xff]
  %v208 = vld [vmem:[%s197 + $0x50] sm:$0xff]
  %v209 = vld [vmem:[%s197 + $0x58] sm:$0xff]
  %v210 = vld [vmem:[%s197 + $0x60] sm:$0xff]
  %v211 = vld [vmem:[%s197 + $0x68] sm:$0xff]
  %v212 = vld [vmem:[%s197 + $0x70] sm:$0xff]
  %v213 = vld [vmem:[%s197 + $0x78] sm:$0xff]
  %v214 = vld [vmem:[%s197 + $0x80] sm:$0xff]
  %v215 = vld [vmem:[%s197 + $0x88] sm:$0xff]
  %v216 = vld [vmem:[%s197 + $0x90] sm:$0xff]
  %v217 = vld [vmem:[%s197 + $0x98] sm:$0xff]
  %v218 = vld [vmem:[%s197 + $0xa0] sm:$0xff]
  %v219 = vld [vmem:[%s197 + $0xa8] sm:$0xff]
  %v220 = vld [vmem:[%s197 + $0xb0] sm:$0xff]
  %v221 = vld [vmem:[%s197 + $0xb8] sm:$0xff]
  %v222 = vld [vmem:[%s197 + $0xc0] sm:$0xff]
  %v223 = vld [vmem:[%s197 + $0xc8] sm:$0xff]
  %v224 = vld [vmem:[%s197 + $0xd0] sm:$0xff]
  %v225 = vld [vmem:[%s197 + $0xd8] sm:$0xff]
  %v226 = vld [vmem:[%s197 + $0xe0] sm:$0xff]
  %v227 = vld [vmem:[%s197 + $0xe8] sm:$0xff]
  %v228 = vld [vmem:[%s197 + $0xf0] sm:$0x1f]
  %v229 = vld [vmem:[%s197 + $0xf8] sm:$0x1f]
  %v231 = vsel %vm69, %v228, 0
  %v234 = vsel %vm69, %v229, 0
  %236 = vmatpush.msra.mxu0 %v231
  %237 = vmatpush.msra.mxu0 %v226
  %238 = vmatpush.msra.mxu0 %v224
  %239 = vmatpush.msra.mxu0 %v222
  %240 = vmatpush.msra.mxu0 %v220
  %241 = vmatpush.msra.mxu0 %v218
  %242 = vmatpush.msra.mxu0 %v216
  %243 = vmatpush.msra.mxu0 %v214
  %244 = vmatpush.msra.mxu0 %v212
  %245 = vmatpush.msra.mxu0 %v210
  %246 = vmatpush.msra.mxu0 %v208
  %247 = vmatpush.msra.mxu0 %v206
  %248 = vmatpush.msra.mxu0 %v204
  %249 = vmatpush.msra.mxu0 %v202
  %250 = vmatpush.msra.mxu0 %v200
  %251 = vmatpush.msra.mxu0 %v198
  %252 = vmatmul.f32.gmra.mxu0 %v67
  %v253 = vpop.f32.mrf.mxu0
  %v254 = vadd.f32 %v63, %v253
  %255 = vdwg.mxu0
  %256 = vmatpush.msra.mxu0 %v234
  %257 = vmatpush.msra.mxu0 %v227
  %258 = vmatpush.msra.mxu0 %v225
  %259 = vmatpush.msra.mxu0 %v223
  %260 = vmatpush.msra.mxu0 %v221
  %261 = vmatpush.msra.mxu0 %v219
  %262 = vmatpush.msra.mxu0 %v217
  %263 = vmatpush.msra.mxu0 %v215
  %264 = vmatpush.msra.mxu0 %v213
  %265 = vmatpush.msra.mxu0 %v211
  %266 = vmatpush.msra.mxu0 %v209
  %267 = vmatpush.msra.mxu0 %v207
  %268 = vmatpush.msra.mxu0 %v205
  %269 = vmatpush.msra.mxu0 %v203
  %270 = vmatpush.msra.mxu0 %v201
  %271 = vmatpush.msra.mxu0 %v199
  %272 = vmatmul.f32.gmra.mxu0 %v67
  %v273 = vpop.f32.mrf.mxu0
  %v274 = vadd.f32 %v63, %v273
  %275 = vdwg.mxu0
  %v276 = vmax.f32 %v195, %v254
  %v277 = vmax.f32 %v196, %v274
  %s278 = scalar_lea.vmem %s0, 768
  %v279 = vld [vmem:[%s278] sm:$0xff]
  %v280 = vld [vmem:[%s278 + $0x8] sm:$0xff]
  %v281 = vld [vmem:[%s278 + $0x10] sm:$0xff]
  %v282 = vld [vmem:[%s278 + $0x18] sm:$0xff]
  %v283 = vld [vmem:[%s278 + $0x20] sm:$0xff]
  %v284 = vld [vmem:[%s278 + $0x28] sm:$0xff]
  %v285 = vld [vmem:[%s278 + $0x30] sm:$0xff]
  %v286 = vld [vmem:[%s278 + $0x38] sm:$0xff]
  %v287 = vld [vmem:[%s278 + $0x40] sm:$0xff]
  %v288 = vld [vmem:[%s278 + $0x48] sm:$0xff]
  %v289 = vld [vmem:[%s278 + $0x50] sm:$0xff]
  %v290 = vld [vmem:[%s278 + $0x58] sm:$0xff]
  %v291 = vld [vmem:[%s278 + $0x60] sm:$0xff]
  %v292 = vld [vmem:[%s278 + $0x68] sm:$0xff]
  %v293 = vld [vmem:[%s278 + $0x70] sm:$0xff]
  %v294 = vld [vmem:[%s278 + $0x78] sm:$0xff]
  %v295 = vld [vmem:[%s278 + $0x80] sm:$0xff]
  %v296 = vld [vmem:[%s278 + $0x88] sm:$0xff]
  %v297 = vld [vmem:[%s278 + $0x90] sm:$0xff]
  %v298 = vld [vmem:[%s278 + $0x98] sm:$0xff]
  %v299 = vld [vmem:[%s278 + $0xa0] sm:$0xff]
  %v300 = vld [vmem:[%s278 + $0xa8] sm:$0xff]
  %v301 = vld [vmem:[%s278 + $0xb0] sm:$0xff]
  %v302 = vld [vmem:[%s278 + $0xb8] sm:$0xff]
  %v303 = vld [vmem:[%s278 + $0xc0] sm:$0xff]
  %v304 = vld [vmem:[%s278 + $0xc8] sm:$0xff]
  %v305 = vld [vmem:[%s278 + $0xd0] sm:$0xff]
  %v306 = vld [vmem:[%s278 + $0xd8] sm:$0xff]
  %v307 = vld [vmem:[%s278 + $0xe0] sm:$0xff]
  %v308 = vld [vmem:[%s278 + $0xe8] sm:$0xff]
  %v309 = vld [vmem:[%s278 + $0xf0] sm:$0x1f]
  %v310 = vld [vmem:[%s278 + $0xf8] sm:$0x1f]
  %v312 = vsel %vm69, %v309, 0
  %v315 = vsel %vm69, %v310, 0
  %317 = vmatpush.msra.mxu0 %v312
  %318 = vmatpush.msra.mxu0 %v307
  %319 = vmatpush.msra.mxu0 %v305
  %320 = vmatpush.msra.mxu0 %v303
  %321 = vmatpush.msra.mxu0 %v301
  %322 = vmatpush.msra.mxu0 %v299
  %323 = vmatpush.msra.mxu0 %v297
  %324 = vmatpush.msra.mxu0 %v295
  %325 = vmatpush.msra.mxu0 %v293
  %326 = vmatpush.msra.mxu0 %v291
  %327 = vmatpush.msra.mxu0 %v289
  %328 = vmatpush.msra.mxu0 %v287
  %329 = vmatpush.msra.mxu0 %v285
  %330 = vmatpush.msra.mxu0 %v283
  %331 = vmatpush.msra.mxu0 %v281
  %332 = vmatpush.msra.mxu0 %v279
  %333 = vmatmul.f32.gmra.mxu0 %v67
  %v334 = vpop.f32.mrf.mxu0
  %v335 = vadd.f32 %v63, %v334
  %336 = vdwg.mxu0
  %337 = vmatpush.msra.mxu0 %v315
  %338 = vmatpush.msra.mxu0 %v308
  %339 = vmatpush.msra.mxu0 %v306
  %340 = vmatpush.msra.mxu0 %v304
  %341 = vmatpush.msra.mxu0 %v302
  %342 = vmatpush.msra.mxu0 %v300
  %343 = vmatpush.msra.mxu0 %v298
  %344 = vmatpush.msra.mxu0 %v296
  %345 = vmatpush.msra.mxu0 %v294
  %346 = vmatpush.msra.mxu0 %v292
  %347 = vmatpush.msra.mxu0 %v290
  %348 = vmatpush.msra.mxu0 %v288
  %349 = vmatpush.msra.mxu0 %v286
  %350 = vmatpush.msra.mxu0 %v284
  %351 = vmatpush.msra.mxu0 %v282
  %352 = vmatpush.msra.mxu0 %v280
  %353 = vmatmul.f32.gmra.mxu0 %v67
  %v354 = vpop.f32.mrf.mxu0
  %v355 = vadd.f32 %v63, %v354
  %356 = vdwg.mxu0
  %v357 = vmax.f32 %v276, %v335
  %v358 = vmax.f32 %v277, %v355
  %v359 = vmax.f32 %v357, 0.0
  %v360 = vmax.f32 %v358, 0.0
  %vm361 = vcmask 794624
  %362 = vst.msk [vmem:[#allocation2] sm:$0x1] %vm361, %v359
  %v364 = vrot.slane %v359, 7
  %v365 = vrot.slane %v364, 2
  %366 = vrot.lane.b32.xlu0 %v365, 98
  %v367 = vpop.permute.xlu0 %366
  %v368 = vrot.slane %v367, 6
  %vm369 = vcmask 801792
  %v370 = vsel %vm369, %v368, %v367
  %vm372 = vcmask 1041168
  %vm373 = vcmask 550914
  %vm374 = vmor %vm373, %vm372
  %375 = vst.msk [vmem:[#allocation2] sm:$0x5] %vm374, %v370
  %376 = vst.sshfl [vmem:[#allocation1] sm:$0xff pattern:$0x73625140] %v359
  %s377 = scalar_lea.vmem [#allocation1], 1
  %v378 = vld [vmem:[%s377] ss:$4 sm:$0xff]
  %379 = vrot.lane.b32.xlu0 %v378, 68
  %v380 = vpop.permute.xlu0 %379
  %v381 = vrot.slane %v380, 6
  %vm382 = vcmask 556032
  %v383 = vsel %vm382, %v381, %v380
  %vm385 = vcmask 1040928
  %vm386 = vcmask 305154
  %vm387 = vmor %vm386, %vm385
  %388 = vst.msk [vmem:[#allocation2 + $0x2] sm:$0x5] %vm387, %v383
  %389 = vst.sshfl [vmem:[#allocation1] sm:$0xff pattern:$0x73625140] %v359
  %s390 = scalar_lea.vmem [#allocation1], 1
  %v391 = vld [vmem:[%s390] ss:$4 sm:$0xff]
  %v392 = vrot.slane %v391, 7
  %v393 = vrot.slane %v392, 2
  %394 = vrot.lane.b32.xlu0 %v393, 38
  %v395 = vpop.permute.xlu0 %394
  %v396 = vrot.slane %v395, 6
  %vm397 = vcmask 310272
  %v398 = vsel %vm397, %v396, %v395
  %vm400 = vcmask 1040688
  %vm401 = vcmask 59394
  %vm402 = vmor %vm401, %vm400
  %403 = vst.msk [vmem:[#allocation2 + $0x4] sm:$0x5] %vm402, %v398
  %v405 = vrot.slane %v360, 6
  %vm406 = vcmask 1041408
  %v407 = vsel %vm406, %v359, %v405
  %408 = vrot.lane.b32.xlu0 %v407, 30
  %v409 = vpop.permute.xlu0 %408
  %v410 = vrot.slane %v409, 2
  %vm411 = vcmask 244736
  %v412 = vsel %vm411, %v409, %v410
  %414 = vst.msk [vmem:[#allocation2 + $0x1] sm:$0x1] %vm361, %v412
  %v415 = vrot.slane %v407, 7
  %v416 = vrot.slane %v415, 2
  %418 = vst.msk [vmem:[#allocation2 + $0x1] sm:$0x5] %vm374, %v416
  %419 = vst.sshfl [vmem:[#allocation1] sm:$0xff pattern:$0x73625140] %v359
  %420 = vst.sshfl [vmem:[#allocation1 + $0x8] sm:$0xff pattern:$0x73625140] %v360
  %s421 = scalar_lea.vmem [#allocation1], 1
  %v422 = vld [vmem:[%s421] ss:$4 sm:$0xff]
  %423 = vrot.lane.b32.xlu0 %v422, 98
  %v424 = vpop.permute.xlu0 %423
  %v425 = vrot.slane %v424, 2
  %v426 = vsel %vm369, %v424, %v425
  %428 = vst.msk [vmem:[#allocation2 + $0x3] sm:$0x5] %vm387, %v426
  %429 = vst.sshfl [vmem:[#allocation1] sm:$0xff pattern:$0x73625140] %v359
  %430 = vst.sshfl [vmem:[#allocation1 + $0x8] sm:$0xff pattern:$0x73625140] %v360
  %s431 = scalar_lea.vmem [#allocation1], 1
  %v432 = vld [vmem:[%s431] ss:$4 sm:$0xff]
  %v433 = vrot.slane %v432, 7
  %v434 = vrot.slane %v433, 2
  %435 = vrot.lane.b32.xlu0 %v434, 68
  %v436 = vpop.permute.xlu0 %435
  %v437 = vrot.slane %v436, 2
  %v438 = vsel %vm382, %v436, %v437
  %440 = vst.msk [vmem:[#allocation2 + $0x5] sm:$0x5] %vm402, %v438
  %v441 = vld [vmem:[#allocation2] sm:$0xff]
  %v442 = vld [vmem:[%s3] sm:$0xff]
  %v443 = vld [vmem:[%s3 + $0x8] sm:$0xff]
  %v444 = vld [vmem:[%s3 + $0x10] sm:$0xff]
  %v445 = vld [vmem:[%s3 + $0x18] sm:$0xff]
  %v446 = vld [vmem:[%s3 + $0x20] sm:$0xff]
  %v447 = vld [vmem:[%s3 + $0x28] sm:$0xff]
  %v448 = vld [vmem:[%s3 + $0x30] sm:$0xff]
  %v449 = vld [vmem:[%s3 + $0x38] sm:$0xff]
  %v450 = vld [vmem:[%s3 + $0x40] sm:$0xff]
  %v451 = vld [vmem:[%s3 + $0x48] sm:$0xff]
  %v452 = vld [vmem:[%s3 + $0x50] sm:$0xff]
  %v453 = vld [vmem:[%s3 + $0x58] sm:$0xff]
  %v454 = vld [vmem:[%s3 + $0x60] sm:$0xff]
  %v455 = vld [vmem:[%s3 + $0x68] sm:$0xff]
  %v456 = vld [vmem:[%s3 + $0x70] sm:$0xff]
  %v457 = vld [vmem:[%s3 + $0x78] sm:$0xff]
  %v458 = vld [vmem:[%s3 + $0x80] sm:$0xff]
  %v459 = vld [vmem:[%s3 + $0x88] sm:$0xff]
  %v460 = vld [vmem:[%s3 + $0x90] sm:$0xff]
  %v461 = vld [vmem:[%s3 + $0x98] sm:$0xff]
  %v462 = vld [vmem:[%s3 + $0xa0] sm:$0xff]
  %v463 = vld [vmem:[%s3 + $0xa8] sm:$0xff]
  %v464 = vld [vmem:[%s3 + $0xb0] sm:$0xff]
  %v465 = vld [vmem:[%s3 + $0xb8] sm:$0xff]
  %v466 = vld [vmem:[%s3 + $0xc0] sm:$0xff]
  %v467 = vld [vmem:[%s3 + $0xc8] sm:$0xff]
  %v468 = vld [vmem:[%s3 + $0xd0] sm:$0xff]
  %v469 = vld [vmem:[%s3 + $0xd8] sm:$0xff]
  %v470 = vld [vmem:[%s3 + $0xe0] sm:$0xff]
  %v471 = vld [vmem:[%s3 + $0xe8] sm:$0xff]
  %v472 = vld [vmem:[%s3 + $0xf0] sm:$0xff]
  %v473 = vld [vmem:[%s3 + $0xf8] sm:$0xff]
  %v474 = vld [vmem:[%s3 + $0x100] sm:$0xff]
  %v475 = vld [vmem:[%s3 + $0x108] sm:$0xff]
  %v476 = vld [vmem:[%s3 + $0x110] sm:$0xff]
  %v477 = vld [vmem:[%s3 + $0x118] sm:$0xff]
  %v478 = vld [vmem:[%s3 + $0x120] sm:$0xff]
  %v479 = vld [vmem:[%s3 + $0x128] sm:$0xff]
  %v480 = vld [vmem:[%s3 + $0x130] sm:$0xff]
  %v481 = vld [vmem:[%s3 + $0x138] sm:$0xff]
  %v482 = vld [vmem:[%s3 + $0x140] sm:$0xff]
  %v483 = vld [vmem:[%s3 + $0x148] sm:$0xff]
  %v484 = vld [vmem:[%s3 + $0x150] sm:$0xff]
  %v485 = vld [vmem:[%s3 + $0x158] sm:$0xff]
  %v486 = vld [vmem:[%s3 + $0x160] sm:$0xff]
  %v487 = vld [vmem:[%s3 + $0x168] sm:$0xff]
  %v488 = vld [vmem:[%s3 + $0x170] sm:$0xff]
  %v489 = vld [vmem:[%s3 + $0x178] sm:$0xff]
  %v490 = vld [vmem:[%s3 + $0x180] sm:$0xff]
  %v491 = vunpack.c.l.bf16 %v442
  %v492 = vunpack.c.h.bf16 %v442
  %v493 = vunpack.c.l.bf16 %v443
  %v494 = vunpack.c.h.bf16 %v443
  %v495 = vunpack.c.l.bf16 %v444
  %v496 = vunpack.c.h.bf16 %v444
  %v497 = vunpack.c.l.bf16 %v445
  %v498 = vunpack.c.h.bf16 %v445
  %v499 = vunpack.c.l.bf16 %v446
  %v500 = vunpack.c.h.bf16 %v446
  %v501 = vunpack.c.l.bf16 %v447
  %v502 = vunpack.c.h.bf16 %v447
  %v503 = vunpack.c.l.bf16 %v448
  %v504 = vunpack.c.h.bf16 %v448
  %v505 = vunpack.c.l.bf16 %v449
  %v506 = vunpack.c.h.bf16 %v449
  %v507 = vunpack.c.l.bf16 %v450
  %v508 = vunpack.c.h.bf16 %v450
  %v509 = vunpack.c.l.bf16 %v451
  %v510 = vunpack.c.h.bf16 %v451
  %v511 = vunpack.c.l.bf16 %v452
  %v512 = vunpack.c.h.bf16 %v452
  %v513 = vunpack.c.l.bf16 %v453
  %v514 = vunpack.c.h.bf16 %v453
  %v515 = vunpack.c.l.bf16 %v454
  %v516 = vunpack.c.h.bf16 %v454
  %v517 = vunpack.c.l.bf16 %v455
  %v518 = vunpack.c.h.bf16 %v455
  %v519 = vunpack.c.l.bf16 %v456
  %v520 = vunpack.c.h.bf16 %v456
  %v521 = vunpack.c.l.bf16 %v457
  %v522 = vunpack.c.h.bf16 %v457
  %v523 = vunpack.c.l.bf16 %v458
  %v524 = vunpack.c.h.bf16 %v458
  %v525 = vunpack.c.l.bf16 %v459
  %v526 = vunpack.c.h.bf16 %v459
  %v527 = vunpack.c.l.bf16 %v460
  %v528 = vunpack.c.h.bf16 %v460
  %v529 = vunpack.c.l.bf16 %v461
  %v530 = vunpack.c.h.bf16 %v461
  %v531 = vunpack.c.l.bf16 %v462
  %v532 = vunpack.c.h.bf16 %v462
  %v533 = vunpack.c.l.bf16 %v463
  %v534 = vunpack.c.h.bf16 %v463
  %v535 = vunpack.c.l.bf16 %v464
  %v536 = vunpack.c.h.bf16 %v464
  %v537 = vunpack.c.l.bf16 %v465
  %v538 = vunpack.c.h.bf16 %v465
  %v539 = vunpack.c.l.bf16 %v466
  %v540 = vunpack.c.h.bf16 %v466
  %v541 = vunpack.c.l.bf16 %v467
  %v542 = vunpack.c.h.bf16 %v467
  %v543 = vunpack.c.l.bf16 %v468
  %v544 = vunpack.c.h.bf16 %v468
  %v545 = vunpack.c.l.bf16 %v469
  %v546 = vunpack.c.h.bf16 %v469
  %v547 = vunpack.c.l.bf16 %v470
  %v548 = vunpack.c.h.bf16 %v470
  %v549 = vunpack.c.l.bf16 %v471
  %v550 = vunpack.c.h.bf16 %v471
  %v551 = vunpack.c.l.bf16 %v472
  %v552 = vunpack.c.h.bf16 %v472
  %v553 = vunpack.c.l.bf16 %v473
  %v554 = vunpack.c.h.bf16 %v473
  %v555 = vunpack.c.l.bf16 %v474
  %v556 = vunpack.c.h.bf16 %v474
  %v557 = vunpack.c.l.bf16 %v475
  %v558 = vunpack.c.h.bf16 %v475
  %v559 = vunpack.c.l.bf16 %v476
  %v560 = vunpack.c.h.bf16 %v476
  %v561 = vunpack.c.l.bf16 %v477
  %v562 = vunpack.c.h.bf16 %v477
  %v563 = vunpack.c.l.bf16 %v478
  %v564 = vunpack.c.h.bf16 %v478
  %v565 = vunpack.c.l.bf16 %v479
  %v566 = vunpack.c.h.bf16 %v479
  %v567 = vunpack.c.l.bf16 %v480
  %v568 = vunpack.c.h.bf16 %v480
  %v569 = vunpack.c.l.bf16 %v481
  %v570 = vunpack.c.h.bf16 %v481
  %v571 = vunpack.c.l.bf16 %v482
  %v572 = vunpack.c.h.bf16 %v482
  %v573 = vunpack.c.l.bf16 %v483
  %v574 = vunpack.c.h.bf16 %v483
  %v575 = vunpack.c.l.bf16 %v484
  %v576 = vunpack.c.h.bf16 %v484
  %v577 = vunpack.c.l.bf16 %v485
  %v578 = vunpack.c.h.bf16 %v485
  %v579 = vunpack.c.l.bf16 %v486
  %v580 = vunpack.c.h.bf16 %v486
  %v581 = vunpack.c.l.bf16 %v487
  %v582 = vunpack.c.h.bf16 %v487
  %v583 = vunpack.c.l.bf16 %v488
  %v584 = vunpack.c.h.bf16 %v488
  %v585 = vunpack.c.l.bf16 %v489
  %v586 = vunpack.c.h.bf16 %v489
  %v587 = vunpack.c.l.bf16 %v490
  %v588 = vunpack.c.h.bf16 %v490
  %v589 = vld [vmem:[%s4] sm:$0x3]
  %v591 = vperm.slane %v589, 0
  %v592 = vperm.slane %v589, 1
  %596 = vst [vmem:[#allocation1] ss:$4 sm:$0xff] %v441
  %v597 = vld.sshfl [vmem:[#allocation1] sm:$0xff pattern:$0x73625140]
  %v598 = vld.sshfl [vmem:[#allocation1 + $0x8] sm:$0xff pattern:$0x73625140]
  %v599 = vld.sshfl [vmem:[#allocation1 + $0x10] sm:$0xff pattern:$0x73625140]
  %v600 = vld.sshfl [vmem:[#allocation1 + $0x18] sm:$0xff pattern:$0x73625140]
  %vm604 = vcmask 64512
  %v605 = vsel %vm604, %v600, 0
  %607 = vmatpush.msra.mxu0 %v521
  %608 = vmatpush.msra.mxu0 %v519
  %609 = vmatpush.msra.mxu0 %v517
  %610 = vmatpush.msra.mxu0 %v515
  %611 = vmatpush.msra.mxu0 %v513
  %612 = vmatpush.msra.mxu0 %v511
  %613 = vmatpush.msra.mxu0 %v509
  %614 = vmatpush.msra.mxu0 %v507
  %615 = vmatpush.msra.mxu0 %v505
  %616 = vmatpush.msra.mxu0 %v503
  %617 = vmatpush.msra.mxu0 %v501
  %618 = vmatpush.msra.mxu0 %v499
  %619 = vmatpush.msra.mxu0 %v497
  %620 = vmatpush.msra.mxu0 %v495
  %621 = vmatpush.msra.mxu0 %v493
  %622 = vmatpush.msra.mxu0 %v491
  %623 = vmatmul.f32.gmra.mxu0 %v597
  %v624 = vpop.f32.mrf.mxu0
  %v625 = vadd.f32 %v591, %v624
  %626 = vdwg.mxu0
  %627 = vmatpush.msra.mxu0 %v553
  %628 = vmatpush.msra.mxu0 %v551
  %629 = vmatpush.msra.mxu0 %v549
  %630 = vmatpush.msra.mxu0 %v547
  %631 = vmatpush.msra.mxu0 %v545
  %632 = vmatpush.msra.mxu0 %v543
  %633 = vmatpush.msra.mxu0 %v541
  %634 = vmatpush.msra.mxu0 %v539
  %635 = vmatpush.msra.mxu0 %v537
  %636 = vmatpush.msra.mxu0 %v535
  %637 = vmatpush.msra.mxu0 %v533
  %638 = vmatpush.msra.mxu0 %v531
  %639 = vmatpush.msra.mxu0 %v529
  %640 = vmatpush.msra.mxu0 %v527
  %641 = vmatpush.msra.mxu0 %v525
  %642 = vmatpush.msra.mxu0 %v523
  %643 = vmatmul.f32.gmra.mxu0 %v598
  %v644 = vpop.f32.mrf.mxu0
  %v645 = vadd.f32 %v625, %v644
  %646 = vdwg.mxu0
  %647 = vmatpush.msra.mxu0 %v585
  %648 = vmatpush.msra.mxu0 %v583
  %649 = vmatpush.msra.mxu0 %v581
  %650 = vmatpush.msra.mxu0 %v579
  %651 = vmatpush.msra.mxu0 %v577
  %652 = vmatpush.msra.mxu0 %v575
  %653 = vmatpush.msra.mxu0 %v573
  %654 = vmatpush.msra.mxu0 %v571
  %655 = vmatpush.msra.mxu0 %v569
  %656 = vmatpush.msra.mxu0 %v567
  %657 = vmatpush.msra.mxu0 %v565
  %658 = vmatpush.msra.mxu0 %v563
  %659 = vmatpush.msra.mxu0 %v561
  %660 = vmatpush.msra.mxu0 %v559
  %661 = vmatpush.msra.mxu0 %v557
  %662 = vmatpush.msra.mxu0 %v555
  %663 = vmatmul.f32.gmra.mxu0 %v599
  %v664 = vpop.f32.mrf.mxu0
  %v665 = vadd.f32 %v645, %v664
  %666 = vdwg.mxu0
  %667 = vmatpush.msra.mxu0 0.0
  %668 = vmatpush.msra.mxu0 0.0
  %669 = vmatpush.msra.mxu0 0.0
  %670 = vmatpush.msra.mxu0 0.0
  %671 = vmatpush.msra.mxu0 0.0
  %672 = vmatpush.msra.mxu0 0.0
  %673 = vmatpush.msra.mxu0 0.0
  %674 = vmatpush.msra.mxu0 0.0
  %675 = vmatpush.msra.mxu0 0.0
  %676 = vmatpush.msra.mxu0 0.0
  %677 = vmatpush.msra.mxu0 0.0
  %678 = vmatpush.msra.mxu0 0.0
  %679 = vmatpush.msra.mxu0 0.0
  %680 = vmatpush.msra.mxu0 0.0
  %681 = vmatpush.msra.mxu0 0.0
  %682 = vmatpush.msra.mxu0 %v587
  %683 = vmatmul.f32.gmra.mxu0 %v605
  %v684 = vpop.f32.mrf.mxu0
  %v685 = vadd.f32 %v665, %v684
  %686 = vdwg.mxu0
  %687 = vmatpush.msra.mxu0 %v522
  %688 = vmatpush.msra.mxu0 %v520
  %689 = vmatpush.msra.mxu0 %v518
  %690 = vmatpush.msra.mxu0 %v516
  %691 = vmatpush.msra.mxu0 %v514
  %692 = vmatpush.msra.mxu0 %v512
  %693 = vmatpush.msra.mxu0 %v510
  %694 = vmatpush.msra.mxu0 %v508
  %695 = vmatpush.msra.mxu0 %v506
  %696 = vmatpush.msra.mxu0 %v504
  %697 = vmatpush.msra.mxu0 %v502
  %698 = vmatpush.msra.mxu0 %v500
  %699 = vmatpush.msra.mxu0 %v498
  %700 = vmatpush.msra.mxu0 %v496
  %701 = vmatpush.msra.mxu0 %v494
  %702 = vmatpush.msra.mxu0 %v492
  %703 = vmatmul.f32.gmra.mxu0 %v597
  %v704 = vpop.f32.mrf.mxu0
  %v705 = vadd.f32 %v592, %v704
  %706 = vdwg.mxu0
  %707 = vmatpush.msra.mxu0 %v554
  %708 = vmatpush.msra.mxu0 %v552
  %709 = vmatpush.msra.mxu0 %v550
  %710 = vmatpush.msra.mxu0 %v548
  %711 = vmatpush.msra.mxu0 %v546
  %712 = vmatpush.msra.mxu0 %v544
  %713 = vmatpush.msra.mxu0 %v542
  %714 = vmatpush.msra.mxu0 %v540
  %715 = vmatpush.msra.mxu0 %v538
  %716 = vmatpush.msra.mxu0 %v536
  %717 = vmatpush.msra.mxu0 %v534
  %718 = vmatpush.msra.mxu0 %v532
  %719 = vmatpush.msra.mxu0 %v530
  %720 = vmatpush.msra.mxu0 %v528
  %721 = vmatpush.msra.mxu0 %v526
  %722 = vmatpush.msra.mxu0 %v524
  %723 = vmatmul.f32.gmra.mxu0 %v598
  %v724 = vpop.f32.mrf.mxu0
  %v725 = vadd.f32 %v705, %v724
  %726 = vdwg.mxu0
  %727 = vmatpush.msra.mxu0 %v586
  %728 = vmatpush.msra.mxu0 %v584
  %729 = vmatpush.msra.mxu0 %v582
  %730 = vmatpush.msra.mxu0 %v580
  %731 = vmatpush.msra.mxu0 %v578
  %732 = vmatpush.msra.mxu0 %v576
  %733 = vmatpush.msra.mxu0 %v574
  %734 = vmatpush.msra.mxu0 %v572
  %735 = vmatpush.msra.mxu0 %v570
  %736 = vmatpush.msra.mxu0 %v568
  %737 = vmatpush.msra.mxu0 %v566
  %738 = vmatpush.msra.mxu0 %v564
  %739 = vmatpush.msra.mxu0 %v562
  %740 = vmatpush.msra.mxu0 %v560
  %741 = vmatpush.msra.mxu0 %v558
  %742 = vmatpush.msra.mxu0 %v556
  %743 = vmatmul.f32.gmra.mxu0 %v599
  %v744 = vpop.f32.mrf.mxu0
  %v745 = vadd.f32 %v725, %v744
  %746 = vdwg.mxu0
  %747 = vmatpush.msra.mxu0 0.0
  %748 = vmatpush.msra.mxu0 0.0
  %749 = vmatpush.msra.mxu0 0.0
  %750 = vmatpush.msra.mxu0 0.0
  %751 = vmatpush.msra.mxu0 0.0
  %752 = vmatpush.msra.mxu0 0.0
  %753 = vmatpush.msra.mxu0 0.0
  %754 = vmatpush.msra.mxu0 0.0
  %755 = vmatpush.msra.mxu0 0.0
  %756 = vmatpush.msra.mxu0 0.0
  %757 = vmatpush.msra.mxu0 0.0
  %758 = vmatpush.msra.mxu0 0.0
  %759 = vmatpush.msra.mxu0 0.0
  %760 = vmatpush.msra.mxu0 0.0
  %761 = vmatpush.msra.mxu0 0.0
  %762 = vmatpush.msra.mxu0 %v588
  %763 = vmatmul.f32.gmra.mxu0 %v605
  %v764 = vpop.f32.mrf.mxu0
  %v765 = vadd.f32 %v745, %v764
  %766 = vdwg.mxu0
  %v767 = vmax.f32 %v685, 0.0
  %v768 = vmax.f32 %v765, 0.0
  %v769 = vld [vmem:[%s5] sm:$0xff]
  %v770 = vld [vmem:[%s5 + $0x8] sm:$0xff]
  %v771 = vld [vmem:[%s5 + $0x10] sm:$0xff]
  %v772 = vld [vmem:[%s5 + $0x18] sm:$0xff]
  %v773 = vld [vmem:[%s5 + $0x20] sm:$0xff]
  %v774 = vld [vmem:[%s5 + $0x28] sm:$0xff]
  %v775 = vld [vmem:[%s5 + $0x30] sm:$0xff]
  %v776 = vld [vmem:[%s5 + $0x38] sm:$0xff]
  %v777 = vld [vmem:[%s5 + $0x40] sm:$0xff]
  %v778 = vld [vmem:[%s5 + $0x48] sm:$0xff]
  %v779 = vld [vmem:[%s5 + $0x50] sm:$0xff]
  %v780 = vld [vmem:[%s5 + $0x58] sm:$0xff]
  %v781 = vld [vmem:[%s5 + $0x60] sm:$0xff]
  %v782 = vld [vmem:[%s5 + $0x68] sm:$0xff]
  %v783 = vld [vmem:[%s5 + $0x70] sm:$0xff]
  %v784 = vld [vmem:[%s5 + $0x78] sm:$0xff]
  %v785 = vld [vmem:[%s5 + $0x80] sm:$0xff]
  %v786 = vld [vmem:[%s5 + $0x88] sm:$0xff]
  %v787 = vld [vmem:[%s5 + $0x90] sm:$0xff]
  %v788 = vld [vmem:[%s5 + $0x98] sm:$0xff]
  %v789 = vld [vmem:[%s5 + $0xa0] sm:$0xff]
  %v790 = vld [vmem:[%s5 + $0xa8] sm:$0xff]
  %v791 = vld [vmem:[%s5 + $0xb0] sm:$0xff]
  %v792 = vld [vmem:[%s5 + $0xb8] sm:$0xff]
  %v793 = vld [vmem:[%s5 + $0xc0] sm:$0xff]
  %v794 = vld [vmem:[%s5 + $0xc8] sm:$0xff]
  %v795 = vld [vmem:[%s5 + $0xd0] sm:$0xff]
  %v796 = vld [vmem:[%s5 + $0xd8] sm:$0xff]
  %v797 = vld [vmem:[%s5 + $0xe0] sm:$0xff]
  %v798 = vld [vmem:[%s5 + $0xe8] sm:$0xff]
  %v799 = vld [vmem:[%s5 + $0xf0] sm:$0xff]
  %v800 = vld [vmem:[%s5 + $0xf8] sm:$0xff]
  %v801 = vld [vmem:[%s5 + $0x100] sm:$0xff]
  %v802 = vld [vmem:[%s5 + $0x108] sm:$0xff]
  %v803 = vld [vmem:[%s5 + $0x110] sm:$0xff]
  %v804 = vld [vmem:[%s5 + $0x118] sm:$0xff]
  %v805 = vld [vmem:[%s5 + $0x120] sm:$0xff]
  %v806 = vld [vmem:[%s5 + $0x128] sm:$0xff]
  %v807 = vld [vmem:[%s5 + $0x130] sm:$0xff]
  %v808 = vld [vmem:[%s5 + $0x138] sm:$0xff]
  %v809 = vld [vmem:[%s5 + $0x140] sm:$0xff]
  %v810 = vld [vmem:[%s5 + $0x148] sm:$0xff]
  %v811 = vld [vmem:[%s5 + $0x150] sm:$0xff]
  %v812 = vld [vmem:[%s5 + $0x158] sm:$0xff]
  %v813 = vld [vmem:[%s5 + $0x160] sm:$0xff]
  %v814 = vld [vmem:[%s5 + $0x168] sm:$0xff]
  %v815 = vld [vmem:[%s5 + $0x170] sm:$0xff]
  %v816 = vld [vmem:[%s5 + $0x178] sm:$0xff]
  %v817 = vld [vmem:[%s5 + $0x180] sm:$0xff]
  %v818 = vld [vmem:[%s5 + $0x188] sm:$0xff]
  %v819 = vld [vmem:[%s5 + $0x190] sm:$0xff]
  %v820 = vld [vmem:[%s5 + $0x198] sm:$0xff]
  %v821 = vld [vmem:[%s5 + $0x1a0] sm:$0xff]
  %v822 = vld [vmem:[%s5 + $0x1a8] sm:$0xff]
  %v823 = vld [vmem:[%s5 + $0x1b0] sm:$0xff]
  %v824 = vld [vmem:[%s5 + $0x1b8] sm:$0xff]
  %v825 = vld [vmem:[%s5 + $0x1c0] sm:$0xff]
  %v826 = vld [vmem:[%s5 + $0x1c8] sm:$0xff]
  %v827 = vld [vmem:[%s5 + $0x1d0] sm:$0xff]
  %v828 = vld [vmem:[%s5 + $0x1d8] sm:$0xff]
  %v829 = vld [vmem:[%s5 + $0x1e0] sm:$0xff]
  %v830 = vld [vmem:[%s5 + $0x1e8] sm:$0xff]
  %v831 = vld [vmem:[%s5 + $0x1f0] sm:$0xff]
  %v832 = vld [vmem:[%s5 + $0x1f8] sm:$0xff]
  %v833 = vld [vmem:[%s5 + $0x200] sm:$0xff]
  %v834 = vld [vmem:[%s5 + $0x208] sm:$0xff]
  %v835 = vld [vmem:[%s5 + $0x210] sm:$0xff]
  %v836 = vld [vmem:[%s5 + $0x218] sm:$0xff]
  %v837 = vld [vmem:[%s5 + $0x220] sm:$0xff]
  %v838 = vld [vmem:[%s5 + $0x228] sm:$0xff]
  %v839 = vld [vmem:[%s5 + $0x230] sm:$0xff]
  %v840 = vld [vmem:[%s5 + $0x238] sm:$0xff]
  %v841 = vld [vmem:[%s5 + $0x240] sm:$0xff]
  %v842 = vld [vmem:[%s5 + $0x248] sm:$0xff]
  %v843 = vld [vmem:[%s5 + $0x250] sm:$0xff]
  %v844 = vld [vmem:[%s5 + $0x258] sm:$0xff]
  %v845 = vld [vmem:[%s5 + $0x260] sm:$0xff]
  %v846 = vld [vmem:[%s5 + $0x268] sm:$0xff]
  %v847 = vld [vmem:[%s5 + $0x270] sm:$0xff]
  %v848 = vld [vmem:[%s5 + $0x278] sm:$0xff]
  %v849 = vld [vmem:[%s5 + $0x280] sm:$0xff]
  %v850 = vld [vmem:[%s5 + $0x288] sm:$0xff]
  %v851 = vld [vmem:[%s5 + $0x290] sm:$0xff]
  %v852 = vld [vmem:[%s5 + $0x298] sm:$0xff]
  %v853 = vld [vmem:[%s5 + $0x2a0] sm:$0xff]
  %v854 = vld [vmem:[%s5 + $0x2a8] sm:$0xff]
  %v855 = vld [vmem:[%s5 + $0x2b0] sm:$0xff]
  %v856 = vld [vmem:[%s5 + $0x2b8] sm:$0xff]
  %v857 = vld [vmem:[%s5 + $0x2c0] sm:$0xff]
  %v858 = vld [vmem:[%s5 + $0x2c8] sm:$0xff]
  %v859 = vld [vmem:[%s5 + $0x2d0] sm:$0xff]
  %v860 = vld [vmem:[%s5 + $0x2d8] sm:$0xff]
  %v861 = vld [vmem:[%s5 + $0x2e0] sm:$0xff]
  %v862 = vld [vmem:[%s5 + $0x2e8] sm:$0xff]
  %v863 = vld [vmem:[%s5 + $0x2f0] sm:$0xff]
  %v864 = vld [vmem:[%s5 + $0x2f8] sm:$0xff]
  %v865 = vld [vmem:[%s5 + $0x300] sm:$0xff]
  %v866 = vld [vmem:[%s5 + $0x308] sm:$0xff]
  %v867 = vld [vmem:[%s5 + $0x310] sm:$0xff]
  %v868 = vld [vmem:[%s5 + $0x318] sm:$0xff]
  %v869 = vld [vmem:[%s5 + $0x320] sm:$0xff]
  %v870 = vld [vmem:[%s5 + $0x328] sm:$0xff]
  %v871 = vld [vmem:[%s5 + $0x330] sm:$0xff]
  %v872 = vld [vmem:[%s5 + $0x338] sm:$0xff]
  %v873 = vld [vmem:[%s5 + $0x340] sm:$0xff]
  %v874 = vld [vmem:[%s5 + $0x348] sm:$0xff]
  %v875 = vld [vmem:[%s5 + $0x350] sm:$0xff]
  %v876 = vld [vmem:[%s5 + $0x358] sm:$0xff]
  %v877 = vld [vmem:[%s5 + $0x360] sm:$0xff]
  %v878 = vld [vmem:[%s5 + $0x368] sm:$0xff]
  %v879 = vld [vmem:[%s5 + $0x370] sm:$0xff]
  %v880 = vld [vmem:[%s5 + $0x378] sm:$0xff]
  %v881 = vld [vmem:[%s5 + $0x380] sm:$0xff]
  %v882 = vld [vmem:[%s5 + $0x388] sm:$0xff]
  %v883 = vld [vmem:[%s5 + $0x390] sm:$0xff]
  %v884 = vld [vmem:[%s5 + $0x398] sm:$0xff]
  %v885 = vld [vmem:[%s5 + $0x3a0] sm:$0xff]
  %v886 = vld [vmem:[%s5 + $0x3a8] sm:$0xff]
  %v887 = vld [vmem:[%s5 + $0x3b0] sm:$0xff]
  %v888 = vld [vmem:[%s5 + $0x3b8] sm:$0xff]
  %v889 = vld [vmem:[%s5 + $0x3c0] sm:$0xff]
  %v890 = vld [vmem:[%s5 + $0x3c8] sm:$0xff]
  %v891 = vld [vmem:[%s5 + $0x3d0] sm:$0xff]
  %v892 = vld [vmem:[%s5 + $0x3d8] sm:$0xff]
  %v893 = vld [vmem:[%s5 + $0x3e0] sm:$0xff]
  %v894 = vld [vmem:[%s5 + $0x3e8] sm:$0xff]
  %v895 = vld [vmem:[%s5 + $0x3f0] sm:$0xff]
  %v896 = vld [vmem:[%s5 + $0x3f8] sm:$0xff]
  %v897 = vld [vmem:[%s5 + $0x400] sm:$0xff]
  %v898 = vld [vmem:[%s5 + $0x408] sm:$0xff]
  %v899 = vld [vmem:[%s5 + $0x410] sm:$0xff]
  %v900 = vld [vmem:[%s5 + $0x418] sm:$0xff]
  %v901 = vld [vmem:[%s5 + $0x420] sm:$0xff]
  %v902 = vld [vmem:[%s5 + $0x428] sm:$0xff]
  %v903 = vld [vmem:[%s5 + $0x430] sm:$0xff]
  %v904 = vld [vmem:[%s5 + $0x438] sm:$0xff]
  %v905 = vld [vmem:[%s5 + $0x440] sm:$0xff]
  %v906 = vld [vmem:[%s5 + $0x448] sm:$0xff]
  %v907 = vld [vmem:[%s5 + $0x450] sm:$0xff]
  %v908 = vld [vmem:[%s5 + $0x458] sm:$0xff]
  %v909 = vld [vmem:[%s5 + $0x460] sm:$0xff]
  %v910 = vld [vmem:[%s5 + $0x468] sm:$0xff]
  %v911 = vld [vmem:[%s5 + $0x470] sm:$0xff]
  %v912 = vld [vmem:[%s5 + $0x478] sm:$0xff]
  %v913 = vld [vmem:[%s5 + $0x480] sm:$0xff]
  %v914 = vld [vmem:[%s5 + $0x488] sm:$0xff]
  %v915 = vld [vmem:[%s5 + $0x490] sm:$0xff]
  %v916 = vld [vmem:[%s5 + $0x498] sm:$0xff]
  %v917 = vld [vmem:[%s5 + $0x4a0] sm:$0xff]
  %v918 = vld [vmem:[%s5 + $0x4a8] sm:$0xff]
  %v919 = vld [vmem:[%s5 + $0x4b0] sm:$0xff]
  %v920 = vld [vmem:[%s5 + $0x4b8] sm:$0xff]
  %v921 = vld [vmem:[%s5 + $0x4c0] sm:$0xff]
  %v922 = vld [vmem:[%s5 + $0x4c8] sm:$0xff]
  %v923 = vld [vmem:[%s5 + $0x4d0] sm:$0xff]
  %v924 = vld [vmem:[%s5 + $0x4d8] sm:$0xff]
  %v925 = vld [vmem:[%s5 + $0x4e0] sm:$0xff]
  %v926 = vld [vmem:[%s5 + $0x4e8] sm:$0xff]
  %v927 = vld [vmem:[%s5 + $0x4f0] sm:$0xff]
  %v928 = vld [vmem:[%s5 + $0x4f8] sm:$0xff]
  %v929 = vld [vmem:[%s5 + $0x500] sm:$0xff]
  %v930 = vld [vmem:[%s5 + $0x508] sm:$0xff]
  %v931 = vld [vmem:[%s5 + $0x510] sm:$0xff]
  %v932 = vld [vmem:[%s5 + $0x518] sm:$0xff]
  %v933 = vld [vmem:[%s5 + $0x520] sm:$0xff]
  %v934 = vld [vmem:[%s5 + $0x528] sm:$0xff]
  %v935 = vld [vmem:[%s5 + $0x530] sm:$0xff]
  %v936 = vld [vmem:[%s5 + $0x538] sm:$0xff]
  %v937 = vld [vmem:[%s5 + $0x540] sm:$0xff]
  %v938 = vld [vmem:[%s5 + $0x548] sm:$0xff]
  %v939 = vld [vmem:[%s5 + $0x550] sm:$0xff]
  %v940 = vld [vmem:[%s5 + $0x558] sm:$0xff]
  %v941 = vld [vmem:[%s5 + $0x560] sm:$0xff]
  %v942 = vld [vmem:[%s5 + $0x568] sm:$0xff]
  %v943 = vld [vmem:[%s5 + $0x570] sm:$0xff]
  %v944 = vld [vmem:[%s5 + $0x578] sm:$0xff]
  %v945 = vld [vmem:[%s5 + $0x580] sm:$0xff]
  %v946 = vld [vmem:[%s5 + $0x588] sm:$0xff]
  %v947 = vld [vmem:[%s5 + $0x590] sm:$0xff]
  %v948 = vld [vmem:[%s5 + $0x598] sm:$0xff]
  %v949 = vld [vmem:[%s5 + $0x5a0] sm:$0xff]
  %v950 = vld [vmem:[%s5 + $0x5a8] sm:$0xff]
  %v951 = vld [vmem:[%s5 + $0x5b0] sm:$0xff]
  %v952 = vld [vmem:[%s5 + $0x5b8] sm:$0xff]
  %v953 = vld [vmem:[%s5 + $0x5c0] sm:$0xff]
  %v954 = vld [vmem:[%s5 + $0x5c8] sm:$0xff]
  %v955 = vld [vmem:[%s5 + $0x5d0] sm:$0xff]
  %v956 = vld [vmem:[%s5 + $0x5d8] sm:$0xff]
  %v957 = vld [vmem:[%s5 + $0x5e0] sm:$0xff]
  %v958 = vld [vmem:[%s5 + $0x5e8] sm:$0xff]
  %v959 = vld [vmem:[%s5 + $0x5f0] sm:$0xff]
  %v960 = vld [vmem:[%s5 + $0x5f8] sm:$0xff]
  %v961 = vld [vmem:[%s5 + $0x600] sm:$0xff]
  %v962 = vld [vmem:[%s5 + $0x608] sm:$0xff]
  %v963 = vld [vmem:[%s5 + $0x610] sm:$0xff]
  %v964 = vld [vmem:[%s5 + $0x618] sm:$0xff]
  %v965 = vld [vmem:[%s5 + $0x620] sm:$0xff]
  %v966 = vld [vmem:[%s5 + $0x628] sm:$0xff]
  %v967 = vld [vmem:[%s5 + $0x630] sm:$0xff]
  %v968 = vld [vmem:[%s5 + $0x638] sm:$0xff]
  %v969 = vld [vmem:[%s5 + $0x640] sm:$0xff]
  %v970 = vld [vmem:[%s5 + $0x648] sm:$0xff]
  %v971 = vld [vmem:[%s5 + $0x650] sm:$0xff]
  %v972 = vld [vmem:[%s5 + $0x658] sm:$0xff]
  %v973 = vld [vmem:[%s5 + $0x660] sm:$0xff]
  %v974 = vld [vmem:[%s5 + $0x668] sm:$0xff]
  %v975 = vld [vmem:[%s5 + $0x670] sm:$0xff]
  %v976 = vld [vmem:[%s5 + $0x678] sm:$0xff]
  %v977 = vld [vmem:[%s5 + $0x680] sm:$0xff]
  %v978 = vld [vmem:[%s5 + $0x688] sm:$0xff]
  %v979 = vld [vmem:[%s5 + $0x690] sm:$0xff]
  %v980 = vld [vmem:[%s5 + $0x698] sm:$0xff]
  %v981 = vld [vmem:[%s5 + $0x6a0] sm:$0xff]
  %v982 = vld [vmem:[%s5 + $0x6a8] sm:$0xff]
  %v983 = vld [vmem:[%s5 + $0x6b0] sm:$0xff]
  %v984 = vld [vmem:[%s5 + $0x6b8] sm:$0xff]
  %v985 = vld [vmem:[%s5 + $0x6c0] sm:$0xff]
  %v986 = vld [vmem:[%s5 + $0x6c8] sm:$0xff]
  %v987 = vld [vmem:[%s5 + $0x6d0] sm:$0xff]
  %v988 = vld [vmem:[%s5 + $0x6d8] sm:$0xff]
  %v989 = vld [vmem:[%s5 + $0x6e0] sm:$0xff]
  %v990 = vld [vmem:[%s5 + $0x6e8] sm:$0xff]
  %v991 = vld [vmem:[%s5 + $0x6f0] sm:$0xff]
  %v992 = vld [vmem:[%s5 + $0x6f8] sm:$0xff]
  %v993 = vld [vmem:[%s5 + $0x700] sm:$0xff]
  %v994 = vld [vmem:[%s5 + $0x708] sm:$0xff]
  %v995 = vld [vmem:[%s5 + $0x710] sm:$0xff]
  %v996 = vld [vmem:[%s5 + $0x718] sm:$0xff]
  %v997 = vld [vmem:[%s5 + $0x720] sm:$0xff]
  %v998 = vld [vmem:[%s5 + $0x728] sm:$0xff]
  %v999 = vld [vmem:[%s5 + $0x730] sm:$0xff]
  %v1000 = vld [vmem:[%s5 + $0x738] sm:$0xff]
  %v1001 = vld [vmem:[%s5 + $0x740] sm:$0xff]
  %v1002 = vld [vmem:[%s5 + $0x748] sm:$0xff]
  %v1003 = vld [vmem:[%s5 + $0x750] sm:$0xff]
  %v1004 = vld [vmem:[%s5 + $0x758] sm:$0xff]
  %v1005 = vld [vmem:[%s5 + $0x760] sm:$0xff]
  %v1006 = vld [vmem:[%s5 + $0x768] sm:$0xff]
  %v1007 = vld [vmem:[%s5 + $0x770] sm:$0xff]
  %v1008 = vld [vmem:[%s5 + $0x778] sm:$0xff]
  %v1009 = vld [vmem:[%s5 + $0x780] sm:$0xff]
  %v1010 = vld [vmem:[%s5 + $0x788] sm:$0xff]
  %v1011 = vld [vmem:[%s5 + $0x790] sm:$0xff]
  %v1012 = vld [vmem:[%s5 + $0x798] sm:$0xff]
  %v1013 = vld [vmem:[%s5 + $0x7a0] sm:$0xff]
  %v1014 = vld [vmem:[%s5 + $0x7a8] sm:$0xff]
  %v1015 = vld [vmem:[%s5 + $0x7b0] sm:$0xff]
  %v1016 = vld [vmem:[%s5 + $0x7b8] sm:$0xff]
  %v1017 = vld [vmem:[%s5 + $0x7c0] sm:$0xff]
  %v1018 = vld [vmem:[%s5 + $0x7c8] sm:$0xff]
  %v1019 = vld [vmem:[%s5 + $0x7d0] sm:$0xff]
  %v1020 = vld [vmem:[%s5 + $0x7d8] sm:$0xff]
  %v1021 = vld [vmem:[%s5 + $0x7e0] sm:$0xff]
  %v1022 = vld [vmem:[%s5 + $0x7e8] sm:$0xff]
  %v1023 = vld [vmem:[%s5 + $0x7f0] sm:$0xff]
  %v1024 = vld [vmem:[%s5 + $0x7f8] sm:$0xff]
  %v1025 = vld [vmem:[%s5 + $0x800] sm:$0xff]
  %v1026 = vld [vmem:[%s5 + $0x808] sm:$0xff]
  %v1027 = vld [vmem:[%s5 + $0x810] sm:$0xff]
  %v1028 = vld [vmem:[%s5 + $0x818] sm:$0xff]
  %v1029 = vld [vmem:[%s5 + $0x820] sm:$0xff]
  %v1030 = vld [vmem:[%s5 + $0x828] sm:$0xff]
  %v1031 = vld [vmem:[%s5 + $0x830] sm:$0xff]
  %v1032 = vld [vmem:[%s5 + $0x838] sm:$0xff]
  %v1033 = vld [vmem:[%s5 + $0x840] sm:$0xff]
  %v1034 = vld [vmem:[%s5 + $0x848] sm:$0xff]
  %v1035 = vld [vmem:[%s5 + $0x850] sm:$0xff]
  %v1036 = vld [vmem:[%s5 + $0x858] sm:$0xff]
  %v1037 = vld [vmem:[%s5 + $0x860] sm:$0xff]
  %v1038 = vld [vmem:[%s5 + $0x868] sm:$0xff]
  %v1039 = vld [vmem:[%s5 + $0x870] sm:$0xff]
  %v1040 = vld [vmem:[%s5 + $0x878] sm:$0xff]
  %v1041 = vld [vmem:[%s5 + $0x880] sm:$0xff]
  %v1042 = vld [vmem:[%s5 + $0x888] sm:$0xff]
  %v1043 = vld [vmem:[%s5 + $0x890] sm:$0xff]
  %v1044 = vld [vmem:[%s5 + $0x898] sm:$0xff]
  %v1045 = vld [vmem:[%s5 + $0x8a0] sm:$0xff]
  %v1046 = vld [vmem:[%s5 + $0x8a8] sm:$0xff]
  %v1047 = vld [vmem:[%s5 + $0x8b0] sm:$0xff]
  %v1048 = vld [vmem:[%s5 + $0x8b8] sm:$0xff]
  %v1049 = vld [vmem:[%s5 + $0x8c0] sm:$0xff]
  %v1050 = vld [vmem:[%s5 + $0x8c8] sm:$0xff]
  %v1051 = vld [vmem:[%s5 + $0x8d0] sm:$0xff]
  %v1052 = vld [vmem:[%s5 + $0x8d8] sm:$0xff]
  %v1053 = vld [vmem:[%s5 + $0x8e0] sm:$0xff]
  %v1054 = vld [vmem:[%s5 + $0x8e8] sm:$0xff]
  %v1055 = vld [vmem:[%s5 + $0x8f0] sm:$0xff]
  %v1056 = vld [vmem:[%s5 + $0x8f8] sm:$0xff]
  %v1057 = vld [vmem:[%s5 + $0x900] sm:$0xff]
  %v1058 = vld [vmem:[%s5 + $0x908] sm:$0xff]
  %v1059 = vld [vmem:[%s5 + $0x910] sm:$0xff]
  %v1060 = vld [vmem:[%s5 + $0x918] sm:$0xff]
  %v1061 = vld [vmem:[%s5 + $0x920] sm:$0xff]
  %v1062 = vld [vmem:[%s5 + $0x928] sm:$0xff]
  %v1063 = vld [vmem:[%s5 + $0x930] sm:$0xff]
  %v1064 = vld [vmem:[%s5 + $0x938] sm:$0xff]
  %v1065 = vld [vmem:[%s5 + $0x940] sm:$0xff]
  %v1066 = vld [vmem:[%s5 + $0x948] sm:$0xff]
  %v1067 = vld [vmem:[%s5 + $0x950] sm:$0xff]
  %v1068 = vld [vmem:[%s5 + $0x958] sm:$0xff]
  %v1069 = vld [vmem:[%s5 + $0x960] sm:$0xff]
  %v1070 = vld [vmem:[%s5 + $0x968] sm:$0xff]
  %v1071 = vld [vmem:[%s5 + $0x970] sm:$0xff]
  %v1072 = vld [vmem:[%s5 + $0x978] sm:$0xff]
  %v1073 = vld [vmem:[%s5 + $0x980] sm:$0xff]
  %v1074 = vld [vmem:[%s5 + $0x988] sm:$0xff]
  %v1075 = vld [vmem:[%s5 + $0x990] sm:$0xff]
  %v1076 = vld [vmem:[%s5 + $0x998] sm:$0xff]
  %v1077 = vld [vmem:[%s5 + $0x9a0] sm:$0xff]
  %v1078 = vld [vmem:[%s5 + $0x9a8] sm:$0xff]
  %v1079 = vld [vmem:[%s5 + $0x9b0] sm:$0xff]
  %v1080 = vld [vmem:[%s5 + $0x9b8] sm:$0xff]
  %v1081 = vld [vmem:[%s5 + $0x9c0] sm:$0xff]
  %v1082 = vld [vmem:[%s5 + $0x9c8] sm:$0xff]
  %v1083 = vld [vmem:[%s5 + $0x9d0] sm:$0xff]
  %v1084 = vld [vmem:[%s5 + $0x9d8] sm:$0xff]
  %v1085 = vld [vmem:[%s5 + $0x9e0] sm:$0xff]
  %v1086 = vld [vmem:[%s5 + $0x9e8] sm:$0xff]
  %v1087 = vld [vmem:[%s5 + $0x9f0] sm:$0xff]
  %v1088 = vld [vmem:[%s5 + $0x9f8] sm:$0xff]
  %v1089 = vld [vmem:[%s5 + $0xa00] sm:$0xff]
  %v1090 = vld [vmem:[%s5 + $0xa08] sm:$0xff]
  %v1091 = vld [vmem:[%s5 + $0xa10] sm:$0xff]
  %v1092 = vld [vmem:[%s5 + $0xa18] sm:$0xff]
  %v1093 = vld [vmem:[%s5 + $0xa20] sm:$0xff]
  %v1094 = vld [vmem:[%s5 + $0xa28] sm:$0xff]
  %v1095 = vld [vmem:[%s5 + $0xa30] sm:$0xff]
  %v1096 = vld [vmem:[%s5 + $0xa38] sm:$0xff]
  %v1097 = vld [vmem:[%s5 + $0xa40] sm:$0xff]
  %v1098 = vld [vmem:[%s5 + $0xa48] sm:$0xff]
  %v1099 = vld [vmem:[%s5 + $0xa50] sm:$0xff]
  %v1100 = vld [vmem:[%s5 + $0xa58] sm:$0xff]
  %v1101 = vld [vmem:[%s5 + $0xa60] sm:$0xff]
  %v1102 = vld [vmem:[%s5 + $0xa68] sm:$0xff]
  %v1103 = vld [vmem:[%s5 + $0xa70] sm:$0xff]
  %v1104 = vld [vmem:[%s5 + $0xa78] sm:$0xff]
  %v1105 = vld [vmem:[%s5 + $0xa80] sm:$0xff]
  %v1106 = vld [vmem:[%s5 + $0xa88] sm:$0xff]
  %v1107 = vld [vmem:[%s5 + $0xa90] sm:$0xff]
  %v1108 = vld [vmem:[%s5 + $0xa98] sm:$0xff]
  %v1109 = vld [vmem:[%s5 + $0xaa0] sm:$0xff]
  %v1110 = vld [vmem:[%s5 + $0xaa8] sm:$0xff]
  %v1111 = vld [vmem:[%s5 + $0xab0] sm:$0xff]
  %v1112 = vld [vmem:[%s5 + $0xab8] sm:$0xff]
  %v1113 = vld [vmem:[%s5 + $0xac0] sm:$0xff]
  %v1114 = vld [vmem:[%s5 + $0xac8] sm:$0xff]
  %v1115 = vld [vmem:[%s5 + $0xad0] sm:$0xff]
  %v1116 = vld [vmem:[%s5 + $0xad8] sm:$0xff]
  %v1117 = vld [vmem:[%s5 + $0xae0] sm:$0xff]
  %v1118 = vld [vmem:[%s5 + $0xae8] sm:$0xff]
  %v1119 = vld [vmem:[%s5 + $0xaf0] sm:$0xff]
  %v1120 = vld [vmem:[%s5 + $0xaf8] sm:$0xff]
  %v1121 = vld [vmem:[%s5 + $0xb00] sm:$0xff]
  %v1122 = vld [vmem:[%s5 + $0xb08] sm:$0xff]
  %v1123 = vld [vmem:[%s5 + $0xb10] sm:$0xff]
  %v1124 = vld [vmem:[%s5 + $0xb18] sm:$0xff]
  %v1125 = vld [vmem:[%s5 + $0xb20] sm:$0xff]
  %v1126 = vld [vmem:[%s5 + $0xb28] sm:$0xff]
  %v1127 = vld [vmem:[%s5 + $0xb30] sm:$0xff]
  %v1128 = vld [vmem:[%s5 + $0xb38] sm:$0xff]
  %v1129 = vld [vmem:[%s5 + $0xb40] sm:$0xff]
  %v1130 = vld [vmem:[%s5 + $0xb48] sm:$0xff]
  %v1131 = vld [vmem:[%s5 + $0xb50] sm:$0xff]
  %v1132 = vld [vmem:[%s5 + $0xb58] sm:$0xff]
  %v1133 = vld [vmem:[%s5 + $0xb60] sm:$0xff]
  %v1134 = vld [vmem:[%s5 + $0xb68] sm:$0xff]
  %v1135 = vld [vmem:[%s5 + $0xb70] sm:$0xff]
  %v1136 = vld [vmem:[%s5 + $0xb78] sm:$0xff]
  %v1137 = vld [vmem:[%s5 + $0xb80] sm:$0xff]
  %v1138 = vld [vmem:[%s5 + $0xb88] sm:$0xff]
  %v1139 = vld [vmem:[%s5 + $0xb90] sm:$0xff]
  %v1140 = vld [vmem:[%s5 + $0xb98] sm:$0xff]
  %v1141 = vld [vmem:[%s5 + $0xba0] sm:$0xff]
  %v1142 = vld [vmem:[%s5 + $0xba8] sm:$0xff]
  %v1143 = vld [vmem:[%s5 + $0xbb0] sm:$0xff]
  %v1144 = vld [vmem:[%s5 + $0xbb8] sm:$0xff]
  %v1145 = vld [vmem:[%s5 + $0xbc0] sm:$0xff]
  %v1146 = vld [vmem:[%s5 + $0xbc8] sm:$0xff]
  %v1147 = vld [vmem:[%s5 + $0xbd0] sm:$0xff]
  %v1148 = vld [vmem:[%s5 + $0xbd8] sm:$0xff]
  %v1149 = vld [vmem:[%s5 + $0xbe0] sm:$0xff]
  %v1150 = vld [vmem:[%s5 + $0xbe8] sm:$0xff]
  %v1151 = vld [vmem:[%s5 + $0xbf0] sm:$0xff]
  %v1152 = vld [vmem:[%s5 + $0xbf8] sm:$0xff]
  %v1153 = vld [vmem:[%s5 + $0xc00] sm:$0xff]
  %v1154 = vld [vmem:[%s5 + $0xc08] sm:$0xff]
  %v1155 = vld [vmem:[%s5 + $0xc10] sm:$0xff]
  %v1156 = vld [vmem:[%s5 + $0xc18] sm:$0xff]
  %v1157 = vld [vmem:[%s5 + $0xc20] sm:$0xff]
  %v1158 = vld [vmem:[%s5 + $0xc28] sm:$0xff]
  %v1159 = vld [vmem:[%s5 + $0xc30] sm:$0xff]
  %v1160 = vld [vmem:[%s5 + $0xc38] sm:$0xff]
  %v1161 = vld [vmem:[%s5 + $0xc40] sm:$0xff]
  %v1162 = vld [vmem:[%s5 + $0xc48] sm:$0xff]
  %v1163 = vld [vmem:[%s5 + $0xc50] sm:$0xff]
  %v1164 = vld [vmem:[%s5 + $0xc58] sm:$0xff]
  %v1165 = vld [vmem:[%s5 + $0xc60] sm:$0xff]
  %v1166 = vld [vmem:[%s5 + $0xc68] sm:$0xff]
  %v1167 = vld [vmem:[%s5 + $0xc70] sm:$0xff]
  %v1168 = vld [vmem:[%s5 + $0xc78] sm:$0xff]
  %v1169 = vld [vmem:[%s5 + $0xc80] sm:$0xff]
  %v1170 = vld [vmem:[%s5 + $0xc88] sm:$0xff]
  %v1171 = vld [vmem:[%s5 + $0xc90] sm:$0xff]
  %v1172 = vld [vmem:[%s5 + $0xc98] sm:$0xff]
  %v1173 = vld [vmem:[%s5 + $0xca0] sm:$0xff]
  %v1174 = vld [vmem:[%s5 + $0xca8] sm:$0xff]
  %v1175 = vld [vmem:[%s5 + $0xcb0] sm:$0xff]
  %v1176 = vld [vmem:[%s5 + $0xcb8] sm:$0xff]
  %v1177 = vld [vmem:[%s5 + $0xcc0] sm:$0xff]
  %v1178 = vld [vmem:[%s5 + $0xcc8] sm:$0xff]
  %v1179 = vld [vmem:[%s5 + $0xcd0] sm:$0xff]
  %v1180 = vld [vmem:[%s5 + $0xcd8] sm:$0xff]
  %v1181 = vld [vmem:[%s5 + $0xce0] sm:$0xff]
  %v1182 = vld [vmem:[%s5 + $0xce8] sm:$0xff]
  %v1183 = vld [vmem:[%s5 + $0xcf0] sm:$0xff]
  %v1184 = vld [vmem:[%s5 + $0xcf8] sm:$0xff]
  %v1185 = vld [vmem:[%s5 + $0xd00] sm:$0xff]
  %v1186 = vld [vmem:[%s5 + $0xd08] sm:$0xff]
  %v1187 = vld [vmem:[%s5 + $0xd10] sm:$0xff]
  %v1188 = vld [vmem:[%s5 + $0xd18] sm:$0xff]
  %v1189 = vld [vmem:[%s5 + $0xd20] sm:$0xff]
  %v1190 = vld [vmem:[%s5 + $0xd28] sm:$0xff]
  %v1191 = vld [vmem:[%s5 + $0xd30] sm:$0xff]
  %v1192 = vld [vmem:[%s5 + $0xd38] sm:$0xff]
  %v1193 = vld [vmem:[%s5 + $0xd40] sm:$0xff]
  %v1194 = vld [vmem:[%s5 + $0xd48] sm:$0xff]
  %v1195 = vld [vmem:[%s5 + $0xd50] sm:$0xff]
  %v1196 = vld [vmem:[%s5 + $0xd58] sm:$0xff]
  %v1197 = vld [vmem:[%s5 + $0xd60] sm:$0xff]
  %v1198 = vld [vmem:[%s5 + $0xd68] sm:$0xff]
  %v1199 = vld [vmem:[%s5 + $0xd70] sm:$0xff]
  %v1200 = vld [vmem:[%s5 + $0xd78] sm:$0xff]
  %v1201 = vld [vmem:[%s5 + $0xd80] sm:$0xff]
  %v1202 = vld [vmem:[%s5 + $0xd88] sm:$0xff]
  %v1203 = vld [vmem:[%s5 + $0xd90] sm:$0xff]
  %v1204 = vld [vmem:[%s5 + $0xd98] sm:$0xff]
  %v1205 = vld [vmem:[%s5 + $0xda0] sm:$0xff]
  %v1206 = vld [vmem:[%s5 + $0xda8] sm:$0xff]
  %v1207 = vld [vmem:[%s5 + $0xdb0] sm:$0xff]
  %v1208 = vld [vmem:[%s5 + $0xdb8] sm:$0xff]
  %v1209 = vld [vmem:[%s5 + $0xdc0] sm:$0xff]
  %v1210 = vld [vmem:[%s5 + $0xdc8] sm:$0xff]
  %v1211 = vld [vmem:[%s5 + $0xdd0] sm:$0xff]
  %v1212 = vld [vmem:[%s5 + $0xdd8] sm:$0xff]
  %v1213 = vld [vmem:[%s5 + $0xde0] sm:$0xff]
  %v1214 = vld [vmem:[%s5 + $0xde8] sm:$0xff]
  %v1215 = vld [vmem:[%s5 + $0xdf0] sm:$0xff]
  %v1216 = vld [vmem:[%s5 + $0xdf8] sm:$0xff]
  %v1217 = vld [vmem:[%s5 + $0xe00] sm:$0xff]
  %v1218 = vld [vmem:[%s5 + $0xe08] sm:$0xff]
  %v1219 = vld [vmem:[%s5 + $0xe10] sm:$0xff]
  %v1220 = vld [vmem:[%s5 + $0xe18] sm:$0xff]
  %v1221 = vld [vmem:[%s5 + $0xe20] sm:$0xff]
  %v1222 = vld [vmem:[%s5 + $0xe28] sm:$0xff]
  %v1223 = vld [vmem:[%s5 + $0xe30] sm:$0xff]
  %v1224 = vld [vmem:[%s5 + $0xe38] sm:$0xff]
  %v1225 = vld [vmem:[%s5 + $0xe40] sm:$0xff]
  %v1226 = vld [vmem:[%s5 + $0xe48] sm:$0xff]
  %v1227 = vld [vmem:[%s5 + $0xe50] sm:$0xff]
  %v1228 = vld [vmem:[%s5 + $0xe58] sm:$0xff]
  %v1229 = vld [vmem:[%s5 + $0xe60] sm:$0xff]
  %v1230 = vld [vmem:[%s5 + $0xe68] sm:$0xff]
  %v1231 = vld [vmem:[%s5 + $0xe70] sm:$0xff]
  %v1232 = vld [vmem:[%s5 + $0xe78] sm:$0xff]
  %v1233 = vld [vmem:[%s5 + $0xe80] sm:$0xff]
  %v1234 = vld [vmem:[%s5 + $0xe88] sm:$0xff]
  %v1235 = vld [vmem:[%s5 + $0xe90] sm:$0xff]
  %v1236 = vld [vmem:[%s5 + $0xe98] sm:$0xff]
  %v1237 = vld [vmem:[%s5 + $0xea0] sm:$0xff]
  %v1238 = vld [vmem:[%s5 + $0xea8] sm:$0xff]
  %v1239 = vld [vmem:[%s5 + $0xeb0] sm:$0xff]
  %v1240 = vld [vmem:[%s5 + $0xeb8] sm:$0xff]
  %v1241 = vld [vmem:[%s5 + $0xec0] sm:$0xff]
  %v1242 = vld [vmem:[%s5 + $0xec8] sm:$0xff]
  %v1243 = vld [vmem:[%s5 + $0xed0] sm:$0xff]
  %v1244 = vld [vmem:[%s5 + $0xed8] sm:$0xff]
  %v1245 = vld [vmem:[%s5 + $0xee0] sm:$0xff]
  %v1246 = vld [vmem:[%s5 + $0xee8] sm:$0xff]
  %v1247 = vld [vmem:[%s5 + $0xef0] sm:$0xff]
  %v1248 = vld [vmem:[%s5 + $0xef8] sm:$0xff]
  %v1249 = vld [vmem:[%s5 + $0xf00] sm:$0xff]
  %v1250 = vld [vmem:[%s5 + $0xf08] sm:$0xff]
  %v1251 = vld [vmem:[%s5 + $0xf10] sm:$0xff]
  %v1252 = vld [vmem:[%s5 + $0xf18] sm:$0xff]
  %v1253 = vld [vmem:[%s5 + $0xf20] sm:$0xff]
  %v1254 = vld [vmem:[%s5 + $0xf28] sm:$0xff]
  %v1255 = vld [vmem:[%s5 + $0xf30] sm:$0xff]
  %v1256 = vld [vmem:[%s5 + $0xf38] sm:$0xff]
  %v1257 = vld [vmem:[%s5 + $0xf40] sm:$0xff]
  %v1258 = vld [vmem:[%s5 + $0xf48] sm:$0xff]
  %v1259 = vld [vmem:[%s5 + $0xf50] sm:$0xff]
  %v1260 = vld [vmem:[%s5 + $0xf58] sm:$0xff]
  %v1261 = vld [vmem:[%s5 + $0xf60] sm:$0xff]
  %v1262 = vld [vmem:[%s5 + $0xf68] sm:$0xff]
  %v1263 = vld [vmem:[%s5 + $0xf70] sm:$0xff]
  %v1264 = vld [vmem:[%s5 + $0xf78] sm:$0xff]
  %v1265 = vld [vmem:[%s5 + $0xf80] sm:$0xff]
  %v1266 = vld [vmem:[%s5 + $0xf88] sm:$0xff]
  %v1267 = vld [vmem:[%s5 + $0xf90] sm:$0xff]
  %v1268 = vld [vmem:[%s5 + $0xf98] sm:$0xff]
  %v1269 = vld [vmem:[%s5 + $0xfa0] sm:$0xff]
  %v1270 = vld [vmem:[%s5 + $0xfa8] sm:$0xff]
  %v1271 = vld [vmem:[%s5 + $0xfb0] sm:$0xff]
  %v1272 = vld [vmem:[%s5 + $0xfb8] sm:$0xff]
  %v1273 = vld [vmem:[%s5 + $0xfc0] sm:$0xff]
  %v1274 = vld [vmem:[%s5 + $0xfc8] sm:$0xff]
  %v1275 = vld [vmem:[%s5 + $0xfd0] sm:$0xff]
  %v1276 = vld [vmem:[%s5 + $0xfd8] sm:$0xff]
  %v1277 = vld [vmem:[%s5 + $0xfe0] sm:$0xff]
  %v1278 = vld [vmem:[%s5 + $0xfe8] sm:$0xff]
  %v1279 = vld [vmem:[%s5 + $0xff0] sm:$0xff]
  %v1280 = vld [vmem:[%s5 + $0xff8] sm:$0xff]
  %v1281 = vld [vmem:[%s5 + $0x1000] sm:$0xff]
  %v1282 = vld [vmem:[%s5 + $0x1008] sm:$0xff]
  %v1283 = vld [vmem:[%s5 + $0x1010] sm:$0xff]
  %v1284 = vld [vmem:[%s5 + $0x1018] sm:$0xff]
  %v1285 = vld [vmem:[%s5 + $0x1020] sm:$0xff]
  %v1286 = vld [vmem:[%s5 + $0x1028] sm:$0xff]
  %v1287 = vld [vmem:[%s5 + $0x1030] sm:$0xff]
  %v1288 = vld [vmem:[%s5 + $0x1038] sm:$0xff]
  %v1289 = vld [vmem:[%s5 + $0x1040] sm:$0xff]
  %v1290 = vld [vmem:[%s5 + $0x1048] sm:$0xff]
  %v1291 = vld [vmem:[%s5 + $0x1050] sm:$0xff]
  %v1292 = vld [vmem:[%s5 + $0x1058] sm:$0xff]
  %v1293 = vld [vmem:[%s5 + $0x1060] sm:$0xff]
  %v1294 = vld [vmem:[%s5 + $0x1068] sm:$0xff]
  %v1295 = vld [vmem:[%s5 + $0x1070] sm:$0xff]
  %v1296 = vld [vmem:[%s5 + $0x1078] sm:$0xff]
  %v1297 = vld [vmem:[%s5 + $0x1080] sm:$0xff]
  %v1298 = vld [vmem:[%s5 + $0x1088] sm:$0xff]
  %v1299 = vld [vmem:[%s5 + $0x1090] sm:$0xff]
  %v1300 = vld [vmem:[%s5 + $0x1098] sm:$0xff]
  %v1301 = vld [vmem:[%s5 + $0x10a0] sm:$0xff]
  %v1302 = vld [vmem:[%s5 + $0x10a8] sm:$0xff]
  %v1303 = vld [vmem:[%s5 + $0x10b0] sm:$0xff]
  %v1304 = vld [vmem:[%s5 + $0x10b8] sm:$0xff]
  %v1305 = vld [vmem:[%s5 + $0x10c0] sm:$0xff]
  %v1306 = vld [vmem:[%s5 + $0x10c8] sm:$0xff]
  %v1307 = vld [vmem:[%s5 + $0x10d0] sm:$0xff]
  %v1308 = vld [vmem:[%s5 + $0x10d8] sm:$0xff]
  %v1309 = vld [vmem:[%s5 + $0x10e0] sm:$0xff]
  %v1310 = vld [vmem:[%s5 + $0x10e8] sm:$0xff]
  %v1311 = vld [vmem:[%s5 + $0x10f0] sm:$0xff]
  %v1312 = vld [vmem:[%s5 + $0x10f8] sm:$0xff]
  %v1313 = vld [vmem:[%s5 + $0x1100] sm:$0xff]
  %v1314 = vld [vmem:[%s5 + $0x1108] sm:$0xff]
  %v1315 = vld [vmem:[%s5 + $0x1110] sm:$0xff]
  %v1316 = vld [vmem:[%s5 + $0x1118] sm:$0xff]
  %v1317 = vld [vmem:[%s5 + $0x1120] sm:$0xff]
  %v1318 = vld [vmem:[%s5 + $0x1128] sm:$0xff]
  %v1319 = vld [vmem:[%s5 + $0x1130] sm:$0xff]
  %v1320 = vld [vmem:[%s5 + $0x1138] sm:$0xff]
  %v1321 = vld [vmem:[%s5 + $0x1140] sm:$0xff]
  %v1322 = vld [vmem:[%s5 + $0x1148] sm:$0xff]
  %v1323 = vld [vmem:[%s5 + $0x1150] sm:$0xff]
  %v1324 = vld [vmem:[%s5 + $0x1158] sm:$0xff]
  %v1325 = vld [vmem:[%s5 + $0x1160] sm:$0xff]
  %v1326 = vld [vmem:[%s5 + $0x1168] sm:$0xff]
  %v1327 = vld [vmem:[%s5 + $0x1170] sm:$0xff]
  %v1328 = vld [vmem:[%s5 + $0x1178] sm:$0xff]
  %v1329 = vld [vmem:[%s5 + $0x1180] sm:$0xff]
  %v1330 = vld [vmem:[%s5 + $0x1188] sm:$0xff]
  %v1331 = vld [vmem:[%s5 + $0x1190] sm:$0xff]
  %v1332 = vld [vmem:[%s5 + $0x1198] sm:$0xff]
  %v1333 = vld [vmem:[%s5 + $0x11a0] sm:$0xff]
  %v1334 = vld [vmem:[%s5 + $0x11a8] sm:$0xff]
  %v1335 = vld [vmem:[%s5 + $0x11b0] sm:$0xff]
  %v1336 = vld [vmem:[%s5 + $0x11b8] sm:$0xff]
  %v1337 = vld [vmem:[%s5 + $0x11c0] sm:$0xff]
  %v1338 = vld [vmem:[%s5 + $0x11c8] sm:$0xff]
  %v1339 = vld [vmem:[%s5 + $0x11d0] sm:$0xff]
  %v1340 = vld [vmem:[%s5 + $0x11d8] sm:$0xff]
  %v1341 = vld [vmem:[%s5 + $0x11e0] sm:$0xff]
  %v1342 = vld [vmem:[%s5 + $0x11e8] sm:$0xff]
  %v1343 = vld [vmem:[%s5 + $0x11f0] sm:$0xff]
  %v1344 = vld [vmem:[%s5 + $0x11f8] sm:$0xff]
  %v1345 = vld [vmem:[%s5 + $0x1200] sm:$0xff]
  %v1346 = vld [vmem:[%s5 + $0x1208] sm:$0xff]
  %v1347 = vld [vmem:[%s5 + $0x1210] sm:$0xff]
  %v1348 = vld [vmem:[%s5 + $0x1218] sm:$0xff]
  %v1349 = vld [vmem:[%s5 + $0x1220] sm:$0xff]
  %v1350 = vld [vmem:[%s5 + $0x1228] sm:$0xff]
  %v1351 = vld [vmem:[%s5 + $0x1230] sm:$0xff]
  %v1352 = vld [vmem:[%s5 + $0x1238] sm:$0xff]
  %v1353 = vld [vmem:[%s5 + $0x1240] sm:$0xff]
  %v1354 = vld [vmem:[%s5 + $0x1248] sm:$0xff]
  %v1355 = vld [vmem:[%s5 + $0x1250] sm:$0xff]
  %v1356 = vld [vmem:[%s5 + $0x1258] sm:$0xff]
  %v1357 = vld [vmem:[%s5 + $0x1260] sm:$0xff]
  %v1358 = vld [vmem:[%s5 + $0x1268] sm:$0xff]
  %v1359 = vld [vmem:[%s5 + $0x1270] sm:$0xff]
  %v1360 = vld [vmem:[%s5 + $0x1278] sm:$0xff]
  %v1361 = vld [vmem:[%s5 + $0x1280] sm:$0xff]
  %v1362 = vld [vmem:[%s5 + $0x1288] sm:$0xff]
  %v1363 = vld [vmem:[%s5 + $0x1290] sm:$0xff]
  %v1364 = vld [vmem:[%s5 + $0x1298] sm:$0xff]
  %v1365 = vld [vmem:[%s5 + $0x12a0] sm:$0xff]
  %v1366 = vld [vmem:[%s5 + $0x12a8] sm:$0xff]
  %v1367 = vld [vmem:[%s5 + $0x12b0] sm:$0xff]
  %v1368 = vld [vmem:[%s5 + $0x12b8] sm:$0xff]
  %v1369 = vld [vmem:[%s5 + $0x12c0] sm:$0xff]
  %v1370 = vld [vmem:[%s5 + $0x12c8] sm:$0xff]
  %v1371 = vld [vmem:[%s5 + $0x12d0] sm:$0xff]
  %v1372 = vld [vmem:[%s5 + $0x12d8] sm:$0xff]
  %v1373 = vld [vmem:[%s5 + $0x12e0] sm:$0xff]
  %v1374 = vld [vmem:[%s5 + $0x12e8] sm:$0xff]
  %v1375 = vld [vmem:[%s5 + $0x12f0] sm:$0xff]
  %v1376 = vld [vmem:[%s5 + $0x12f8] sm:$0xff]
  %v1377 = vld [vmem:[%s5 + $0x1300] sm:$0xff]
  %v1378 = vld [vmem:[%s5 + $0x1308] sm:$0xff]
  %v1379 = vld [vmem:[%s5 + $0x1310] sm:$0xff]
  %v1380 = vld [vmem:[%s5 + $0x1318] sm:$0xff]
  %v1381 = vld [vmem:[%s5 + $0x1320] sm:$0xff]
  %v1382 = vld [vmem:[%s5 + $0x1328] sm:$0xff]
  %v1383 = vld [vmem:[%s5 + $0x1330] sm:$0xff]
  %v1384 = vld [vmem:[%s5 + $0x1338] sm:$0xff]
  %v1385 = vld [vmem:[%s5 + $0x1340] sm:$0xff]
  %v1386 = vld [vmem:[%s5 + $0x1348] sm:$0xff]
  %v1387 = vld [vmem:[%s5 + $0x1350] sm:$0xff]
  %v1388 = vld [vmem:[%s5 + $0x1358] sm:$0xff]
  %v1389 = vld [vmem:[%s5 + $0x1360] sm:$0xff]
  %v1390 = vld [vmem:[%s5 + $0x1368] sm:$0xff]
  %v1391 = vld [vmem:[%s5 + $0x1370] sm:$0xff]
  %v1392 = vld [vmem:[%s5 + $0x1378] sm:$0xff]
  %v1393 = vld [vmem:[%s5 + $0x1380] sm:$0xff]
  %v1394 = vld [vmem:[%s5 + $0x1388] sm:$0xff]
  %v1395 = vld [vmem:[%s5 + $0x1390] sm:$0xff]
  %v1396 = vld [vmem:[%s5 + $0x1398] sm:$0xff]
  %v1397 = vld [vmem:[%s5 + $0x13a0] sm:$0xff]
  %v1398 = vld [vmem:[%s5 + $0x13a8] sm:$0xff]
  %v1399 = vld [vmem:[%s5 + $0x13b0] sm:$0xff]
  %v1400 = vld [vmem:[%s5 + $0x13b8] sm:$0xff]
  %v1401 = vld [vmem:[%s5 + $0x13c0] sm:$0xff]
  %v1402 = vld [vmem:[%s5 + $0x13c8] sm:$0xff]
  %v1403 = vld [vmem:[%s5 + $0x13d0] sm:$0xff]
  %v1404 = vld [vmem:[%s5 + $0x13d8] sm:$0xff]
  %v1405 = vld [vmem:[%s5 + $0x13e0] sm:$0xff]
  %v1406 = vld [vmem:[%s5 + $0x13e8] sm:$0xff]
  %v1407 = vld [vmem:[%s5 + $0x13f0] sm:$0xff]
  %v1408 = vld [vmem:[%s5 + $0x13f8] sm:$0xff]
  %v1409 = vld [vmem:[%s5 + $0x1400] sm:$0xff]
  %v1410 = vld [vmem:[%s5 + $0x1408] sm:$0xff]
  %v1411 = vld [vmem:[%s5 + $0x1410] sm:$0xff]
  %v1412 = vld [vmem:[%s5 + $0x1418] sm:$0xff]
  %v1413 = vld [vmem:[%s5 + $0x1420] sm:$0xff]
  %v1414 = vld [vmem:[%s5 + $0x1428] sm:$0xff]
  %v1415 = vld [vmem:[%s5 + $0x1430] sm:$0xff]
  %v1416 = vld [vmem:[%s5 + $0x1438] sm:$0xff]
  %v1417 = vld [vmem:[%s5 + $0x1440] sm:$0xff]
  %v1418 = vld [vmem:[%s5 + $0x1448] sm:$0xff]
  %v1419 = vld [vmem:[%s5 + $0x1450] sm:$0xff]
  %v1420 = vld [vmem:[%s5 + $0x1458] sm:$0xff]
  %v1421 = vld [vmem:[%s5 + $0x1460] sm:$0xff]
  %v1422 = vld [vmem:[%s5 + $0x1468] sm:$0xff]
  %v1423 = vld [vmem:[%s5 + $0x1470] sm:$0xff]
  %v1424 = vld [vmem:[%s5 + $0x1478] sm:$0xff]
  %v1425 = vld [vmem:[%s5 + $0x1480] sm:$0xff]
  %v1426 = vld [vmem:[%s5 + $0x1488] sm:$0xff]
  %v1427 = vld [vmem:[%s5 + $0x1490] sm:$0xff]
  %v1428 = vld [vmem:[%s5 + $0x1498] sm:$0xff]
  %v1429 = vld [vmem:[%s5 + $0x14a0] sm:$0xff]
  %v1430 = vld [vmem:[%s5 + $0x14a8] sm:$0xff]
  %v1431 = vld [vmem:[%s5 + $0x14b0] sm:$0xff]
  %v1432 = vld [vmem:[%s5 + $0x14b8] sm:$0xff]
  %v1433 = vld [vmem:[%s5 + $0x14c0] sm:$0xff]
  %v1434 = vld [vmem:[%s5 + $0x14c8] sm:$0xff]
  %v1435 = vld [vmem:[%s5 + $0x14d0] sm:$0xff]
  %v1436 = vld [vmem:[%s5 + $0x14d8] sm:$0xff]
  %v1437 = vld [vmem:[%s5 + $0x14e0] sm:$0xff]
  %v1438 = vld [vmem:[%s5 + $0x14e8] sm:$0xff]
  %v1439 = vld [vmem:[%s5 + $0x14f0] sm:$0xff]
  %v1440 = vld [vmem:[%s5 + $0x14f8] sm:$0xff]
  %v1441 = vld [vmem:[%s5 + $0x1500] sm:$0xff]
  %v1442 = vld [vmem:[%s5 + $0x1508] sm:$0xff]
  %v1443 = vld [vmem:[%s5 + $0x1510] sm:$0xff]
  %v1444 = vld [vmem:[%s5 + $0x1518] sm:$0xff]
  %v1445 = vld [vmem:[%s5 + $0x1520] sm:$0xff]
  %v1446 = vld [vmem:[%s5 + $0x1528] sm:$0xff]
  %v1447 = vld [vmem:[%s5 + $0x1530] sm:$0xff]
  %v1448 = vld [vmem:[%s5 + $0x1538] sm:$0xff]
  %v1449 = vld [vmem:[%s5 + $0x1540] sm:$0xff]
  %v1450 = vld [vmem:[%s5 + $0x1548] sm:$0xff]
  %v1451 = vld [vmem:[%s5 + $0x1550] sm:$0xff]
  %v1452 = vld [vmem:[%s5 + $0x1558] sm:$0xff]
  %v1453 = vld [vmem:[%s5 + $0x1560] sm:$0xff]
  %v1454 = vld [vmem:[%s5 + $0x1568] sm:$0xff]
  %v1455 = vld [vmem:[%s5 + $0x1570] sm:$0xff]
  %v1456 = vld [vmem:[%s5 + $0x1578] sm:$0xff]
  %v1457 = vld [vmem:[%s5 + $0x1580] sm:$0xff]
  %v1458 = vld [vmem:[%s5 + $0x1588] sm:$0xff]
  %v1459 = vld [vmem:[%s5 + $0x1590] sm:$0xff]
  %v1460 = vld [vmem:[%s5 + $0x1598] sm:$0xff]
  %v1461 = vld [vmem:[%s5 + $0x15a0] sm:$0xff]
  %v1462 = vld [vmem:[%s5 + $0x15a8] sm:$0xff]
  %v1463 = vld [vmem:[%s5 + $0x15b0] sm:$0xff]
  %v1464 = vld [vmem:[%s5 + $0x15b8] sm:$0xff]
  %v1465 = vld [vmem:[%s5 + $0x15c0] sm:$0xff]
  %v1466 = vld [vmem:[%s5 + $0x15c8] sm:$0xff]
  %v1467 = vld [vmem:[%s5 + $0x15d0] sm:$0xff]
  %v1468 = vld [vmem:[%s5 + $0x15d8] sm:$0xff]
  %v1469 = vld [vmem:[%s5 + $0x15e0] sm:$0xff]
  %v1470 = vld [vmem:[%s5 + $0x15e8] sm:$0xff]
  %v1471 = vld [vmem:[%s5 + $0x15f0] sm:$0xff]
  %v1472 = vld [vmem:[%s5 + $0x15f8] sm:$0xff]
  %v1473 = vld [vmem:[%s5 + $0x1600] sm:$0xff]
  %v1474 = vld [vmem:[%s5 + $0x1608] sm:$0xff]
  %v1475 = vld [vmem:[%s5 + $0x1610] sm:$0xff]
  %v1476 = vld [vmem:[%s5 + $0x1618] sm:$0xff]
  %v1477 = vld [vmem:[%s5 + $0x1620] sm:$0xff]
  %v1478 = vld [vmem:[%s5 + $0x1628] sm:$0xff]
  %v1479 = vld [vmem:[%s5 + $0x1630] sm:$0xff]
  %v1480 = vld [vmem:[%s5 + $0x1638] sm:$0xff]
  %v1481 = vld [vmem:[%s5 + $0x1640] sm:$0xff]
  %v1482 = vld [vmem:[%s5 + $0x1648] sm:$0xff]
  %v1483 = vld [vmem:[%s5 + $0x1650] sm:$0xff]
  %v1484 = vld [vmem:[%s5 + $0x1658] sm:$0xff]
  %v1485 = vld [vmem:[%s5 + $0x1660] sm:$0xff]
  %v1486 = vld [vmem:[%s5 + $0x1668] sm:$0xff]
  %v1487 = vld [vmem:[%s5 + $0x1670] sm:$0xff]
  %v1488 = vld [vmem:[%s5 + $0x1678] sm:$0xff]
  %v1489 = vld [vmem:[%s5 + $0x1680] sm:$0xff]
  %v1490 = vld [vmem:[%s5 + $0x1688] sm:$0xff]
  %v1491 = vld [vmem:[%s5 + $0x1690] sm:$0xff]
  %v1492 = vld [vmem:[%s5 + $0x1698] sm:$0xff]
  %v1493 = vld [vmem:[%s5 + $0x16a0] sm:$0xff]
  %v1494 = vld [vmem:[%s5 + $0x16a8] sm:$0xff]
  %v1495 = vld [vmem:[%s5 + $0x16b0] sm:$0xff]
  %v1496 = vld [vmem:[%s5 + $0x16b8] sm:$0xff]
  %v1497 = vld [vmem:[%s5 + $0x16c0] sm:$0xff]
  %v1498 = vld [vmem:[%s5 + $0x16c8] sm:$0xff]
  %v1499 = vld [vmem:[%s5 + $0x16d0] sm:$0xff]
  %v1500 = vld [vmem:[%s5 + $0x16d8] sm:$0xff]
  %v1501 = vld [vmem:[%s5 + $0x16e0] sm:$0xff]
  %v1502 = vld [vmem:[%s5 + $0x16e8] sm:$0xff]
  %v1503 = vld [vmem:[%s5 + $0x16f0] sm:$0xff]
  %v1504 = vld [vmem:[%s5 + $0x16f8] sm:$0xff]
  %v1505 = vld [vmem:[%s5 + $0x1700] sm:$0xff]
  %v1506 = vld [vmem:[%s5 + $0x1708] sm:$0xff]
  %v1507 = vld [vmem:[%s5 + $0x1710] sm:$0xff]
  %v1508 = vld [vmem:[%s5 + $0x1718] sm:$0xff]
  %v1509 = vld [vmem:[%s5 + $0x1720] sm:$0xff]
  %v1510 = vld [vmem:[%s5 + $0x1728] sm:$0xff]
  %v1511 = vld [vmem:[%s5 + $0x1730] sm:$0xff]
  %v1512 = vld [vmem:[%s5 + $0x1738] sm:$0xff]
  %v1513 = vld [vmem:[%s5 + $0x1740] sm:$0xff]
  %v1514 = vld [vmem:[%s5 + $0x1748] sm:$0xff]
  %v1515 = vld [vmem:[%s5 + $0x1750] sm:$0xff]
  %v1516 = vld [vmem:[%s5 + $0x1758] sm:$0xff]
  %v1517 = vld [vmem:[%s5 + $0x1760] sm:$0xff]
  %v1518 = vld [vmem:[%s5 + $0x1768] sm:$0xff]
  %v1519 = vld [vmem:[%s5 + $0x1770] sm:$0xff]
  %v1520 = vld [vmem:[%s5 + $0x1778] sm:$0xff]
  %v1521 = vld [vmem:[%s5 + $0x1780] sm:$0xff]
  %v1522 = vld [vmem:[%s5 + $0x1788] sm:$0xff]
  %v1523 = vld [vmem:[%s5 + $0x1790] sm:$0xff]
  %v1524 = vld [vmem:[%s5 + $0x1798] sm:$0xff]
  %v1525 = vld [vmem:[%s5 + $0x17a0] sm:$0xff]
  %v1526 = vld [vmem:[%s5 + $0x17a8] sm:$0xff]
  %v1527 = vld [vmem:[%s5 + $0x17b0] sm:$0xff]
  %v1528 = vld [vmem:[%s5 + $0x17b8] sm:$0xff]
  %v1529 = vld [vmem:[%s5 + $0x17c0] sm:$0xff]
  %v1530 = vld [vmem:[%s5 + $0x17c8] sm:$0xff]
  %v1531 = vld [vmem:[%s5 + $0x17d0] sm:$0xff]
  %v1532 = vld [vmem:[%s5 + $0x17d8] sm:$0xff]
  %v1533 = vld [vmem:[%s5 + $0x17e0] sm:$0xff]
  %v1534 = vld [vmem:[%s5 + $0x17e8] sm:$0xff]
  %v1535 = vld [vmem:[%s5 + $0x17f0] sm:$0xff]
  %v1536 = vld [vmem:[%s5 + $0x17f8] sm:$0xff]
  %v1537 = vunpack.c.l.bf16 %v769
  %v1538 = vunpack.c.h.bf16 %v769
  %v1539 = vunpack.c.l.bf16 %v770
  %v1540 = vunpack.c.h.bf16 %v770
  %v1541 = vunpack.c.l.bf16 %v771
  %v1542 = vunpack.c.h.bf16 %v771
  %v1543 = vunpack.c.l.bf16 %v772
  %v1544 = vunpack.c.h.bf16 %v772
  %v1545 = vunpack.c.l.bf16 %v773
  %v1546 = vunpack.c.h.bf16 %v773
  %v1547 = vunpack.c.l.bf16 %v774
  %v1548 = vunpack.c.h.bf16 %v774
  %v1549 = vunpack.c.l.bf16 %v775
  %v1550 = vunpack.c.h.bf16 %v775
  %v1551 = vunpack.c.l.bf16 %v776
  %v1552 = vunpack.c.h.bf16 %v776
  %v1553 = vunpack.c.l.bf16 %v777
  %v1554 = vunpack.c.h.bf16 %v777
  %v1555 = vunpack.c.l.bf16 %v778
  %v1556 = vunpack.c.h.bf16 %v778
  %v1557 = vunpack.c.l.bf16 %v779
  %v1558 = vunpack.c.h.bf16 %v779
  %v1559 = vunpack.c.l.bf16 %v780
  %v1560 = vunpack.c.h.bf16 %v780
  %v1561 = vunpack.c.l.bf16 %v781
  %v1562 = vunpack.c.h.bf16 %v781
  %v1563 = vunpack.c.l.bf16 %v782
  %v1564 = vunpack.c.h.bf16 %v782
  %v1565 = vunpack.c.l.bf16 %v783
  %v1566 = vunpack.c.h.bf16 %v783
  %v1567 = vunpack.c.l.bf16 %v784
  %v1568 = vunpack.c.h.bf16 %v784
  %v1569 = vunpack.c.l.bf16 %v785
  %v1570 = vunpack.c.h.bf16 %v785
  %v1571 = vunpack.c.l.bf16 %v786
  %v1572 = vunpack.c.h.bf16 %v786
  %v1573 = vunpack.c.l.bf16 %v787
  %v1574 = vunpack.c.h.bf16 %v787
  %v1575 = vunpack.c.l.bf16 %v788
  %v1576 = vunpack.c.h.bf16 %v788
  %v1577 = vunpack.c.l.bf16 %v789
  %v1578 = vunpack.c.h.bf16 %v789
  %v1579 = vunpack.c.l.bf16 %v790
  %v1580 = vunpack.c.h.bf16 %v790
  %v1581 = vunpack.c.l.bf16 %v791
  %v1582 = vunpack.c.h.bf16 %v791
  %v1583 = vunpack.c.l.bf16 %v792
  %v1584 = vunpack.c.h.bf16 %v792
  %v1585 = vunpack.c.l.bf16 %v793
  %v1586 = vunpack.c.h.bf16 %v793
  %v1587 = vunpack.c.l.bf16 %v794
  %v1588 = vunpack.c.h.bf16 %v794
  %v1589 = vunpack.c.l.bf16 %v795
  %v1590 = vunpack.c.h.bf16 %v795
  %v1591 = vunpack.c.l.bf16 %v796
  %v1592 = vunpack.c.h.bf16 %v796
  %v1593 = vunpack.c.l.bf16 %v797
  %v1594 = vunpack.c.h.bf16 %v797
  %v1595 = vunpack.c.l.bf16 %v798
  %v1596 = vunpack.c.h.bf16 %v798
  %v1597 = vunpack.c.l.bf16 %v799
  %v1598 = vunpack.c.h.bf16 %v799
  %v1599 = vunpack.c.l.bf16 %v800
  %v1600 = vunpack.c.h.bf16 %v800
  %v1601 = vunpack.c.l.bf16 %v801
  %v1602 = vunpack.c.h.bf16 %v801
  %v1603 = vunpack.c.l.bf16 %v802
  %v1604 = vunpack.c.h.bf16 %v802
  %v1605 = vunpack.c.l.bf16 %v803
  %v1606 = vunpack.c.h.bf16 %v803
  %v1607 = vunpack.c.l.bf16 %v804
  %v1608 = vunpack.c.h.bf16 %v804
  %v1609 = vunpack.c.l.bf16 %v805
  %v1610 = vunpack.c.h.bf16 %v805
  %v1611 = vunpack.c.l.bf16 %v806
  %v1612 = vunpack.c.h.bf16 %v806
  %v1613 = vunpack.c.l.bf16 %v807
  %v1614 = vunpack.c.h.bf16 %v807
  %v1615 = vunpack.c.l.bf16 %v808
  %v1616 = vunpack.c.h.bf16 %v808
  %v1617 = vunpack.c.l.bf16 %v809
  %v1618 = vunpack.c.h.bf16 %v809
  %v1619 = vunpack.c.l.bf16 %v810
  %v1620 = vunpack.c.h.bf16 %v810
  %v1621 = vunpack.c.l.bf16 %v811
  %v1622 = vunpack.c.h.bf16 %v811
  %v1623 = vunpack.c.l.bf16 %v812
  %v1624 = vunpack.c.h.bf16 %v812
  %v1625 = vunpack.c.l.bf16 %v813
  %v1626 = vunpack.c.h.bf16 %v813
  %v1627 = vunpack.c.l.bf16 %v814
  %v1628 = vunpack.c.h.bf16 %v814
  %v1629 = vunpack.c.l.bf16 %v815
  %v1630 = vunpack.c.h.bf16 %v815
  %v1631 = vunpack.c.l.bf16 %v816
  %v1632 = vunpack.c.h.bf16 %v816
  %v1633 = vunpack.c.l.bf16 %v817
  %v1634 = vunpack.c.h.bf16 %v817
  %v1635 = vunpack.c.l.bf16 %v818
  %v1636 = vunpack.c.h.bf16 %v818
  %v1637 = vunpack.c.l.bf16 %v819
  %v1638 = vunpack.c.h.bf16 %v819
  %v1639 = vunpack.c.l.bf16 %v820
  %v1640 = vunpack.c.h.bf16 %v820
  %v1641 = vunpack.c.l.bf16 %v821
  %v1642 = vunpack.c.h.bf16 %v821
  %v1643 = vunpack.c.l.bf16 %v822
  %v1644 = vunpack.c.h.bf16 %v822
  %v1645 = vunpack.c.l.bf16 %v823
  %v1646 = vunpack.c.h.bf16 %v823
  %v1647 = vunpack.c.l.bf16 %v824
  %v1648 = vunpack.c.h.bf16 %v824
  %v1649 = vunpack.c.l.bf16 %v825
  %v1650 = vunpack.c.h.bf16 %v825
  %v1651 = vunpack.c.l.bf16 %v826
  %v1652 = vunpack.c.h.bf16 %v826
  %v1653 = vunpack.c.l.bf16 %v827
  %v1654 = vunpack.c.h.bf16 %v827
  %v1655 = vunpack.c.l.bf16 %v828
  %v1656 = vunpack.c.h.bf16 %v828
  %v1657 = vunpack.c.l.bf16 %v829
  %v1658 = vunpack.c.h.bf16 %v829
  %v1659 = vunpack.c.l.bf16 %v830
  %v1660 = vunpack.c.h.bf16 %v830
  %v1661 = vunpack.c.l.bf16 %v831
  %v1662 = vunpack.c.h.bf16 %v831
  %v1663 = vunpack.c.l.bf16 %v832
  %v1664 = vunpack.c.h.bf16 %v832
  %v1665 = vunpack.c.l.bf16 %v833
  %v1666 = vunpack.c.h.bf16 %v833
  %v1667 = vunpack.c.l.bf16 %v834
  %v1668 = vunpack.c.h.bf16 %v834
  %v1669 = vunpack.c.l.bf16 %v835
  %v1670 = vunpack.c.h.bf16 %v835
  %v1671 = vunpack.c.l.bf16 %v836
  %v1672 = vunpack.c.h.bf16 %v836
  %v1673 = vunpack.c.l.bf16 %v837
  %v1674 = vunpack.c.h.bf16 %v837
  %v1675 = vunpack.c.l.bf16 %v838
  %v1676 = vunpack.c.h.bf16 %v838
  %v1677 = vunpack.c.l.bf16 %v839
  %v1678 = vunpack.c.h.bf16 %v839
  %v1679 = vunpack.c.l.bf16 %v840
  %v1680 = vunpack.c.h.bf16 %v840
  %v1681 = vunpack.c.l.bf16 %v841
  %v1682 = vunpack.c.h.bf16 %v841
  %v1683 = vunpack.c.l.bf16 %v842
  %v1684 = vunpack.c.h.bf16 %v842
  %v1685 = vunpack.c.l.bf16 %v843
  %v1686 = vunpack.c.h.bf16 %v843
  %v1687 = vunpack.c.l.bf16 %v844
  %v1688 = vunpack.c.h.bf16 %v844
  %v1689 = vunpack.c.l.bf16 %v845
  %v1690 = vunpack.c.h.bf16 %v845
  %v1691 = vunpack.c.l.bf16 %v846
  %v1692 = vunpack.c.h.bf16 %v846
  %v1693 = vunpack.c.l.bf16 %v847
  %v1694 = vunpack.c.h.bf16 %v847
  %v1695 = vunpack.c.l.bf16 %v848
  %v1696 = vunpack.c.h.bf16 %v848
  %v1697 = vunpack.c.l.bf16 %v849
  %v1698 = vunpack.c.h.bf16 %v849
  %v1699 = vunpack.c.l.bf16 %v850
  %v1700 = vunpack.c.h.bf16 %v850
  %v1701 = vunpack.c.l.bf16 %v851
  %v1702 = vunpack.c.h.bf16 %v851
  %v1703 = vunpack.c.l.bf16 %v852
  %v1704 = vunpack.c.h.bf16 %v852
  %v1705 = vunpack.c.l.bf16 %v853
  %v1706 = vunpack.c.h.bf16 %v853
  %v1707 = vunpack.c.l.bf16 %v854
  %v1708 = vunpack.c.h.bf16 %v854
  %v1709 = vunpack.c.l.bf16 %v855
  %v1710 = vunpack.c.h.bf16 %v855
  %v1711 = vunpack.c.l.bf16 %v856
  %v1712 = vunpack.c.h.bf16 %v856
  %v1713 = vunpack.c.l.bf16 %v857
  %v1714 = vunpack.c.h.bf16 %v857
  %v1715 = vunpack.c.l.bf16 %v858
  %v1716 = vunpack.c.h.bf16 %v858
  %v1717 = vunpack.c.l.bf16 %v859
  %v1718 = vunpack.c.h.bf16 %v859
  %v1719 = vunpack.c.l.bf16 %v860
  %v1720 = vunpack.c.h.bf16 %v860
  %v1721 = vunpack.c.l.bf16 %v861
  %v1722 = vunpack.c.h.bf16 %v861
  %v1723 = vunpack.c.l.bf16 %v862
  %v1724 = vunpack.c.h.bf16 %v862
  %v1725 = vunpack.c.l.bf16 %v863
  %v1726 = vunpack.c.h.bf16 %v863
  %v1727 = vunpack.c.l.bf16 %v864
  %v1728 = vunpack.c.h.bf16 %v864
  %v1729 = vunpack.c.l.bf16 %v865
  %v1730 = vunpack.c.h.bf16 %v865
  %v1731 = vunpack.c.l.bf16 %v866
  %v1732 = vunpack.c.h.bf16 %v866
  %v1733 = vunpack.c.l.bf16 %v867
  %v1734 = vunpack.c.h.bf16 %v867
  %v1735 = vunpack.c.l.bf16 %v868
  %v1736 = vunpack.c.h.bf16 %v868
  %v1737 = vunpack.c.l.bf16 %v869
  %v1738 = vunpack.c.h.bf16 %v869
  %v1739 = vunpack.c.l.bf16 %v870
  %v1740 = vunpack.c.h.bf16 %v870
  %v1741 = vunpack.c.l.bf16 %v871
  %v1742 = vunpack.c.h.bf16 %v871
  %v1743 = vunpack.c.l.bf16 %v872
  %v1744 = vunpack.c.h.bf16 %v872
  %v1745 = vunpack.c.l.bf16 %v873
  %v1746 = vunpack.c.h.bf16 %v873
  %v1747 = vunpack.c.l.bf16 %v874
  %v1748 = vunpack.c.h.bf16 %v874
  %v1749 = vunpack.c.l.bf16 %v875
  %v1750 = vunpack.c.h.bf16 %v875
  %v1751 = vunpack.c.l.bf16 %v876
  %v1752 = vunpack.c.h.bf16 %v876
  %v1753 = vunpack.c.l.bf16 %v877
  %v1754 = vunpack.c.h.bf16 %v877
  %v1755 = vunpack.c.l.bf16 %v878
  %v1756 = vunpack.c.h.bf16 %v878
  %v1757 = vunpack.c.l.bf16 %v879
  %v1758 = vunpack.c.h.bf16 %v879
  %v1759 = vunpack.c.l.bf16 %v880
  %v1760 = vunpack.c.h.bf16 %v880
  %v1761 = vunpack.c.l.bf16 %v881
  %v1762 = vunpack.c.h.bf16 %v881
  %v1763 = vunpack.c.l.bf16 %v882
  %v1764 = vunpack.c.h.bf16 %v882
  %v1765 = vunpack.c.l.bf16 %v883
  %v1766 = vunpack.c.h.bf16 %v883
  %v1767 = vunpack.c.l.bf16 %v884
  %v1768 = vunpack.c.h.bf16 %v884
  %v1769 = vunpack.c.l.bf16 %v885
  %v1770 = vunpack.c.h.bf16 %v885
  %v1771 = vunpack.c.l.bf16 %v886
  %v1772 = vunpack.c.h.bf16 %v886
  %v1773 = vunpack.c.l.bf16 %v887
  %v1774 = vunpack.c.h.bf16 %v887
  %v1775 = vunpack.c.l.bf16 %v888
  %v1776 = vunpack.c.h.bf16 %v888
  %v1777 = vunpack.c.l.bf16 %v889
  %v1778 = vunpack.c.h.bf16 %v889
  %v1779 = vunpack.c.l.bf16 %v890
  %v1780 = vunpack.c.h.bf16 %v890
  %v1781 = vunpack.c.l.bf16 %v891
  %v1782 = vunpack.c.h.bf16 %v891
  %v1783 = vunpack.c.l.bf16 %v892
  %v1784 = vunpack.c.h.bf16 %v892
  %v1785 = vunpack.c.l.bf16 %v893
  %v1786 = vunpack.c.h.bf16 %v893
  %v1787 = vunpack.c.l.bf16 %v894
  %v1788 = vunpack.c.h.bf16 %v894
  %v1789 = vunpack.c.l.bf16 %v895
  %v1790 = vunpack.c.h.bf16 %v895
  %v1791 = vunpack.c.l.bf16 %v896
  %v1792 = vunpack.c.h.bf16 %v896
  %v1793 = vunpack.c.l.bf16 %v897
  %v1794 = vunpack.c.h.bf16 %v897
  %v1795 = vunpack.c.l.bf16 %v898
  %v1796 = vunpack.c.h.bf16 %v898
  %v1797 = vunpack.c.l.bf16 %v899
  %v1798 = vunpack.c.h.bf16 %v899
  %v1799 = vunpack.c.l.bf16 %v900
  %v1800 = vunpack.c.h.bf16 %v900
  %v1801 = vunpack.c.l.bf16 %v901
  %v1802 = vunpack.c.h.bf16 %v901
  %v1803 = vunpack.c.l.bf16 %v902
  %v1804 = vunpack.c.h.bf16 %v902
  %v1805 = vunpack.c.l.bf16 %v903
  %v1806 = vunpack.c.h.bf16 %v903
  %v1807 = vunpack.c.l.bf16 %v904
  %v1808 = vunpack.c.h.bf16 %v904
  %v1809 = vunpack.c.l.bf16 %v905
  %v1810 = vunpack.c.h.bf16 %v905
  %v1811 = vunpack.c.l.bf16 %v906
  %v1812 = vunpack.c.h.bf16 %v906
  %v1813 = vunpack.c.l.bf16 %v907
  %v1814 = vunpack.c.h.bf16 %v907
  %v1815 = vunpack.c.l.bf16 %v908
  %v1816 = vunpack.c.h.bf16 %v908
  %v1817 = vunpack.c.l.bf16 %v909
  %v1818 = vunpack.c.h.bf16 %v909
  %v1819 = vunpack.c.l.bf16 %v910
  %v1820 = vunpack.c.h.bf16 %v910
  %v1821 = vunpack.c.l.bf16 %v911
  %v1822 = vunpack.c.h.bf16 %v911
  %v1823 = vunpack.c.l.bf16 %v912
  %v1824 = vunpack.c.h.bf16 %v912
  %v1825 = vunpack.c.l.bf16 %v913
  %v1826 = vunpack.c.h.bf16 %v913
  %v1827 = vunpack.c.l.bf16 %v914
  %v1828 = vunpack.c.h.bf16 %v914
  %v1829 = vunpack.c.l.bf16 %v915
  %v1830 = vunpack.c.h.bf16 %v915
  %v1831 = vunpack.c.l.bf16 %v916
  %v1832 = vunpack.c.h.bf16 %v916
  %v1833 = vunpack.c.l.bf16 %v917
  %v1834 = vunpack.c.h.bf16 %v917
  %v1835 = vunpack.c.l.bf16 %v918
  %v1836 = vunpack.c.h.bf16 %v918
  %v1837 = vunpack.c.l.bf16 %v919
  %v1838 = vunpack.c.h.bf16 %v919
  %v1839 = vunpack.c.l.bf16 %v920
  %v1840 = vunpack.c.h.bf16 %v920
  %v1841 = vunpack.c.l.bf16 %v921
  %v1842 = vunpack.c.h.bf16 %v921
  %v1843 = vunpack.c.l.bf16 %v922
  %v1844 = vunpack.c.h.bf16 %v922
  %v1845 = vunpack.c.l.bf16 %v923
  %v1846 = vunpack.c.h.bf16 %v923
  %v1847 = vunpack.c.l.bf16 %v924
  %v1848 = vunpack.c.h.bf16 %v924
  %v1849 = vunpack.c.l.bf16 %v925
  %v1850 = vunpack.c.h.bf16 %v925
  %v1851 = vunpack.c.l.bf16 %v926
  %v1852 = vunpack.c.h.bf16 %v926
  %v1853 = vunpack.c.l.bf16 %v927
  %v1854 = vunpack.c.h.bf16 %v927
  %v1855 = vunpack.c.l.bf16 %v928
  %v1856 = vunpack.c.h.bf16 %v928
  %v1857 = vunpack.c.l.bf16 %v929
  %v1858 = vunpack.c.h.bf16 %v929
  %v1859 = vunpack.c.l.bf16 %v930
  %v1860 = vunpack.c.h.bf16 %v930
  %v1861 = vunpack.c.l.bf16 %v931
  %v1862 = vunpack.c.h.bf16 %v931
  %v1863 = vunpack.c.l.bf16 %v932
  %v1864 = vunpack.c.h.bf16 %v932
  %v1865 = vunpack.c.l.bf16 %v933
  %v1866 = vunpack.c.h.bf16 %v933
  %v1867 = vunpack.c.l.bf16 %v934
  %v1868 = vunpack.c.h.bf16 %v934
  %v1869 = vunpack.c.l.bf16 %v935
  %v1870 = vunpack.c.h.bf16 %v935
  %v1871 = vunpack.c.l.bf16 %v936
  %v1872 = vunpack.c.h.bf16 %v936
  %v1873 = vunpack.c.l.bf16 %v937
  %v1874 = vunpack.c.h.bf16 %v937
  %v1875 = vunpack.c.l.bf16 %v938
  %v1876 = vunpack.c.h.bf16 %v938
  %v1877 = vunpack.c.l.bf16 %v939
  %v1878 = vunpack.c.h.bf16 %v939
  %v1879 = vunpack.c.l.bf16 %v940
  %v1880 = vunpack.c.h.bf16 %v940
  %v1881 = vunpack.c.l.bf16 %v941
  %v1882 = vunpack.c.h.bf16 %v941
  %v1883 = vunpack.c.l.bf16 %v942
  %v1884 = vunpack.c.h.bf16 %v942
  %v1885 = vunpack.c.l.bf16 %v943
  %v1886 = vunpack.c.h.bf16 %v943
  %v1887 = vunpack.c.l.bf16 %v944
  %v1888 = vunpack.c.h.bf16 %v944
  %v1889 = vunpack.c.l.bf16 %v945
  %v1890 = vunpack.c.h.bf16 %v945
  %v1891 = vunpack.c.l.bf16 %v946
  %v1892 = vunpack.c.h.bf16 %v946
  %v1893 = vunpack.c.l.bf16 %v947
  %v1894 = vunpack.c.h.bf16 %v947
  %v1895 = vunpack.c.l.bf16 %v948
  %v1896 = vunpack.c.h.bf16 %v948
  %v1897 = vunpack.c.l.bf16 %v949
  %v1898 = vunpack.c.h.bf16 %v949
  %v1899 = vunpack.c.l.bf16 %v950
  %v1900 = vunpack.c.h.bf16 %v950
  %v1901 = vunpack.c.l.bf16 %v951
  %v1902 = vunpack.c.h.bf16 %v951
  %v1903 = vunpack.c.l.bf16 %v952
  %v1904 = vunpack.c.h.bf16 %v952
  %v1905 = vunpack.c.l.bf16 %v953
  %v1906 = vunpack.c.h.bf16 %v953
  %v1907 = vunpack.c.l.bf16 %v954
  %v1908 = vunpack.c.h.bf16 %v954
  %v1909 = vunpack.c.l.bf16 %v955
  %v1910 = vunpack.c.h.bf16 %v955
  %v1911 = vunpack.c.l.bf16 %v956
  %v1912 = vunpack.c.h.bf16 %v956
  %v1913 = vunpack.c.l.bf16 %v957
  %v1914 = vunpack.c.h.bf16 %v957
  %v1915 = vunpack.c.l.bf16 %v958
  %v1916 = vunpack.c.h.bf16 %v958
  %v1917 = vunpack.c.l.bf16 %v959
  %v1918 = vunpack.c.h.bf16 %v959
  %v1919 = vunpack.c.l.bf16 %v960
  %v1920 = vunpack.c.h.bf16 %v960
  %v1921 = vunpack.c.l.bf16 %v961
  %v1922 = vunpack.c.h.bf16 %v961
  %v1923 = vunpack.c.l.bf16 %v962
  %v1924 = vunpack.c.h.bf16 %v962
  %v1925 = vunpack.c.l.bf16 %v963
  %v1926 = vunpack.c.h.bf16 %v963
  %v1927 = vunpack.c.l.bf16 %v964
  %v1928 = vunpack.c.h.bf16 %v964
  %v1929 = vunpack.c.l.bf16 %v965
  %v1930 = vunpack.c.h.bf16 %v965
  %v1931 = vunpack.c.l.bf16 %v966
  %v1932 = vunpack.c.h.bf16 %v966
  %v1933 = vunpack.c.l.bf16 %v967
  %v1934 = vunpack.c.h.bf16 %v967
  %v1935 = vunpack.c.l.bf16 %v968
  %v1936 = vunpack.c.h.bf16 %v968
  %v1937 = vunpack.c.l.bf16 %v969
  %v1938 = vunpack.c.h.bf16 %v969
  %v1939 = vunpack.c.l.bf16 %v970
  %v1940 = vunpack.c.h.bf16 %v970
  %v1941 = vunpack.c.l.bf16 %v971
  %v1942 = vunpack.c.h.bf16 %v971
  %v1943 = vunpack.c.l.bf16 %v972
  %v1944 = vunpack.c.h.bf16 %v972
  %v1945 = vunpack.c.l.bf16 %v973
  %v1946 = vunpack.c.h.bf16 %v973
  %v1947 = vunpack.c.l.bf16 %v974
  %v1948 = vunpack.c.h.bf16 %v974
  %v1949 = vunpack.c.l.bf16 %v975
  %v1950 = vunpack.c.h.bf16 %v975
  %v1951 = vunpack.c.l.bf16 %v976
  %v1952 = vunpack.c.h.bf16 %v976
  %v1953 = vunpack.c.l.bf16 %v977
  %v1954 = vunpack.c.h.bf16 %v977
  %v1955 = vunpack.c.l.bf16 %v978
  %v1956 = vunpack.c.h.bf16 %v978
  %v1957 = vunpack.c.l.bf16 %v979
  %v1958 = vunpack.c.h.bf16 %v979
  %v1959 = vunpack.c.l.bf16 %v980
  %v1960 = vunpack.c.h.bf16 %v980
  %v1961 = vunpack.c.l.bf16 %v981
  %v1962 = vunpack.c.h.bf16 %v981
  %v1963 = vunpack.c.l.bf16 %v982
  %v1964 = vunpack.c.h.bf16 %v982
  %v1965 = vunpack.c.l.bf16 %v983
  %v1966 = vunpack.c.h.bf16 %v983
  %v1967 = vunpack.c.l.bf16 %v984
  %v1968 = vunpack.c.h.bf16 %v984
  %v1969 = vunpack.c.l.bf16 %v985
  %v1970 = vunpack.c.h.bf16 %v985
  %v1971 = vunpack.c.l.bf16 %v986
  %v1972 = vunpack.c.h.bf16 %v986
  %v1973 = vunpack.c.l.bf16 %v987
  %v1974 = vunpack.c.h.bf16 %v987
  %v1975 = vunpack.c.l.bf16 %v988
  %v1976 = vunpack.c.h.bf16 %v988
  %v1977 = vunpack.c.l.bf16 %v989
  %v1978 = vunpack.c.h.bf16 %v989
  %v1979 = vunpack.c.l.bf16 %v990
  %v1980 = vunpack.c.h.bf16 %v990
  %v1981 = vunpack.c.l.bf16 %v991
  %v1982 = vunpack.c.h.bf16 %v991
  %v1983 = vunpack.c.l.bf16 %v992
  %v1984 = vunpack.c.h.bf16 %v992
  %v1985 = vunpack.c.l.bf16 %v993
  %v1986 = vunpack.c.h.bf16 %v993
  %v1987 = vunpack.c.l.bf16 %v994
  %v1988 = vunpack.c.h.bf16 %v994
  %v1989 = vunpack.c.l.bf16 %v995
  %v1990 = vunpack.c.h.bf16 %v995
  %v1991 = vunpack.c.l.bf16 %v996
  %v1992 = vunpack.c.h.bf16 %v996
  %v1993 = vunpack.c.l.bf16 %v997
  %v1994 = vunpack.c.h.bf16 %v997
  %v1995 = vunpack.c.l.bf16 %v998
  %v1996 = vunpack.c.h.bf16 %v998
  %v1997 = vunpack.c.l.bf16 %v999
  %v1998 = vunpack.c.h.bf16 %v999
  %v1999 = vunpack.c.l.bf16 %v1000
  %v2000 = vunpack.c.h.bf16 %v1000
  %v2001 = vunpack.c.l.bf16 %v1001
  %v2002 = vunpack.c.h.bf16 %v1001
  %v2003 = vunpack.c.l.bf16 %v1002
  %v2004 = vunpack.c.h.bf16 %v1002
  %v2005 = vunpack.c.l.bf16 %v1003
  %v2006 = vunpack.c.h.bf16 %v1003
  %v2007 = vunpack.c.l.bf16 %v1004
  %v2008 = vunpack.c.h.bf16 %v1004
  %v2009 = vunpack.c.l.bf16 %v1005
  %v2010 = vunpack.c.h.bf16 %v1005
  %v2011 = vunpack.c.l.bf16 %v1006
  %v2012 = vunpack.c.h.bf16 %v1006
  %v2013 = vunpack.c.l.bf16 %v1007
  %v2014 = vunpack.c.h.bf16 %v1007
  %v2015 = vunpack.c.l.bf16 %v1008
  %v2016 = vunpack.c.h.bf16 %v1008
  %v2017 = vunpack.c.l.bf16 %v1009
  %v2018 = vunpack.c.h.bf16 %v1009
  %v2019 = vunpack.c.l.bf16 %v1010
  %v2020 = vunpack.c.h.bf16 %v1010
  %v2021 = vunpack.c.l.bf16 %v1011
  %v2022 = vunpack.c.h.bf16 %v1011
  %v2023 = vunpack.c.l.bf16 %v1012
  %v2024 = vunpack.c.h.bf16 %v1012
  %v2025 = vunpack.c.l.bf16 %v1013
  %v2026 = vunpack.c.h.bf16 %v1013
  %v2027 = vunpack.c.l.bf16 %v1014
  %v2028 = vunpack.c.h.bf16 %v1014
  %v2029 = vunpack.c.l.bf16 %v1015
  %v2030 = vunpack.c.h.bf16 %v1015
  %v2031 = vunpack.c.l.bf16 %v1016
  %v2032 = vunpack.c.h.bf16 %v1016
  %v2033 = vunpack.c.l.bf16 %v1017
  %v2034 = vunpack.c.h.bf16 %v1017
  %v2035 = vunpack.c.l.bf16 %v1018
  %v2036 = vunpack.c.h.bf16 %v1018
  %v2037 = vunpack.c.l.bf16 %v1019
  %v2038 = vunpack.c.h.bf16 %v1019
  %v2039 = vunpack.c.l.bf16 %v1020
  %v2040 = vunpack.c.h.bf16 %v1020
  %v2041 = vunpack.c.l.bf16 %v1021
  %v2042 = vunpack.c.h.bf16 %v1021
  %v2043 = vunpack.c.l.bf16 %v1022
  %v2044 = vunpack.c.h.bf16 %v1022
  %v2045 = vunpack.c.l.bf16 %v1023
  %v2046 = vunpack.c.h.bf16 %v1023
  %v2047 = vunpack.c.l.bf16 %v1024
  %v2048 = vunpack.c.h.bf16 %v1024
  %v2049 = vunpack.c.l.bf16 %v1025
  %v2050 = vunpack.c.h.bf16 %v1025
  %v2051 = vunpack.c.l.bf16 %v1026
  %v2052 = vunpack.c.h.bf16 %v1026
  %v2053 = vunpack.c.l.bf16 %v1027
  %v2054 = vunpack.c.h.bf16 %v1027
  %v2055 = vunpack.c.l.bf16 %v1028
  %v2056 = vunpack.c.h.bf16 %v1028
  %v2057 = vunpack.c.l.bf16 %v1029
  %v2058 = vunpack.c.h.bf16 %v1029
  %v2059 = vunpack.c.l.bf16 %v1030
  %v2060 = vunpack.c.h.bf16 %v1030
  %v2061 = vunpack.c.l.bf16 %v1031
  %v2062 = vunpack.c.h.bf16 %v1031
  %v2063 = vunpack.c.l.bf16 %v1032
  %v2064 = vunpack.c.h.bf16 %v1032
  %v2065 = vunpack.c.l.bf16 %v1033
  %v2066 = vunpack.c.h.bf16 %v1033
  %v2067 = vunpack.c.l.bf16 %v1034
  %v2068 = vunpack.c.h.bf16 %v1034
  %v2069 = vunpack.c.l.bf16 %v1035
  %v2070 = vunpack.c.h.bf16 %v1035
  %v2071 = vunpack.c.l.bf16 %v1036
  %v2072 = vunpack.c.h.bf16 %v1036
  %v2073 = vunpack.c.l.bf16 %v1037
  %v2074 = vunpack.c.h.bf16 %v1037
  %v2075 = vunpack.c.l.bf16 %v1038
  %v2076 = vunpack.c.h.bf16 %v1038
  %v2077 = vunpack.c.l.bf16 %v1039
  %v2078 = vunpack.c.h.bf16 %v1039
  %v2079 = vunpack.c.l.bf16 %v1040
  %v2080 = vunpack.c.h.bf16 %v1040
  %v2081 = vunpack.c.l.bf16 %v1041
  %v2082 = vunpack.c.h.bf16 %v1041
  %v2083 = vunpack.c.l.bf16 %v1042
  %v2084 = vunpack.c.h.bf16 %v1042
  %v2085 = vunpack.c.l.bf16 %v1043
  %v2086 = vunpack.c.h.bf16 %v1043
  %v2087 = vunpack.c.l.bf16 %v1044
  %v2088 = vunpack.c.h.bf16 %v1044
  %v2089 = vunpack.c.l.bf16 %v1045
  %v2090 = vunpack.c.h.bf16 %v1045
  %v2091 = vunpack.c.l.bf16 %v1046
  %v2092 = vunpack.c.h.bf16 %v1046
  %v2093 = vunpack.c.l.bf16 %v1047
  %v2094 = vunpack.c.h.bf16 %v1047
  %v2095 = vunpack.c.l.bf16 %v1048
  %v2096 = vunpack.c.h.bf16 %v1048
  %v2097 = vunpack.c.l.bf16 %v1049
  %v2098 = vunpack.c.h.bf16 %v1049
  %v2099 = vunpack.c.l.bf16 %v1050
  %v2100 = vunpack.c.h.bf16 %v1050
  %v2101 = vunpack.c.l.bf16 %v1051
  %v2102 = vunpack.c.h.bf16 %v1051
  %v2103 = vunpack.c.l.bf16 %v1052
  %v2104 = vunpack.c.h.bf16 %v1052
  %v2105 = vunpack.c.l.bf16 %v1053
  %v2106 = vunpack.c.h.bf16 %v1053
  %v2107 = vunpack.c.l.bf16 %v1054
  %v2108 = vunpack.c.h.bf16 %v1054
  %v2109 = vunpack.c.l.bf16 %v1055
  %v2110 = vunpack.c.h.bf16 %v1055
  %v2111 = vunpack.c.l.bf16 %v1056
  %v2112 = vunpack.c.h.bf16 %v1056
  %v2113 = vunpack.c.l.bf16 %v1057
  %v2114 = vunpack.c.h.bf16 %v1057
  %v2115 = vunpack.c.l.bf16 %v1058
  %v2116 = vunpack.c.h.bf16 %v1058
  %v2117 = vunpack.c.l.bf16 %v1059
  %v2118 = vunpack.c.h.bf16 %v1059
  %v2119 = vunpack.c.l.bf16 %v1060
  %v2120 = vunpack.c.h.bf16 %v1060
  %v2121 = vunpack.c.l.bf16 %v1061
  %v2122 = vunpack.c.h.bf16 %v1061
  %v2123 = vunpack.c.l.bf16 %v1062
  %v2124 = vunpack.c.h.bf16 %v1062
  %v2125 = vunpack.c.l.bf16 %v1063
  %v2126 = vunpack.c.h.bf16 %v1063
  %v2127 = vunpack.c.l.bf16 %v1064
  %v2128 = vunpack.c.h.bf16 %v1064
  %v2129 = vunpack.c.l.bf16 %v1065
  %v2130 = vunpack.c.h.bf16 %v1065
  %v2131 = vunpack.c.l.bf16 %v1066
  %v2132 = vunpack.c.h.bf16 %v1066
  %v2133 = vunpack.c.l.bf16 %v1067
  %v2134 = vunpack.c.h.bf16 %v1067
  %v2135 = vunpack.c.l.bf16 %v1068
  %v2136 = vunpack.c.h.bf16 %v1068
  %v2137 = vunpack.c.l.bf16 %v1069
  %v2138 = vunpack.c.h.bf16 %v1069
  %v2139 = vunpack.c.l.bf16 %v1070
  %v2140 = vunpack.c.h.bf16 %v1070
  %v2141 = vunpack.c.l.bf16 %v1071
  %v2142 = vunpack.c.h.bf16 %v1071
  %v2143 = vunpack.c.l.bf16 %v1072
  %v2144 = vunpack.c.h.bf16 %v1072
  %v2145 = vunpack.c.l.bf16 %v1073
  %v2146 = vunpack.c.h.bf16 %v1073
  %v2147 = vunpack.c.l.bf16 %v1074
  %v2148 = vunpack.c.h.bf16 %v1074
  %v2149 = vunpack.c.l.bf16 %v1075
  %v2150 = vunpack.c.h.bf16 %v1075
  %v2151 = vunpack.c.l.bf16 %v1076
  %v2152 = vunpack.c.h.bf16 %v1076
  %v2153 = vunpack.c.l.bf16 %v1077
  %v2154 = vunpack.c.h.bf16 %v1077
  %v2155 = vunpack.c.l.bf16 %v1078
  %v2156 = vunpack.c.h.bf16 %v1078
  %v2157 = vunpack.c.l.bf16 %v1079
  %v2158 = vunpack.c.h.bf16 %v1079
  %v2159 = vunpack.c.l.bf16 %v1080
  %v2160 = vunpack.c.h.bf16 %v1080
  %v2161 = vunpack.c.l.bf16 %v1081
  %v2162 = vunpack.c.h.bf16 %v1081
  %v2163 = vunpack.c.l.bf16 %v1082
  %v2164 = vunpack.c.h.bf16 %v1082
  %v2165 = vunpack.c.l.bf16 %v1083
  %v2166 = vunpack.c.h.bf16 %v1083
  %v2167 = vunpack.c.l.bf16 %v1084
  %v2168 = vunpack.c.h.bf16 %v1084
  %v2169 = vunpack.c.l.bf16 %v1085
  %v2170 = vunpack.c.h.bf16 %v1085
  %v2171 = vunpack.c.l.bf16 %v1086
  %v2172 = vunpack.c.h.bf16 %v1086
  %v2173 = vunpack.c.l.bf16 %v1087
  %v2174 = vunpack.c.h.bf16 %v1087
  %v2175 = vunpack.c.l.bf16 %v1088
  %v2176 = vunpack.c.h.bf16 %v1088
  %v2177 = vunpack.c.l.bf16 %v1089
  %v2178 = vunpack.c.h.bf16 %v1089
  %v2179 = vunpack.c.l.bf16 %v1090
  %v2180 = vunpack.c.h.bf16 %v1090
  %v2181 = vunpack.c.l.bf16 %v1091
  %v2182 = vunpack.c.h.bf16 %v1091
  %v2183 = vunpack.c.l.bf16 %v1092
  %v2184 = vunpack.c.h.bf16 %v1092
  %v2185 = vunpack.c.l.bf16 %v1093
  %v2186 = vunpack.c.h.bf16 %v1093
  %v2187 = vunpack.c.l.bf16 %v1094
  %v2188 = vunpack.c.h.bf16 %v1094
  %v2189 = vunpack.c.l.bf16 %v1095
  %v2190 = vunpack.c.h.bf16 %v1095
  %v2191 = vunpack.c.l.bf16 %v1096
  %v2192 = vunpack.c.h.bf16 %v1096
  %v2193 = vunpack.c.l.bf16 %v1097
  %v2194 = vunpack.c.h.bf16 %v1097
  %v2195 = vunpack.c.l.bf16 %v1098
  %v2196 = vunpack.c.h.bf16 %v1098
  %v2197 = vunpack.c.l.bf16 %v1099
  %v2198 = vunpack.c.h.bf16 %v1099
  %v2199 = vunpack.c.l.bf16 %v1100
  %v2200 = vunpack.c.h.bf16 %v1100
  %v2201 = vunpack.c.l.bf16 %v1101
  %v2202 = vunpack.c.h.bf16 %v1101
  %v2203 = vunpack.c.l.bf16 %v1102
  %v2204 = vunpack.c.h.bf16 %v1102
  %v2205 = vunpack.c.l.bf16 %v1103
  %v2206 = vunpack.c.h.bf16 %v1103
  %v2207 = vunpack.c.l.bf16 %v1104
  %v2208 = vunpack.c.h.bf16 %v1104
  %v2209 = vunpack.c.l.bf16 %v1105
  %v2210 = vunpack.c.h.bf16 %v1105
  %v2211 = vunpack.c.l.bf16 %v1106
  %v2212 = vunpack.c.h.bf16 %v1106
  %v2213 = vunpack.c.l.bf16 %v1107
  %v2214 = vunpack.c.h.bf16 %v1107
  %v2215 = vunpack.c.l.bf16 %v1108
  %v2216 = vunpack.c.h.bf16 %v1108
  %v2217 = vunpack.c.l.bf16 %v1109
  %v2218 = vunpack.c.h.bf16 %v1109
  %v2219 = vunpack.c.l.bf16 %v1110
  %v2220 = vunpack.c.h.bf16 %v1110
  %v2221 = vunpack.c.l.bf16 %v1111
  %v2222 = vunpack.c.h.bf16 %v1111
  %v2223 = vunpack.c.l.bf16 %v1112
  %v2224 = vunpack.c.h.bf16 %v1112
  %v2225 = vunpack.c.l.bf16 %v1113
  %v2226 = vunpack.c.h.bf16 %v1113
  %v2227 = vunpack.c.l.bf16 %v1114
  %v2228 = vunpack.c.h.bf16 %v1114
  %v2229 = vunpack.c.l.bf16 %v1115
  %v2230 = vunpack.c.h.bf16 %v1115
  %v2231 = vunpack.c.l.bf16 %v1116
  %v2232 = vunpack.c.h.bf16 %v1116
  %v2233 = vunpack.c.l.bf16 %v1117
  %v2234 = vunpack.c.h.bf16 %v1117
  %v2235 = vunpack.c.l.bf16 %v1118
  %v2236 = vunpack.c.h.bf16 %v1118
  %v2237 = vunpack.c.l.bf16 %v1119
  %v2238 = vunpack.c.h.bf16 %v1119
  %v2239 = vunpack.c.l.bf16 %v1120
  %v2240 = vunpack.c.h.bf16 %v1120
  %v2241 = vunpack.c.l.bf16 %v1121
  %v2242 = vunpack.c.h.bf16 %v1121
  %v2243 = vunpack.c.l.bf16 %v1122
  %v2244 = vunpack.c.h.bf16 %v1122
  %v2245 = vunpack.c.l.bf16 %v1123
  %v2246 = vunpack.c.h.bf16 %v1123
  %v2247 = vunpack.c.l.bf16 %v1124
  %v2248 = vunpack.c.h.bf16 %v1124
  %v2249 = vunpack.c.l.bf16 %v1125
  %v2250 = vunpack.c.h.bf16 %v1125
  %v2251 = vunpack.c.l.bf16 %v1126
  %v2252 = vunpack.c.h.bf16 %v1126
  %v2253 = vunpack.c.l.bf16 %v1127
  %v2254 = vunpack.c.h.bf16 %v1127
  %v2255 = vunpack.c.l.bf16 %v1128
  %v2256 = vunpack.c.h.bf16 %v1128
  %v2257 = vunpack.c.l.bf16 %v1129
  %v2258 = vunpack.c.h.bf16 %v1129
  %v2259 = vunpack.c.l.bf16 %v1130
  %v2260 = vunpack.c.h.bf16 %v1130
  %v2261 = vunpack.c.l.bf16 %v1131
  %v2262 = vunpack.c.h.bf16 %v1131
  %v2263 = vunpack.c.l.bf16 %v1132
  %v2264 = vunpack.c.h.bf16 %v1132
  %v2265 = vunpack.c.l.bf16 %v1133
  %v2266 = vunpack.c.h.bf16 %v1133
  %v2267 = vunpack.c.l.bf16 %v1134
  %v2268 = vunpack.c.h.bf16 %v1134
  %v2269 = vunpack.c.l.bf16 %v1135
  %v2270 = vunpack.c.h.bf16 %v1135
  %v2271 = vunpack.c.l.bf16 %v1136
  %v2272 = vunpack.c.h.bf16 %v1136
  %v2273 = vunpack.c.l.bf16 %v1137
  %v2274 = vunpack.c.h.bf16 %v1137
  %v2275 = vunpack.c.l.bf16 %v1138
  %v2276 = vunpack.c.h.bf16 %v1138
  %v2277 = vunpack.c.l.bf16 %v1139
  %v2278 = vunpack.c.h.bf16 %v1139
  %v2279 = vunpack.c.l.bf16 %v1140
  %v2280 = vunpack.c.h.bf16 %v1140
  %v2281 = vunpack.c.l.bf16 %v1141
  %v2282 = vunpack.c.h.bf16 %v1141
  %v2283 = vunpack.c.l.bf16 %v1142
  %v2284 = vunpack.c.h.bf16 %v1142
  %v2285 = vunpack.c.l.bf16 %v1143
  %v2286 = vunpack.c.h.bf16 %v1143
  %v2287 = vunpack.c.l.bf16 %v1144
  %v2288 = vunpack.c.h.bf16 %v1144
  %v2289 = vunpack.c.l.bf16 %v1145
  %v2290 = vunpack.c.h.bf16 %v1145
  %v2291 = vunpack.c.l.bf16 %v1146
  %v2292 = vunpack.c.h.bf16 %v1146
  %v2293 = vunpack.c.l.bf16 %v1147
  %v2294 = vunpack.c.h.bf16 %v1147
  %v2295 = vunpack.c.l.bf16 %v1148
  %v2296 = vunpack.c.h.bf16 %v1148
  %v2297 = vunpack.c.l.bf16 %v1149
  %v2298 = vunpack.c.h.bf16 %v1149
  %v2299 = vunpack.c.l.bf16 %v1150
  %v2300 = vunpack.c.h.bf16 %v1150
  %v2301 = vunpack.c.l.bf16 %v1151
  %v2302 = vunpack.c.h.bf16 %v1151
  %v2303 = vunpack.c.l.bf16 %v1152
  %v2304 = vunpack.c.h.bf16 %v1152
  %v2305 = vunpack.c.l.bf16 %v1153
  %v2306 = vunpack.c.h.bf16 %v1153
  %v2307 = vunpack.c.l.bf16 %v1154
  %v2308 = vunpack.c.h.bf16 %v1154
  %v2309 = vunpack.c.l.bf16 %v1155
  %v2310 = vunpack.c.h.bf16 %v1155
  %v2311 = vunpack.c.l.bf16 %v1156
  %v2312 = vunpack.c.h.bf16 %v1156
  %v2313 = vunpack.c.l.bf16 %v1157
  %v2314 = vunpack.c.h.bf16 %v1157
  %v2315 = vunpack.c.l.bf16 %v1158
  %v2316 = vunpack.c.h.bf16 %v1158
  %v2317 = vunpack.c.l.bf16 %v1159
  %v2318 = vunpack.c.h.bf16 %v1159
  %v2319 = vunpack.c.l.bf16 %v1160
  %v2320 = vunpack.c.h.bf16 %v1160
  %v2321 = vunpack.c.l.bf16 %v1161
  %v2322 = vunpack.c.h.bf16 %v1161
  %v2323 = vunpack.c.l.bf16 %v1162
  %v2324 = vunpack.c.h.bf16 %v1162
  %v2325 = vunpack.c.l.bf16 %v1163
  %v2326 = vunpack.c.h.bf16 %v1163
  %v2327 = vunpack.c.l.bf16 %v1164
  %v2328 = vunpack.c.h.bf16 %v1164
  %v2329 = vunpack.c.l.bf16 %v1165
  %v2330 = vunpack.c.h.bf16 %v1165
  %v2331 = vunpack.c.l.bf16 %v1166
  %v2332 = vunpack.c.h.bf16 %v1166
  %v2333 = vunpack.c.l.bf16 %v1167
  %v2334 = vunpack.c.h.bf16 %v1167
  %v2335 = vunpack.c.l.bf16 %v1168
  %v2336 = vunpack.c.h.bf16 %v1168
  %v2337 = vunpack.c.l.bf16 %v1169
  %v2338 = vunpack.c.h.bf16 %v1169
  %v2339 = vunpack.c.l.bf16 %v1170
  %v2340 = vunpack.c.h.bf16 %v1170
  %v2341 = vunpack.c.l.bf16 %v1171
  %v2342 = vunpack.c.h.bf16 %v1171
  %v2343 = vunpack.c.l.bf16 %v1172
  %v2344 = vunpack.c.h.bf16 %v1172
  %v2345 = vunpack.c.l.bf16 %v1173
  %v2346 = vunpack.c.h.bf16 %v1173
  %v2347 = vunpack.c.l.bf16 %v1174
  %v2348 = vunpack.c.h.bf16 %v1174
  %v2349 = vunpack.c.l.bf16 %v1175
  %v2350 = vunpack.c.h.bf16 %v1175
  %v2351 = vunpack.c.l.bf16 %v1176
  %v2352 = vunpack.c.h.bf16 %v1176
  %v2353 = vunpack.c.l.bf16 %v1177
  %v2354 = vunpack.c.h.bf16 %v1177
  %v2355 = vunpack.c.l.bf16 %v1178
  %v2356 = vunpack.c.h.bf16 %v1178
  %v2357 = vunpack.c.l.bf16 %v1179
  %v2358 = vunpack.c.h.bf16 %v1179
  %v2359 = vunpack.c.l.bf16 %v1180
  %v2360 = vunpack.c.h.bf16 %v1180
  %v2361 = vunpack.c.l.bf16 %v1181
  %v2362 = vunpack.c.h.bf16 %v1181
  %v2363 = vunpack.c.l.bf16 %v1182
  %v2364 = vunpack.c.h.bf16 %v1182
  %v2365 = vunpack.c.l.bf16 %v1183
  %v2366 = vunpack.c.h.bf16 %v1183
  %v2367 = vunpack.c.l.bf16 %v1184
  %v2368 = vunpack.c.h.bf16 %v1184
  %v2369 = vunpack.c.l.bf16 %v1185
  %v2370 = vunpack.c.h.bf16 %v1185
  %v2371 = vunpack.c.l.bf16 %v1186
  %v2372 = vunpack.c.h.bf16 %v1186
  %v2373 = vunpack.c.l.bf16 %v1187
  %v2374 = vunpack.c.h.bf16 %v1187
  %v2375 = vunpack.c.l.bf16 %v1188
  %v2376 = vunpack.c.h.bf16 %v1188
  %v2377 = vunpack.c.l.bf16 %v1189
  %v2378 = vunpack.c.h.bf16 %v1189
  %v2379 = vunpack.c.l.bf16 %v1190
  %v2380 = vunpack.c.h.bf16 %v1190
  %v2381 = vunpack.c.l.bf16 %v1191
  %v2382 = vunpack.c.h.bf16 %v1191
  %v2383 = vunpack.c.l.bf16 %v1192
  %v2384 = vunpack.c.h.bf16 %v1192
  %v2385 = vunpack.c.l.bf16 %v1193
  %v2386 = vunpack.c.h.bf16 %v1193
  %v2387 = vunpack.c.l.bf16 %v1194
  %v2388 = vunpack.c.h.bf16 %v1194
  %v2389 = vunpack.c.l.bf16 %v1195
  %v2390 = vunpack.c.h.bf16 %v1195
  %v2391 = vunpack.c.l.bf16 %v1196
  %v2392 = vunpack.c.h.bf16 %v1196
  %v2393 = vunpack.c.l.bf16 %v1197
  %v2394 = vunpack.c.h.bf16 %v1197
  %v2395 = vunpack.c.l.bf16 %v1198
  %v2396 = vunpack.c.h.bf16 %v1198
  %v2397 = vunpack.c.l.bf16 %v1199
  %v2398 = vunpack.c.h.bf16 %v1199
  %v2399 = vunpack.c.l.bf16 %v1200
  %v2400 = vunpack.c.h.bf16 %v1200
  %v2401 = vunpack.c.l.bf16 %v1201
  %v2402 = vunpack.c.h.bf16 %v1201
  %v2403 = vunpack.c.l.bf16 %v1202
  %v2404 = vunpack.c.h.bf16 %v1202
  %v2405 = vunpack.c.l.bf16 %v1203
  %v2406 = vunpack.c.h.bf16 %v1203
  %v2407 = vunpack.c.l.bf16 %v1204
  %v2408 = vunpack.c.h.bf16 %v1204
  %v2409 = vunpack.c.l.bf16 %v1205
  %v2410 = vunpack.c.h.bf16 %v1205
  %v2411 = vunpack.c.l.bf16 %v1206
  %v2412 = vunpack.c.h.bf16 %v1206
  %v2413 = vunpack.c.l.bf16 %v1207
  %v2414 = vunpack.c.h.bf16 %v1207
  %v2415 = vunpack.c.l.bf16 %v1208
  %v2416 = vunpack.c.h.bf16 %v1208
  %v2417 = vunpack.c.l.bf16 %v1209
  %v2418 = vunpack.c.h.bf16 %v1209
  %v2419 = vunpack.c.l.bf16 %v1210
  %v2420 = vunpack.c.h.bf16 %v1210
  %v2421 = vunpack.c.l.bf16 %v1211
  %v2422 = vunpack.c.h.bf16 %v1211
  %v2423 = vunpack.c.l.bf16 %v1212
  %v2424 = vunpack.c.h.bf16 %v1212
  %v2425 = vunpack.c.l.bf16 %v1213
  %v2426 = vunpack.c.h.bf16 %v1213
  %v2427 = vunpack.c.l.bf16 %v1214
  %v2428 = vunpack.c.h.bf16 %v1214
  %v2429 = vunpack.c.l.bf16 %v1215
  %v2430 = vunpack.c.h.bf16 %v1215
  %v2431 = vunpack.c.l.bf16 %v1216
  %v2432 = vunpack.c.h.bf16 %v1216
  %v2433 = vunpack.c.l.bf16 %v1217
  %v2434 = vunpack.c.h.bf16 %v1217
  %v2435 = vunpack.c.l.bf16 %v1218
  %v2436 = vunpack.c.h.bf16 %v1218
  %v2437 = vunpack.c.l.bf16 %v1219
  %v2438 = vunpack.c.h.bf16 %v1219
  %v2439 = vunpack.c.l.bf16 %v1220
  %v2440 = vunpack.c.h.bf16 %v1220
  %v2441 = vunpack.c.l.bf16 %v1221
  %v2442 = vunpack.c.h.bf16 %v1221
  %v2443 = vunpack.c.l.bf16 %v1222
  %v2444 = vunpack.c.h.bf16 %v1222
  %v2445 = vunpack.c.l.bf16 %v1223
  %v2446 = vunpack.c.h.bf16 %v1223
  %v2447 = vunpack.c.l.bf16 %v1224
  %v2448 = vunpack.c.h.bf16 %v1224
  %v2449 = vunpack.c.l.bf16 %v1225
  %v2450 = vunpack.c.h.bf16 %v1225
  %v2451 = vunpack.c.l.bf16 %v1226
  %v2452 = vunpack.c.h.bf16 %v1226
  %v2453 = vunpack.c.l.bf16 %v1227
  %v2454 = vunpack.c.h.bf16 %v1227
  %v2455 = vunpack.c.l.bf16 %v1228
  %v2456 = vunpack.c.h.bf16 %v1228
  %v2457 = vunpack.c.l.bf16 %v1229
  %v2458 = vunpack.c.h.bf16 %v1229
  %v2459 = vunpack.c.l.bf16 %v1230
  %v2460 = vunpack.c.h.bf16 %v1230
  %v2461 = vunpack.c.l.bf16 %v1231
  %v2462 = vunpack.c.h.bf16 %v1231
  %v2463 = vunpack.c.l.bf16 %v1232
  %v2464 = vunpack.c.h.bf16 %v1232
  %v2465 = vunpack.c.l.bf16 %v1233
  %v2466 = vunpack.c.h.bf16 %v1233
  %v2467 = vunpack.c.l.bf16 %v1234
  %v2468 = vunpack.c.h.bf16 %v1234
  %v2469 = vunpack.c.l.bf16 %v1235
  %v2470 = vunpack.c.h.bf16 %v1235
  %v2471 = vunpack.c.l.bf16 %v1236
  %v2472 = vunpack.c.h.bf16 %v1236
  %v2473 = vunpack.c.l.bf16 %v1237
  %v2474 = vunpack.c.h.bf16 %v1237
  %v2475 = vunpack.c.l.bf16 %v1238
  %v2476 = vunpack.c.h.bf16 %v1238
  %v2477 = vunpack.c.l.bf16 %v1239
  %v2478 = vunpack.c.h.bf16 %v1239
  %v2479 = vunpack.c.l.bf16 %v1240
  %v2480 = vunpack.c.h.bf16 %v1240
  %v2481 = vunpack.c.l.bf16 %v1241
  %v2482 = vunpack.c.h.bf16 %v1241
  %v2483 = vunpack.c.l.bf16 %v1242
  %v2484 = vunpack.c.h.bf16 %v1242
  %v2485 = vunpack.c.l.bf16 %v1243
  %v2486 = vunpack.c.h.bf16 %v1243
  %v2487 = vunpack.c.l.bf16 %v1244
  %v2488 = vunpack.c.h.bf16 %v1244
  %v2489 = vunpack.c.l.bf16 %v1245
  %v2490 = vunpack.c.h.bf16 %v1245
  %v2491 = vunpack.c.l.bf16 %v1246
  %v2492 = vunpack.c.h.bf16 %v1246
  %v2493 = vunpack.c.l.bf16 %v1247
  %v2494 = vunpack.c.h.bf16 %v1247
  %v2495 = vunpack.c.l.bf16 %v1248
  %v2496 = vunpack.c.h.bf16 %v1248
  %v2497 = vunpack.c.l.bf16 %v1249
  %v2498 = vunpack.c.h.bf16 %v1249
  %v2499 = vunpack.c.l.bf16 %v1250
  %v2500 = vunpack.c.h.bf16 %v1250
  %v2501 = vunpack.c.l.bf16 %v1251
  %v2502 = vunpack.c.h.bf16 %v1251
  %v2503 = vunpack.c.l.bf16 %v1252
  %v2504 = vunpack.c.h.bf16 %v1252
  %v2505 = vunpack.c.l.bf16 %v1253
  %v2506 = vunpack.c.h.bf16 %v1253
  %v2507 = vunpack.c.l.bf16 %v1254
  %v2508 = vunpack.c.h.bf16 %v1254
  %v2509 = vunpack.c.l.bf16 %v1255
  %v2510 = vunpack.c.h.bf16 %v1255
  %v2511 = vunpack.c.l.bf16 %v1256
  %v2512 = vunpack.c.h.bf16 %v1256
  %v2513 = vunpack.c.l.bf16 %v1257
  %v2514 = vunpack.c.h.bf16 %v1257
  %v2515 = vunpack.c.l.bf16 %v1258
  %v2516 = vunpack.c.h.bf16 %v1258
  %v2517 = vunpack.c.l.bf16 %v1259
  %v2518 = vunpack.c.h.bf16 %v1259
  %v2519 = vunpack.c.l.bf16 %v1260
  %v2520 = vunpack.c.h.bf16 %v1260
  %v2521 = vunpack.c.l.bf16 %v1261
  %v2522 = vunpack.c.h.bf16 %v1261
  %v2523 = vunpack.c.l.bf16 %v1262
  %v2524 = vunpack.c.h.bf16 %v1262
  %v2525 = vunpack.c.l.bf16 %v1263
  %v2526 = vunpack.c.h.bf16 %v1263
  %v2527 = vunpack.c.l.bf16 %v1264
  %v2528 = vunpack.c.h.bf16 %v1264
  %v2529 = vunpack.c.l.bf16 %v1265
  %v2530 = vunpack.c.h.bf16 %v1265
  %v2531 = vunpack.c.l.bf16 %v1266
  %v2532 = vunpack.c.h.bf16 %v1266
  %v2533 = vunpack.c.l.bf16 %v1267
  %v2534 = vunpack.c.h.bf16 %v1267
  %v2535 = vunpack.c.l.bf16 %v1268
  %v2536 = vunpack.c.h.bf16 %v1268
  %v2537 = vunpack.c.l.bf16 %v1269
  %v2538 = vunpack.c.h.bf16 %v1269
  %v2539 = vunpack.c.l.bf16 %v1270
  %v2540 = vunpack.c.h.bf16 %v1270
  %v2541 = vunpack.c.l.bf16 %v1271
  %v2542 = vunpack.c.h.bf16 %v1271
  %v2543 = vunpack.c.l.bf16 %v1272
  %v2544 = vunpack.c.h.bf16 %v1272
  %v2545 = vunpack.c.l.bf16 %v1273
  %v2546 = vunpack.c.h.bf16 %v1273
  %v2547 = vunpack.c.l.bf16 %v1274
  %v2548 = vunpack.c.h.bf16 %v1274
  %v2549 = vunpack.c.l.bf16 %v1275
  %v2550 = vunpack.c.h.bf16 %v1275
  %v2551 = vunpack.c.l.bf16 %v1276
  %v2552 = vunpack.c.h.bf16 %v1276
  %v2553 = vunpack.c.l.bf16 %v1277
  %v2554 = vunpack.c.h.bf16 %v1277
  %v2555 = vunpack.c.l.bf16 %v1278
  %v2556 = vunpack.c.h.bf16 %v1278
  %v2557 = vunpack.c.l.bf16 %v1279
  %v2558 = vunpack.c.h.bf16 %v1279
  %v2559 = vunpack.c.l.bf16 %v1280
  %v2560 = vunpack.c.h.bf16 %v1280
  %v2561 = vunpack.c.l.bf16 %v1281
  %v2562 = vunpack.c.h.bf16 %v1281
  %v2563 = vunpack.c.l.bf16 %v1282
  %v2564 = vunpack.c.h.bf16 %v1282
  %v2565 = vunpack.c.l.bf16 %v1283
  %v2566 = vunpack.c.h.bf16 %v1283
  %v2567 = vunpack.c.l.bf16 %v1284
  %v2568 = vunpack.c.h.bf16 %v1284
  %v2569 = vunpack.c.l.bf16 %v1285
  %v2570 = vunpack.c.h.bf16 %v1285
  %v2571 = vunpack.c.l.bf16 %v1286
  %v2572 = vunpack.c.h.bf16 %v1286
  %v2573 = vunpack.c.l.bf16 %v1287
  %v2574 = vunpack.c.h.bf16 %v1287
  %v2575 = vunpack.c.l.bf16 %v1288
  %v2576 = vunpack.c.h.bf16 %v1288
  %v2577 = vunpack.c.l.bf16 %v1289
  %v2578 = vunpack.c.h.bf16 %v1289
  %v2579 = vunpack.c.l.bf16 %v1290
  %v2580 = vunpack.c.h.bf16 %v1290
  %v2581 = vunpack.c.l.bf16 %v1291
  %v2582 = vunpack.c.h.bf16 %v1291
  %v2583 = vunpack.c.l.bf16 %v1292
  %v2584 = vunpack.c.h.bf16 %v1292
  %v2585 = vunpack.c.l.bf16 %v1293
  %v2586 = vunpack.c.h.bf16 %v1293
  %v2587 = vunpack.c.l.bf16 %v1294
  %v2588 = vunpack.c.h.bf16 %v1294
  %v2589 = vunpack.c.l.bf16 %v1295
  %v2590 = vunpack.c.h.bf16 %v1295
  %v2591 = vunpack.c.l.bf16 %v1296
  %v2592 = vunpack.c.h.bf16 %v1296
  %v2593 = vunpack.c.l.bf16 %v1297
  %v2594 = vunpack.c.h.bf16 %v1297
  %v2595 = vunpack.c.l.bf16 %v1298
  %v2596 = vunpack.c.h.bf16 %v1298
  %v2597 = vunpack.c.l.bf16 %v1299
  %v2598 = vunpack.c.h.bf16 %v1299
  %v2599 = vunpack.c.l.bf16 %v1300
  %v2600 = vunpack.c.h.bf16 %v1300
  %v2601 = vunpack.c.l.bf16 %v1301
  %v2602 = vunpack.c.h.bf16 %v1301
  %v2603 = vunpack.c.l.bf16 %v1302
  %v2604 = vunpack.c.h.bf16 %v1302
  %v2605 = vunpack.c.l.bf16 %v1303
  %v2606 = vunpack.c.h.bf16 %v1303
  %v2607 = vunpack.c.l.bf16 %v1304
  %v2608 = vunpack.c.h.bf16 %v1304
  %v2609 = vunpack.c.l.bf16 %v1305
  %v2610 = vunpack.c.h.bf16 %v1305
  %v2611 = vunpack.c.l.bf16 %v1306
  %v2612 = vunpack.c.h.bf16 %v1306
  %v2613 = vunpack.c.l.bf16 %v1307
  %v2614 = vunpack.c.h.bf16 %v1307
  %v2615 = vunpack.c.l.bf16 %v1308
  %v2616 = vunpack.c.h.bf16 %v1308
  %v2617 = vunpack.c.l.bf16 %v1309
  %v2618 = vunpack.c.h.bf16 %v1309
  %v2619 = vunpack.c.l.bf16 %v1310
  %v2620 = vunpack.c.h.bf16 %v1310
  %v2621 = vunpack.c.l.bf16 %v1311
  %v2622 = vunpack.c.h.bf16 %v1311
  %v2623 = vunpack.c.l.bf16 %v1312
  %v2624 = vunpack.c.h.bf16 %v1312
  %v2625 = vunpack.c.l.bf16 %v1313
  %v2626 = vunpack.c.h.bf16 %v1313
  %v2627 = vunpack.c.l.bf16 %v1314
  %v2628 = vunpack.c.h.bf16 %v1314
  %v2629 = vunpack.c.l.bf16 %v1315
  %v2630 = vunpack.c.h.bf16 %v1315
  %v2631 = vunpack.c.l.bf16 %v1316
  %v2632 = vunpack.c.h.bf16 %v1316
  %v2633 = vunpack.c.l.bf16 %v1317
  %v2634 = vunpack.c.h.bf16 %v1317
  %v2635 = vunpack.c.l.bf16 %v1318
  %v2636 = vunpack.c.h.bf16 %v1318
  %v2637 = vunpack.c.l.bf16 %v1319
  %v2638 = vunpack.c.h.bf16 %v1319
  %v2639 = vunpack.c.l.bf16 %v1320
  %v2640 = vunpack.c.h.bf16 %v1320
  %v2641 = vunpack.c.l.bf16 %v1321
  %v2642 = vunpack.c.h.bf16 %v1321
  %v2643 = vunpack.c.l.bf16 %v1322
  %v2644 = vunpack.c.h.bf16 %v1322
  %v2645 = vunpack.c.l.bf16 %v1323
  %v2646 = vunpack.c.h.bf16 %v1323
  %v2647 = vunpack.c.l.bf16 %v1324
  %v2648 = vunpack.c.h.bf16 %v1324
  %v2649 = vunpack.c.l.bf16 %v1325
  %v2650 = vunpack.c.h.bf16 %v1325
  %v2651 = vunpack.c.l.bf16 %v1326
  %v2652 = vunpack.c.h.bf16 %v1326
  %v2653 = vunpack.c.l.bf16 %v1327
  %v2654 = vunpack.c.h.bf16 %v1327
  %v2655 = vunpack.c.l.bf16 %v1328
  %v2656 = vunpack.c.h.bf16 %v1328
  %v2657 = vunpack.c.l.bf16 %v1329
  %v2658 = vunpack.c.h.bf16 %v1329
  %v2659 = vunpack.c.l.bf16 %v1330
  %v2660 = vunpack.c.h.bf16 %v1330
  %v2661 = vunpack.c.l.bf16 %v1331
  %v2662 = vunpack.c.h.bf16 %v1331
  %v2663 = vunpack.c.l.bf16 %v1332
  %v2664 = vunpack.c.h.bf16 %v1332
  %v2665 = vunpack.c.l.bf16 %v1333
  %v2666 = vunpack.c.h.bf16 %v1333
  %v2667 = vunpack.c.l.bf16 %v1334
  %v2668 = vunpack.c.h.bf16 %v1334
  %v2669 = vunpack.c.l.bf16 %v1335
  %v2670 = vunpack.c.h.bf16 %v1335
  %v2671 = vunpack.c.l.bf16 %v1336
  %v2672 = vunpack.c.h.bf16 %v1336
  %v2673 = vunpack.c.l.bf16 %v1337
  %v2674 = vunpack.c.h.bf16 %v1337
  %v2675 = vunpack.c.l.bf16 %v1338
  %v2676 = vunpack.c.h.bf16 %v1338
  %v2677 = vunpack.c.l.bf16 %v1339
  %v2678 = vunpack.c.h.bf16 %v1339
  %v2679 = vunpack.c.l.bf16 %v1340
  %v2680 = vunpack.c.h.bf16 %v1340
  %v2681 = vunpack.c.l.bf16 %v1341
  %v2682 = vunpack.c.h.bf16 %v1341
  %v2683 = vunpack.c.l.bf16 %v1342
  %v2684 = vunpack.c.h.bf16 %v1342
  %v2685 = vunpack.c.l.bf16 %v1343
  %v2686 = vunpack.c.h.bf16 %v1343
  %v2687 = vunpack.c.l.bf16 %v1344
  %v2688 = vunpack.c.h.bf16 %v1344
  %v2689 = vunpack.c.l.bf16 %v1345
  %v2690 = vunpack.c.h.bf16 %v1345
  %v2691 = vunpack.c.l.bf16 %v1346
  %v2692 = vunpack.c.h.bf16 %v1346
  %v2693 = vunpack.c.l.bf16 %v1347
  %v2694 = vunpack.c.h.bf16 %v1347
  %v2695 = vunpack.c.l.bf16 %v1348
  %v2696 = vunpack.c.h.bf16 %v1348
  %v2697 = vunpack.c.l.bf16 %v1349
  %v2698 = vunpack.c.h.bf16 %v1349
  %v2699 = vunpack.c.l.bf16 %v1350
  %v2700 = vunpack.c.h.bf16 %v1350
  %v2701 = vunpack.c.l.bf16 %v1351
  %v2702 = vunpack.c.h.bf16 %v1351
  %v2703 = vunpack.c.l.bf16 %v1352
  %v2704 = vunpack.c.h.bf16 %v1352
  %v2705 = vunpack.c.l.bf16 %v1353
  %v2706 = vunpack.c.h.bf16 %v1353
  %v2707 = vunpack.c.l.bf16 %v1354
  %v2708 = vunpack.c.h.bf16 %v1354
  %v2709 = vunpack.c.l.bf16 %v1355
  %v2710 = vunpack.c.h.bf16 %v1355
  %v2711 = vunpack.c.l.bf16 %v1356
  %v2712 = vunpack.c.h.bf16 %v1356
  %v2713 = vunpack.c.l.bf16 %v1357
  %v2714 = vunpack.c.h.bf16 %v1357
  %v2715 = vunpack.c.l.bf16 %v1358
  %v2716 = vunpack.c.h.bf16 %v1358
  %v2717 = vunpack.c.l.bf16 %v1359
  %v2718 = vunpack.c.h.bf16 %v1359
  %v2719 = vunpack.c.l.bf16 %v1360
  %v2720 = vunpack.c.h.bf16 %v1360
  %v2721 = vunpack.c.l.bf16 %v1361
  %v2722 = vunpack.c.h.bf16 %v1361
  %v2723 = vunpack.c.l.bf16 %v1362
  %v2724 = vunpack.c.h.bf16 %v1362
  %v2725 = vunpack.c.l.bf16 %v1363
  %v2726 = vunpack.c.h.bf16 %v1363
  %v2727 = vunpack.c.l.bf16 %v1364
  %v2728 = vunpack.c.h.bf16 %v1364
  %v2729 = vunpack.c.l.bf16 %v1365
  %v2730 = vunpack.c.h.bf16 %v1365
  %v2731 = vunpack.c.l.bf16 %v1366
  %v2732 = vunpack.c.h.bf16 %v1366
  %v2733 = vunpack.c.l.bf16 %v1367
  %v2734 = vunpack.c.h.bf16 %v1367
  %v2735 = vunpack.c.l.bf16 %v1368
  %v2736 = vunpack.c.h.bf16 %v1368
  %v2737 = vunpack.c.l.bf16 %v1369
  %v2738 = vunpack.c.h.bf16 %v1369
  %v2739 = vunpack.c.l.bf16 %v1370
  %v2740 = vunpack.c.h.bf16 %v1370
  %v2741 = vunpack.c.l.bf16 %v1371
  %v2742 = vunpack.c.h.bf16 %v1371
  %v2743 = vunpack.c.l.bf16 %v1372
  %v2744 = vunpack.c.h.bf16 %v1372
  %v2745 = vunpack.c.l.bf16 %v1373
  %v2746 = vunpack.c.h.bf16 %v1373
  %v2747 = vunpack.c.l.bf16 %v1374
  %v2748 = vunpack.c.h.bf16 %v1374
  %v2749 = vunpack.c.l.bf16 %v1375
  %v2750 = vunpack.c.h.bf16 %v1375
  %v2751 = vunpack.c.l.bf16 %v1376
  %v2752 = vunpack.c.h.bf16 %v1376
  %v2753 = vunpack.c.l.bf16 %v1377
  %v2754 = vunpack.c.h.bf16 %v1377
  %v2755 = vunpack.c.l.bf16 %v1378
  %v2756 = vunpack.c.h.bf16 %v1378
  %v2757 = vunpack.c.l.bf16 %v1379
  %v2758 = vunpack.c.h.bf16 %v1379
  %v2759 = vunpack.c.l.bf16 %v1380
  %v2760 = vunpack.c.h.bf16 %v1380
  %v2761 = vunpack.c.l.bf16 %v1381
  %v2762 = vunpack.c.h.bf16 %v1381
  %v2763 = vunpack.c.l.bf16 %v1382
  %v2764 = vunpack.c.h.bf16 %v1382
  %v2765 = vunpack.c.l.bf16 %v1383
  %v2766 = vunpack.c.h.bf16 %v1383
  %v2767 = vunpack.c.l.bf16 %v1384
  %v2768 = vunpack.c.h.bf16 %v1384
  %v2769 = vunpack.c.l.bf16 %v1385
  %v2770 = vunpack.c.h.bf16 %v1385
  %v2771 = vunpack.c.l.bf16 %v1386
  %v2772 = vunpack.c.h.bf16 %v1386
  %v2773 = vunpack.c.l.bf16 %v1387
  %v2774 = vunpack.c.h.bf16 %v1387
  %v2775 = vunpack.c.l.bf16 %v1388
  %v2776 = vunpack.c.h.bf16 %v1388
  %v2777 = vunpack.c.l.bf16 %v1389
  %v2778 = vunpack.c.h.bf16 %v1389
  %v2779 = vunpack.c.l.bf16 %v1390
  %v2780 = vunpack.c.h.bf16 %v1390
  %v2781 = vunpack.c.l.bf16 %v1391
  %v2782 = vunpack.c.h.bf16 %v1391
  %v2783 = vunpack.c.l.bf16 %v1392
  %v2784 = vunpack.c.h.bf16 %v1392
  %v2785 = vunpack.c.l.bf16 %v1393
  %v2786 = vunpack.c.h.bf16 %v1393
  %v2787 = vunpack.c.l.bf16 %v1394
  %v2788 = vunpack.c.h.bf16 %v1394
  %v2789 = vunpack.c.l.bf16 %v1395
  %v2790 = vunpack.c.h.bf16 %v1395
  %v2791 = vunpack.c.l.bf16 %v1396
  %v2792 = vunpack.c.h.bf16 %v1396
  %v2793 = vunpack.c.l.bf16 %v1397
  %v2794 = vunpack.c.h.bf16 %v1397
  %v2795 = vunpack.c.l.bf16 %v1398
  %v2796 = vunpack.c.h.bf16 %v1398
  %v2797 = vunpack.c.l.bf16 %v1399
  %v2798 = vunpack.c.h.bf16 %v1399
  %v2799 = vunpack.c.l.bf16 %v1400
  %v2800 = vunpack.c.h.bf16 %v1400
  %v2801 = vunpack.c.l.bf16 %v1401
  %v2802 = vunpack.c.h.bf16 %v1401
  %v2803 = vunpack.c.l.bf16 %v1402
  %v2804 = vunpack.c.h.bf16 %v1402
  %v2805 = vunpack.c.l.bf16 %v1403
  %v2806 = vunpack.c.h.bf16 %v1403
  %v2807 = vunpack.c.l.bf16 %v1404
  %v2808 = vunpack.c.h.bf16 %v1404
  %v2809 = vunpack.c.l.bf16 %v1405
  %v2810 = vunpack.c.h.bf16 %v1405
  %v2811 = vunpack.c.l.bf16 %v1406
  %v2812 = vunpack.c.h.bf16 %v1406
  %v2813 = vunpack.c.l.bf16 %v1407
  %v2814 = vunpack.c.h.bf16 %v1407
  %v2815 = vunpack.c.l.bf16 %v1408
  %v2816 = vunpack.c.h.bf16 %v1408
  %v2817 = vunpack.c.l.bf16 %v1409
  %v2818 = vunpack.c.h.bf16 %v1409
  %v2819 = vunpack.c.l.bf16 %v1410
  %v2820 = vunpack.c.h.bf16 %v1410
  %v2821 = vunpack.c.l.bf16 %v1411
  %v2822 = vunpack.c.h.bf16 %v1411
  %v2823 = vunpack.c.l.bf16 %v1412
  %v2824 = vunpack.c.h.bf16 %v1412
  %v2825 = vunpack.c.l.bf16 %v1413
  %v2826 = vunpack.c.h.bf16 %v1413
  %v2827 = vunpack.c.l.bf16 %v1414
  %v2828 = vunpack.c.h.bf16 %v1414
  %v2829 = vunpack.c.l.bf16 %v1415
  %v2830 = vunpack.c.h.bf16 %v1415
  %v2831 = vunpack.c.l.bf16 %v1416
  %v2832 = vunpack.c.h.bf16 %v1416
  %v2833 = vunpack.c.l.bf16 %v1417
  %v2834 = vunpack.c.h.bf16 %v1417
  %v2835 = vunpack.c.l.bf16 %v1418
  %v2836 = vunpack.c.h.bf16 %v1418
  %v2837 = vunpack.c.l.bf16 %v1419
  %v2838 = vunpack.c.h.bf16 %v1419
  %v2839 = vunpack.c.l.bf16 %v1420
  %v2840 = vunpack.c.h.bf16 %v1420
  %v2841 = vunpack.c.l.bf16 %v1421
  %v2842 = vunpack.c.h.bf16 %v1421
  %v2843 = vunpack.c.l.bf16 %v1422
  %v2844 = vunpack.c.h.bf16 %v1422
  %v2845 = vunpack.c.l.bf16 %v1423
  %v2846 = vunpack.c.h.bf16 %v1423
  %v2847 = vunpack.c.l.bf16 %v1424
  %v2848 = vunpack.c.h.bf16 %v1424
  %v2849 = vunpack.c.l.bf16 %v1425
  %v2850 = vunpack.c.h.bf16 %v1425
  %v2851 = vunpack.c.l.bf16 %v1426
  %v2852 = vunpack.c.h.bf16 %v1426
  %v2853 = vunpack.c.l.bf16 %v1427
  %v2854 = vunpack.c.h.bf16 %v1427
  %v2855 = vunpack.c.l.bf16 %v1428
  %v2856 = vunpack.c.h.bf16 %v1428
  %v2857 = vunpack.c.l.bf16 %v1429
  %v2858 = vunpack.c.h.bf16 %v1429
  %v2859 = vunpack.c.l.bf16 %v1430
  %v2860 = vunpack.c.h.bf16 %v1430
  %v2861 = vunpack.c.l.bf16 %v1431
  %v2862 = vunpack.c.h.bf16 %v1431
  %v2863 = vunpack.c.l.bf16 %v1432
  %v2864 = vunpack.c.h.bf16 %v1432
  %v2865 = vunpack.c.l.bf16 %v1433
  %v2866 = vunpack.c.h.bf16 %v1433
  %v2867 = vunpack.c.l.bf16 %v1434
  %v2868 = vunpack.c.h.bf16 %v1434
  %v2869 = vunpack.c.l.bf16 %v1435
  %v2870 = vunpack.c.h.bf16 %v1435
  %v2871 = vunpack.c.l.bf16 %v1436
  %v2872 = vunpack.c.h.bf16 %v1436
  %v2873 = vunpack.c.l.bf16 %v1437
  %v2874 = vunpack.c.h.bf16 %v1437
  %v2875 = vunpack.c.l.bf16 %v1438
  %v2876 = vunpack.c.h.bf16 %v1438
  %v2877 = vunpack.c.l.bf16 %v1439
  %v2878 = vunpack.c.h.bf16 %v1439
  %v2879 = vunpack.c.l.bf16 %v1440
  %v2880 = vunpack.c.h.bf16 %v1440
  %v2881 = vunpack.c.l.bf16 %v1441
  %v2882 = vunpack.c.h.bf16 %v1441
  %v2883 = vunpack.c.l.bf16 %v1442
  %v2884 = vunpack.c.h.bf16 %v1442
  %v2885 = vunpack.c.l.bf16 %v1443
  %v2886 = vunpack.c.h.bf16 %v1443
  %v2887 = vunpack.c.l.bf16 %v1444
  %v2888 = vunpack.c.h.bf16 %v1444
  %v2889 = vunpack.c.l.bf16 %v1445
  %v2890 = vunpack.c.h.bf16 %v1445
  %v2891 = vunpack.c.l.bf16 %v1446
  %v2892 = vunpack.c.h.bf16 %v1446
  %v2893 = vunpack.c.l.bf16 %v1447
  %v2894 = vunpack.c.h.bf16 %v1447
  %v2895 = vunpack.c.l.bf16 %v1448
  %v2896 = vunpack.c.h.bf16 %v1448
  %v2897 = vunpack.c.l.bf16 %v1449
  %v2898 = vunpack.c.h.bf16 %v1449
  %v2899 = vunpack.c.l.bf16 %v1450
  %v2900 = vunpack.c.h.bf16 %v1450
  %v2901 = vunpack.c.l.bf16 %v1451
  %v2902 = vunpack.c.h.bf16 %v1451
  %v2903 = vunpack.c.l.bf16 %v1452
  %v2904 = vunpack.c.h.bf16 %v1452
  %v2905 = vunpack.c.l.bf16 %v1453
  %v2906 = vunpack.c.h.bf16 %v1453
  %v2907 = vunpack.c.l.bf16 %v1454
  %v2908 = vunpack.c.h.bf16 %v1454
  %v2909 = vunpack.c.l.bf16 %v1455
  %v2910 = vunpack.c.h.bf16 %v1455
  %v2911 = vunpack.c.l.bf16 %v1456
  %v2912 = vunpack.c.h.bf16 %v1456
  %v2913 = vunpack.c.l.bf16 %v1457
  %v2914 = vunpack.c.h.bf16 %v1457
  %v2915 = vunpack.c.l.bf16 %v1458
  %v2916 = vunpack.c.h.bf16 %v1458
  %v2917 = vunpack.c.l.bf16 %v1459
  %v2918 = vunpack.c.h.bf16 %v1459
  %v2919 = vunpack.c.l.bf16 %v1460
  %v2920 = vunpack.c.h.bf16 %v1460
  %v2921 = vunpack.c.l.bf16 %v1461
  %v2922 = vunpack.c.h.bf16 %v1461
  %v2923 = vunpack.c.l.bf16 %v1462
  %v2924 = vunpack.c.h.bf16 %v1462
  %v2925 = vunpack.c.l.bf16 %v1463
  %v2926 = vunpack.c.h.bf16 %v1463
  %v2927 = vunpack.c.l.bf16 %v1464
  %v2928 = vunpack.c.h.bf16 %v1464
  %v2929 = vunpack.c.l.bf16 %v1465
  %v2930 = vunpack.c.h.bf16 %v1465
  %v2931 = vunpack.c.l.bf16 %v1466
  %v2932 = vunpack.c.h.bf16 %v1466
  %v2933 = vunpack.c.l.bf16 %v1467
  %v2934 = vunpack.c.h.bf16 %v1467
  %v2935 = vunpack.c.l.bf16 %v1468
  %v2936 = vunpack.c.h.bf16 %v1468
  %v2937 = vunpack.c.l.bf16 %v1469
  %v2938 = vunpack.c.h.bf16 %v1469
  %v2939 = vunpack.c.l.bf16 %v1470
  %v2940 = vunpack.c.h.bf16 %v1470
  %v2941 = vunpack.c.l.bf16 %v1471
  %v2942 = vunpack.c.h.bf16 %v1471
  %v2943 = vunpack.c.l.bf16 %v1472
  %v2944 = vunpack.c.h.bf16 %v1472
  %v2945 = vunpack.c.l.bf16 %v1473
  %v2946 = vunpack.c.h.bf16 %v1473
  %v2947 = vunpack.c.l.bf16 %v1474
  %v2948 = vunpack.c.h.bf16 %v1474
  %v2949 = vunpack.c.l.bf16 %v1475
  %v2950 = vunpack.c.h.bf16 %v1475
  %v2951 = vunpack.c.l.bf16 %v1476
  %v2952 = vunpack.c.h.bf16 %v1476
  %v2953 = vunpack.c.l.bf16 %v1477
  %v2954 = vunpack.c.h.bf16 %v1477
  %v2955 = vunpack.c.l.bf16 %v1478
  %v2956 = vunpack.c.h.bf16 %v1478
  %v2957 = vunpack.c.l.bf16 %v1479
  %v2958 = vunpack.c.h.bf16 %v1479
  %v2959 = vunpack.c.l.bf16 %v1480
  %v2960 = vunpack.c.h.bf16 %v1480
  %v2961 = vunpack.c.l.bf16 %v1481
  %v2962 = vunpack.c.h.bf16 %v1481
  %v2963 = vunpack.c.l.bf16 %v1482
  %v2964 = vunpack.c.h.bf16 %v1482
  %v2965 = vunpack.c.l.bf16 %v1483
  %v2966 = vunpack.c.h.bf16 %v1483
  %v2967 = vunpack.c.l.bf16 %v1484
  %v2968 = vunpack.c.h.bf16 %v1484
  %v2969 = vunpack.c.l.bf16 %v1485
  %v2970 = vunpack.c.h.bf16 %v1485
  %v2971 = vunpack.c.l.bf16 %v1486
  %v2972 = vunpack.c.h.bf16 %v1486
  %v2973 = vunpack.c.l.bf16 %v1487
  %v2974 = vunpack.c.h.bf16 %v1487
  %v2975 = vunpack.c.l.bf16 %v1488
  %v2976 = vunpack.c.h.bf16 %v1488
  %v2977 = vunpack.c.l.bf16 %v1489
  %v2978 = vunpack.c.h.bf16 %v1489
  %v2979 = vunpack.c.l.bf16 %v1490
  %v2980 = vunpack.c.h.bf16 %v1490
  %v2981 = vunpack.c.l.bf16 %v1491
  %v2982 = vunpack.c.h.bf16 %v1491
  %v2983 = vunpack.c.l.bf16 %v1492
  %v2984 = vunpack.c.h.bf16 %v1492
  %v2985 = vunpack.c.l.bf16 %v1493
  %v2986 = vunpack.c.h.bf16 %v1493
  %v2987 = vunpack.c.l.bf16 %v1494
  %v2988 = vunpack.c.h.bf16 %v1494
  %v2989 = vunpack.c.l.bf16 %v1495
  %v2990 = vunpack.c.h.bf16 %v1495
  %v2991 = vunpack.c.l.bf16 %v1496
  %v2992 = vunpack.c.h.bf16 %v1496
  %v2993 = vunpack.c.l.bf16 %v1497
  %v2994 = vunpack.c.h.bf16 %v1497
  %v2995 = vunpack.c.l.bf16 %v1498
  %v2996 = vunpack.c.h.bf16 %v1498
  %v2997 = vunpack.c.l.bf16 %v1499
  %v2998 = vunpack.c.h.bf16 %v1499
  %v2999 = vunpack.c.l.bf16 %v1500
  %v3000 = vunpack.c.h.bf16 %v1500
  %v3001 = vunpack.c.l.bf16 %v1501
  %v3002 = vunpack.c.h.bf16 %v1501
  %v3003 = vunpack.c.l.bf16 %v1502
  %v3004 = vunpack.c.h.bf16 %v1502
  %v3005 = vunpack.c.l.bf16 %v1503
  %v3006 = vunpack.c.h.bf16 %v1503
  %v3007 = vunpack.c.l.bf16 %v1504
  %v3008 = vunpack.c.h.bf16 %v1504
  %v3009 = vunpack.c.l.bf16 %v1505
  %v3010 = vunpack.c.h.bf16 %v1505
  %v3011 = vunpack.c.l.bf16 %v1506
  %v3012 = vunpack.c.h.bf16 %v1506
  %v3013 = vunpack.c.l.bf16 %v1507
  %v3014 = vunpack.c.h.bf16 %v1507
  %v3015 = vunpack.c.l.bf16 %v1508
  %v3016 = vunpack.c.h.bf16 %v1508
  %v3017 = vunpack.c.l.bf16 %v1509
  %v3018 = vunpack.c.h.bf16 %v1509
  %v3019 = vunpack.c.l.bf16 %v1510
  %v3020 = vunpack.c.h.bf16 %v1510
  %v3021 = vunpack.c.l.bf16 %v1511
  %v3022 = vunpack.c.h.bf16 %v1511
  %v3023 = vunpack.c.l.bf16 %v1512
  %v3024 = vunpack.c.h.bf16 %v1512
  %v3025 = vunpack.c.l.bf16 %v1513
  %v3026 = vunpack.c.h.bf16 %v1513
  %v3027 = vunpack.c.l.bf16 %v1514
  %v3028 = vunpack.c.h.bf16 %v1514
  %v3029 = vunpack.c.l.bf16 %v1515
  %v3030 = vunpack.c.h.bf16 %v1515
  %v3031 = vunpack.c.l.bf16 %v1516
  %v3032 = vunpack.c.h.bf16 %v1516
  %v3033 = vunpack.c.l.bf16 %v1517
  %v3034 = vunpack.c.h.bf16 %v1517
  %v3035 = vunpack.c.l.bf16 %v1518
  %v3036 = vunpack.c.h.bf16 %v1518
  %v3037 = vunpack.c.l.bf16 %v1519
  %v3038 = vunpack.c.h.bf16 %v1519
  %v3039 = vunpack.c.l.bf16 %v1520
  %v3040 = vunpack.c.h.bf16 %v1520
  %v3041 = vunpack.c.l.bf16 %v1521
  %v3042 = vunpack.c.h.bf16 %v1521
  %v3043 = vunpack.c.l.bf16 %v1522
  %v3044 = vunpack.c.h.bf16 %v1522
  %v3045 = vunpack.c.l.bf16 %v1523
  %v3046 = vunpack.c.h.bf16 %v1523
  %v3047 = vunpack.c.l.bf16 %v1524
  %v3048 = vunpack.c.h.bf16 %v1524
  %v3049 = vunpack.c.l.bf16 %v1525
  %v3050 = vunpack.c.h.bf16 %v1525
  %v3051 = vunpack.c.l.bf16 %v1526
  %v3052 = vunpack.c.h.bf16 %v1526
  %v3053 = vunpack.c.l.bf16 %v1527
  %v3054 = vunpack.c.h.bf16 %v1527
  %v3055 = vunpack.c.l.bf16 %v1528
  %v3056 = vunpack.c.h.bf16 %v1528
  %v3057 = vunpack.c.l.bf16 %v1529
  %v3058 = vunpack.c.h.bf16 %v1529
  %v3059 = vunpack.c.l.bf16 %v1530
  %v3060 = vunpack.c.h.bf16 %v1530
  %v3061 = vunpack.c.l.bf16 %v1531
  %v3062 = vunpack.c.h.bf16 %v1531
  %v3063 = vunpack.c.l.bf16 %v1532
  %v3064 = vunpack.c.h.bf16 %v1532
  %v3065 = vunpack.c.l.bf16 %v1533
  %v3066 = vunpack.c.h.bf16 %v1533
  %v3067 = vunpack.c.l.bf16 %v1534
  %v3068 = vunpack.c.h.bf16 %v1534
  %v3069 = vunpack.c.l.bf16 %v1535
  %v3070 = vunpack.c.h.bf16 %v1535
  %v3071 = vunpack.c.l.bf16 %v1536
  %v3072 = vunpack.c.h.bf16 %v1536
  %v3073 = vld [vmem:[%s6] sm:$0xff]
  %v3074 = vld [vmem:[%s6 + $0x8] sm:$0xff]
  %v3075 = vld [vmem:[%s6 + $0x10] sm:$0xff]
  %v3076 = vld [vmem:[%s6 + $0x18] sm:$0xff]
  %v3077 = vld [vmem:[%s6 + $0x20] sm:$0xff]
  %v3078 = vld [vmem:[%s6 + $0x28] sm:$0xff]
  %v3085 = vperm.slane %v3073, 0
  %v3086 = vperm.slane %v3073, 1
  %v3087 = vperm.slane %v3073, 2
  %v3088 = vperm.slane %v3073, 3
  %v3089 = vperm.slane %v3073, 4
  %v3090 = vperm.slane %v3073, 5
  %v3091 = vperm.slane %v3073, 6
  %v3092 = vperm.slane %v3073, 7
  %v3093 = vperm.slane %v3074, 0
  %v3094 = vperm.slane %v3074, 1
  %v3095 = vperm.slane %v3074, 2
  %v3096 = vperm.slane %v3074, 3
  %v3097 = vperm.slane %v3074, 4
  %v3098 = vperm.slane %v3074, 5
  %v3099 = vperm.slane %v3074, 6
  %v3100 = vperm.slane %v3074, 7
  %v3101 = vperm.slane %v3075, 0
  %v3102 = vperm.slane %v3075, 1
  %v3103 = vperm.slane %v3075, 2
  %v3104 = vperm.slane %v3075, 3
  %v3105 = vperm.slane %v3075, 4
  %v3106 = vperm.slane %v3075, 5
  %v3107 = vperm.slane %v3075, 6
  %v3108 = vperm.slane %v3075, 7
  %v3109 = vperm.slane %v3076, 0
  %v3110 = vperm.slane %v3076, 1
  %v3111 = vperm.slane %v3076, 2
  %v3112 = vperm.slane %v3076, 3
  %v3113 = vperm.slane %v3076, 4
  %v3114 = vperm.slane %v3076, 5
  %v3115 = vperm.slane %v3076, 6
  %v3116 = vperm.slane %v3076, 7
  %v3117 = vperm.slane %v3077, 0
  %v3118 = vperm.slane %v3077, 1
  %v3119 = vperm.slane %v3077, 2
  %v3120 = vperm.slane %v3077, 3
  %v3121 = vperm.slane %v3077, 4
  %v3122 = vperm.slane %v3077, 5
  %v3123 = vperm.slane %v3077, 6
  %v3124 = vperm.slane %v3077, 7
  %v3125 = vperm.slane %v3078, 0
  %v3126 = vperm.slane %v3078, 1
  %v3127 = vperm.slane %v3078, 2
  %v3128 = vperm.slane %v3078, 3
  %v3129 = vperm.slane %v3078, 4
  %v3130 = vperm.slane %v3078, 5
  %v3131 = vperm.slane %v3078, 6
  %v3132 = vperm.slane %v3078, 7
  %3181 = vmatpush.msra.mxu0 %v2257
  %3182 = vmatpush.msra.mxu0 %v2209
  %3183 = vmatpush.msra.mxu0 %v2161
  %3184 = vmatpush.msra.mxu0 %v2113
  %3185 = vmatpush.msra.mxu0 %v2065
  %3186 = vmatpush.msra.mxu0 %v2017
  %3187 = vmatpush.msra.mxu0 %v1969
  %3188 = vmatpush.msra.mxu0 %v1921
  %3189 = vmatpush.msra.mxu0 %v1873
  %3190 = vmatpush.msra.mxu0 %v1825
  %3191 = vmatpush.msra.mxu0 %v1777
  %3192 = vmatpush.msra.mxu0 %v1729
  %3193 = vmatpush.msra.mxu0 %v1681
  %3194 = vmatpush.msra.mxu0 %v1633
  %3195 = vmatpush.msra.mxu0 %v1585
  %3196 = vmatpush.msra.mxu0 %v1537
  %3197 = vmatmul.f32.gmra.mxu0 %v767
  %v3198 = vpop.f32.mrf.mxu0
  %v3199 = vadd.f32 %v3085, %v3198
  %3200 = vdwg.mxu0
  %3201 = vmatpush.msra.mxu0 %v3025
  %3202 = vmatpush.msra.mxu0 %v2977
  %3203 = vmatpush.msra.mxu0 %v2929
  %3204 = vmatpush.msra.mxu0 %v2881
  %3205 = vmatpush.msra.mxu0 %v2833
  %3206 = vmatpush.msra.mxu0 %v2785
  %3207 = vmatpush.msra.mxu0 %v2737
  %3208 = vmatpush.msra.mxu0 %v2689
  %3209 = vmatpush.msra.mxu0 %v2641
  %3210 = vmatpush.msra.mxu0 %v2593
  %3211 = vmatpush.msra.mxu0 %v2545
  %3212 = vmatpush.msra.mxu0 %v2497
  %3213 = vmatpush.msra.mxu0 %v2449
  %3214 = vmatpush.msra.mxu0 %v2401
  %3215 = vmatpush.msra.mxu0 %v2353
  %3216 = vmatpush.msra.mxu0 %v2305
  %3217 = vmatmul.f32.gmra.mxu0 %v768
  %v3218 = vpop.f32.mrf.mxu0
  %v3219 = vadd.f32 %v3199, %v3218
  %3220 = vdwg.mxu0
  %3221 = vmatpush.msra.mxu0 %v2258
  %3222 = vmatpush.msra.mxu0 %v2210
  %3223 = vmatpush.msra.mxu0 %v2162
  %3224 = vmatpush.msra.mxu0 %v2114
  %3225 = vmatpush.msra.mxu0 %v2066
  %3226 = vmatpush.msra.mxu0 %v2018
  %3227 = vmatpush.msra.mxu0 %v1970
  %3228 = vmatpush.msra.mxu0 %v1922
  %3229 = vmatpush.msra.mxu0 %v1874
  %3230 = vmatpush.msra.mxu0 %v1826
  %3231 = vmatpush.msra.mxu0 %v1778
  %3232 = vmatpush.msra.mxu0 %v1730
  %3233 = vmatpush.msra.mxu0 %v1682
  %3234 = vmatpush.msra.mxu0 %v1634
  %3235 = vmatpush.msra.mxu0 %v1586
  %3236 = vmatpush.msra.mxu0 %v1538
  %3237 = vmatmul.f32.gmra.mxu0 %v767
  %v3238 = vpop.f32.mrf.mxu0
  %v3239 = vadd.f32 %v3086, %v3238
  %3240 = vdwg.mxu0
  %3241 = vmatpush.msra.mxu0 %v3026
  %3242 = vmatpush.msra.mxu0 %v2978
  %3243 = vmatpush.msra.mxu0 %v2930
  %3244 = vmatpush.msra.mxu0 %v2882
  %3245 = vmatpush.msra.mxu0 %v2834
  %3246 = vmatpush.msra.mxu0 %v2786
  %3247 = vmatpush.msra.mxu0 %v2738
  %3248 = vmatpush.msra.mxu0 %v2690
  %3249 = vmatpush.msra.mxu0 %v2642
  %3250 = vmatpush.msra.mxu0 %v2594
  %3251 = vmatpush.msra.mxu0 %v2546
  %3252 = vmatpush.msra.mxu0 %v2498
  %3253 = vmatpush.msra.mxu0 %v2450
  %3254 = vmatpush.msra.mxu0 %v2402
  %3255 = vmatpush.msra.mxu0 %v2354
  %3256 = vmatpush.msra.mxu0 %v2306
  %3257 = vmatmul.f32.gmra.mxu0 %v768
  %v3258 = vpop.f32.mrf.mxu0
  %v3259 = vadd.f32 %v3239, %v3258
  %3260 = vdwg.mxu0
  %3261 = vmatpush.msra.mxu0 %v2259
  %3262 = vmatpush.msra.mxu0 %v2211
  %3263 = vmatpush.msra.mxu0 %v2163
  %3264 = vmatpush.msra.mxu0 %v2115
  %3265 = vmatpush.msra.mxu0 %v2067
  %3266 = vmatpush.msra.mxu0 %v2019
  %3267 = vmatpush.msra.mxu0 %v1971
  %3268 = vmatpush.msra.mxu0 %v1923
  %3269 = vmatpush.msra.mxu0 %v1875
  %3270 = vmatpush.msra.mxu0 %v1827
  %3271 = vmatpush.msra.mxu0 %v1779
  %3272 = vmatpush.msra.mxu0 %v1731
  %3273 = vmatpush.msra.mxu0 %v1683
  %3274 = vmatpush.msra.mxu0 %v1635
  %3275 = vmatpush.msra.mxu0 %v1587
  %3276 = vmatpush.msra.mxu0 %v1539
  %3277 = vmatmul.f32.gmra.mxu0 %v767
  %v3278 = vpop.f32.mrf.mxu0
  %v3279 = vadd.f32 %v3087, %v3278
  %3280 = vdwg.mxu0
  %3281 = vmatpush.msra.mxu0 %v3027
  %3282 = vmatpush.msra.mxu0 %v2979
  %3283 = vmatpush.msra.mxu0 %v2931
  %3284 = vmatpush.msra.mxu0 %v2883
  %3285 = vmatpush.msra.mxu0 %v2835
  %3286 = vmatpush.msra.mxu0 %v2787
  %3287 = vmatpush.msra.mxu0 %v2739
  %3288 = vmatpush.msra.mxu0 %v2691
  %3289 = vmatpush.msra.mxu0 %v2643
  %3290 = vmatpush.msra.mxu0 %v2595
  %3291 = vmatpush.msra.mxu0 %v2547
  %3292 = vmatpush.msra.mxu0 %v2499
  %3293 = vmatpush.msra.mxu0 %v2451
  %3294 = vmatpush.msra.mxu0 %v2403
  %3295 = vmatpush.msra.mxu0 %v2355
  %3296 = vmatpush.msra.mxu0 %v2307
  %3297 = vmatmul.f32.gmra.mxu0 %v768
  %v3298 = vpop.f32.mrf.mxu0
  %v3299 = vadd.f32 %v3279, %v3298
  %3300 = vdwg.mxu0
  %3301 = vmatpush.msra.mxu0 %v2260
  %3302 = vmatpush.msra.mxu0 %v2212
  %3303 = vmatpush.msra.mxu0 %v2164
  %3304 = vmatpush.msra.mxu0 %v2116
  %3305 = vmatpush.msra.mxu0 %v2068
  %3306 = vmatpush.msra.mxu0 %v2020
  %3307 = vmatpush.msra.mxu0 %v1972
  %3308 = vmatpush.msra.mxu0 %v1924
  %3309 = vmatpush.msra.mxu0 %v1876
  %3310 = vmatpush.msra.mxu0 %v1828
  %3311 = vmatpush.msra.mxu0 %v1780
  %3312 = vmatpush.msra.mxu0 %v1732
  %3313 = vmatpush.msra.mxu0 %v1684
  %3314 = vmatpush.msra.mxu0 %v1636
  %3315 = vmatpush.msra.mxu0 %v1588
  %3316 = vmatpush.msra.mxu0 %v1540
  %3317 = vmatmul.f32.gmra.mxu0 %v767
  %v3318 = vpop.f32.mrf.mxu0
  %v3319 = vadd.f32 %v3088, %v3318
  %3320 = vdwg.mxu0
  %3321 = vmatpush.msra.mxu0 %v3028
  %3322 = vmatpush.msra.mxu0 %v2980
  %3323 = vmatpush.msra.mxu0 %v2932
  %3324 = vmatpush.msra.mxu0 %v2884
  %3325 = vmatpush.msra.mxu0 %v2836
  %3326 = vmatpush.msra.mxu0 %v2788
  %3327 = vmatpush.msra.mxu0 %v2740
  %3328 = vmatpush.msra.mxu0 %v2692
  %3329 = vmatpush.msra.mxu0 %v2644
  %3330 = vmatpush.msra.mxu0 %v2596
  %3331 = vmatpush.msra.mxu0 %v2548
  %3332 = vmatpush.msra.mxu0 %v2500
  %3333 = vmatpush.msra.mxu0 %v2452
  %3334 = vmatpush.msra.mxu0 %v2404
  %3335 = vmatpush.msra.mxu0 %v2356
  %3336 = vmatpush.msra.mxu0 %v2308
  %3337 = vmatmul.f32.gmra.mxu0 %v768
  %v3338 = vpop.f32.mrf.mxu0
  %v3339 = vadd.f32 %v3319, %v3338
  %3340 = vdwg.mxu0
  %3341 = vmatpush.msra.mxu0 %v2261
  %3342 = vmatpush.msra.mxu0 %v2213
  %3343 = vmatpush.msra.mxu0 %v2165
  %3344 = vmatpush.msra.mxu0 %v2117
  %3345 = vmatpush.msra.mxu0 %v2069
  %3346 = vmatpush.msra.mxu0 %v2021
  %3347 = vmatpush.msra.mxu0 %v1973
  %3348 = vmatpush.msra.mxu0 %v1925
  %3349 = vmatpush.msra.mxu0 %v1877
  %3350 = vmatpush.msra.mxu0 %v1829
  %3351 = vmatpush.msra.mxu0 %v1781
  %3352 = vmatpush.msra.mxu0 %v1733
  %3353 = vmatpush.msra.mxu0 %v1685
  %3354 = vmatpush.msra.mxu0 %v1637
  %3355 = vmatpush.msra.mxu0 %v1589
  %3356 = vmatpush.msra.mxu0 %v1541
  %3357 = vmatmul.f32.gmra.mxu0 %v767
  %v3358 = vpop.f32.mrf.mxu0
  %v3359 = vadd.f32 %v3089, %v3358
  %3360 = vdwg.mxu0
  %3361 = vmatpush.msra.mxu0 %v3029
  %3362 = vmatpush.msra.mxu0 %v2981
  %3363 = vmatpush.msra.mxu0 %v2933
  %3364 = vmatpush.msra.mxu0 %v2885
  %3365 = vmatpush.msra.mxu0 %v2837
  %3366 = vmatpush.msra.mxu0 %v2789
  %3367 = vmatpush.msra.mxu0 %v2741
  %3368 = vmatpush.msra.mxu0 %v2693
  %3369 = vmatpush.msra.mxu0 %v2645
  %3370 = vmatpush.msra.mxu0 %v2597
  %3371 = vmatpush.msra.mxu0 %v2549
  %3372 = vmatpush.msra.mxu0 %v2501
  %3373 = vmatpush.msra.mxu0 %v2453
  %3374 = vmatpush.msra.mxu0 %v2405
  %3375 = vmatpush.msra.mxu0 %v2357
  %3376 = vmatpush.msra.mxu0 %v2309
  %3377 = vmatmul.f32.gmra.mxu0 %v768
  %v3378 = vpop.f32.mrf.mxu0
  %v3379 = vadd.f32 %v3359, %v3378
  %3380 = vdwg.mxu0
  %3381 = vmatpush.msra.mxu0 %v2262
  %3382 = vmatpush.msra.mxu0 %v2214
  %3383 = vmatpush.msra.mxu0 %v2166
  %3384 = vmatpush.msra.mxu0 %v2118
  %3385 = vmatpush.msra.mxu0 %v2070
  %3386 = vmatpush.msra.mxu0 %v2022
  %3387 = vmatpush.msra.mxu0 %v1974
  %3388 = vmatpush.msra.mxu0 %v1926
  %3389 = vmatpush.msra.mxu0 %v1878
  %3390 = vmatpush.msra.mxu0 %v1830
  %3391 = vmatpush.msra.mxu0 %v1782
  %3392 = vmatpush.msra.mxu0 %v1734
  %3393 = vmatpush.msra.mxu0 %v1686
  %3394 = vmatpush.msra.mxu0 %v1638
  %3395 = vmatpush.msra.mxu0 %v1590
  %3396 = vmatpush.msra.mxu0 %v1542
  %3397 = vmatmul.f32.gmra.mxu0 %v767
  %v3398 = vpop.f32.mrf.mxu0
  %v3399 = vadd.f32 %v3090, %v3398
  %3400 = vdwg.mxu0
  %3401 = vmatpush.msra.mxu0 %v3030
  %3402 = vmatpush.msra.mxu0 %v2982
  %3403 = vmatpush.msra.mxu0 %v2934
  %3404 = vmatpush.msra.mxu0 %v2886
  %3405 = vmatpush.msra.mxu0 %v2838
  %3406 = vmatpush.msra.mxu0 %v2790
  %3407 = vmatpush.msra.mxu0 %v2742
  %3408 = vmatpush.msra.mxu0 %v2694
  %3409 = vmatpush.msra.mxu0 %v2646
  %3410 = vmatpush.msra.mxu0 %v2598
  %3411 = vmatpush.msra.mxu0 %v2550
  %3412 = vmatpush.msra.mxu0 %v2502
  %3413 = vmatpush.msra.mxu0 %v2454
  %3414 = vmatpush.msra.mxu0 %v2406
  %3415 = vmatpush.msra.mxu0 %v2358
  %3416 = vmatpush.msra.mxu0 %v2310
  %3417 = vmatmul.f32.gmra.mxu0 %v768
  %v3418 = vpop.f32.mrf.mxu0
  %v3419 = vadd.f32 %v3399, %v3418
  %3420 = vdwg.mxu0
  %3421 = vmatpush.msra.mxu0 %v2263
  %3422 = vmatpush.msra.mxu0 %v2215
  %3423 = vmatpush.msra.mxu0 %v2167
  %3424 = vmatpush.msra.mxu0 %v2119
  %3425 = vmatpush.msra.mxu0 %v2071
  %3426 = vmatpush.msra.mxu0 %v2023
  %3427 = vmatpush.msra.mxu0 %v1975
  %3428 = vmatpush.msra.mxu0 %v1927
  %3429 = vmatpush.msra.mxu0 %v1879
  %3430 = vmatpush.msra.mxu0 %v1831
  %3431 = vmatpush.msra.mxu0 %v1783
  %3432 = vmatpush.msra.mxu0 %v1735
  %3433 = vmatpush.msra.mxu0 %v1687
  %3434 = vmatpush.msra.mxu0 %v1639
  %3435 = vmatpush.msra.mxu0 %v1591
  %3436 = vmatpush.msra.mxu0 %v1543
  %3437 = vmatmul.f32.gmra.mxu0 %v767
  %v3438 = vpop.f32.mrf.mxu0
  %v3439 = vadd.f32 %v3091, %v3438
  %3440 = vdwg.mxu0
  %3441 = vmatpush.msra.mxu0 %v3031
  %3442 = vmatpush.msra.mxu0 %v2983
  %3443 = vmatpush.msra.mxu0 %v2935
  %3444 = vmatpush.msra.mxu0 %v2887
  %3445 = vmatpush.msra.mxu0 %v2839
  %3446 = vmatpush.msra.mxu0 %v2791
  %3447 = vmatpush.msra.mxu0 %v2743
  %3448 = vmatpush.msra.mxu0 %v2695
  %3449 = vmatpush.msra.mxu0 %v2647
  %3450 = vmatpush.msra.mxu0 %v2599
  %3451 = vmatpush.msra.mxu0 %v2551
  %3452 = vmatpush.msra.mxu0 %v2503
  %3453 = vmatpush.msra.mxu0 %v2455
  %3454 = vmatpush.msra.mxu0 %v2407
  %3455 = vmatpush.msra.mxu0 %v2359
  %3456 = vmatpush.msra.mxu0 %v2311
  %3457 = vmatmul.f32.gmra.mxu0 %v768
  %v3458 = vpop.f32.mrf.mxu0
  %v3459 = vadd.f32 %v3439, %v3458
  %3460 = vdwg.mxu0
  %3461 = vmatpush.msra.mxu0 %v2264
  %3462 = vmatpush.msra.mxu0 %v2216
  %3463 = vmatpush.msra.mxu0 %v2168
  %3464 = vmatpush.msra.mxu0 %v2120
  %3465 = vmatpush.msra.mxu0 %v2072
  %3466 = vmatpush.msra.mxu0 %v2024
  %3467 = vmatpush.msra.mxu0 %v1976
  %3468 = vmatpush.msra.mxu0 %v1928
  %3469 = vmatpush.msra.mxu0 %v1880
  %3470 = vmatpush.msra.mxu0 %v1832
  %3471 = vmatpush.msra.mxu0 %v1784
  %3472 = vmatpush.msra.mxu0 %v1736
  %3473 = vmatpush.msra.mxu0 %v1688
  %3474 = vmatpush.msra.mxu0 %v1640
  %3475 = vmatpush.msra.mxu0 %v1592
  %3476 = vmatpush.msra.mxu0 %v1544
  %3477 = vmatmul.f32.gmra.mxu0 %v767
  %v3478 = vpop.f32.mrf.mxu0
  %v3479 = vadd.f32 %v3092, %v3478
  %3480 = vdwg.mxu0
  %3481 = vmatpush.msra.mxu0 %v3032
  %3482 = vmatpush.msra.mxu0 %v2984
  %3483 = vmatpush.msra.mxu0 %v2936
  %3484 = vmatpush.msra.mxu0 %v2888
  %3485 = vmatpush.msra.mxu0 %v2840
  %3486 = vmatpush.msra.mxu0 %v2792
  %3487 = vmatpush.msra.mxu0 %v2744
  %3488 = vmatpush.msra.mxu0 %v2696
  %3489 = vmatpush.msra.mxu0 %v2648
  %3490 = vmatpush.msra.mxu0 %v2600
  %3491 = vmatpush.msra.mxu0 %v2552
  %3492 = vmatpush.msra.mxu0 %v2504
  %3493 = vmatpush.msra.mxu0 %v2456
  %3494 = vmatpush.msra.mxu0 %v2408
  %3495 = vmatpush.msra.mxu0 %v2360
  %3496 = vmatpush.msra.mxu0 %v2312
  %3497 = vmatmul.f32.gmra.mxu0 %v768
  %v3498 = vpop.f32.mrf.mxu0
  %v3499 = vadd.f32 %v3479, %v3498
  %3500 = vdwg.mxu0
  %3501 = vmatpush.msra.mxu0 %v2265
  %3502 = vmatpush.msra.mxu0 %v2217
  %3503 = vmatpush.msra.mxu0 %v2169
  %3504 = vmatpush.msra.mxu0 %v2121
  %3505 = vmatpush.msra.mxu0 %v2073
  %3506 = vmatpush.msra.mxu0 %v2025
  %3507 = vmatpush.msra.mxu0 %v1977
  %3508 = vmatpush.msra.mxu0 %v1929
  %3509 = vmatpush.msra.mxu0 %v1881
  %3510 = vmatpush.msra.mxu0 %v1833
  %3511 = vmatpush.msra.mxu0 %v1785
  %3512 = vmatpush.msra.mxu0 %v1737
  %3513 = vmatpush.msra.mxu0 %v1689
  %3514 = vmatpush.msra.mxu0 %v1641
  %3515 = vmatpush.msra.mxu0 %v1593
  %3516 = vmatpush.msra.mxu0 %v1545
  %3517 = vmatmul.f32.gmra.mxu0 %v767
  %v3518 = vpop.f32.mrf.mxu0
  %v3519 = vadd.f32 %v3093, %v3518
  %3520 = vdwg.mxu0
  %3521 = vmatpush.msra.mxu0 %v3033
  %3522 = vmatpush.msra.mxu0 %v2985
  %3523 = vmatpush.msra.mxu0 %v2937
  %3524 = vmatpush.msra.mxu0 %v2889
  %3525 = vmatpush.msra.mxu0 %v2841
  %3526 = vmatpush.msra.mxu0 %v2793
  %3527 = vmatpush.msra.mxu0 %v2745
  %3528 = vmatpush.msra.mxu0 %v2697
  %3529 = vmatpush.msra.mxu0 %v2649
  %3530 = vmatpush.msra.mxu0 %v2601
  %3531 = vmatpush.msra.mxu0 %v2553
  %3532 = vmatpush.msra.mxu0 %v2505
  %3533 = vmatpush.msra.mxu0 %v2457
  %3534 = vmatpush.msra.mxu0 %v2409
  %3535 = vmatpush.msra.mxu0 %v2361
  %3536 = vmatpush.msra.mxu0 %v2313
  %3537 = vmatmul.f32.gmra.mxu0 %v768
  %v3538 = vpop.f32.mrf.mxu0
  %v3539 = vadd.f32 %v3519, %v3538
  %3540 = vdwg.mxu0
  %3541 = vmatpush.msra.mxu0 %v2266
  %3542 = vmatpush.msra.mxu0 %v2218
  %3543 = vmatpush.msra.mxu0 %v2170
  %3544 = vmatpush.msra.mxu0 %v2122
  %3545 = vmatpush.msra.mxu0 %v2074
  %3546 = vmatpush.msra.mxu0 %v2026
  %3547 = vmatpush.msra.mxu0 %v1978
  %3548 = vmatpush.msra.mxu0 %v1930
  %3549 = vmatpush.msra.mxu0 %v1882
  %3550 = vmatpush.msra.mxu0 %v1834
  %3551 = vmatpush.msra.mxu0 %v1786
  %3552 = vmatpush.msra.mxu0 %v1738
  %3553 = vmatpush.msra.mxu0 %v1690
  %3554 = vmatpush.msra.mxu0 %v1642
  %3555 = vmatpush.msra.mxu0 %v1594
  %3556 = vmatpush.msra.mxu0 %v1546
  %3557 = vmatmul.f32.gmra.mxu0 %v767
  %v3558 = vpop.f32.mrf.mxu0
  %v3559 = vadd.f32 %v3094, %v3558
  %3560 = vdwg.mxu0
  %3561 = vmatpush.msra.mxu0 %v3034
  %3562 = vmatpush.msra.mxu0 %v2986
  %3563 = vmatpush.msra.mxu0 %v2938
  %3564 = vmatpush.msra.mxu0 %v2890
  %3565 = vmatpush.msra.mxu0 %v2842
  %3566 = vmatpush.msra.mxu0 %v2794
  %3567 = vmatpush.msra.mxu0 %v2746
  %3568 = vmatpush.msra.mxu0 %v2698
  %3569 = vmatpush.msra.mxu0 %v2650
  %3570 = vmatpush.msra.mxu0 %v2602
  %3571 = vmatpush.msra.mxu0 %v2554
  %3572 = vmatpush.msra.mxu0 %v2506
  %3573 = vmatpush.msra.mxu0 %v2458
  %3574 = vmatpush.msra.mxu0 %v2410
  %3575 = vmatpush.msra.mxu0 %v2362
  %3576 = vmatpush.msra.mxu0 %v2314
  %3577 = vmatmul.f32.gmra.mxu0 %v768
  %v3578 = vpop.f32.mrf.mxu0
  %v3579 = vadd.f32 %v3559, %v3578
  %3580 = vdwg.mxu0
  %3581 = vmatpush.msra.mxu0 %v2267
  %3582 = vmatpush.msra.mxu0 %v2219
  %3583 = vmatpush.msra.mxu0 %v2171
  %3584 = vmatpush.msra.mxu0 %v2123
  %3585 = vmatpush.msra.mxu0 %v2075
  %3586 = vmatpush.msra.mxu0 %v2027
  %3587 = vmatpush.msra.mxu0 %v1979
  %3588 = vmatpush.msra.mxu0 %v1931
  %3589 = vmatpush.msra.mxu0 %v1883
  %3590 = vmatpush.msra.mxu0 %v1835
  %3591 = vmatpush.msra.mxu0 %v1787
  %3592 = vmatpush.msra.mxu0 %v1739
  %3593 = vmatpush.msra.mxu0 %v1691
  %3594 = vmatpush.msra.mxu0 %v1643
  %3595 = vmatpush.msra.mxu0 %v1595
  %3596 = vmatpush.msra.mxu0 %v1547
  %3597 = vmatmul.f32.gmra.mxu0 %v767
  %v3598 = vpop.f32.mrf.mxu0
  %v3599 = vadd.f32 %v3095, %v3598
  %3600 = vdwg.mxu0
  %3601 = vmatpush.msra.mxu0 %v3035
  %3602 = vmatpush.msra.mxu0 %v2987
  %3603 = vmatpush.msra.mxu0 %v2939
  %3604 = vmatpush.msra.mxu0 %v2891
  %3605 = vmatpush.msra.mxu0 %v2843
  %3606 = vmatpush.msra.mxu0 %v2795
  %3607 = vmatpush.msra.mxu0 %v2747
  %3608 = vmatpush.msra.mxu0 %v2699
  %3609 = vmatpush.msra.mxu0 %v2651
  %3610 = vmatpush.msra.mxu0 %v2603
  %3611 = vmatpush.msra.mxu0 %v2555
  %3612 = vmatpush.msra.mxu0 %v2507
  %3613 = vmatpush.msra.mxu0 %v2459
  %3614 = vmatpush.msra.mxu0 %v2411
  %3615 = vmatpush.msra.mxu0 %v2363
  %3616 = vmatpush.msra.mxu0 %v2315
  %3617 = vmatmul.f32.gmra.mxu0 %v768
  %v3618 = vpop.f32.mrf.mxu0
  %v3619 = vadd.f32 %v3599, %v3618
  %3620 = vdwg.mxu0
  %3621 = vmatpush.msra.mxu0 %v2268
  %3622 = vmatpush.msra.mxu0 %v2220
  %3623 = vmatpush.msra.mxu0 %v2172
  %3624 = vmatpush.msra.mxu0 %v2124
  %3625 = vmatpush.msra.mxu0 %v2076
  %3626 = vmatpush.msra.mxu0 %v2028
  %3627 = vmatpush.msra.mxu0 %v1980
  %3628 = vmatpush.msra.mxu0 %v1932
  %3629 = vmatpush.msra.mxu0 %v1884
  %3630 = vmatpush.msra.mxu0 %v1836
  %3631 = vmatpush.msra.mxu0 %v1788
  %3632 = vmatpush.msra.mxu0 %v1740
  %3633 = vmatpush.msra.mxu0 %v1692
  %3634 = vmatpush.msra.mxu0 %v1644
  %3635 = vmatpush.msra.mxu0 %v1596
  %3636 = vmatpush.msra.mxu0 %v1548
  %3637 = vmatmul.f32.gmra.mxu0 %v767
  %v3638 = vpop.f32.mrf.mxu0
  %v3639 = vadd.f32 %v3096, %v3638
  %3640 = vdwg.mxu0
  %3641 = vmatpush.msra.mxu0 %v3036
  %3642 = vmatpush.msra.mxu0 %v2988
  %3643 = vmatpush.msra.mxu0 %v2940
  %3644 = vmatpush.msra.mxu0 %v2892
  %3645 = vmatpush.msra.mxu0 %v2844
  %3646 = vmatpush.msra.mxu0 %v2796
  %3647 = vmatpush.msra.mxu0 %v2748
  %3648 = vmatpush.msra.mxu0 %v2700
  %3649 = vmatpush.msra.mxu0 %v2652
  %3650 = vmatpush.msra.mxu0 %v2604
  %3651 = vmatpush.msra.mxu0 %v2556
  %3652 = vmatpush.msra.mxu0 %v2508
  %3653 = vmatpush.msra.mxu0 %v2460
  %3654 = vmatpush.msra.mxu0 %v2412
  %3655 = vmatpush.msra.mxu0 %v2364
  %3656 = vmatpush.msra.mxu0 %v2316
  %3657 = vmatmul.f32.gmra.mxu0 %v768
  %v3658 = vpop.f32.mrf.mxu0
  %v3659 = vadd.f32 %v3639, %v3658
  %3660 = vdwg.mxu0
  %3661 = vmatpush.msra.mxu0 %v2269
  %3662 = vmatpush.msra.mxu0 %v2221
  %3663 = vmatpush.msra.mxu0 %v2173
  %3664 = vmatpush.msra.mxu0 %v2125
  %3665 = vmatpush.msra.mxu0 %v2077
  %3666 = vmatpush.msra.mxu0 %v2029
  %3667 = vmatpush.msra.mxu0 %v1981
  %3668 = vmatpush.msra.mxu0 %v1933
  %3669 = vmatpush.msra.mxu0 %v1885
  %3670 = vmatpush.msra.mxu0 %v1837
  %3671 = vmatpush.msra.mxu0 %v1789
  %3672 = vmatpush.msra.mxu0 %v1741
  %3673 = vmatpush.msra.mxu0 %v1693
  %3674 = vmatpush.msra.mxu0 %v1645
  %3675 = vmatpush.msra.mxu0 %v1597
  %3676 = vmatpush.msra.mxu0 %v1549
  %3677 = vmatmul.f32.gmra.mxu0 %v767
  %v3678 = vpop.f32.mrf.mxu0
  %v3679 = vadd.f32 %v3097, %v3678
  %3680 = vdwg.mxu0
  %3681 = vmatpush.msra.mxu0 %v3037
  %3682 = vmatpush.msra.mxu0 %v2989
  %3683 = vmatpush.msra.mxu0 %v2941
  %3684 = vmatpush.msra.mxu0 %v2893
  %3685 = vmatpush.msra.mxu0 %v2845
  %3686 = vmatpush.msra.mxu0 %v2797
  %3687 = vmatpush.msra.mxu0 %v2749
  %3688 = vmatpush.msra.mxu0 %v2701
  %3689 = vmatpush.msra.mxu0 %v2653
  %3690 = vmatpush.msra.mxu0 %v2605
  %3691 = vmatpush.msra.mxu0 %v2557
  %3692 = vmatpush.msra.mxu0 %v2509
  %3693 = vmatpush.msra.mxu0 %v2461
  %3694 = vmatpush.msra.mxu0 %v2413
  %3695 = vmatpush.msra.mxu0 %v2365
  %3696 = vmatpush.msra.mxu0 %v2317
  %3697 = vmatmul.f32.gmra.mxu0 %v768
  %v3698 = vpop.f32.mrf.mxu0
  %v3699 = vadd.f32 %v3679, %v3698
  %3700 = vdwg.mxu0
  %3701 = vmatpush.msra.mxu0 %v2270
  %3702 = vmatpush.msra.mxu0 %v2222
  %3703 = vmatpush.msra.mxu0 %v2174
  %3704 = vmatpush.msra.mxu0 %v2126
  %3705 = vmatpush.msra.mxu0 %v2078
  %3706 = vmatpush.msra.mxu0 %v2030
  %3707 = vmatpush.msra.mxu0 %v1982
  %3708 = vmatpush.msra.mxu0 %v1934
  %3709 = vmatpush.msra.mxu0 %v1886
  %3710 = vmatpush.msra.mxu0 %v1838
  %3711 = vmatpush.msra.mxu0 %v1790
  %3712 = vmatpush.msra.mxu0 %v1742
  %3713 = vmatpush.msra.mxu0 %v1694
  %3714 = vmatpush.msra.mxu0 %v1646
  %3715 = vmatpush.msra.mxu0 %v1598
  %3716 = vmatpush.msra.mxu0 %v1550
  %3717 = vmatmul.f32.gmra.mxu0 %v767
  %v3718 = vpop.f32.mrf.mxu0
  %v3719 = vadd.f32 %v3098, %v3718
  %3720 = vdwg.mxu0
  %3721 = vmatpush.msra.mxu0 %v3038
  %3722 = vmatpush.msra.mxu0 %v2990
  %3723 = vmatpush.msra.mxu0 %v2942
  %3724 = vmatpush.msra.mxu0 %v2894
  %3725 = vmatpush.msra.mxu0 %v2846
  %3726 = vmatpush.msra.mxu0 %v2798
  %3727 = vmatpush.msra.mxu0 %v2750
  %3728 = vmatpush.msra.mxu0 %v2702
  %3729 = vmatpush.msra.mxu0 %v2654
  %3730 = vmatpush.msra.mxu0 %v2606
  %3731 = vmatpush.msra.mxu0 %v2558
  %3732 = vmatpush.msra.mxu0 %v2510
  %3733 = vmatpush.msra.mxu0 %v2462
  %3734 = vmatpush.msra.mxu0 %v2414
  %3735 = vmatpush.msra.mxu0 %v2366
  %3736 = vmatpush.msra.mxu0 %v2318
  %3737 = vmatmul.f32.gmra.mxu0 %v768
  %v3738 = vpop.f32.mrf.mxu0
  %v3739 = vadd.f32 %v3719, %v3738
  %3740 = vdwg.mxu0
  %3741 = vmatpush.msra.mxu0 %v2271
  %3742 = vmatpush.msra.mxu0 %v2223
  %3743 = vmatpush.msra.mxu0 %v2175
  %3744 = vmatpush.msra.mxu0 %v2127
  %3745 = vmatpush.msra.mxu0 %v2079
  %3746 = vmatpush.msra.mxu0 %v2031
  %3747 = vmatpush.msra.mxu0 %v1983
  %3748 = vmatpush.msra.mxu0 %v1935
  %3749 = vmatpush.msra.mxu0 %v1887
  %3750 = vmatpush.msra.mxu0 %v1839
  %3751 = vmatpush.msra.mxu0 %v1791
  %3752 = vmatpush.msra.mxu0 %v1743
  %3753 = vmatpush.msra.mxu0 %v1695
  %3754 = vmatpush.msra.mxu0 %v1647
  %3755 = vmatpush.msra.mxu0 %v1599
  %3756 = vmatpush.msra.mxu0 %v1551
  %3757 = vmatmul.f32.gmra.mxu0 %v767
  %v3758 = vpop.f32.mrf.mxu0
  %v3759 = vadd.f32 %v3099, %v3758
  %3760 = vdwg.mxu0
  %3761 = vmatpush.msra.mxu0 %v3039
  %3762 = vmatpush.msra.mxu0 %v2991
  %3763 = vmatpush.msra.mxu0 %v2943
  %3764 = vmatpush.msra.mxu0 %v2895
  %3765 = vmatpush.msra.mxu0 %v2847
  %3766 = vmatpush.msra.mxu0 %v2799
  %3767 = vmatpush.msra.mxu0 %v2751
  %3768 = vmatpush.msra.mxu0 %v2703
  %3769 = vmatpush.msra.mxu0 %v2655
  %3770 = vmatpush.msra.mxu0 %v2607
  %3771 = vmatpush.msra.mxu0 %v2559
  %3772 = vmatpush.msra.mxu0 %v2511
  %3773 = vmatpush.msra.mxu0 %v2463
  %3774 = vmatpush.msra.mxu0 %v2415
  %3775 = vmatpush.msra.mxu0 %v2367
  %3776 = vmatpush.msra.mxu0 %v2319
  %3777 = vmatmul.f32.gmra.mxu0 %v768
  %v3778 = vpop.f32.mrf.mxu0
  %v3779 = vadd.f32 %v3759, %v3778
  %3780 = vdwg.mxu0
  %3781 = vmatpush.msra.mxu0 %v2272
  %3782 = vmatpush.msra.mxu0 %v2224
  %3783 = vmatpush.msra.mxu0 %v2176
  %3784 = vmatpush.msra.mxu0 %v2128
  %3785 = vmatpush.msra.mxu0 %v2080
  %3786 = vmatpush.msra.mxu0 %v2032
  %3787 = vmatpush.msra.mxu0 %v1984
  %3788 = vmatpush.msra.mxu0 %v1936
  %3789 = vmatpush.msra.mxu0 %v1888
  %3790 = vmatpush.msra.mxu0 %v1840
  %3791 = vmatpush.msra.mxu0 %v1792
  %3792 = vmatpush.msra.mxu0 %v1744
  %3793 = vmatpush.msra.mxu0 %v1696
  %3794 = vmatpush.msra.mxu0 %v1648
  %3795 = vmatpush.msra.mxu0 %v1600
  %3796 = vmatpush.msra.mxu0 %v1552
  %3797 = vmatmul.f32.gmra.mxu0 %v767
  %v3798 = vpop.f32.mrf.mxu0
  %v3799 = vadd.f32 %v3100, %v3798
  %3800 = vdwg.mxu0
  %3801 = vmatpush.msra.mxu0 %v3040
  %3802 = vmatpush.msra.mxu0 %v2992
  %3803 = vmatpush.msra.mxu0 %v2944
  %3804 = vmatpush.msra.mxu0 %v2896
  %3805 = vmatpush.msra.mxu0 %v2848
  %3806 = vmatpush.msra.mxu0 %v2800
  %3807 = vmatpush.msra.mxu0 %v2752
  %3808 = vmatpush.msra.mxu0 %v2704
  %3809 = vmatpush.msra.mxu0 %v2656
  %3810 = vmatpush.msra.mxu0 %v2608
  %3811 = vmatpush.msra.mxu0 %v2560
  %3812 = vmatpush.msra.mxu0 %v2512
  %3813 = vmatpush.msra.mxu0 %v2464
  %3814 = vmatpush.msra.mxu0 %v2416
  %3815 = vmatpush.msra.mxu0 %v2368
  %3816 = vmatpush.msra.mxu0 %v2320
  %3817 = vmatmul.f32.gmra.mxu0 %v768
  %v3818 = vpop.f32.mrf.mxu0
  %v3819 = vadd.f32 %v3799, %v3818
  %3820 = vdwg.mxu0
  %3821 = vmatpush.msra.mxu0 %v2273
  %3822 = vmatpush.msra.mxu0 %v2225
  %3823 = vmatpush.msra.mxu0 %v2177
  %3824 = vmatpush.msra.mxu0 %v2129
  %3825 = vmatpush.msra.mxu0 %v2081
  %3826 = vmatpush.msra.mxu0 %v2033
  %3827 = vmatpush.msra.mxu0 %v1985
  %3828 = vmatpush.msra.mxu0 %v1937
  %3829 = vmatpush.msra.mxu0 %v1889
  %3830 = vmatpush.msra.mxu0 %v1841
  %3831 = vmatpush.msra.mxu0 %v1793
  %3832 = vmatpush.msra.mxu0 %v1745
  %3833 = vmatpush.msra.mxu0 %v1697
  %3834 = vmatpush.msra.mxu0 %v1649
  %3835 = vmatpush.msra.mxu0 %v1601
  %3836 = vmatpush.msra.mxu0 %v1553
  %3837 = vmatmul.f32.gmra.mxu0 %v767
  %v3838 = vpop.f32.mrf.mxu0
  %v3839 = vadd.f32 %v3101, %v3838
  %3840 = vdwg.mxu0
  %3841 = vmatpush.msra.mxu0 %v3041
  %3842 = vmatpush.msra.mxu0 %v2993
  %3843 = vmatpush.msra.mxu0 %v2945
  %3844 = vmatpush.msra.mxu0 %v2897
  %3845 = vmatpush.msra.mxu0 %v2849
  %3846 = vmatpush.msra.mxu0 %v2801
  %3847 = vmatpush.msra.mxu0 %v2753
  %3848 = vmatpush.msra.mxu0 %v2705
  %3849 = vmatpush.msra.mxu0 %v2657
  %3850 = vmatpush.msra.mxu0 %v2609
  %3851 = vmatpush.msra.mxu0 %v2561
  %3852 = vmatpush.msra.mxu0 %v2513
  %3853 = vmatpush.msra.mxu0 %v2465
  %3854 = vmatpush.msra.mxu0 %v2417
  %3855 = vmatpush.msra.mxu0 %v2369
  %3856 = vmatpush.msra.mxu0 %v2321
  %3857 = vmatmul.f32.gmra.mxu0 %v768
  %v3858 = vpop.f32.mrf.mxu0
  %v3859 = vadd.f32 %v3839, %v3858
  %3860 = vdwg.mxu0
  %3861 = vmatpush.msra.mxu0 %v2274
  %3862 = vmatpush.msra.mxu0 %v2226
  %3863 = vmatpush.msra.mxu0 %v2178
  %3864 = vmatpush.msra.mxu0 %v2130
  %3865 = vmatpush.msra.mxu0 %v2082
  %3866 = vmatpush.msra.mxu0 %v2034
  %3867 = vmatpush.msra.mxu0 %v1986
  %3868 = vmatpush.msra.mxu0 %v1938
  %3869 = vmatpush.msra.mxu0 %v1890
  %3870 = vmatpush.msra.mxu0 %v1842
  %3871 = vmatpush.msra.mxu0 %v1794
  %3872 = vmatpush.msra.mxu0 %v1746
  %3873 = vmatpush.msra.mxu0 %v1698
  %3874 = vmatpush.msra.mxu0 %v1650
  %3875 = vmatpush.msra.mxu0 %v1602
  %3876 = vmatpush.msra.mxu0 %v1554
  %3877 = vmatmul.f32.gmra.mxu0 %v767
  %v3878 = vpop.f32.mrf.mxu0
  %v3879 = vadd.f32 %v3102, %v3878
  %3880 = vdwg.mxu0
  %3881 = vmatpush.msra.mxu0 %v3042
  %3882 = vmatpush.msra.mxu0 %v2994
  %3883 = vmatpush.msra.mxu0 %v2946
  %3884 = vmatpush.msra.mxu0 %v2898
  %3885 = vmatpush.msra.mxu0 %v2850
  %3886 = vmatpush.msra.mxu0 %v2802
  %3887 = vmatpush.msra.mxu0 %v2754
  %3888 = vmatpush.msra.mxu0 %v2706
  %3889 = vmatpush.msra.mxu0 %v2658
  %3890 = vmatpush.msra.mxu0 %v2610
  %3891 = vmatpush.msra.mxu0 %v2562
  %3892 = vmatpush.msra.mxu0 %v2514
  %3893 = vmatpush.msra.mxu0 %v2466
  %3894 = vmatpush.msra.mxu0 %v2418
  %3895 = vmatpush.msra.mxu0 %v2370
  %3896 = vmatpush.msra.mxu0 %v2322
  %3897 = vmatmul.f32.gmra.mxu0 %v768
  %v3898 = vpop.f32.mrf.mxu0
  %v3899 = vadd.f32 %v3879, %v3898
  %3900 = vdwg.mxu0
  %3901 = vmatpush.msra.mxu0 %v2275
  %3902 = vmatpush.msra.mxu0 %v2227
  %3903 = vmatpush.msra.mxu0 %v2179
  %3904 = vmatpush.msra.mxu0 %v2131
  %3905 = vmatpush.msra.mxu0 %v2083
  %3906 = vmatpush.msra.mxu0 %v2035
  %3907 = vmatpush.msra.mxu0 %v1987
  %3908 = vmatpush.msra.mxu0 %v1939
  %3909 = vmatpush.msra.mxu0 %v1891
  %3910 = vmatpush.msra.mxu0 %v1843
  %3911 = vmatpush.msra.mxu0 %v1795
  %3912 = vmatpush.msra.mxu0 %v1747
  %3913 = vmatpush.msra.mxu0 %v1699
  %3914 = vmatpush.msra.mxu0 %v1651
  %3915 = vmatpush.msra.mxu0 %v1603
  %3916 = vmatpush.msra.mxu0 %v1555
  %3917 = vmatmul.f32.gmra.mxu0 %v767
  %v3918 = vpop.f32.mrf.mxu0
  %v3919 = vadd.f32 %v3103, %v3918
  %3920 = vdwg.mxu0
  %3921 = vmatpush.msra.mxu0 %v3043
  %3922 = vmatpush.msra.mxu0 %v2995
  %3923 = vmatpush.msra.mxu0 %v2947
  %3924 = vmatpush.msra.mxu0 %v2899
  %3925 = vmatpush.msra.mxu0 %v2851
  %3926 = vmatpush.msra.mxu0 %v2803
  %3927 = vmatpush.msra.mxu0 %v2755
  %3928 = vmatpush.msra.mxu0 %v2707
  %3929 = vmatpush.msra.mxu0 %v2659
  %3930 = vmatpush.msra.mxu0 %v2611
  %3931 = vmatpush.msra.mxu0 %v2563
  %3932 = vmatpush.msra.mxu0 %v2515
  %3933 = vmatpush.msra.mxu0 %v2467
  %3934 = vmatpush.msra.mxu0 %v2419
  %3935 = vmatpush.msra.mxu0 %v2371
  %3936 = vmatpush.msra.mxu0 %v2323
  %3937 = vmatmul.f32.gmra.mxu0 %v768
  %v3938 = vpop.f32.mrf.mxu0
  %v3939 = vadd.f32 %v3919, %v3938
  %3940 = vdwg.mxu0
  %3941 = vmatpush.msra.mxu0 %v2276
  %3942 = vmatpush.msra.mxu0 %v2228
  %3943 = vmatpush.msra.mxu0 %v2180
  %3944 = vmatpush.msra.mxu0 %v2132
  %3945 = vmatpush.msra.mxu0 %v2084
  %3946 = vmatpush.msra.mxu0 %v2036
  %3947 = vmatpush.msra.mxu0 %v1988
  %3948 = vmatpush.msra.mxu0 %v1940
  %3949 = vmatpush.msra.mxu0 %v1892
  %3950 = vmatpush.msra.mxu0 %v1844
  %3951 = vmatpush.msra.mxu0 %v1796
  %3952 = vmatpush.msra.mxu0 %v1748
  %3953 = vmatpush.msra.mxu0 %v1700
  %3954 = vmatpush.msra.mxu0 %v1652
  %3955 = vmatpush.msra.mxu0 %v1604
  %3956 = vmatpush.msra.mxu0 %v1556
  %3957 = vmatmul.f32.gmra.mxu0 %v767
  %v3958 = vpop.f32.mrf.mxu0
  %v3959 = vadd.f32 %v3104, %v3958
  %3960 = vdwg.mxu0
  %3961 = vmatpush.msra.mxu0 %v3044
  %3962 = vmatpush.msra.mxu0 %v2996
  %3963 = vmatpush.msra.mxu0 %v2948
  %3964 = vmatpush.msra.mxu0 %v2900
  %3965 = vmatpush.msra.mxu0 %v2852
  %3966 = vmatpush.msra.mxu0 %v2804
  %3967 = vmatpush.msra.mxu0 %v2756
  %3968 = vmatpush.msra.mxu0 %v2708
  %3969 = vmatpush.msra.mxu0 %v2660
  %3970 = vmatpush.msra.mxu0 %v2612
  %3971 = vmatpush.msra.mxu0 %v2564
  %3972 = vmatpush.msra.mxu0 %v2516
  %3973 = vmatpush.msra.mxu0 %v2468
  %3974 = vmatpush.msra.mxu0 %v2420
  %3975 = vmatpush.msra.mxu0 %v2372
  %3976 = vmatpush.msra.mxu0 %v2324
  %3977 = vmatmul.f32.gmra.mxu0 %v768
  %v3978 = vpop.f32.mrf.mxu0
  %v3979 = vadd.f32 %v3959, %v3978
  %3980 = vdwg.mxu0
  %3981 = vmatpush.msra.mxu0 %v2277
  %3982 = vmatpush.msra.mxu0 %v2229
  %3983 = vmatpush.msra.mxu0 %v2181
  %3984 = vmatpush.msra.mxu0 %v2133
  %3985 = vmatpush.msra.mxu0 %v2085
  %3986 = vmatpush.msra.mxu0 %v2037
  %3987 = vmatpush.msra.mxu0 %v1989
  %3988 = vmatpush.msra.mxu0 %v1941
  %3989 = vmatpush.msra.mxu0 %v1893
  %3990 = vmatpush.msra.mxu0 %v1845
  %3991 = vmatpush.msra.mxu0 %v1797
  %3992 = vmatpush.msra.mxu0 %v1749
  %3993 = vmatpush.msra.mxu0 %v1701
  %3994 = vmatpush.msra.mxu0 %v1653
  %3995 = vmatpush.msra.mxu0 %v1605
  %3996 = vmatpush.msra.mxu0 %v1557
  %3997 = vmatmul.f32.gmra.mxu0 %v767
  %v3998 = vpop.f32.mrf.mxu0
  %v3999 = vadd.f32 %v3105, %v3998
  %4000 = vdwg.mxu0
  %4001 = vmatpush.msra.mxu0 %v3045
  %4002 = vmatpush.msra.mxu0 %v2997
  %4003 = vmatpush.msra.mxu0 %v2949
  %4004 = vmatpush.msra.mxu0 %v2901
  %4005 = vmatpush.msra.mxu0 %v2853
  %4006 = vmatpush.msra.mxu0 %v2805
  %4007 = vmatpush.msra.mxu0 %v2757
  %4008 = vmatpush.msra.mxu0 %v2709
  %4009 = vmatpush.msra.mxu0 %v2661
  %4010 = vmatpush.msra.mxu0 %v2613
  %4011 = vmatpush.msra.mxu0 %v2565
  %4012 = vmatpush.msra.mxu0 %v2517
  %4013 = vmatpush.msra.mxu0 %v2469
  %4014 = vmatpush.msra.mxu0 %v2421
  %4015 = vmatpush.msra.mxu0 %v2373
  %4016 = vmatpush.msra.mxu0 %v2325
  %4017 = vmatmul.f32.gmra.mxu0 %v768
  %v4018 = vpop.f32.mrf.mxu0
  %v4019 = vadd.f32 %v3999, %v4018
  %4020 = vdwg.mxu0
  %4021 = vmatpush.msra.mxu0 %v2278
  %4022 = vmatpush.msra.mxu0 %v2230
  %4023 = vmatpush.msra.mxu0 %v2182
  %4024 = vmatpush.msra.mxu0 %v2134
  %4025 = vmatpush.msra.mxu0 %v2086
  %4026 = vmatpush.msra.mxu0 %v2038
  %4027 = vmatpush.msra.mxu0 %v1990
  %4028 = vmatpush.msra.mxu0 %v1942
  %4029 = vmatpush.msra.mxu0 %v1894
  %4030 = vmatpush.msra.mxu0 %v1846
  %4031 = vmatpush.msra.mxu0 %v1798
  %4032 = vmatpush.msra.mxu0 %v1750
  %4033 = vmatpush.msra.mxu0 %v1702
  %4034 = vmatpush.msra.mxu0 %v1654
  %4035 = vmatpush.msra.mxu0 %v1606
  %4036 = vmatpush.msra.mxu0 %v1558
  %4037 = vmatmul.f32.gmra.mxu0 %v767
  %v4038 = vpop.f32.mrf.mxu0
  %v4039 = vadd.f32 %v3106, %v4038
  %4040 = vdwg.mxu0
  %4041 = vmatpush.msra.mxu0 %v3046
  %4042 = vmatpush.msra.mxu0 %v2998
  %4043 = vmatpush.msra.mxu0 %v2950
  %4044 = vmatpush.msra.mxu0 %v2902
  %4045 = vmatpush.msra.mxu0 %v2854
  %4046 = vmatpush.msra.mxu0 %v2806
  %4047 = vmatpush.msra.mxu0 %v2758
  %4048 = vmatpush.msra.mxu0 %v2710
  %4049 = vmatpush.msra.mxu0 %v2662
  %4050 = vmatpush.msra.mxu0 %v2614
  %4051 = vmatpush.msra.mxu0 %v2566
  %4052 = vmatpush.msra.mxu0 %v2518
  %4053 = vmatpush.msra.mxu0 %v2470
  %4054 = vmatpush.msra.mxu0 %v2422
  %4055 = vmatpush.msra.mxu0 %v2374
  %4056 = vmatpush.msra.mxu0 %v2326
  %4057 = vmatmul.f32.gmra.mxu0 %v768
  %v4058 = vpop.f32.mrf.mxu0
  %v4059 = vadd.f32 %v4039, %v4058
  %4060 = vdwg.mxu0
  %4061 = vmatpush.msra.mxu0 %v2279
  %4062 = vmatpush.msra.mxu0 %v2231
  %4063 = vmatpush.msra.mxu0 %v2183
  %4064 = vmatpush.msra.mxu0 %v2135
  %4065 = vmatpush.msra.mxu0 %v2087
  %4066 = vmatpush.msra.mxu0 %v2039
  %4067 = vmatpush.msra.mxu0 %v1991
  %4068 = vmatpush.msra.mxu0 %v1943
  %4069 = vmatpush.msra.mxu0 %v1895
  %4070 = vmatpush.msra.mxu0 %v1847
  %4071 = vmatpush.msra.mxu0 %v1799
  %4072 = vmatpush.msra.mxu0 %v1751
  %4073 = vmatpush.msra.mxu0 %v1703
  %4074 = vmatpush.msra.mxu0 %v1655
  %4075 = vmatpush.msra.mxu0 %v1607
  %4076 = vmatpush.msra.mxu0 %v1559
  %4077 = vmatmul.f32.gmra.mxu0 %v767
  %v4078 = vpop.f32.mrf.mxu0
  %v4079 = vadd.f32 %v3107, %v4078
  %4080 = vdwg.mxu0
  %4081 = vmatpush.msra.mxu0 %v3047
  %4082 = vmatpush.msra.mxu0 %v2999
  %4083 = vmatpush.msra.mxu0 %v2951
  %4084 = vmatpush.msra.mxu0 %v2903
  %4085 = vmatpush.msra.mxu0 %v2855
  %4086 = vmatpush.msra.mxu0 %v2807
  %4087 = vmatpush.msra.mxu0 %v2759
  %4088 = vmatpush.msra.mxu0 %v2711
  %4089 = vmatpush.msra.mxu0 %v2663
  %4090 = vmatpush.msra.mxu0 %v2615
  %4091 = vmatpush.msra.mxu0 %v2567
  %4092 = vmatpush.msra.mxu0 %v2519
  %4093 = vmatpush.msra.mxu0 %v2471
  %4094 = vmatpush.msra.mxu0 %v2423
  %4095 = vmatpush.msra.mxu0 %v2375
  %4096 = vmatpush.msra.mxu0 %v2327
  %4097 = vmatmul.f32.gmra.mxu0 %v768
  %v4098 = vpop.f32.mrf.mxu0
  %v4099 = vadd.f32 %v4079, %v4098
  %4100 = vdwg.mxu0
  %4101 = vmatpush.msra.mxu0 %v2280
  %4102 = vmatpush.msra.mxu0 %v2232
  %4103 = vmatpush.msra.mxu0 %v2184
  %4104 = vmatpush.msra.mxu0 %v2136
  %4105 = vmatpush.msra.mxu0 %v2088
  %4106 = vmatpush.msra.mxu0 %v2040
  %4107 = vmatpush.msra.mxu0 %v1992
  %4108 = vmatpush.msra.mxu0 %v1944
  %4109 = vmatpush.msra.mxu0 %v1896
  %4110 = vmatpush.msra.mxu0 %v1848
  %4111 = vmatpush.msra.mxu0 %v1800
  %4112 = vmatpush.msra.mxu0 %v1752
  %4113 = vmatpush.msra.mxu0 %v1704
  %4114 = vmatpush.msra.mxu0 %v1656
  %4115 = vmatpush.msra.mxu0 %v1608
  %4116 = vmatpush.msra.mxu0 %v1560
  %4117 = vmatmul.f32.gmra.mxu0 %v767
  %v4118 = vpop.f32.mrf.mxu0
  %v4119 = vadd.f32 %v3108, %v4118
  %4120 = vdwg.mxu0
  %4121 = vmatpush.msra.mxu0 %v3048
  %4122 = vmatpush.msra.mxu0 %v3000
  %4123 = vmatpush.msra.mxu0 %v2952
  %4124 = vmatpush.msra.mxu0 %v2904
  %4125 = vmatpush.msra.mxu0 %v2856
  %4126 = vmatpush.msra.mxu0 %v2808
  %4127 = vmatpush.msra.mxu0 %v2760
  %4128 = vmatpush.msra.mxu0 %v2712
  %4129 = vmatpush.msra.mxu0 %v2664
  %4130 = vmatpush.msra.mxu0 %v2616
  %4131 = vmatpush.msra.mxu0 %v2568
  %4132 = vmatpush.msra.mxu0 %v2520
  %4133 = vmatpush.msra.mxu0 %v2472
  %4134 = vmatpush.msra.mxu0 %v2424
  %4135 = vmatpush.msra.mxu0 %v2376
  %4136 = vmatpush.msra.mxu0 %v2328
  %4137 = vmatmul.f32.gmra.mxu0 %v768
  %v4138 = vpop.f32.mrf.mxu0
  %v4139 = vadd.f32 %v4119, %v4138
  %4140 = vdwg.mxu0
  %4141 = vmatpush.msra.mxu0 %v2281
  %4142 = vmatpush.msra.mxu0 %v2233
  %4143 = vmatpush.msra.mxu0 %v2185
  %4144 = vmatpush.msra.mxu0 %v2137
  %4145 = vmatpush.msra.mxu0 %v2089
  %4146 = vmatpush.msra.mxu0 %v2041
  %4147 = vmatpush.msra.mxu0 %v1993
  %4148 = vmatpush.msra.mxu0 %v1945
  %4149 = vmatpush.msra.mxu0 %v1897
  %4150 = vmatpush.msra.mxu0 %v1849
  %4151 = vmatpush.msra.mxu0 %v1801
  %4152 = vmatpush.msra.mxu0 %v1753
  %4153 = vmatpush.msra.mxu0 %v1705
  %4154 = vmatpush.msra.mxu0 %v1657
  %4155 = vmatpush.msra.mxu0 %v1609
  %4156 = vmatpush.msra.mxu0 %v1561
  %4157 = vmatmul.f32.gmra.mxu0 %v767
  %v4158 = vpop.f32.mrf.mxu0
  %v4159 = vadd.f32 %v3109, %v4158
  %4160 = vdwg.mxu0
  %4161 = vmatpush.msra.mxu0 %v3049
  %4162 = vmatpush.msra.mxu0 %v3001
  %4163 = vmatpush.msra.mxu0 %v2953
  %4164 = vmatpush.msra.mxu0 %v2905
  %4165 = vmatpush.msra.mxu0 %v2857
  %4166 = vmatpush.msra.mxu0 %v2809
  %4167 = vmatpush.msra.mxu0 %v2761
  %4168 = vmatpush.msra.mxu0 %v2713
  %4169 = vmatpush.msra.mxu0 %v2665
  %4170 = vmatpush.msra.mxu0 %v2617
  %4171 = vmatpush.msra.mxu0 %v2569
  %4172 = vmatpush.msra.mxu0 %v2521
  %4173 = vmatpush.msra.mxu0 %v2473
  %4174 = vmatpush.msra.mxu0 %v2425
  %4175 = vmatpush.msra.mxu0 %v2377
  %4176 = vmatpush.msra.mxu0 %v2329
  %4177 = vmatmul.f32.gmra.mxu0 %v768
  %v4178 = vpop.f32.mrf.mxu0
  %v4179 = vadd.f32 %v4159, %v4178
  %4180 = vdwg.mxu0
  %4181 = vmatpush.msra.mxu0 %v2282
  %4182 = vmatpush.msra.mxu0 %v2234
  %4183 = vmatpush.msra.mxu0 %v2186
  %4184 = vmatpush.msra.mxu0 %v2138
  %4185 = vmatpush.msra.mxu0 %v2090
  %4186 = vmatpush.msra.mxu0 %v2042
  %4187 = vmatpush.msra.mxu0 %v1994
  %4188 = vmatpush.msra.mxu0 %v1946
  %4189 = vmatpush.msra.mxu0 %v1898
  %4190 = vmatpush.msra.mxu0 %v1850
  %4191 = vmatpush.msra.mxu0 %v1802
  %4192 = vmatpush.msra.mxu0 %v1754
  %4193 = vmatpush.msra.mxu0 %v1706
  %4194 = vmatpush.msra.mxu0 %v1658
  %4195 = vmatpush.msra.mxu0 %v1610
  %4196 = vmatpush.msra.mxu0 %v1562
  %4197 = vmatmul.f32.gmra.mxu0 %v767
  %v4198 = vpop.f32.mrf.mxu0
  %v4199 = vadd.f32 %v3110, %v4198
  %4200 = vdwg.mxu0
  %4201 = vmatpush.msra.mxu0 %v3050
  %4202 = vmatpush.msra.mxu0 %v3002
  %4203 = vmatpush.msra.mxu0 %v2954
  %4204 = vmatpush.msra.mxu0 %v2906
  %4205 = vmatpush.msra.mxu0 %v2858
  %4206 = vmatpush.msra.mxu0 %v2810
  %4207 = vmatpush.msra.mxu0 %v2762
  %4208 = vmatpush.msra.mxu0 %v2714
  %4209 = vmatpush.msra.mxu0 %v2666
  %4210 = vmatpush.msra.mxu0 %v2618
  %4211 = vmatpush.msra.mxu0 %v2570
  %4212 = vmatpush.msra.mxu0 %v2522
  %4213 = vmatpush.msra.mxu0 %v2474
  %4214 = vmatpush.msra.mxu0 %v2426
  %4215 = vmatpush.msra.mxu0 %v2378
  %4216 = vmatpush.msra.mxu0 %v2330
  %4217 = vmatmul.f32.gmra.mxu0 %v768
  %v4218 = vpop.f32.mrf.mxu0
  %v4219 = vadd.f32 %v4199, %v4218
  %4220 = vdwg.mxu0
  %4221 = vmatpush.msra.mxu0 %v2283
  %4222 = vmatpush.msra.mxu0 %v2235
  %4223 = vmatpush.msra.mxu0 %v2187
  %4224 = vmatpush.msra.mxu0 %v2139
  %4225 = vmatpush.msra.mxu0 %v2091
  %4226 = vmatpush.msra.mxu0 %v2043
  %4227 = vmatpush.msra.mxu0 %v1995
  %4228 = vmatpush.msra.mxu0 %v1947
  %4229 = vmatpush.msra.mxu0 %v1899
  %4230 = vmatpush.msra.mxu0 %v1851
  %4231 = vmatpush.msra.mxu0 %v1803
  %4232 = vmatpush.msra.mxu0 %v1755
  %4233 = vmatpush.msra.mxu0 %v1707
  %4234 = vmatpush.msra.mxu0 %v1659
  %4235 = vmatpush.msra.mxu0 %v1611
  %4236 = vmatpush.msra.mxu0 %v1563
  %4237 = vmatmul.f32.gmra.mxu0 %v767
  %v4238 = vpop.f32.mrf.mxu0
  %v4239 = vadd.f32 %v3111, %v4238
  %4240 = vdwg.mxu0
  %4241 = vmatpush.msra.mxu0 %v3051
  %4242 = vmatpush.msra.mxu0 %v3003
  %4243 = vmatpush.msra.mxu0 %v2955
  %4244 = vmatpush.msra.mxu0 %v2907
  %4245 = vmatpush.msra.mxu0 %v2859
  %4246 = vmatpush.msra.mxu0 %v2811
  %4247 = vmatpush.msra.mxu0 %v2763
  %4248 = vmatpush.msra.mxu0 %v2715
  %4249 = vmatpush.msra.mxu0 %v2667
  %4250 = vmatpush.msra.mxu0 %v2619
  %4251 = vmatpush.msra.mxu0 %v2571
  %4252 = vmatpush.msra.mxu0 %v2523
  %4253 = vmatpush.msra.mxu0 %v2475
  %4254 = vmatpush.msra.mxu0 %v2427
  %4255 = vmatpush.msra.mxu0 %v2379
  %4256 = vmatpush.msra.mxu0 %v2331
  %4257 = vmatmul.f32.gmra.mxu0 %v768
  %v4258 = vpop.f32.mrf.mxu0
  %v4259 = vadd.f32 %v4239, %v4258
  %4260 = vdwg.mxu0
  %4261 = vmatpush.msra.mxu0 %v2284
  %4262 = vmatpush.msra.mxu0 %v2236
  %4263 = vmatpush.msra.mxu0 %v2188
  %4264 = vmatpush.msra.mxu0 %v2140
  %4265 = vmatpush.msra.mxu0 %v2092
  %4266 = vmatpush.msra.mxu0 %v2044
  %4267 = vmatpush.msra.mxu0 %v1996
  %4268 = vmatpush.msra.mxu0 %v1948
  %4269 = vmatpush.msra.mxu0 %v1900
  %4270 = vmatpush.msra.mxu0 %v1852
  %4271 = vmatpush.msra.mxu0 %v1804
  %4272 = vmatpush.msra.mxu0 %v1756
  %4273 = vmatpush.msra.mxu0 %v1708
  %4274 = vmatpush.msra.mxu0 %v1660
  %4275 = vmatpush.msra.mxu0 %v1612
  %4276 = vmatpush.msra.mxu0 %v1564
  %4277 = vmatmul.f32.gmra.mxu0 %v767
  %v4278 = vpop.f32.mrf.mxu0
  %v4279 = vadd.f32 %v3112, %v4278
  %4280 = vdwg.mxu0
  %4281 = vmatpush.msra.mxu0 %v3052
  %4282 = vmatpush.msra.mxu0 %v3004
  %4283 = vmatpush.msra.mxu0 %v2956
  %4284 = vmatpush.msra.mxu0 %v2908
  %4285 = vmatpush.msra.mxu0 %v2860
  %4286 = vmatpush.msra.mxu0 %v2812
  %4287 = vmatpush.msra.mxu0 %v2764
  %4288 = vmatpush.msra.mxu0 %v2716
  %4289 = vmatpush.msra.mxu0 %v2668
  %4290 = vmatpush.msra.mxu0 %v2620
  %4291 = vmatpush.msra.mxu0 %v2572
  %4292 = vmatpush.msra.mxu0 %v2524
  %4293 = vmatpush.msra.mxu0 %v2476
  %4294 = vmatpush.msra.mxu0 %v2428
  %4295 = vmatpush.msra.mxu0 %v2380
  %4296 = vmatpush.msra.mxu0 %v2332
  %4297 = vmatmul.f32.gmra.mxu0 %v768
  %v4298 = vpop.f32.mrf.mxu0
  %v4299 = vadd.f32 %v4279, %v4298
  %4300 = vdwg.mxu0
  %4301 = vmatpush.msra.mxu0 %v2285
  %4302 = vmatpush.msra.mxu0 %v2237
  %4303 = vmatpush.msra.mxu0 %v2189
  %4304 = vmatpush.msra.mxu0 %v2141
  %4305 = vmatpush.msra.mxu0 %v2093
  %4306 = vmatpush.msra.mxu0 %v2045
  %4307 = vmatpush.msra.mxu0 %v1997
  %4308 = vmatpush.msra.mxu0 %v1949
  %4309 = vmatpush.msra.mxu0 %v1901
  %4310 = vmatpush.msra.mxu0 %v1853
  %4311 = vmatpush.msra.mxu0 %v1805
  %4312 = vmatpush.msra.mxu0 %v1757
  %4313 = vmatpush.msra.mxu0 %v1709
  %4314 = vmatpush.msra.mxu0 %v1661
  %4315 = vmatpush.msra.mxu0 %v1613
  %4316 = vmatpush.msra.mxu0 %v1565
  %4317 = vmatmul.f32.gmra.mxu0 %v767
  %v4318 = vpop.f32.mrf.mxu0
  %v4319 = vadd.f32 %v3113, %v4318
  %4320 = vdwg.mxu0
  %4321 = vmatpush.msra.mxu0 %v3053
  %4322 = vmatpush.msra.mxu0 %v3005
  %4323 = vmatpush.msra.mxu0 %v2957
  %4324 = vmatpush.msra.mxu0 %v2909
  %4325 = vmatpush.msra.mxu0 %v2861
  %4326 = vmatpush.msra.mxu0 %v2813
  %4327 = vmatpush.msra.mxu0 %v2765
  %4328 = vmatpush.msra.mxu0 %v2717
  %4329 = vmatpush.msra.mxu0 %v2669
  %4330 = vmatpush.msra.mxu0 %v2621
  %4331 = vmatpush.msra.mxu0 %v2573
  %4332 = vmatpush.msra.mxu0 %v2525
  %4333 = vmatpush.msra.mxu0 %v2477
  %4334 = vmatpush.msra.mxu0 %v2429
  %4335 = vmatpush.msra.mxu0 %v2381
  %4336 = vmatpush.msra.mxu0 %v2333
  %4337 = vmatmul.f32.gmra.mxu0 %v768
  %v4338 = vpop.f32.mrf.mxu0
  %v4339 = vadd.f32 %v4319, %v4338
  %4340 = vdwg.mxu0
  %4341 = vmatpush.msra.mxu0 %v2286
  %4342 = vmatpush.msra.mxu0 %v2238
  %4343 = vmatpush.msra.mxu0 %v2190
  %4344 = vmatpush.msra.mxu0 %v2142
  %4345 = vmatpush.msra.mxu0 %v2094
  %4346 = vmatpush.msra.mxu0 %v2046
  %4347 = vmatpush.msra.mxu0 %v1998
  %4348 = vmatpush.msra.mxu0 %v1950
  %4349 = vmatpush.msra.mxu0 %v1902
  %4350 = vmatpush.msra.mxu0 %v1854
  %4351 = vmatpush.msra.mxu0 %v1806
  %4352 = vmatpush.msra.mxu0 %v1758
  %4353 = vmatpush.msra.mxu0 %v1710
  %4354 = vmatpush.msra.mxu0 %v1662
  %4355 = vmatpush.msra.mxu0 %v1614
  %4356 = vmatpush.msra.mxu0 %v1566
  %4357 = vmatmul.f32.gmra.mxu0 %v767
  %v4358 = vpop.f32.mrf.mxu0
  %v4359 = vadd.f32 %v3114, %v4358
  %4360 = vdwg.mxu0
  %4361 = vmatpush.msra.mxu0 %v3054
  %4362 = vmatpush.msra.mxu0 %v3006
  %4363 = vmatpush.msra.mxu0 %v2958
  %4364 = vmatpush.msra.mxu0 %v2910
  %4365 = vmatpush.msra.mxu0 %v2862
  %4366 = vmatpush.msra.mxu0 %v2814
  %4367 = vmatpush.msra.mxu0 %v2766
  %4368 = vmatpush.msra.mxu0 %v2718
  %4369 = vmatpush.msra.mxu0 %v2670
  %4370 = vmatpush.msra.mxu0 %v2622
  %4371 = vmatpush.msra.mxu0 %v2574
  %4372 = vmatpush.msra.mxu0 %v2526
  %4373 = vmatpush.msra.mxu0 %v2478
  %4374 = vmatpush.msra.mxu0 %v2430
  %4375 = vmatpush.msra.mxu0 %v2382
  %4376 = vmatpush.msra.mxu0 %v2334
  %4377 = vmatmul.f32.gmra.mxu0 %v768
  %v4378 = vpop.f32.mrf.mxu0
  %v4379 = vadd.f32 %v4359, %v4378
  %4380 = vdwg.mxu0
  %4381 = vmatpush.msra.mxu0 %v2287
  %4382 = vmatpush.msra.mxu0 %v2239
  %4383 = vmatpush.msra.mxu0 %v2191
  %4384 = vmatpush.msra.mxu0 %v2143
  %4385 = vmatpush.msra.mxu0 %v2095
  %4386 = vmatpush.msra.mxu0 %v2047
  %4387 = vmatpush.msra.mxu0 %v1999
  %4388 = vmatpush.msra.mxu0 %v1951
  %4389 = vmatpush.msra.mxu0 %v1903
  %4390 = vmatpush.msra.mxu0 %v1855
  %4391 = vmatpush.msra.mxu0 %v1807
  %4392 = vmatpush.msra.mxu0 %v1759
  %4393 = vmatpush.msra.mxu0 %v1711
  %4394 = vmatpush.msra.mxu0 %v1663
  %4395 = vmatpush.msra.mxu0 %v1615
  %4396 = vmatpush.msra.mxu0 %v1567
  %4397 = vmatmul.f32.gmra.mxu0 %v767
  %v4398 = vpop.f32.mrf.mxu0
  %v4399 = vadd.f32 %v3115, %v4398
  %4400 = vdwg.mxu0
  %4401 = vmatpush.msra.mxu0 %v3055
  %4402 = vmatpush.msra.mxu0 %v3007
  %4403 = vmatpush.msra.mxu0 %v2959
  %4404 = vmatpush.msra.mxu0 %v2911
  %4405 = vmatpush.msra.mxu0 %v2863
  %4406 = vmatpush.msra.mxu0 %v2815
  %4407 = vmatpush.msra.mxu0 %v2767
  %4408 = vmatpush.msra.mxu0 %v2719
  %4409 = vmatpush.msra.mxu0 %v2671
  %4410 = vmatpush.msra.mxu0 %v2623
  %4411 = vmatpush.msra.mxu0 %v2575
  %4412 = vmatpush.msra.mxu0 %v2527
  %4413 = vmatpush.msra.mxu0 %v2479
  %4414 = vmatpush.msra.mxu0 %v2431
  %4415 = vmatpush.msra.mxu0 %v2383
  %4416 = vmatpush.msra.mxu0 %v2335
  %4417 = vmatmul.f32.gmra.mxu0 %v768
  %v4418 = vpop.f32.mrf.mxu0
  %v4419 = vadd.f32 %v4399, %v4418
  %4420 = vdwg.mxu0
  %4421 = vmatpush.msra.mxu0 %v2288
  %4422 = vmatpush.msra.mxu0 %v2240
  %4423 = vmatpush.msra.mxu0 %v2192
  %4424 = vmatpush.msra.mxu0 %v2144
  %4425 = vmatpush.msra.mxu0 %v2096
  %4426 = vmatpush.msra.mxu0 %v2048
  %4427 = vmatpush.msra.mxu0 %v2000
  %4428 = vmatpush.msra.mxu0 %v1952
  %4429 = vmatpush.msra.mxu0 %v1904
  %4430 = vmatpush.msra.mxu0 %v1856
  %4431 = vmatpush.msra.mxu0 %v1808
  %4432 = vmatpush.msra.mxu0 %v1760
  %4433 = vmatpush.msra.mxu0 %v1712
  %4434 = vmatpush.msra.mxu0 %v1664
  %4435 = vmatpush.msra.mxu0 %v1616
  %4436 = vmatpush.msra.mxu0 %v1568
  %4437 = vmatmul.f32.gmra.mxu0 %v767
  %v4438 = vpop.f32.mrf.mxu0
  %v4439 = vadd.f32 %v3116, %v4438
  %4440 = vdwg.mxu0
  %4441 = vmatpush.msra.mxu0 %v3056
  %4442 = vmatpush.msra.mxu0 %v3008
  %4443 = vmatpush.msra.mxu0 %v2960
  %4444 = vmatpush.msra.mxu0 %v2912
  %4445 = vmatpush.msra.mxu0 %v2864
  %4446 = vmatpush.msra.mxu0 %v2816
  %4447 = vmatpush.msra.mxu0 %v2768
  %4448 = vmatpush.msra.mxu0 %v2720
  %4449 = vmatpush.msra.mxu0 %v2672
  %4450 = vmatpush.msra.mxu0 %v2624
  %4451 = vmatpush.msra.mxu0 %v2576
  %4452 = vmatpush.msra.mxu0 %v2528
  %4453 = vmatpush.msra.mxu0 %v2480
  %4454 = vmatpush.msra.mxu0 %v2432
  %4455 = vmatpush.msra.mxu0 %v2384
  %4456 = vmatpush.msra.mxu0 %v2336
  %4457 = vmatmul.f32.gmra.mxu0 %v768
  %v4458 = vpop.f32.mrf.mxu0
  %v4459 = vadd.f32 %v4439, %v4458
  %4460 = vdwg.mxu0
  %4461 = vmatpush.msra.mxu0 %v2289
  %4462 = vmatpush.msra.mxu0 %v2241
  %4463 = vmatpush.msra.mxu0 %v2193
  %4464 = vmatpush.msra.mxu0 %v2145
  %4465 = vmatpush.msra.mxu0 %v2097
  %4466 = vmatpush.msra.mxu0 %v2049
  %4467 = vmatpush.msra.mxu0 %v2001
  %4468 = vmatpush.msra.mxu0 %v1953
  %4469 = vmatpush.msra.mxu0 %v1905
  %4470 = vmatpush.msra.mxu0 %v1857
  %4471 = vmatpush.msra.mxu0 %v1809
  %4472 = vmatpush.msra.mxu0 %v1761
  %4473 = vmatpush.msra.mxu0 %v1713
  %4474 = vmatpush.msra.mxu0 %v1665
  %4475 = vmatpush.msra.mxu0 %v1617
  %4476 = vmatpush.msra.mxu0 %v1569
  %4477 = vmatmul.f32.gmra.mxu0 %v767
  %v4478 = vpop.f32.mrf.mxu0
  %v4479 = vadd.f32 %v3117, %v4478
  %4480 = vdwg.mxu0
  %4481 = vmatpush.msra.mxu0 %v3057
  %4482 = vmatpush.msra.mxu0 %v3009
  %4483 = vmatpush.msra.mxu0 %v2961
  %4484 = vmatpush.msra.mxu0 %v2913
  %4485 = vmatpush.msra.mxu0 %v2865
  %4486 = vmatpush.msra.mxu0 %v2817
  %4487 = vmatpush.msra.mxu0 %v2769
  %4488 = vmatpush.msra.mxu0 %v2721
  %4489 = vmatpush.msra.mxu0 %v2673
  %4490 = vmatpush.msra.mxu0 %v2625
  %4491 = vmatpush.msra.mxu0 %v2577
  %4492 = vmatpush.msra.mxu0 %v2529
  %4493 = vmatpush.msra.mxu0 %v2481
  %4494 = vmatpush.msra.mxu0 %v2433
  %4495 = vmatpush.msra.mxu0 %v2385
  %4496 = vmatpush.msra.mxu0 %v2337
  %4497 = vmatmul.f32.gmra.mxu0 %v768
  %v4498 = vpop.f32.mrf.mxu0
  %v4499 = vadd.f32 %v4479, %v4498
  %4500 = vdwg.mxu0
  %4501 = vmatpush.msra.mxu0 %v2290
  %4502 = vmatpush.msra.mxu0 %v2242
  %4503 = vmatpush.msra.mxu0 %v2194
  %4504 = vmatpush.msra.mxu0 %v2146
  %4505 = vmatpush.msra.mxu0 %v2098
  %4506 = vmatpush.msra.mxu0 %v2050
  %4507 = vmatpush.msra.mxu0 %v2002
  %4508 = vmatpush.msra.mxu0 %v1954
  %4509 = vmatpush.msra.mxu0 %v1906
  %4510 = vmatpush.msra.mxu0 %v1858
  %4511 = vmatpush.msra.mxu0 %v1810
  %4512 = vmatpush.msra.mxu0 %v1762
  %4513 = vmatpush.msra.mxu0 %v1714
  %4514 = vmatpush.msra.mxu0 %v1666
  %4515 = vmatpush.msra.mxu0 %v1618
  %4516 = vmatpush.msra.mxu0 %v1570
  %4517 = vmatmul.f32.gmra.mxu0 %v767
  %v4518 = vpop.f32.mrf.mxu0
  %v4519 = vadd.f32 %v3118, %v4518
  %4520 = vdwg.mxu0
  %4521 = vmatpush.msra.mxu0 %v3058
  %4522 = vmatpush.msra.mxu0 %v3010
  %4523 = vmatpush.msra.mxu0 %v2962
  %4524 = vmatpush.msra.mxu0 %v2914
  %4525 = vmatpush.msra.mxu0 %v2866
  %4526 = vmatpush.msra.mxu0 %v2818
  %4527 = vmatpush.msra.mxu0 %v2770
  %4528 = vmatpush.msra.mxu0 %v2722
  %4529 = vmatpush.msra.mxu0 %v2674
  %4530 = vmatpush.msra.mxu0 %v2626
  %4531 = vmatpush.msra.mxu0 %v2578
  %4532 = vmatpush.msra.mxu0 %v2530
  %4533 = vmatpush.msra.mxu0 %v2482
  %4534 = vmatpush.msra.mxu0 %v2434
  %4535 = vmatpush.msra.mxu0 %v2386
  %4536 = vmatpush.msra.mxu0 %v2338
  %4537 = vmatmul.f32.gmra.mxu0 %v768
  %v4538 = vpop.f32.mrf.mxu0
  %v4539 = vadd.f32 %v4519, %v4538
  %4540 = vdwg.mxu0
  %4541 = vmatpush.msra.mxu0 %v2291
  %4542 = vmatpush.msra.mxu0 %v2243
  %4543 = vmatpush.msra.mxu0 %v2195
  %4544 = vmatpush.msra.mxu0 %v2147
  %4545 = vmatpush.msra.mxu0 %v2099
  %4546 = vmatpush.msra.mxu0 %v2051
  %4547 = vmatpush.msra.mxu0 %v2003
  %4548 = vmatpush.msra.mxu0 %v1955
  %4549 = vmatpush.msra.mxu0 %v1907
  %4550 = vmatpush.msra.mxu0 %v1859
  %4551 = vmatpush.msra.mxu0 %v1811
  %4552 = vmatpush.msra.mxu0 %v1763
  %4553 = vmatpush.msra.mxu0 %v1715
  %4554 = vmatpush.msra.mxu0 %v1667
  %4555 = vmatpush.msra.mxu0 %v1619
  %4556 = vmatpush.msra.mxu0 %v1571
  %4557 = vmatmul.f32.gmra.mxu0 %v767
  %v4558 = vpop.f32.mrf.mxu0
  %v4559 = vadd.f32 %v3119, %v4558
  %4560 = vdwg.mxu0
  %4561 = vmatpush.msra.mxu0 %v3059
  %4562 = vmatpush.msra.mxu0 %v3011
  %4563 = vmatpush.msra.mxu0 %v2963
  %4564 = vmatpush.msra.mxu0 %v2915
  %4565 = vmatpush.msra.mxu0 %v2867
  %4566 = vmatpush.msra.mxu0 %v2819
  %4567 = vmatpush.msra.mxu0 %v2771
  %4568 = vmatpush.msra.mxu0 %v2723
  %4569 = vmatpush.msra.mxu0 %v2675
  %4570 = vmatpush.msra.mxu0 %v2627
  %4571 = vmatpush.msra.mxu0 %v2579
  %4572 = vmatpush.msra.mxu0 %v2531
  %4573 = vmatpush.msra.mxu0 %v2483
  %4574 = vmatpush.msra.mxu0 %v2435
  %4575 = vmatpush.msra.mxu0 %v2387
  %4576 = vmatpush.msra.mxu0 %v2339
  %4577 = vmatmul.f32.gmra.mxu0 %v768
  %v4578 = vpop.f32.mrf.mxu0
  %v4579 = vadd.f32 %v4559, %v4578
  %4580 = vdwg.mxu0
  %4581 = vmatpush.msra.mxu0 %v2292
  %4582 = vmatpush.msra.mxu0 %v2244
  %4583 = vmatpush.msra.mxu0 %v2196
  %4584 = vmatpush.msra.mxu0 %v2148
  %4585 = vmatpush.msra.mxu0 %v2100
  %4586 = vmatpush.msra.mxu0 %v2052
  %4587 = vmatpush.msra.mxu0 %v2004
  %4588 = vmatpush.msra.mxu0 %v1956
  %4589 = vmatpush.msra.mxu0 %v1908
  %4590 = vmatpush.msra.mxu0 %v1860
  %4591 = vmatpush.msra.mxu0 %v1812
  %4592 = vmatpush.msra.mxu0 %v1764
  %4593 = vmatpush.msra.mxu0 %v1716
  %4594 = vmatpush.msra.mxu0 %v1668
  %4595 = vmatpush.msra.mxu0 %v1620
  %4596 = vmatpush.msra.mxu0 %v1572
  %4597 = vmatmul.f32.gmra.mxu0 %v767
  %v4598 = vpop.f32.mrf.mxu0
  %v4599 = vadd.f32 %v3120, %v4598
  %4600 = vdwg.mxu0
  %4601 = vmatpush.msra.mxu0 %v3060
  %4602 = vmatpush.msra.mxu0 %v3012
  %4603 = vmatpush.msra.mxu0 %v2964
  %4604 = vmatpush.msra.mxu0 %v2916
  %4605 = vmatpush.msra.mxu0 %v2868
  %4606 = vmatpush.msra.mxu0 %v2820
  %4607 = vmatpush.msra.mxu0 %v2772
  %4608 = vmatpush.msra.mxu0 %v2724
  %4609 = vmatpush.msra.mxu0 %v2676
  %4610 = vmatpush.msra.mxu0 %v2628
  %4611 = vmatpush.msra.mxu0 %v2580
  %4612 = vmatpush.msra.mxu0 %v2532
  %4613 = vmatpush.msra.mxu0 %v2484
  %4614 = vmatpush.msra.mxu0 %v2436
  %4615 = vmatpush.msra.mxu0 %v2388
  %4616 = vmatpush.msra.mxu0 %v2340
  %4617 = vmatmul.f32.gmra.mxu0 %v768
  %v4618 = vpop.f32.mrf.mxu0
  %v4619 = vadd.f32 %v4599, %v4618
  %4620 = vdwg.mxu0
  %4621 = vmatpush.msra.mxu0 %v2293
  %4622 = vmatpush.msra.mxu0 %v2245
  %4623 = vmatpush.msra.mxu0 %v2197
  %4624 = vmatpush.msra.mxu0 %v2149
  %4625 = vmatpush.msra.mxu0 %v2101
  %4626 = vmatpush.msra.mxu0 %v2053
  %4627 = vmatpush.msra.mxu0 %v2005
  %4628 = vmatpush.msra.mxu0 %v1957
  %4629 = vmatpush.msra.mxu0 %v1909
  %4630 = vmatpush.msra.mxu0 %v1861
  %4631 = vmatpush.msra.mxu0 %v1813
  %4632 = vmatpush.msra.mxu0 %v1765
  %4633 = vmatpush.msra.mxu0 %v1717
  %4634 = vmatpush.msra.mxu0 %v1669
  %4635 = vmatpush.msra.mxu0 %v1621
  %4636 = vmatpush.msra.mxu0 %v1573
  %4637 = vmatmul.f32.gmra.mxu0 %v767
  %v4638 = vpop.f32.mrf.mxu0
  %v4639 = vadd.f32 %v3121, %v4638
  %4640 = vdwg.mxu0
  %4641 = vmatpush.msra.mxu0 %v3061
  %4642 = vmatpush.msra.mxu0 %v3013
  %4643 = vmatpush.msra.mxu0 %v2965
  %4644 = vmatpush.msra.mxu0 %v2917
  %4645 = vmatpush.msra.mxu0 %v2869
  %4646 = vmatpush.msra.mxu0 %v2821
  %4647 = vmatpush.msra.mxu0 %v2773
  %4648 = vmatpush.msra.mxu0 %v2725
  %4649 = vmatpush.msra.mxu0 %v2677
  %4650 = vmatpush.msra.mxu0 %v2629
  %4651 = vmatpush.msra.mxu0 %v2581
  %4652 = vmatpush.msra.mxu0 %v2533
  %4653 = vmatpush.msra.mxu0 %v2485
  %4654 = vmatpush.msra.mxu0 %v2437
  %4655 = vmatpush.msra.mxu0 %v2389
  %4656 = vmatpush.msra.mxu0 %v2341
  %4657 = vmatmul.f32.gmra.mxu0 %v768
  %v4658 = vpop.f32.mrf.mxu0
  %v4659 = vadd.f32 %v4639, %v4658
  %4660 = vdwg.mxu0
  %4661 = vmatpush.msra.mxu0 %v2294
  %4662 = vmatpush.msra.mxu0 %v2246
  %4663 = vmatpush.msra.mxu0 %v2198
  %4664 = vmatpush.msra.mxu0 %v2150
  %4665 = vmatpush.msra.mxu0 %v2102
  %4666 = vmatpush.msra.mxu0 %v2054
  %4667 = vmatpush.msra.mxu0 %v2006
  %4668 = vmatpush.msra.mxu0 %v1958
  %4669 = vmatpush.msra.mxu0 %v1910
  %4670 = vmatpush.msra.mxu0 %v1862
  %4671 = vmatpush.msra.mxu0 %v1814
  %4672 = vmatpush.msra.mxu0 %v1766
  %4673 = vmatpush.msra.mxu0 %v1718
  %4674 = vmatpush.msra.mxu0 %v1670
  %4675 = vmatpush.msra.mxu0 %v1622
  %4676 = vmatpush.msra.mxu0 %v1574
  %4677 = vmatmul.f32.gmra.mxu0 %v767
  %v4678 = vpop.f32.mrf.mxu0
  %v4679 = vadd.f32 %v3122, %v4678
  %4680 = vdwg.mxu0
  %4681 = vmatpush.msra.mxu0 %v3062
  %4682 = vmatpush.msra.mxu0 %v3014
  %4683 = vmatpush.msra.mxu0 %v2966
  %4684 = vmatpush.msra.mxu0 %v2918
  %4685 = vmatpush.msra.mxu0 %v2870
  %4686 = vmatpush.msra.mxu0 %v2822
  %4687 = vmatpush.msra.mxu0 %v2774
  %4688 = vmatpush.msra.mxu0 %v2726
  %4689 = vmatpush.msra.mxu0 %v2678
  %4690 = vmatpush.msra.mxu0 %v2630
  %4691 = vmatpush.msra.mxu0 %v2582
  %4692 = vmatpush.msra.mxu0 %v2534
  %4693 = vmatpush.msra.mxu0 %v2486
  %4694 = vmatpush.msra.mxu0 %v2438
  %4695 = vmatpush.msra.mxu0 %v2390
  %4696 = vmatpush.msra.mxu0 %v2342
  %4697 = vmatmul.f32.gmra.mxu0 %v768
  %v4698 = vpop.f32.mrf.mxu0
  %v4699 = vadd.f32 %v4679, %v4698
  %4700 = vdwg.mxu0
  %4701 = vmatpush.msra.mxu0 %v2295
  %4702 = vmatpush.msra.mxu0 %v2247
  %4703 = vmatpush.msra.mxu0 %v2199
  %4704 = vmatpush.msra.mxu0 %v2151
  %4705 = vmatpush.msra.mxu0 %v2103
  %4706 = vmatpush.msra.mxu0 %v2055
  %4707 = vmatpush.msra.mxu0 %v2007
  %4708 = vmatpush.msra.mxu0 %v1959
  %4709 = vmatpush.msra.mxu0 %v1911
  %4710 = vmatpush.msra.mxu0 %v1863
  %4711 = vmatpush.msra.mxu0 %v1815
  %4712 = vmatpush.msra.mxu0 %v1767
  %4713 = vmatpush.msra.mxu0 %v1719
  %4714 = vmatpush.msra.mxu0 %v1671
  %4715 = vmatpush.msra.mxu0 %v1623
  %4716 = vmatpush.msra.mxu0 %v1575
  %4717 = vmatmul.f32.gmra.mxu0 %v767
  %v4718 = vpop.f32.mrf.mxu0
  %v4719 = vadd.f32 %v3123, %v4718
  %4720 = vdwg.mxu0
  %4721 = vmatpush.msra.mxu0 %v3063
  %4722 = vmatpush.msra.mxu0 %v3015
  %4723 = vmatpush.msra.mxu0 %v2967
  %4724 = vmatpush.msra.mxu0 %v2919
  %4725 = vmatpush.msra.mxu0 %v2871
  %4726 = vmatpush.msra.mxu0 %v2823
  %4727 = vmatpush.msra.mxu0 %v2775
  %4728 = vmatpush.msra.mxu0 %v2727
  %4729 = vmatpush.msra.mxu0 %v2679
  %4730 = vmatpush.msra.mxu0 %v2631
  %4731 = vmatpush.msra.mxu0 %v2583
  %4732 = vmatpush.msra.mxu0 %v2535
  %4733 = vmatpush.msra.mxu0 %v2487
  %4734 = vmatpush.msra.mxu0 %v2439
  %4735 = vmatpush.msra.mxu0 %v2391
  %4736 = vmatpush.msra.mxu0 %v2343
  %4737 = vmatmul.f32.gmra.mxu0 %v768
  %v4738 = vpop.f32.mrf.mxu0
  %v4739 = vadd.f32 %v4719, %v4738
  %4740 = vdwg.mxu0
  %4741 = vmatpush.msra.mxu0 %v2296
  %4742 = vmatpush.msra.mxu0 %v2248
  %4743 = vmatpush.msra.mxu0 %v2200
  %4744 = vmatpush.msra.mxu0 %v2152
  %4745 = vmatpush.msra.mxu0 %v2104
  %4746 = vmatpush.msra.mxu0 %v2056
  %4747 = vmatpush.msra.mxu0 %v2008
  %4748 = vmatpush.msra.mxu0 %v1960
  %4749 = vmatpush.msra.mxu0 %v1912
  %4750 = vmatpush.msra.mxu0 %v1864
  %4751 = vmatpush.msra.mxu0 %v1816
  %4752 = vmatpush.msra.mxu0 %v1768
  %4753 = vmatpush.msra.mxu0 %v1720
  %4754 = vmatpush.msra.mxu0 %v1672
  %4755 = vmatpush.msra.mxu0 %v1624
  %4756 = vmatpush.msra.mxu0 %v1576
  %4757 = vmatmul.f32.gmra.mxu0 %v767
  %v4758 = vpop.f32.mrf.mxu0
  %v4759 = vadd.f32 %v3124, %v4758
  %4760 = vdwg.mxu0
  %4761 = vmatpush.msra.mxu0 %v3064
  %4762 = vmatpush.msra.mxu0 %v3016
  %4763 = vmatpush.msra.mxu0 %v2968
  %4764 = vmatpush.msra.mxu0 %v2920
  %4765 = vmatpush.msra.mxu0 %v2872
  %4766 = vmatpush.msra.mxu0 %v2824
  %4767 = vmatpush.msra.mxu0 %v2776
  %4768 = vmatpush.msra.mxu0 %v2728
  %4769 = vmatpush.msra.mxu0 %v2680
  %4770 = vmatpush.msra.mxu0 %v2632
  %4771 = vmatpush.msra.mxu0 %v2584
  %4772 = vmatpush.msra.mxu0 %v2536
  %4773 = vmatpush.msra.mxu0 %v2488
  %4774 = vmatpush.msra.mxu0 %v2440
  %4775 = vmatpush.msra.mxu0 %v2392
  %4776 = vmatpush.msra.mxu0 %v2344
  %4777 = vmatmul.f32.gmra.mxu0 %v768
  %v4778 = vpop.f32.mrf.mxu0
  %v4779 = vadd.f32 %v4759, %v4778
  %4780 = vdwg.mxu0
  %4781 = vmatpush.msra.mxu0 %v2297
  %4782 = vmatpush.msra.mxu0 %v2249
  %4783 = vmatpush.msra.mxu0 %v2201
  %4784 = vmatpush.msra.mxu0 %v2153
  %4785 = vmatpush.msra.mxu0 %v2105
  %4786 = vmatpush.msra.mxu0 %v2057
  %4787 = vmatpush.msra.mxu0 %v2009
  %4788 = vmatpush.msra.mxu0 %v1961
  %4789 = vmatpush.msra.mxu0 %v1913
  %4790 = vmatpush.msra.mxu0 %v1865
  %4791 = vmatpush.msra.mxu0 %v1817
  %4792 = vmatpush.msra.mxu0 %v1769
  %4793 = vmatpush.msra.mxu0 %v1721
  %4794 = vmatpush.msra.mxu0 %v1673
  %4795 = vmatpush.msra.mxu0 %v1625
  %4796 = vmatpush.msra.mxu0 %v1577
  %4797 = vmatmul.f32.gmra.mxu0 %v767
  %v4798 = vpop.f32.mrf.mxu0
  %v4799 = vadd.f32 %v3125, %v4798
  %4800 = vdwg.mxu0
  %4801 = vmatpush.msra.mxu0 %v3065
  %4802 = vmatpush.msra.mxu0 %v3017
  %4803 = vmatpush.msra.mxu0 %v2969
  %4804 = vmatpush.msra.mxu0 %v2921
  %4805 = vmatpush.msra.mxu0 %v2873
  %4806 = vmatpush.msra.mxu0 %v2825
  %4807 = vmatpush.msra.mxu0 %v2777
  %4808 = vmatpush.msra.mxu0 %v2729
  %4809 = vmatpush.msra.mxu0 %v2681
  %4810 = vmatpush.msra.mxu0 %v2633
  %4811 = vmatpush.msra.mxu0 %v2585
  %4812 = vmatpush.msra.mxu0 %v2537
  %4813 = vmatpush.msra.mxu0 %v2489
  %4814 = vmatpush.msra.mxu0 %v2441
  %4815 = vmatpush.msra.mxu0 %v2393
  %4816 = vmatpush.msra.mxu0 %v2345
  %4817 = vmatmul.f32.gmra.mxu0 %v768
  %v4818 = vpop.f32.mrf.mxu0
  %v4819 = vadd.f32 %v4799, %v4818
  %4820 = vdwg.mxu0
  %4821 = vmatpush.msra.mxu0 %v2298
  %4822 = vmatpush.msra.mxu0 %v2250
  %4823 = vmatpush.msra.mxu0 %v2202
  %4824 = vmatpush.msra.mxu0 %v2154
  %4825 = vmatpush.msra.mxu0 %v2106
  %4826 = vmatpush.msra.mxu0 %v2058
  %4827 = vmatpush.msra.mxu0 %v2010
  %4828 = vmatpush.msra.mxu0 %v1962
  %4829 = vmatpush.msra.mxu0 %v1914
  %4830 = vmatpush.msra.mxu0 %v1866
  %4831 = vmatpush.msra.mxu0 %v1818
  %4832 = vmatpush.msra.mxu0 %v1770
  %4833 = vmatpush.msra.mxu0 %v1722
  %4834 = vmatpush.msra.mxu0 %v1674
  %4835 = vmatpush.msra.mxu0 %v1626
  %4836 = vmatpush.msra.mxu0 %v1578
  %4837 = vmatmul.f32.gmra.mxu0 %v767
  %v4838 = vpop.f32.mrf.mxu0
  %v4839 = vadd.f32 %v3126, %v4838
  %4840 = vdwg.mxu0
  %4841 = vmatpush.msra.mxu0 %v3066
  %4842 = vmatpush.msra.mxu0 %v3018
  %4843 = vmatpush.msra.mxu0 %v2970
  %4844 = vmatpush.msra.mxu0 %v2922
  %4845 = vmatpush.msra.mxu0 %v2874
  %4846 = vmatpush.msra.mxu0 %v2826
  %4847 = vmatpush.msra.mxu0 %v2778
  %4848 = vmatpush.msra.mxu0 %v2730
  %4849 = vmatpush.msra.mxu0 %v2682
  %4850 = vmatpush.msra.mxu0 %v2634
  %4851 = vmatpush.msra.mxu0 %v2586
  %4852 = vmatpush.msra.mxu0 %v2538
  %4853 = vmatpush.msra.mxu0 %v2490
  %4854 = vmatpush.msra.mxu0 %v2442
  %4855 = vmatpush.msra.mxu0 %v2394
  %4856 = vmatpush.msra.mxu0 %v2346
  %4857 = vmatmul.f32.gmra.mxu0 %v768
  %v4858 = vpop.f32.mrf.mxu0
  %v4859 = vadd.f32 %v4839, %v4858
  %4860 = vdwg.mxu0
  %4861 = vmatpush.msra.mxu0 %v2299
  %4862 = vmatpush.msra.mxu0 %v2251
  %4863 = vmatpush.msra.mxu0 %v2203
  %4864 = vmatpush.msra.mxu0 %v2155
  %4865 = vmatpush.msra.mxu0 %v2107
  %4866 = vmatpush.msra.mxu0 %v2059
  %4867 = vmatpush.msra.mxu0 %v2011
  %4868 = vmatpush.msra.mxu0 %v1963
  %4869 = vmatpush.msra.mxu0 %v1915
  %4870 = vmatpush.msra.mxu0 %v1867
  %4871 = vmatpush.msra.mxu0 %v1819
  %4872 = vmatpush.msra.mxu0 %v1771
  %4873 = vmatpush.msra.mxu0 %v1723
  %4874 = vmatpush.msra.mxu0 %v1675
  %4875 = vmatpush.msra.mxu0 %v1627
  %4876 = vmatpush.msra.mxu0 %v1579
  %4877 = vmatmul.f32.gmra.mxu0 %v767
  %v4878 = vpop.f32.mrf.mxu0
  %v4879 = vadd.f32 %v3127, %v4878
  %4880 = vdwg.mxu0
  %4881 = vmatpush.msra.mxu0 %v3067
  %4882 = vmatpush.msra.mxu0 %v3019
  %4883 = vmatpush.msra.mxu0 %v2971
  %4884 = vmatpush.msra.mxu0 %v2923
  %4885 = vmatpush.msra.mxu0 %v2875
  %4886 = vmatpush.msra.mxu0 %v2827
  %4887 = vmatpush.msra.mxu0 %v2779
  %4888 = vmatpush.msra.mxu0 %v2731
  %4889 = vmatpush.msra.mxu0 %v2683
  %4890 = vmatpush.msra.mxu0 %v2635
  %4891 = vmatpush.msra.mxu0 %v2587
  %4892 = vmatpush.msra.mxu0 %v2539
  %4893 = vmatpush.msra.mxu0 %v2491
  %4894 = vmatpush.msra.mxu0 %v2443
  %4895 = vmatpush.msra.mxu0 %v2395
  %4896 = vmatpush.msra.mxu0 %v2347
  %4897 = vmatmul.f32.gmra.mxu0 %v768
  %v4898 = vpop.f32.mrf.mxu0
  %v4899 = vadd.f32 %v4879, %v4898
  %4900 = vdwg.mxu0
  %4901 = vmatpush.msra.mxu0 %v2300
  %4902 = vmatpush.msra.mxu0 %v2252
  %4903 = vmatpush.msra.mxu0 %v2204
  %4904 = vmatpush.msra.mxu0 %v2156
  %4905 = vmatpush.msra.mxu0 %v2108
  %4906 = vmatpush.msra.mxu0 %v2060
  %4907 = vmatpush.msra.mxu0 %v2012
  %4908 = vmatpush.msra.mxu0 %v1964
  %4909 = vmatpush.msra.mxu0 %v1916
  %4910 = vmatpush.msra.mxu0 %v1868
  %4911 = vmatpush.msra.mxu0 %v1820
  %4912 = vmatpush.msra.mxu0 %v1772
  %4913 = vmatpush.msra.mxu0 %v1724
  %4914 = vmatpush.msra.mxu0 %v1676
  %4915 = vmatpush.msra.mxu0 %v1628
  %4916 = vmatpush.msra.mxu0 %v1580
  %4917 = vmatmul.f32.gmra.mxu0 %v767
  %v4918 = vpop.f32.mrf.mxu0
  %v4919 = vadd.f32 %v3128, %v4918
  %4920 = vdwg.mxu0
  %4921 = vmatpush.msra.mxu0 %v3068
  %4922 = vmatpush.msra.mxu0 %v3020
  %4923 = vmatpush.msra.mxu0 %v2972
  %4924 = vmatpush.msra.mxu0 %v2924
  %4925 = vmatpush.msra.mxu0 %v2876
  %4926 = vmatpush.msra.mxu0 %v2828
  %4927 = vmatpush.msra.mxu0 %v2780
  %4928 = vmatpush.msra.mxu0 %v2732
  %4929 = vmatpush.msra.mxu0 %v2684
  %4930 = vmatpush.msra.mxu0 %v2636
  %4931 = vmatpush.msra.mxu0 %v2588
  %4932 = vmatpush.msra.mxu0 %v2540
  %4933 = vmatpush.msra.mxu0 %v2492
  %4934 = vmatpush.msra.mxu0 %v2444
  %4935 = vmatpush.msra.mxu0 %v2396
  %4936 = vmatpush.msra.mxu0 %v2348
  %4937 = vmatmul.f32.gmra.mxu0 %v768
  %v4938 = vpop.f32.mrf.mxu0
  %v4939 = vadd.f32 %v4919, %v4938
  %4940 = vdwg.mxu0
  %4941 = vmatpush.msra.mxu0 %v2301
  %4942 = vmatpush.msra.mxu0 %v2253
  %4943 = vmatpush.msra.mxu0 %v2205
  %4944 = vmatpush.msra.mxu0 %v2157
  %4945 = vmatpush.msra.mxu0 %v2109
  %4946 = vmatpush.msra.mxu0 %v2061
  %4947 = vmatpush.msra.mxu0 %v2013
  %4948 = vmatpush.msra.mxu0 %v1965
  %4949 = vmatpush.msra.mxu0 %v1917
  %4950 = vmatpush.msra.mxu0 %v1869
  %4951 = vmatpush.msra.mxu0 %v1821
  %4952 = vmatpush.msra.mxu0 %v1773
  %4953 = vmatpush.msra.mxu0 %v1725
  %4954 = vmatpush.msra.mxu0 %v1677
  %4955 = vmatpush.msra.mxu0 %v1629
  %4956 = vmatpush.msra.mxu0 %v1581
  %4957 = vmatmul.f32.gmra.mxu0 %v767
  %v4958 = vpop.f32.mrf.mxu0
  %v4959 = vadd.f32 %v3129, %v4958
  %4960 = vdwg.mxu0
  %4961 = vmatpush.msra.mxu0 %v3069
  %4962 = vmatpush.msra.mxu0 %v3021
  %4963 = vmatpush.msra.mxu0 %v2973
  %4964 = vmatpush.msra.mxu0 %v2925
  %4965 = vmatpush.msra.mxu0 %v2877
  %4966 = vmatpush.msra.mxu0 %v2829
  %4967 = vmatpush.msra.mxu0 %v2781
  %4968 = vmatpush.msra.mxu0 %v2733
  %4969 = vmatpush.msra.mxu0 %v2685
  %4970 = vmatpush.msra.mxu0 %v2637
  %4971 = vmatpush.msra.mxu0 %v2589
  %4972 = vmatpush.msra.mxu0 %v2541
  %4973 = vmatpush.msra.mxu0 %v2493
  %4974 = vmatpush.msra.mxu0 %v2445
  %4975 = vmatpush.msra.mxu0 %v2397
  %4976 = vmatpush.msra.mxu0 %v2349
  %4977 = vmatmul.f32.gmra.mxu0 %v768
  %v4978 = vpop.f32.mrf.mxu0
  %v4979 = vadd.f32 %v4959, %v4978
  %4980 = vdwg.mxu0
  %4981 = vmatpush.msra.mxu0 %v2302
  %4982 = vmatpush.msra.mxu0 %v2254
  %4983 = vmatpush.msra.mxu0 %v2206
  %4984 = vmatpush.msra.mxu0 %v2158
  %4985 = vmatpush.msra.mxu0 %v2110
  %4986 = vmatpush.msra.mxu0 %v2062
  %4987 = vmatpush.msra.mxu0 %v2014
  %4988 = vmatpush.msra.mxu0 %v1966
  %4989 = vmatpush.msra.mxu0 %v1918
  %4990 = vmatpush.msra.mxu0 %v1870
  %4991 = vmatpush.msra.mxu0 %v1822
  %4992 = vmatpush.msra.mxu0 %v1774
  %4993 = vmatpush.msra.mxu0 %v1726
  %4994 = vmatpush.msra.mxu0 %v1678
  %4995 = vmatpush.msra.mxu0 %v1630
  %4996 = vmatpush.msra.mxu0 %v1582
  %4997 = vmatmul.f32.gmra.mxu0 %v767
  %v4998 = vpop.f32.mrf.mxu0
  %v4999 = vadd.f32 %v3130, %v4998
  %5000 = vdwg.mxu0
  %5001 = vmatpush.msra.mxu0 %v3070
  %5002 = vmatpush.msra.mxu0 %v3022
  %5003 = vmatpush.msra.mxu0 %v2974
  %5004 = vmatpush.msra.mxu0 %v2926
  %5005 = vmatpush.msra.mxu0 %v2878
  %5006 = vmatpush.msra.mxu0 %v2830
  %5007 = vmatpush.msra.mxu0 %v2782
  %5008 = vmatpush.msra.mxu0 %v2734
  %5009 = vmatpush.msra.mxu0 %v2686
  %5010 = vmatpush.msra.mxu0 %v2638
  %5011 = vmatpush.msra.mxu0 %v2590
  %5012 = vmatpush.msra.mxu0 %v2542
  %5013 = vmatpush.msra.mxu0 %v2494
  %5014 = vmatpush.msra.mxu0 %v2446
  %5015 = vmatpush.msra.mxu0 %v2398
  %5016 = vmatpush.msra.mxu0 %v2350
  %5017 = vmatmul.f32.gmra.mxu0 %v768
  %v5018 = vpop.f32.mrf.mxu0
  %v5019 = vadd.f32 %v4999, %v5018
  %5020 = vdwg.mxu0
  %5021 = vmatpush.msra.mxu0 %v2303
  %5022 = vmatpush.msra.mxu0 %v2255
  %5023 = vmatpush.msra.mxu0 %v2207
  %5024 = vmatpush.msra.mxu0 %v2159
  %5025 = vmatpush.msra.mxu0 %v2111
  %5026 = vmatpush.msra.mxu0 %v2063
  %5027 = vmatpush.msra.mxu0 %v2015
  %5028 = vmatpush.msra.mxu0 %v1967
  %5029 = vmatpush.msra.mxu0 %v1919
  %5030 = vmatpush.msra.mxu0 %v1871
  %5031 = vmatpush.msra.mxu0 %v1823
  %5032 = vmatpush.msra.mxu0 %v1775
  %5033 = vmatpush.msra.mxu0 %v1727
  %5034 = vmatpush.msra.mxu0 %v1679
  %5035 = vmatpush.msra.mxu0 %v1631
  %5036 = vmatpush.msra.mxu0 %v1583
  %5037 = vmatmul.f32.gmra.mxu0 %v767
  %v5038 = vpop.f32.mrf.mxu0
  %v5039 = vadd.f32 %v3131, %v5038
  %5040 = vdwg.mxu0
  %5041 = vmatpush.msra.mxu0 %v3071
  %5042 = vmatpush.msra.mxu0 %v3023
  %5043 = vmatpush.msra.mxu0 %v2975
  %5044 = vmatpush.msra.mxu0 %v2927
  %5045 = vmatpush.msra.mxu0 %v2879
  %5046 = vmatpush.msra.mxu0 %v2831
  %5047 = vmatpush.msra.mxu0 %v2783
  %5048 = vmatpush.msra.mxu0 %v2735
  %5049 = vmatpush.msra.mxu0 %v2687
  %5050 = vmatpush.msra.mxu0 %v2639
  %5051 = vmatpush.msra.mxu0 %v2591
  %5052 = vmatpush.msra.mxu0 %v2543
  %5053 = vmatpush.msra.mxu0 %v2495
  %5054 = vmatpush.msra.mxu0 %v2447
  %5055 = vmatpush.msra.mxu0 %v2399
  %5056 = vmatpush.msra.mxu0 %v2351
  %5057 = vmatmul.f32.gmra.mxu0 %v768
  %v5058 = vpop.f32.mrf.mxu0
  %v5059 = vadd.f32 %v5039, %v5058
  %5060 = vdwg.mxu0
  %5061 = vmatpush.msra.mxu0 %v2304
  %5062 = vmatpush.msra.mxu0 %v2256
  %5063 = vmatpush.msra.mxu0 %v2208
  %5064 = vmatpush.msra.mxu0 %v2160
  %5065 = vmatpush.msra.mxu0 %v2112
  %5066 = vmatpush.msra.mxu0 %v2064
  %5067 = vmatpush.msra.mxu0 %v2016
  %5068 = vmatpush.msra.mxu0 %v1968
  %5069 = vmatpush.msra.mxu0 %v1920
  %5070 = vmatpush.msra.mxu0 %v1872
  %5071 = vmatpush.msra.mxu0 %v1824
  %5072 = vmatpush.msra.mxu0 %v1776
  %5073 = vmatpush.msra.mxu0 %v1728
  %5074 = vmatpush.msra.mxu0 %v1680
  %5075 = vmatpush.msra.mxu0 %v1632
  %5076 = vmatpush.msra.mxu0 %v1584
  %5077 = vmatmul.f32.gmra.mxu0 %v767
  %v5078 = vpop.f32.mrf.mxu0
  %v5079 = vadd.f32 %v3132, %v5078
  %5080 = vdwg.mxu0
  %5081 = vmatpush.msra.mxu0 %v3072
  %5082 = vmatpush.msra.mxu0 %v3024
  %5083 = vmatpush.msra.mxu0 %v2976
  %5084 = vmatpush.msra.mxu0 %v2928
  %5085 = vmatpush.msra.mxu0 %v2880
  %5086 = vmatpush.msra.mxu0 %v2832
  %5087 = vmatpush.msra.mxu0 %v2784
  %5088 = vmatpush.msra.mxu0 %v2736
  %5089 = vmatpush.msra.mxu0 %v2688
  %5090 = vmatpush.msra.mxu0 %v2640
  %5091 = vmatpush.msra.mxu0 %v2592
  %5092 = vmatpush.msra.mxu0 %v2544
  %5093 = vmatpush.msra.mxu0 %v2496
  %5094 = vmatpush.msra.mxu0 %v2448
  %5095 = vmatpush.msra.mxu0 %v2400
  %5096 = vmatpush.msra.mxu0 %v2352
  %5097 = vmatmul.f32.gmra.mxu0 %v768
  %v5098 = vpop.f32.mrf.mxu0
  %v5099 = vadd.f32 %v5079, %v5098
  %5100 = vdwg.mxu0
  %v5101 = vmax.f32 %v3219, 0.0
  %v5102 = vmax.f32 %v3259, 0.0
  %v5103 = vmax.f32 %v3299, 0.0
  %v5104 = vmax.f32 %v3339, 0.0
  %v5105 = vmax.f32 %v3379, 0.0
  %v5106 = vmax.f32 %v3419, 0.0
  %v5107 = vmax.f32 %v3459, 0.0
  %v5108 = vmax.f32 %v3499, 0.0
  %v5109 = vmax.f32 %v3539, 0.0
  %v5110 = vmax.f32 %v3579, 0.0
  %v5111 = vmax.f32 %v3619, 0.0
  %v5112 = vmax.f32 %v3659, 0.0
  %v5113 = vmax.f32 %v3699, 0.0
  %v5114 = vmax.f32 %v3739, 0.0
  %v5115 = vmax.f32 %v3779, 0.0
  %v5116 = vmax.f32 %v3819, 0.0
  %v5117 = vmax.f32 %v3859, 0.0
  %v5118 = vmax.f32 %v3899, 0.0
  %v5119 = vmax.f32 %v3939, 0.0
  %v5120 = vmax.f32 %v3979, 0.0
  %v5121 = vmax.f32 %v4019, 0.0
  %v5122 = vmax.f32 %v4059, 0.0
  %v5123 = vmax.f32 %v4099, 0.0
  %v5124 = vmax.f32 %v4139, 0.0
  %v5125 = vmax.f32 %v4179, 0.0
  %v5126 = vmax.f32 %v4219, 0.0
  %v5127 = vmax.f32 %v4259, 0.0
  %v5128 = vmax.f32 %v4299, 0.0
  %v5129 = vmax.f32 %v4339, 0.0
  %v5130 = vmax.f32 %v4379, 0.0
  %v5131 = vmax.f32 %v4419, 0.0
  %v5132 = vmax.f32 %v4459, 0.0
  %v5133 = vmax.f32 %v4499, 0.0
  %v5134 = vmax.f32 %v4539, 0.0
  %v5135 = vmax.f32 %v4579, 0.0
  %v5136 = vmax.f32 %v4619, 0.0
  %v5137 = vmax.f32 %v4659, 0.0
  %v5138 = vmax.f32 %v4699, 0.0
  %v5139 = vmax.f32 %v4739, 0.0
  %v5140 = vmax.f32 %v4779, 0.0
  %v5141 = vmax.f32 %v4819, 0.0
  %v5142 = vmax.f32 %v4859, 0.0
  %v5143 = vmax.f32 %v4899, 0.0
  %v5144 = vmax.f32 %v4939, 0.0
  %v5145 = vmax.f32 %v4979, 0.0
  %v5146 = vmax.f32 %v5019, 0.0
  %v5147 = vmax.f32 %v5059, 0.0
  %v5148 = vmax.f32 %v5099, 0.0
  %v5197 = vrot.slane %v5102, 6
  %v5198 = vrot.slane %v5103, 4
  %v5199 = vrot.slane %v5104, 2
  %v5200 = vrot.slane %v5106, 6
  %v5201 = vrot.slane %v5107, 4
  %v5202 = vrot.slane %v5108, 2
  %v5203 = vrot.slane %v5110, 6
  %v5204 = vrot.slane %v5111, 4
  %v5205 = vrot.slane %v5112, 2
  %v5206 = vrot.slane %v5114, 6
  %v5207 = vrot.slane %v5115, 4
  %v5208 = vrot.slane %v5116, 2
  %v5209 = vrot.slane %v5118, 6
  %v5210 = vrot.slane %v5119, 4
  %v5211 = vrot.slane %v5120, 2
  %v5212 = vrot.slane %v5122, 6
  %v5213 = vrot.slane %v5123, 4
  %v5214 = vrot.slane %v5124, 2
  %v5215 = vrot.slane %v5126, 6
  %v5216 = vrot.slane %v5127, 4
  %v5217 = vrot.slane %v5128, 2
  %v5218 = vrot.slane %v5130, 6
  %v5219 = vrot.slane %v5131, 4
  %v5220 = vrot.slane %v5132, 2
  %v5221 = vrot.slane %v5134, 6
  %v5222 = vrot.slane %v5135, 4
  %v5223 = vrot.slane %v5136, 2
  %v5224 = vrot.slane %v5138, 6
  %v5225 = vrot.slane %v5139, 4
  %v5226 = vrot.slane %v5140, 2
  %v5227 = vrot.slane %v5142, 6
  %v5228 = vrot.slane %v5143, 4
  %v5229 = vrot.slane %v5144, 2
  %v5230 = vrot.slane %v5146, 6
  %v5231 = vrot.slane %v5147, 4
  %v5232 = vrot.slane %v5148, 2
  %v5233 = vsel %vm406, %v5101, %v5197
  %vm5234 = vcmask 1045508
  %v5235 = vsel %vm5234, %v5198, %v5199
  %vm5236 = vcmask 1043456
  %v5237 = vsel %vm5236, %v5233, %v5235
  %v5238 = vsel %vm406, %v5105, %v5200
  %v5239 = vsel %vm5234, %v5201, %v5202
  %v5240 = vsel %vm5236, %v5238, %v5239
  %v5241 = vsel %vm406, %v5109, %v5203
  %v5242 = vsel %vm5234, %v5204, %v5205
  %v5243 = vsel %vm5236, %v5241, %v5242
  %v5244 = vsel %vm406, %v5113, %v5206
  %v5245 = vsel %vm5234, %v5207, %v5208
  %v5246 = vsel %vm5236, %v5244, %v5245
  %v5247 = vsel %vm406, %v5117, %v5209
  %v5248 = vsel %vm5234, %v5210, %v5211
  %v5249 = vsel %vm5236, %v5247, %v5248
  %v5250 = vsel %vm406, %v5121, %v5212
  %v5251 = vsel %vm5234, %v5213, %v5214
  %v5252 = vsel %vm5236, %v5250, %v5251
  %v5253 = vsel %vm406, %v5125, %v5215
  %v5254 = vsel %vm5234, %v5216, %v5217
  %v5255 = vsel %vm5236, %v5253, %v5254
  %v5256 = vsel %vm406, %v5129, %v5218
  %v5257 = vsel %vm5234, %v5219, %v5220
  %v5258 = vsel %vm5236, %v5256, %v5257
  %v5259 = vsel %vm406, %v5133, %v5221
  %v5260 = vsel %vm5234, %v5222, %v5223
  %v5261 = vsel %vm5236, %v5259, %v5260
  %v5262 = vsel %vm406, %v5137, %v5224
  %v5263 = vsel %vm5234, %v5225, %v5226
  %v5264 = vsel %vm5236, %v5262, %v5263
  %v5265 = vsel %vm406, %v5141, %v5227
  %v5266 = vsel %vm5234, %v5228, %v5229
  %v5267 = vsel %vm5236, %v5265, %v5266
  %v5268 = vsel %vm406, %v5145, %v5230
  %v5269 = vsel %vm5234, %v5231, %v5232
  %v5270 = vsel %vm5236, %v5268, %v5269
  %5283 = vst [vmem:[%s7] sm:$0xff] %v5237
  %5284 = vst [vmem:[%s7 + $0x8] sm:$0xff] %v5240
  %5285 = vst [vmem:[%s7 + $0x10] sm:$0xff] %v5243
  %5286 = vst [vmem:[%s7 + $0x18] sm:$0xff] %v5246
  %5287 = vst [vmem:[%s7 + $0x20] sm:$0xff] %v5249
  %5288 = vst [vmem:[%s7 + $0x28] sm:$0xff] %v5252
  %5289 = vst [vmem:[%s7 + $0x30] sm:$0xff] %v5255
  %5290 = vst [vmem:[%s7 + $0x38] sm:$0xff] %v5258
  %5291 = vst [vmem:[%s7 + $0x40] sm:$0xff] %v5261
  %5292 = vst [vmem:[%s7 + $0x48] sm:$0xff] %v5264
  %5293 = vst [vmem:[%s7 + $0x50] sm:$0xff] %v5267
  %5294 = vst [vmem:[%s7 + $0x58] sm:$0xff] %v5270
  // Predicated region
  $region30: #{model_forward.3} parent=0 // pred_check
    _
  $region31: #{model_forward.3} parent=0 // pred_check_branch
    %5296 = sbr.rel (0) target = $region33
  $region32: #{model_forward.3} parent=0 // pred_region
    _
  $region33: #{model_forward.3} parent=0 // pred_fallthru
    _
  // Predicated region
  $region34: #{model_forward.3} parent=0 // pred_check
    _
  $region35: #{model_forward.3} parent=0 // pred_check_branch
    %5298 = sbr.rel (0) target = $region37
  $region36: #{model_forward.3} parent=0 // pred_region
    _
  $region37: #{model_forward.3} parent=0 // pred_fallthru
    _

</llo_original>
